<compile_context>
chip_gen: v5e
topology: v5e:2x2
jax: 0.10.0
libtpu: 0.0.40
codegen_flags: <defaults>
</compile_context>

<pallas_src>
import functools
import math

import jax
import jax.numpy as jnp
from jax.experimental import pallas as pl
from jax.experimental.pallas import tpu as pltpu

# ----------------------------------------------------------------------------
# Architecture config (static Python, never traced)
# ----------------------------------------------------------------------------
STEM_CH = 16
SCALE = 4
EXPANSION = 2
# (planes, num_blocks, stride) per stage -- block counts follow [3, 4, 23, 3]
STAGES = ((16, 3, 1), (32, 4, 2), (64, 23, 2), (64, 3, 2))
DEC_FEAT = 32
DEC_RES_BLOCKS = 18

VMEM_LIMIT_BYTES = 32 * 1024 * 1024   # safe on v5e/v6e (128 MiB) and v7x (64 MiB)


def _round_up(x, m):
    return (x + m - 1) // m * m


def _largest_tile(padded_dim, candidates):
    """Largest candidate tile that evenly divides the padded dim."""
    for c in candidates:
        if padded_dim % c == 0:
            return c
    return candidates[-1]


# ----------------------------------------------------------------------------
# Pallas kernels: tiled matmul with f32 accumulator and fused epilogue
#   (bias add [+ residual add] [+ ReLU])
# ----------------------------------------------------------------------------
def _mm_kernel(a_ref, w_ref, b_ref, o_ref, acc_ref, *, relu):
    @pl.when(pl.program_id(2) == 0)
    def _():
        acc_ref[...] = jnp.zeros_like(acc_ref)

    acc_ref[...] += jnp.dot(a_ref[...], w_ref[...],
                            preferred_element_type=jnp.float32)

    @pl.when(pl.program_id(2) == pl.num_programs(2) - 1)
    def _():
        out = acc_ref[...] + b_ref[...]
        if relu:
            out = jnp.maximum(out, 0.0)
        o_ref[...] = out.astype(o_ref.dtype)


def _mm_res_kernel(a_ref, w_ref, b_ref, r_ref, o_ref, acc_ref, *, relu):
    @pl.when(pl.program_id(2) == 0)
    def _():
        acc_ref[...] = jnp.zeros_like(acc_ref)

    acc_ref[...] += jnp.dot(a_ref[...], w_ref[...],
                            preferred_element_type=jnp.float32)

    @pl.when(pl.program_id(2) == pl.num_programs(2) - 1)
    def _():
        out = acc_ref[...] + b_ref[...] + r_ref[...]
        if relu:
            out = jnp.maximum(out, 0.0)
        o_ref[...] = out.astype(o_ref.dtype)


def matmul_bias(a, w, b, residual=None, relu=False):
    """a: [M, K] f32; w: [K, N]; b: [N] f32; residual: [M, N] f32 or None."""
    M, K = a.shape
    _, N = w.shape

    # MXU/vreg-friendly padded extents.
    Kp = _round_up(K, 128)
    Np = _round_up(N, 128)
    Mp = _round_up(M, 8)

    # Tile selection.  Caps keep the double-buffered working set ~4 MiB, which
    # fits every generation (v7x has only 64 MiB VMEM); tn up to 256 matches
    # the v6e/v7x 256-wide MXU and is still fine on v5e's 128-wide MXU.
    tk = _largest_tile(Kp, (512, 384, 256, 128))
    tn = _largest_tile(Np, (256, 128))
    tm = min(512, Mp)
    Mp = _round_up(Mp, tm)
    grid = (Mp // tm, Np // tn, Kp // tk)

    # bf16 operands for the MXU; accumulation and epilogue stay in f32.
    a_p = jnp.pad(a.astype(jnp.bfloat16), ((0, Mp - M), (0, Kp - K)))
    w_p = jnp.pad(w.astype(jnp.bfloat16), ((0, Kp - K), (0, Np - N)))
    b_p = jnp.pad(b.astype(jnp.float32).reshape(1, N), ((0, 0), (0, Np - N)))

    a_spec = pl.BlockSpec((tm, tk), lambda i, j, k: (i, k))
    w_spec = pl.BlockSpec((tk, tn), lambda i, j, k: (k, j))
    b_spec = pl.BlockSpec((1, tn), lambda i, j, k: (0, j))
    o_spec = pl.BlockSpec((tm, tn), lambda i, j, k: (i, j))

    n_res = 1 if residual is not None else 0
    cost = pl.CostEstimate(
        flops=2 * Mp * Np * Kp,
        transcendentals=0,
        bytes_accessed=(Mp * Kp + Kp * Np) * 2 + Np * 4
        + (1 + n_res) * Mp * Np * 4,
    )
    cparams = pltpu.CompilerParams(
        dimension_semantics=("parallel", "parallel", "arbitrary"),
        vmem_limit_bytes=VMEM_LIMIT_BYTES,
    )
    out_shape = jax.ShapeDtypeStruct((Mp, Np), jnp.float32)
    scratch = [pltpu.VMEM((tm, tn), jnp.float32)]

    if residual is None:
        out = pl.pallas_call(
            functools.partial(_mm_kernel, relu=relu),
            out_shape=out_shape,
            grid_spec=pltpu.PrefetchScalarGridSpec(
                num_scalar_prefetch=0,
                grid=grid,
                in_specs=[a_spec, w_spec, b_spec],
                out_specs=o_spec,
                scratch_shapes=scratch),
            compiler_params=cparams,
            cost_estimate=cost,
        )(a_p, w_p, b_p)
    else:
        r_p = jnp.pad(residual.astype(jnp.float32), ((0, Mp - M), (0, Np - N)))
        r_spec = pl.BlockSpec((tm, tn), lambda i, j, k: (i, j))
        out = pl.pallas_call(
            functools.partial(_mm_res_kernel, relu=relu),
            out_shape=out_shape,
            grid_spec=pltpu.PrefetchScalarGridSpec(
                num_scalar_prefetch=0,
                grid=grid,
                in_specs=[a_spec, w_spec, b_spec, r_spec],
                out_specs=o_spec,
                scratch_shapes=scratch),
            compiler_params=cparams,
            cost_estimate=cost,
        )(a_p, w_p, b_p, r_p)
    return out[:M, :N]


# ----------------------------------------------------------------------------
# Convolution wrapper (im2col glue + Pallas matmul hot path)
# ----------------------------------------------------------------------------
def conv2d(x, p, *, stride=1, padding=None, relu=False, residual=None):
    """x: [N, H, W, Cin] NHWC f32; p: {'w': [kh,kw,Cin,Cout] bf16, 'b': [Cout] f32}."""
    w, b = p["w"], p["b"]
    kh, kw, cin, cout = w.shape
    if padding is None:
        padding = kh // 2
    n, h, wd, _ = x.shape
    xp = jnp.pad(x, ((0, 0), (padding, padding), (padding, padding), (0, 0)))
    ho = (h + 2 * padding - kh) // stride + 1
    wo = (wd + 2 * padding - kw) // stride + 1

    # TODO(synk): implicit GEMM (in-kernel tap loop) to avoid the kh*kw im2col
    # blow-up in HBM.
    cols = []
    for i in range(kh):
        for j in range(kw):
            cols.append(xp[:, i:i + stride * ho:stride, j:j + stride * wo:stride, :])
    a = jnp.concatenate(cols, axis=-1).reshape(n * ho * wo, kh * kw * cin)
    wm = w.reshape(kh * kw * cin, cout)
    r = None if residual is None else residual.reshape(n * ho * wo, cout)

    out = matmul_bias(a, wm, b, residual=r, relu=relu)
    return out.reshape(n, ho, wo, cout)


def avg_pool3x3(x, stride):
    """AvgPool2d(kernel=3, stride, padding=1), count_include_pad=True. (glue)"""
    n, h, wd, c = x.shape
    xp = jnp.pad(x, ((0, 0), (1, 1), (1, 1), (0, 0)))
    ho = (h + 2 - 3) // stride + 1
    wo = (wd + 2 - 3) // stride + 1
    acc = jnp.zeros((n, ho, wo, c), jnp.float32)
    for i in range(3):
        for j in range(3):
            acc = acc + xp[:, i:i + stride * ho:stride, j:j + stride * wo:stride, :]
    return acc / 9.0


# ----------------------------------------------------------------------------
# Deterministic parameter initialization (weights stored in bf16 once)
# ----------------------------------------------------------------------------
class ParamGen:
    def __init__(self, seed=0):
        self.key = jax.random.PRNGKey(seed)
        self.count = 0

    def conv(self, kh, kw, cin, cout):
        self.count += 1
        k = jax.random.fold_in(self.key, self.count)
        fan_in = kh * kw * cin
        w = jax.random.normal(k, (kh, kw, cin, cout), jnp.float32) / math.sqrt(fan_in)
        b = jnp.zeros((cout,), jnp.float32)
        return {"w": w.astype(jnp.bfloat16), "b": b}


def init_bottle2neck(pg, inplanes, planes, downsample):
    width = planes // SCALE
    return {
        "conv1": pg.conv(1, 1, inplanes, width * SCALE),
        "convs": [pg.conv(3, 3, width, width) for _ in range(SCALE - 1)],
        "conv3": pg.conv(1, 1, width * SCALE, planes * EXPANSION),
        "downsample": pg.conv(1, 1, inplanes, planes * EXPANSION) if downsample else None,
    }


def init_params(seed=0):
    pg = ParamGen(seed)
    enc = {"stem": pg.conv(3, 3, 3, STEM_CH), "layers": []}
    inplanes = STEM_CH
    for planes, blocks, stride in STAGES:
        stage = []
        for bi in range(blocks):
            s = stride if bi == 0 else 1
            need_ds = (bi == 0) and (s != 1 or inplanes != planes * EXPANSION)
            stage.append(init_bottle2neck(pg, inplanes, planes, need_ds))
            inplanes = planes * EXPANSION
        enc["layers"].append(stage)
    enc_out_ch = inplanes

    dec = {
        "conv_e": pg.conv(1, 1, enc_out_ch, DEC_FEAT),
        "conv_in": pg.conv(3, 3, 3, DEC_FEAT),
        "res": [{"c1": pg.conv(3, 3, DEC_FEAT, DEC_FEAT),
                 "c2": pg.conv(3, 3, DEC_FEAT, DEC_FEAT)}
                for _ in range(DEC_RES_BLOCKS)],
        "conv_out": pg.conv(3, 3, DEC_FEAT, 3),
    }
    return {"encoder": enc, "decoder": dec}


# ----------------------------------------------------------------------------
# Forward pass
# ----------------------------------------------------------------------------
def bottle2neck_fwd(p, x, *, stride, stype):
    out = conv2d(x, p["conv1"], relu=True)  # 1x1 reduce
    width = p["convs"][0]["w"].shape[2]
    scale = len(p["convs"]) + 1
    spx = [out[..., i * width:(i + 1) * width] for i in range(scale)]

    # TODO(synk): group the independent branch convs of "stage"-type blocks
    # into one block-diagonal matmul ("normal" blocks are serially dependent).
    outs = []
    sp = None
    for i in range(scale - 1):
        if i == 0 or stype == "stage":
            sp = spx[i]
        else:
            sp = sp + spx[i]
        sp = conv2d(sp, p["convs"][i], stride=stride, relu=True)
        outs.append(sp)
    if stype == "normal":
        outs.append(spx[scale - 1])
    else:
        outs.append(avg_pool3x3(spx[scale - 1], stride))
    out = jnp.concatenate(outs, axis=-1)

    if p["downsample"] is not None:
        res = conv2d(x, p["downsample"], stride=stride, relu=False)
    else:
        res = x
    # conv3 (1x1 expand) fused with skip-add + relu inside the Pallas kernel
    return conv2d(out, p["conv3"], relu=True, residual=res)


def encoder_fwd(p, x):
    h = conv2d(x, p["stem"], relu=True)
    for (planes, blocks, stride), stage in zip(STAGES, p["layers"]):
        for bi, blk in enumerate(stage):
            s = stride if bi == 0 else 1
            stype = "stage" if bi == 0 else "normal"
            h = bottle2neck_fwd(blk, h, stride=s, stype=stype)
    return h


def decoder_fwd(p, x, x_e):
    n, h, w, _ = x.shape
    e = conv2d(x_e, p["conv_e"], relu=True)                   # 1x1 project
    fh, fw = h // e.shape[1], w // e.shape[2]
    e_up = jnp.repeat(jnp.repeat(e, fh, axis=1), fw, axis=2)  # nearest upsample
    feat = conv2d(x, p["conv_in"], relu=True, residual=e_up)  # fused feature fusion
    # TODO(synk): fuse c1+ReLU+c2+skip of each res block into one pallas_call.
    for blk in p["res"]:
        hid = conv2d(feat, blk["c1"], relu=True)
        feat = conv2d(hid, blk["c2"], relu=False, residual=feat)  # fused skip add
    return conv2d(feat, p["conv_out"], relu=False, residual=x)    # global image skip


@jax.jit
def syn_model_forward(params, x_nchw):
    x = jnp.transpose(x_nchw, (0, 2, 3, 1)).astype(jnp.float32)  # NCHW -> NHWC
    x_e = encoder_fwd(params["encoder"], x)
    out = decoder_fwd(params["decoder"], x, x_e)
    return jnp.transpose(out, (0, 3, 1, 2))                      # NHWC -> NCHW


# ----------------------------------------------------------------------------
if __name__ == "__main__":
    params = init_params(seed=0)
    key = jax.random.PRNGKey(0)
    x = jax.random.normal(key, (2, 3, 16, 16), jnp.float32)  # NCHW, like PyTorch

    out = syn_model_forward(params, x)
    out = jax.block_until_ready(out)

    assert out.shape == x.shape, (out.shape, x.shape)
    assert bool(jnp.all(jnp.isfinite(out)))
    print("KERNEL_OK")
</pallas_src>

<mosaic_0001>
module attributes {stable_mosaic.version = 11 : i64} {
  func.func @_mm_kernel(%arg0: i32, %arg1: i32, %arg2: i32, %arg3: memref<512x128xbf16, #tpu.memory_space<vmem>>, %arg4: memref<128x128xbf16, #tpu.memory_space<vmem>>, %arg5: memref<1x128xf32, #tpu.memory_space<vmem>>, %arg6: memref<512x128xf32, #tpu.memory_space<vmem>>, %arg7: memref<512x128xf32, #tpu.memory_space<vmem>>) attributes {dimension_semantics = [#tpu.dimension_semantics<parallel>, #tpu.dimension_semantics<parallel>, #tpu.dimension_semantics<arbitrary>], iteration_bounds = array<i64: 1, 1, 1>, scalar_prefetch = 0 : i64, scratch_operands = 1 : i64, tpu.core_type = #tpu.core_type<tc>, window_params = [{transform_indices = @transform_0, window_bounds = array<i64: 512, 128>}, {transform_indices = @transform_1, window_bounds = array<i64: 128, 128>}, {transform_indices = @transform_2, window_bounds = array<i64: 1, 128>}, {transform_indices = @transform_3, window_bounds = array<i64: 512, 128>}]} {
    %c0_i32 = arith.constant 0 : i32
    %0 = arith.cmpi eq, %arg2, %c0_i32 : i32
    %1 = arith.extui %0 : i1 to i32
    %c0_i32_0 = arith.constant 0 : i32
    %2 = arith.cmpi ne, %1, %c0_i32_0 : i32
    scf.if %2 {
      %cst_10 = arith.constant 0.000000e+00 : f32
      %12 = vector.broadcast %cst_10 : f32 to vector<512x128xf32>
      %c0_11 = arith.constant 0 : index
      %c0_12 = arith.constant 0 : index
      %13 = vector.load %arg7[%c0_11, %c0_12] : memref<512x128xf32, #tpu.memory_space<vmem>>, vector<512x128xf32>
      tpu.vector_store %arg7[%c0_11, %c0_12], %12 {strides = array<i32>} : memref<512x128xf32, #tpu.memory_space<vmem>>, vector<512x128xf32>,
    } else {
    }
    %c0 = arith.constant 0 : index
    %c0_1 = arith.constant 0 : index
    %3 = vector.load %arg7[%c0, %c0_1] : memref<512x128xf32, #tpu.memory_space<vmem>>, vector<512x128xf32>
    %c0_2 = arith.constant 0 : index
    %c0_3 = arith.constant 0 : index
    %4 = vector.load %arg3[%c0_2, %c0_3] : memref<512x128xbf16, #tpu.memory_space<vmem>>, vector<512x128xbf16>
    %c0_4 = arith.constant 0 : index
    %c0_5 = arith.constant 0 : index
    %5 = vector.load %arg4[%c0_4, %c0_5] : memref<128x128xbf16, #tpu.memory_space<vmem>>, vector<128x128xbf16>
    %cst = arith.constant dense<0.000000e+00> : vector<512x128xf32>
    %6 = tpu.matmul %4, %5, %cst {dimension_numbers = #tpu.dot_dimension_numbers<[1], [0], [0], [1], [0, 0, 1, 1], [], []>} : vector<512x128xbf16>, vector<128x128xbf16>, vector<512x128xf32> -> vector<512x128xf32>
    %7 = arith.addf %3, %6 : vector<512x128xf32>
    %c0_6 = arith.constant 0 : index
    %c0_7 = arith.constant 0 : index
    %8 = vector.load %arg7[%c0_6, %c0_7] : memref<512x128xf32, #tpu.memory_space<vmem>>, vector<512x128xf32>
    tpu.vector_store %arg7[%c0_6, %c0_7], %7 {strides = array<i32>} : memref<512x128xf32, #tpu.memory_space<vmem>>, vector<512x128xf32>,
    %c0_i32_8 = arith.constant 0 : i32
    %9 = arith.cmpi eq, %arg2, %c0_i32_8 : i32
    %10 = arith.extui %9 : i1 to i32
    %c0_i32_9 = arith.constant 0 : i32
    %11 = arith.cmpi ne, %10, %c0_i32_9 : i32
    scf.if %11 {
      %c0_10 = arith.constant 0 : index
      %c0_11 = arith.constant 0 : index
      %12 = vector.load %arg7[%c0_10, %c0_11] : memref<512x128xf32, #tpu.memory_space<vmem>>, vector<512x128xf32>
      %c0_12 = arith.constant 0 : index
      %c0_13 = arith.constant 0 : index
      %13 = vector.load %arg5[%c0_12, %c0_13] : memref<1x128xf32, #tpu.memory_space<vmem>>, vector<1x128xf32>
      %14 = vector.broadcast %13 : vector<1x128xf32> to vector<512x128xf32>
      %15 = arith.addf %12, %14 : vector<512x128xf32>
      %cst_14 = arith.constant 0.000000e+00 : f32
      %16 = vector.broadcast %cst_14 : f32 to vector<512x128xf32>
      %17 = arith.maximumf %15, %16 : vector<512x128xf32>
      %c0_15 = arith.constant 0 : index
      %c0_16 = arith.constant 0 : index
      %18 = vector.load %arg6[%c0_15, %c0_16] : memref<512x128xf32, #tpu.memory_space<vmem>>, vector<512x128xf32>
      tpu.vector_store %arg6[%c0_15, %c0_16], %17 {strides = array<i32>} : memref<512x128xf32, #tpu.memory_space<vmem>>, vector<512x128xf32>,
    } else {
    }
    return
  }
  func.func @transform_0(%arg0: i32, %arg1: i32, %arg2: i32) -> (i32, i32) {
    %c0_i32 = arith.constant 0 : i32
    return %arg0, %arg2 : i32, i32
  }
  func.func @transform_1(%arg0: i32, %arg1: i32, %arg2: i32) -> (i32, i32) {
    %c0_i32 = arith.constant 0 : i32
    return %arg2, %arg1 : i32, i32
  }
  func.func @transform_2(%arg0: i32, %arg1: i32, %arg2: i32) -> (i32, i32) {
    %c0_i32 = arith.constant 0 : i32
    %c0_i32_0 = arith.constant 0 : i32
    return %c0_i32, %arg1 : i32, i32
  }
  func.func @transform_3(%arg0: i32, %arg1: i32, %arg2: i32) -> (i32, i32) {
    %c0_i32 = arith.constant 0 : i32
    return %arg0, %arg1 : i32, i32
  }
}

module attributes {stable_mosaic.version = 11 : i64} {
  func.func @_mm_kernel(%arg0: i32, %arg1: i32, %arg2: i32, %arg3: memref<512x128xbf16, #tpu.memory_space<vmem>>, %arg4: memref<128x128xbf16, #tpu.memory_space<vmem>>, %arg5: memref<1x128xf32, #tpu.memory_space<vmem>>, %arg6: memref<512x128xf32, #tpu.memory_space<vmem>>, %arg7: memref<512x128xf32, #tpu.memory_space<vmem>>) attributes {dimension_semantics = [#tpu.dimension_semantics<parallel>, #tpu.dimension_semantics<parallel>, #tpu.dimension_semantics<arbitrary>], iteration_bounds = array<i64: 1, 1, 1>, scalar_prefetch = 0 : i64, scratch_operands = 1 : i64, tpu.core_type = #tpu.core_type<tc>, window_params = [{transform_indices = @transform_0, window_bounds = array<i64: 512, 128>}, {transform_indices = @transform_1, window_bounds = array<i64: 128, 128>}, {transform_indices = @transform_2, window_bounds = array<i64: 1, 128>}, {transform_indices = @transform_3, window_bounds = array<i64: 512, 128>}]} {
    %c0_i32 = arith.constant 0 : i32
    %0 = arith.cmpi eq, %arg2, %c0_i32 : i32
    %1 = arith.extui %0 : i1 to i32
    %c0_i32_0 = arith.constant 0 : i32
    %2 = arith.cmpi ne, %1, %c0_i32_0 : i32
    scf.if %2 {
      %cst_10 = arith.constant 0.000000e+00 : f32
      %12 = vector.broadcast %cst_10 : f32 to vector<512x128xf32>
      %c0_11 = arith.constant 0 : index
      %c0_12 = arith.constant 0 : index
      %13 = vector.load %arg7[%c0_11, %c0_12] : memref<512x128xf32, #tpu.memory_space<vmem>>, vector<512x128xf32>
      tpu.vector_store %arg7[%c0_11, %c0_12], %12 {strides = array<i32>} : memref<512x128xf32, #tpu.memory_space<vmem>>, vector<512x128xf32>,
    } else {
    }
    %c0 = arith.constant 0 : index
    %c0_1 = arith.constant 0 : index
    %3 = vector.load %arg7[%c0, %c0_1] : memref<512x128xf32, #tpu.memory_space<vmem>>, vector<512x128xf32>
    %c0_2 = arith.constant 0 : index
    %c0_3 = arith.constant 0 : index
    %4 = vector.load %arg3[%c0_2, %c0_3] : memref<512x128xbf16, #tpu.memory_space<vmem>>, vector<512x128xbf16>
    %c0_4 = arith.constant 0 : index
    %c0_5 = arith.constant 0 : index
    %5 = vector.load %arg4[%c0_4, %c0_5] : memref<128x128xbf16, #tpu.memory_space<vmem>>, vector<128x128xbf16>
    %cst = arith.constant dense<0.000000e+00> : vector<512x128xf32>
    %6 = tpu.matmul %4, %5, %cst {dimension_numbers = #tpu.dot_dimension_numbers<[1], [0], [0], [1], [0, 0, 1, 1], [], []>} : vector<512x128xbf16>, vector<128x128xbf16>, vector<512x128xf32> -> vector<512x128xf32>
    %7 = arith.addf %3, %6 : vector<512x128xf32>
    %c0_6 = arith.constant 0 : index
    %c0_7 = arith.constant 0 : index
    %8 = vector.load %arg7[%c0_6, %c0_7] : memref<512x128xf32, #tpu.memory_space<vmem>>, vector<512x128xf32>
    tpu.vector_store %arg7[%c0_6, %c0_7], %7 {strides = array<i32>} : memref<512x128xf32, #tpu.memory_space<vmem>>, vector<512x128xf32>,
    %c0_i32_8 = arith.constant 0 : i32
    %9 = arith.cmpi eq, %arg2, %c0_i32_8 : i32
    %10 = arith.extui %9 : i1 to i32
    %c0_i32_9 = arith.constant 0 : i32
    %11 = arith.cmpi ne, %10, %c0_i32_9 : i32
    scf.if %11 {
      %c0_10 = arith.constant 0 : index
      %c0_11 = arith.constant 0 : index
      %12 = vector.load %arg7[%c0_10, %c0_11] : memref<512x128xf32, #tpu.memory_space<vmem>>, vector<512x128xf32>
      %c0_12 = arith.constant 0 : index
      %c0_13 = arith.constant 0 : index
      %13 = vector.load %arg5[%c0_12, %c0_13] : memref<1x128xf32, #tpu.memory_space<vmem>>, vector<1x128xf32>
      %14 = vector.broadcast %13 : vector<1x128xf32> to vector<512x128xf32>
      %15 = arith.addf %12, %14 : vector<512x128xf32>
      %c0_14 = arith.constant 0 : index
      %c0_15 = arith.constant 0 : index
      %16 = vector.load %arg6[%c0_14, %c0_15] : memref<512x128xf32, #tpu.memory_space<vmem>>, vector<512x128xf32>
      tpu.vector_store %arg6[%c0_14, %c0_15], %15 {strides = array<i32>} : memref<512x128xf32, #tpu.memory_space<vmem>>, vector<512x128xf32>,
    } else {
    }
    return
  }
  func.func @transform_0(%arg0: i32, %arg1: i32, %arg2: i32) -> (i32, i32) {
    %c0_i32 = arith.constant 0 : i32
    return %arg0, %arg2 : i32, i32
  }
  func.func @transform_1(%arg0: i32, %arg1: i32, %arg2: i32) -> (i32, i32) {
    %c0_i32 = arith.constant 0 : i32
    return %arg2, %arg1 : i32, i32
  }
  func.func @transform_2(%arg0: i32, %arg1: i32, %arg2: i32) -> (i32, i32) {
    %c0_i32 = arith.constant 0 : i32
    %c0_i32_0 = arith.constant 0 : i32
    return %c0_i32, %arg1 : i32, i32
  }
  func.func @transform_3(%arg0: i32, %arg1: i32, %arg2: i32) -> (i32, i32) {
    %c0_i32 = arith.constant 0 : i32
    return %arg0, %arg1 : i32, i32
  }
}

module attributes {stable_mosaic.version = 11 : i64} {
  func.func @_mm_res_kernel(%arg0: i32, %arg1: i32, %arg2: i32, %arg3: memref<512x128xbf16, #tpu.memory_space<vmem>>, %arg4: memref<128x128xbf16, #tpu.memory_space<vmem>>, %arg5: memref<1x128xf32, #tpu.memory_space<vmem>>, %arg6: memref<512x128xf32, #tpu.memory_space<vmem>>, %arg7: memref<512x128xf32, #tpu.memory_space<vmem>>, %arg8: memref<512x128xf32, #tpu.memory_space<vmem>>) attributes {dimension_semantics = [#tpu.dimension_semantics<parallel>, #tpu.dimension_semantics<parallel>, #tpu.dimension_semantics<arbitrary>], iteration_bounds = array<i64: 1, 1, 1>, scalar_prefetch = 0 : i64, scratch_operands = 1 : i64, tpu.core_type = #tpu.core_type<tc>, window_params = [{transform_indices = @transform_0, window_bounds = array<i64: 512, 128>}, {transform_indices = @transform_1, window_bounds = array<i64: 128, 128>}, {transform_indices = @transform_2, window_bounds = array<i64: 1, 128>}, {transform_indices = @transform_3, window_bounds = array<i64: 512, 128>}, {transform_indices = @transform_4, window_bounds = array<i64: 512, 128>}]} {
    %c0_i32 = arith.constant 0 : i32
    %0 = arith.cmpi eq, %arg2, %c0_i32 : i32
    %1 = arith.extui %0 : i1 to i32
    %c0_i32_0 = arith.constant 0 : i32
    %2 = arith.cmpi ne, %1, %c0_i32_0 : i32
    scf.if %2 {
      %cst_10 = arith.constant 0.000000e+00 : f32
      %12 = vector.broadcast %cst_10 : f32 to vector<512x128xf32>
      %c0_11 = arith.constant 0 : index
      %c0_12 = arith.constant 0 : index
      %13 = vector.load %arg8[%c0_11, %c0_12] : memref<512x128xf32, #tpu.memory_space<vmem>>, vector<512x128xf32>
      tpu.vector_store %arg8[%c0_11, %c0_12], %12 {strides = array<i32>} : memref<512x128xf32, #tpu.memory_space<vmem>>, vector<512x128xf32>,
    } else {
    }
    %c0 = arith.constant 0 : index
    %c0_1 = arith.constant 0 : index
    %3 = vector.load %arg8[%c0, %c0_1] : memref<512x128xf32, #tpu.memory_space<vmem>>, vector<512x128xf32>
    %c0_2 = arith.constant 0 : index
    %c0_3 = arith.constant 0 : index
    %4 = vector.load %arg3[%c0_2, %c0_3] : memref<512x128xbf16, #tpu.memory_space<vmem>>, vector<512x128xbf16>
    %c0_4 = arith.constant 0 : index
    %c0_5 = arith.constant 0 : index
    %5 = vector.load %arg4[%c0_4, %c0_5] : memref<128x128xbf16, #tpu.memory_space<vmem>>, vector<128x128xbf16>
    %cst = arith.constant dense<0.000000e+00> : vector<512x128xf32>
    %6 = tpu.matmul %4, %5, %cst {dimension_numbers = #tpu.dot_dimension_numbers<[1], [0], [0], [1], [0, 0, 1, 1], [], []>} : vector<512x128xbf16>, vector<128x128xbf16>, vector<512x128xf32> -> vector<512x128xf32>
    %7 = arith.addf %3, %6 : vector<512x128xf32>
    %c0_6 = arith.constant 0 : index
    %c0_7 = arith.constant 0 : index
    %8 = vector.load %arg8[%c0_6, %c0_7] : memref<512x128xf32, #tpu.memory_space<vmem>>, vector<512x128xf32>
    tpu.vector_store %arg8[%c0_6, %c0_7], %7 {strides = array<i32>} : memref<512x128xf32, #tpu.memory_space<vmem>>, vector<512x128xf32>,
    %c0_i32_8 = arith.constant 0 : i32
    %9 = arith.cmpi eq, %arg2, %c0_i32_8 : i32
    %10 = arith.extui %9 : i1 to i32
    %c0_i32_9 = arith.constant 0 : i32
    %11 = arith.cmpi ne, %10, %c0_i32_9 : i32
    scf.if %11 {
      %c0_10 = arith.constant 0 : index
      %c0_11 = arith.constant 0 : index
      %12 = vector.load %arg8[%c0_10, %c0_11] : memref<512x128xf32, #tpu.memory_space<vmem>>, vector<512x128xf32>
      %c0_12 = arith.constant 0 : index
      %c0_13 = arith.constant 0 : index
      %13 = vector.load %arg5[%c0_12, %c0_13] : memref<1x128xf32, #tpu.memory_space<vmem>>, vector<1x128xf32>
      %14 = vector.broadcast %13 : vector<1x128xf32> to vector<512x128xf32>
      %15 = arith.addf %12, %14 : vector<512x128xf32>
      %c0_14 = arith.constant 0 : index
      %c0_15 = arith.constant 0 : index
      %16 = vector.load %arg6[%c0_14, %c0_15] : memref<512x128xf32, #tpu.memory_space<vmem>>, vector<512x128xf32>
      %17 = arith.addf %15, %16 : vector<512x128xf32>
      %cst_16 = arith.constant 0.000000e+00 : f32
      %18 = vector.broadcast %cst_16 : f32 to vector<512x128xf32>
      %19 = arith.maximumf %17, %18 : vector<512x128xf32>
      %c0_17 = arith.constant 0 : index
      %c0_18 = arith.constant 0 : index
      %20 = vector.load %arg7[%c0_17, %c0_18] : memref<512x128xf32, #tpu.memory_space<vmem>>, vector<512x128xf32>
      tpu.vector_store %arg7[%c0_17, %c0_18], %19 {strides = array<i32>} : memref<512x128xf32, #tpu.memory_space<vmem>>, vector<512x128xf32>,
    } else {
    }
    return
  }
  func.func @transform_0(%arg0: i32, %arg1: i32, %arg2: i32) -> (i32, i32) {
    %c0_i32 = arith.constant 0 : i32
    return %arg0, %arg2 : i32, i32
  }
  func.func @transform_1(%arg0: i32, %arg1: i32, %arg2: i32) -> (i32, i32) {
    %c0_i32 = arith.constant 0 : i32
    return %arg2, %arg1 : i32, i32
  }
  func.func @transform_2(%arg0: i32, %arg1: i32, %arg2: i32) -> (i32, i32) {
    %c0_i32 = arith.constant 0 : i32
    %c0_i32_0 = arith.constant 0 : i32
    return %c0_i32, %arg1 : i32, i32
  }
  func.func @transform_3(%arg0: i32, %arg1: i32, %arg2: i32) -> (i32, i32) {
    %c0_i32 = arith.constant 0 : i32
    return %arg0, %arg1 : i32, i32
  }
  func.func @transform_4(%arg0: i32, %arg1: i32, %arg2: i32) -> (i32, i32) {
    %c0_i32 = arith.constant 0 : i32
    return %arg0, %arg1 : i32, i32
  }
}

module attributes {stable_mosaic.version = 11 : i64} {
  func.func @_mm_kernel(%arg0: i32, %arg1: i32, %arg2: i32, %arg3: memref<128x128xbf16, #tpu.memory_space<vmem>>, %arg4: memref<128x128xbf16, #tpu.memory_space<vmem>>, %arg5: memref<1x128xf32, #tpu.memory_space<vmem>>, %arg6: memref<128x128xf32, #tpu.memory_space<vmem>>, %arg7: memref<128x128xf32, #tpu.memory_space<vmem>>) attributes {dimension_semantics = [#tpu.dimension_semantics<parallel>, #tpu.dimension_semantics<parallel>, #tpu.dimension_semantics<arbitrary>], iteration_bounds = array<i64: 1, 1, 1>, scalar_prefetch = 0 : i64, scratch_operands = 1 : i64, tpu.core_type = #tpu.core_type<tc>, window_params = [{transform_indices = @transform_0, window_bounds = array<i64: 128, 128>}, {transform_indices = @transform_1, window_bounds = array<i64: 128, 128>}, {transform_indices = @transform_2, window_bounds = array<i64: 1, 128>}, {transform_indices = @transform_3, window_bounds = array<i64: 128, 128>}]} {
    %c0_i32 = arith.constant 0 : i32
    %0 = arith.cmpi eq, %arg2, %c0_i32 : i32
    %1 = arith.extui %0 : i1 to i32
    %c0_i32_0 = arith.constant 0 : i32
    %2 = arith.cmpi ne, %1, %c0_i32_0 : i32
    scf.if %2 {
      %cst_10 = arith.constant 0.000000e+00 : f32
      %12 = vector.broadcast %cst_10 : f32 to vector<128x128xf32>
      %c0_11 = arith.constant 0 : index
      %c0_12 = arith.constant 0 : index
      %13 = vector.load %arg7[%c0_11, %c0_12] : memref<128x128xf32, #tpu.memory_space<vmem>>, vector<128x128xf32>
      tpu.vector_store %arg7[%c0_11, %c0_12], %12 {strides = array<i32>} : memref<128x128xf32, #tpu.memory_space<vmem>>, vector<128x128xf32>,
    } else {
    }
    %c0 = arith.constant 0 : index
    %c0_1 = arith.constant 0 : index
    %3 = vector.load %arg7[%c0, %c0_1] : memref<128x128xf32, #tpu.memory_space<vmem>>, vector<128x128xf32>
    %c0_2 = arith.constant 0 : index
    %c0_3 = arith.constant 0 : index
    %4 = vector.load %arg3[%c0_2, %c0_3] : memref<128x128xbf16, #tpu.memory_space<vmem>>, vector<128x128xbf16>
    %c0_4 = arith.constant 0 : index
    %c0_5 = arith.constant 0 : index
    %5 = vector.load %arg4[%c0_4, %c0_5] : memref<128x128xbf16, #tpu.memory_space<vmem>>, vector<128x128xbf16>
    %cst = arith.constant dense<0.000000e+00> : vector<128x128xf32>
    %6 = tpu.matmul %4, %5, %cst {dimension_numbers = #tpu.dot_dimension_numbers<[1], [0], [0], [1], [0, 0, 1, 1], [], []>} : vector<128x128xbf16>, vector<128x128xbf16>, vector<128x128xf32> -> vector<128x128xf32>
    %7 = arith.addf %3, %6 : vector<128x128xf32>
    %c0_6 = arith.constant 0 : index
    %c0_7 = arith.constant 0 : index
    %8 = vector.load %arg7[%c0_6, %c0_7] : memref<128x128xf32, #tpu.memory_space<vmem>>, vector<128x128xf32>
    tpu.vector_store %arg7[%c0_6, %c0_7], %7 {strides = array<i32>} : memref<128x128xf32, #tpu.memory_space<vmem>>, vector<128x128xf32>,
    %c0_i32_8 = arith.constant 0 : i32
    %9 = arith.cmpi eq, %arg2, %c0_i32_8 : i32
    %10 = arith.extui %9 : i1 to i32
    %c0_i32_9 = arith.constant 0 : i32
    %11 = arith.cmpi ne, %10, %c0_i32_9 : i32
    scf.if %11 {
      %c0_10 = arith.constant 0 : index
      %c0_11 = arith.constant 0 : index
      %12 = vector.load %arg7[%c0_10, %c0_11] : memref<128x128xf32, #tpu.memory_space<vmem>>, vector<128x128xf32>
      %c0_12 = arith.constant 0 : index
      %c0_13 = arith.constant 0 : index
      %13 = vector.load %arg5[%c0_12, %c0_13] : memref<1x128xf32, #tpu.memory_space<vmem>>, vector<1x128xf32>
      %14 = vector.broadcast %13 : vector<1x128xf32> to vector<128x128xf32>
      %15 = arith.addf %12, %14 : vector<128x128xf32>
      %cst_14 = arith.constant 0.000000e+00 : f32
      %16 = vector.broadcast %cst_14 : f32 to vector<128x128xf32>
      %17 = arith.maximumf %15, %16 : vector<128x128xf32>
      %c0_15 = arith.constant 0 : index
      %c0_16 = arith.constant 0 : index
      %18 = vector.load %arg6[%c0_15, %c0_16] : memref<128x128xf32, #tpu.memory_space<vmem>>, vector<128x128xf32>
      tpu.vector_store %arg6[%c0_15, %c0_16], %17 {strides = array<i32>} : memref<128x128xf32, #tpu.memory_space<vmem>>, vector<128x128xf32>,
    } else {
    }
    return
  }
  func.func @transform_0(%arg0: i32, %arg1: i32, %arg2: i32) -> (i32, i32) {
    %c0_i32 = arith.constant 0 : i32
    return %arg0, %arg2 : i32, i32
  }
  func.func @transform_1(%arg0: i32, %arg1: i32, %arg2: i32) -> (i32, i32) {
    %c0_i32 = arith.constant 0 : i32
    return %arg2, %arg1 : i32, i32
  }
  func.func @transform_2(%arg0: i32, %arg1: i32, %arg2: i32) -> (i32, i32) {
    %c0_i32 = arith.constant 0 : i32
    %c0_i32_0 = arith.constant 0 : i32
    return %c0_i32, %arg1 : i32, i32
  }
  func.func @transform_3(%arg0: i32, %arg1: i32, %arg2: i32) -> (i32, i32) {
    %c0_i32 = arith.constant 0 : i32
    return %arg0, %arg1 : i32, i32
  }
}

module attributes {stable_mosaic.version = 11 : i64} {
  func.func @_mm_kernel(%arg0: i32, %arg1: i32, %arg2: i32, %arg3: memref<128x128xbf16, #tpu.memory_space<vmem>>, %arg4: memref<128x128xbf16, #tpu.memory_space<vmem>>, %arg5: memref<1x128xf32, #tpu.memory_space<vmem>>, %arg6: memref<128x128xf32, #tpu.memory_space<vmem>>, %arg7: memref<128x128xf32, #tpu.memory_space<vmem>>) attributes {dimension_semantics = [#tpu.dimension_semantics<parallel>, #tpu.dimension_semantics<parallel>, #tpu.dimension_semantics<arbitrary>], iteration_bounds = array<i64: 1, 1, 1>, scalar_prefetch = 0 : i64, scratch_operands = 1 : i64, tpu.core_type = #tpu.core_type<tc>, window_params = [{transform_indices = @transform_0, window_bounds = array<i64: 128, 128>}, {transform_indices = @transform_1, window_bounds = array<i64: 128, 128>}, {transform_indices = @transform_2, window_bounds = array<i64: 1, 128>}, {transform_indices = @transform_3, window_bounds = array<i64: 128, 128>}]} {
    %c0_i32 = arith.constant 0 : i32
    %0 = arith.cmpi eq, %arg2, %c0_i32 : i32
    %1 = arith.extui %0 : i1 to i32
    %c0_i32_0 = arith.constant 0 : i32
    %2 = arith.cmpi ne, %1, %c0_i32_0 : i32
    scf.if %2 {
      %cst_10 = arith.constant 0.000000e+00 : f32
      %12 = vector.broadcast %cst_10 : f32 to vector<128x128xf32>
      %c0_11 = arith.constant 0 : index
      %c0_12 = arith.constant 0 : index
      %13 = vector.load %arg7[%c0_11, %c0_12] : memref<128x128xf32, #tpu.memory_space<vmem>>, vector<128x128xf32>
      tpu.vector_store %arg7[%c0_11, %c0_12], %12 {strides = array<i32>} : memref<128x128xf32, #tpu.memory_space<vmem>>, vector<128x128xf32>,
    } else {
    }
    %c0 = arith.constant 0 : index
    %c0_1 = arith.constant 0 : index
    %3 = vector.load %arg7[%c0, %c0_1] : memref<128x128xf32, #tpu.memory_space<vmem>>, vector<128x128xf32>
    %c0_2 = arith.constant 0 : index
    %c0_3 = arith.constant 0 : index
    %4 = vector.load %arg3[%c0_2, %c0_3] : memref<128x128xbf16, #tpu.memory_space<vmem>>, vector<128x128xbf16>
    %c0_4 = arith.constant 0 : index
    %c0_5 = arith.constant 0 : index
    %5 = vector.load %arg4[%c0_4, %c0_5] : memref<128x128xbf16, #tpu.memory_space<vmem>>, vector<128x128xbf16>
    %cst = arith.constant dense<0.000000e+00> : vector<128x128xf32>
    %6 = tpu.matmul %4, %5, %cst {dimension_numbers = #tpu.dot_dimension_numbers<[1], [0], [0], [1], [0, 0, 1, 1], [], []>} : vector<128x128xbf16>, vector<128x128xbf16>, vector<128x128xf32> -> vector<128x128xf32>
    %7 = arith.addf %3, %6 : vector<128x128xf32>
    %c0_6 = arith.constant 0 : index
    %c0_7 = arith.constant 0 : index
    %8 = vector.load %arg7[%c0_6, %c0_7] : memref<128x128xf32, #tpu.memory_space<vmem>>, vector<128x128xf32>
    tpu.vector_store %arg7[%c0_6, %c0_7], %7 {strides = array<i32>} : memref<128x128xf32, #tpu.memory_space<vmem>>, vector<128x128xf32>,
    %c0_i32_8 = arith.constant 0 : i32
    %9 = arith.cmpi eq, %arg2, %c0_i32_8 : i32
    %10 = arith.extui %9 : i1 to i32
    %c0_i32_9 = arith.constant 0 : i32
    %11 = arith.cmpi ne, %10, %c0_i32_9 : i32
    scf.if %11 {
      %c0_10 = arith.constant 0 : index
      %c0_11 = arith.constant 0 : index
      %12 = vector.load %arg7[%c0_10, %c0_11] : memref<128x128xf32, #tpu.memory_space<vmem>>, vector<128x128xf32>
      %c0_12 = arith.constant 0 : index
      %c0_13 = arith.constant 0 : index
      %13 = vector.load %arg5[%c0_12, %c0_13] : memref<1x128xf32, #tpu.memory_space<vmem>>, vector<1x128xf32>
      %14 = vector.broadcast %13 : vector<1x128xf32> to vector<128x128xf32>
      %15 = arith.addf %12, %14 : vector<128x128xf32>
      %c0_14 = arith.constant 0 : index
      %c0_15 = arith.constant 0 : index
      %16 = vector.load %arg6[%c0_14, %c0_15] : memref<128x128xf32, #tpu.memory_space<vmem>>, vector<128x128xf32>
      tpu.vector_store %arg6[%c0_14, %c0_15], %15 {strides = array<i32>} : memref<128x128xf32, #tpu.memory_space<vmem>>, vector<128x128xf32>,
    } else {
    }
    return
  }
  func.func @transform_0(%arg0: i32, %arg1: i32, %arg2: i32) -> (i32, i32) {
    %c0_i32 = arith.constant 0 : i32
    return %arg0, %arg2 : i32, i32
  }
  func.func @transform_1(%arg0: i32, %arg1: i32, %arg2: i32) -> (i32, i32) {
    %c0_i32 = arith.constant 0 : i32
    return %arg2, %arg1 : i32, i32
  }
  func.func @transform_2(%arg0: i32, %arg1: i32, %arg2: i32) -> (i32, i32) {
    %c0_i32 = arith.constant 0 : i32
    %c0_i32_0 = arith.constant 0 : i32
    return %c0_i32, %arg1 : i32, i32
  }
  func.func @transform_3(%arg0: i32, %arg1: i32, %arg2: i32) -> (i32, i32) {
    %c0_i32 = arith.constant 0 : i32
    return %arg0, %arg1 : i32, i32
  }
}

module attributes {stable_mosaic.version = 11 : i64} {
  func.func @_mm_res_kernel(%arg0: i32, %arg1: i32, %arg2: i32, %arg3: memref<128x128xbf16, #tpu.memory_space<vmem>>, %arg4: memref<128x128xbf16, #tpu.memory_space<vmem>>, %arg5: memref<1x128xf32, #tpu.memory_space<vmem>>, %arg6: memref<128x128xf32, #tpu.memory_space<vmem>>, %arg7: memref<128x128xf32, #tpu.memory_space<vmem>>, %arg8: memref<128x128xf32, #tpu.memory_space<vmem>>) attributes {dimension_semantics = [#tpu.dimension_semantics<parallel>, #tpu.dimension_semantics<parallel>, #tpu.dimension_semantics<arbitrary>], iteration_bounds = array<i64: 1, 1, 1>, scalar_prefetch = 0 : i64, scratch_operands = 1 : i64, tpu.core_type = #tpu.core_type<tc>, window_params = [{transform_indices = @transform_0, window_bounds = array<i64: 128, 128>}, {transform_indices = @transform_1, window_bounds = array<i64: 128, 128>}, {transform_indices = @transform_2, window_bounds = array<i64: 1, 128>}, {transform_indices = @transform_3, window_bounds = array<i64: 128, 128>}, {transform_indices = @transform_4, window_bounds = array<i64: 128, 128>}]} {
    %c0_i32 = arith.constant 0 : i32
    %0 = arith.cmpi eq, %arg2, %c0_i32 : i32
    %1 = arith.extui %0 : i1 to i32
    %c0_i32_0 = arith.constant 0 : i32
    %2 = arith.cmpi ne, %1, %c0_i32_0 : i32
    scf.if %2 {
      %cst_10 = arith.constant 0.000000e+00 : f32
      %12 = vector.broadcast %cst_10 : f32 to vector<128x128xf32>
      %c0_11 = arith.constant 0 : index
      %c0_12 = arith.constant 0 : index
      %13 = vector.load %arg8[%c0_11, %c0_12] : memref<128x128xf32, #tpu.memory_space<vmem>>, vector<128x128xf32>
      tpu.vector_store %arg8[%c0_11, %c0_12], %12 {strides = array<i32>} : memref<128x128xf32, #tpu.memory_space<vmem>>, vector<128x128xf32>,
    } else {
    }
    %c0 = arith.constant 0 : index
    %c0_1 = arith.constant 0 : index
    %3 = vector.load %arg8[%c0, %c0_1] : memref<128x128xf32, #tpu.memory_space<vmem>>, vector<128x128xf32>
    %c0_2 = arith.constant 0 : index
    %c0_3 = arith.constant 0 : index
    %4 = vector.load %arg3[%c0_2, %c0_3] : memref<128x128xbf16, #tpu.memory_space<vmem>>, vector<128x128xbf16>
    %c0_4 = arith.constant 0 : index
    %c0_5 = arith.constant 0 : index
    %5 = vector.load %arg4[%c0_4, %c0_5] : memref<128x128xbf16, #tpu.memory_space<vmem>>, vector<128x128xbf16>
    %cst = arith.constant dense<0.000000e+00> : vector<128x128xf32>
    %6 = tpu.matmul %4, %5, %cst {dimension_numbers = #tpu.dot_dimension_numbers<[1], [0], [0], [1], [0, 0, 1, 1], [], []>} : vector<128x128xbf16>, vector<128x128xbf16>, vector<128x128xf32> -> vector<128x128xf32>
    %7 = arith.addf %3, %6 : vector<128x128xf32>
    %c0_6 = arith.constant 0 : index
    %c0_7 = arith.constant 0 : index
    %8 = vector.load %arg8[%c0_6, %c0_7] : memref<128x128xf32, #tpu.memory_space<vmem>>, vector<128x128xf32>
    tpu.vector_store %arg8[%c0_6, %c0_7], %7 {strides = array<i32>} : memref<128x128xf32, #tpu.memory_space<vmem>>, vector<128x128xf32>,
    %c0_i32_8 = arith.constant 0 : i32
    %9 = arith.cmpi eq, %arg2, %c0_i32_8 : i32
    %10 = arith.extui %9 : i1 to i32
    %c0_i32_9 = arith.constant 0 : i32
    %11 = arith.cmpi ne, %10, %c0_i32_9 : i32
    scf.if %11 {
      %c0_10 = arith.constant 0 : index
      %c0_11 = arith.constant 0 : index
      %12 = vector.load %arg8[%c0_10, %c0_11] : memref<128x128xf32, #tpu.memory_space<vmem>>, vector<128x128xf32>
      %c0_12 = arith.constant 0 : index
      %c0_13 = arith.constant 0 : index
      %13 = vector.load %arg5[%c0_12, %c0_13] : memref<1x128xf32, #tpu.memory_space<vmem>>, vector<1x128xf32>
      %14 = vector.broadcast %13 : vector<1x128xf32> to vector<128x128xf32>
      %15 = arith.addf %12, %14 : vector<128x128xf32>
      %c0_14 = arith.constant 0 : index
      %c0_15 = arith.constant 0 : index
      %16 = vector.load %arg6[%c0_14, %c0_15] : memref<128x128xf32, #tpu.memory_space<vmem>>, vector<128x128xf32>
      %17 = arith.addf %15, %16 : vector<128x128xf32>
      %cst_16 = arith.constant 0.000000e+00 : f32
      %18 = vector.broadcast %cst_16 : f32 to vector<128x128xf32>
      %19 = arith.maximumf %17, %18 : vector<128x128xf32>
      %c0_17 = arith.constant 0 : index
      %c0_18 = arith.constant 0 : index
      %20 = vector.load %arg7[%c0_17, %c0_18] : memref<128x128xf32, #tpu.memory_space<vmem>>, vector<128x128xf32>
      tpu.vector_store %arg7[%c0_17, %c0_18], %19 {strides = array<i32>} : memref<128x128xf32, #tpu.memory_space<vmem>>, vector<128x128xf32>,
    } else {
    }
    return
  }
  func.func @transform_0(%arg0: i32, %arg1: i32, %arg2: i32) -> (i32, i32) {
    %c0_i32 = arith.constant 0 : i32
    return %arg0, %arg2 : i32, i32
  }
  func.func @transform_1(%arg0: i32, %arg1: i32, %arg2: i32) -> (i32, i32) {
    %c0_i32 = arith.constant 0 : i32
    return %arg2, %arg1 : i32, i32
  }
  func.func @transform_2(%arg0: i32, %arg1: i32, %arg2: i32) -> (i32, i32) {
    %c0_i32 = arith.constant 0 : i32
    %c0_i32_0 = arith.constant 0 : i32
    return %c0_i32, %arg1 : i32, i32
  }
  func.func @transform_3(%arg0: i32, %arg1: i32, %arg2: i32) -> (i32, i32) {
    %c0_i32 = arith.constant 0 : i32
    return %arg0, %arg1 : i32, i32
  }
  func.func @transform_4(%arg0: i32, %arg1: i32, %arg2: i32) -> (i32, i32) {
    %c0_i32 = arith.constant 0 : i32
    return %arg0, %arg1 : i32, i32
  }
}

module attributes {stable_mosaic.version = 11 : i64} {
  func.func @_mm_kernel(%arg0: i32, %arg1: i32, %arg2: i32, %arg3: memref<32x256xbf16, #tpu.memory_space<vmem>>, %arg4: memref<256x128xbf16, #tpu.memory_space<vmem>>, %arg5: memref<1x128xf32, #tpu.memory_space<vmem>>, %arg6: memref<32x128xf32, #tpu.memory_space<vmem>>, %arg7: memref<32x128xf32, #tpu.memory_space<vmem>>) attributes {dimension_semantics = [#tpu.dimension_semantics<parallel>, #tpu.dimension_semantics<parallel>, #tpu.dimension_semantics<arbitrary>], iteration_bounds = array<i64: 1, 1, 1>, scalar_prefetch = 0 : i64, scratch_operands = 1 : i64, tpu.core_type = #tpu.core_type<tc>, window_params = [{transform_indices = @transform_0, window_bounds = array<i64: 32, 256>}, {transform_indices = @transform_1, window_bounds = array<i64: 256, 128>}, {transform_indices = @transform_2, window_bounds = array<i64: 1, 128>}, {transform_indices = @transform_3, window_bounds = array<i64: 32, 128>}]} {
    %c0_i32 = arith.constant 0 : i32
    %0 = arith.cmpi eq, %arg2, %c0_i32 : i32
    %1 = arith.extui %0 : i1 to i32
    %c0_i32_0 = arith.constant 0 : i32
    %2 = arith.cmpi ne, %1, %c0_i32_0 : i32
    scf.if %2 {
      %cst_10 = arith.constant 0.000000e+00 : f32
      %12 = vector.broadcast %cst_10 : f32 to vector<32x128xf32>
      %c0_11 = arith.constant 0 : index
      %c0_12 = arith.constant 0 : index
      %13 = vector.load %arg7[%c0_11, %c0_12] : memref<32x128xf32, #tpu.memory_space<vmem>>, vector<32x128xf32>
      tpu.vector_store %arg7[%c0_11, %c0_12], %12 {strides = array<i32>} : memref<32x128xf32, #tpu.memory_space<vmem>>, vector<32x128xf32>,
    } else {
    }
    %c0 = arith.constant 0 : index
    %c0_1 = arith.constant 0 : index
    %3 = vector.load %arg7[%c0, %c0_1] : memref<32x128xf32, #tpu.memory_space<vmem>>, vector<32x128xf32>
    %c0_2 = arith.constant 0 : index
    %c0_3 = arith.constant 0 : index
    %4 = vector.load %arg3[%c0_2, %c0_3] : memref<32x256xbf16, #tpu.memory_space<vmem>>, vector<32x256xbf16>
    %c0_4 = arith.constant 0 : index
    %c0_5 = arith.constant 0 : index
    %5 = vector.load %arg4[%c0_4, %c0_5] : memref<256x128xbf16, #tpu.memory_space<vmem>>, vector<256x128xbf16>
    %cst = arith.constant dense<0.000000e+00> : vector<32x128xf32>
    %6 = tpu.matmul %4, %5, %cst {dimension_numbers = #tpu.dot_dimension_numbers<[1], [0], [0], [1], [0, 0, 1, 1], [], []>} : vector<32x256xbf16>, vector<256x128xbf16>, vector<32x128xf32> -> vector<32x128xf32>
    %7 = arith.addf %3, %6 : vector<32x128xf32>
    %c0_6 = arith.constant 0 : index
    %c0_7 = arith.constant 0 : index
    %8 = vector.load %arg7[%c0_6, %c0_7] : memref<32x128xf32, #tpu.memory_space<vmem>>, vector<32x128xf32>
    tpu.vector_store %arg7[%c0_6, %c0_7], %7 {strides = array<i32>} : memref<32x128xf32, #tpu.memory_space<vmem>>, vector<32x128xf32>,
    %c0_i32_8 = arith.constant 0 : i32
    %9 = arith.cmpi eq, %arg2, %c0_i32_8 : i32
    %10 = arith.extui %9 : i1 to i32
    %c0_i32_9 = arith.constant 0 : i32
    %11 = arith.cmpi ne, %10, %c0_i32_9 : i32
    scf.if %11 {
      %c0_10 = arith.constant 0 : index
      %c0_11 = arith.constant 0 : index
      %12 = vector.load %arg7[%c0_10, %c0_11] : memref<32x128xf32, #tpu.memory_space<vmem>>, vector<32x128xf32>
      %c0_12 = arith.constant 0 : index
      %c0_13 = arith.constant 0 : index
      %13 = vector.load %arg5[%c0_12, %c0_13] : memref<1x128xf32, #tpu.memory_space<vmem>>, vector<1x128xf32>
      %14 = vector.broadcast %13 : vector<1x128xf32> to vector<32x128xf32>
      %15 = arith.addf %12, %14 : vector<32x128xf32>
      %cst_14 = arith.constant 0.000000e+00 : f32
      %16 = vector.broadcast %cst_14 : f32 to vector<32x128xf32>
      %17 = arith.maximumf %15, %16 : vector<32x128xf32>
      %c0_15 = arith.constant 0 : index
      %c0_16 = arith.constant 0 : index
      %18 = vector.load %arg6[%c0_15, %c0_16] : memref<32x128xf32, #tpu.memory_space<vmem>>, vector<32x128xf32>
      tpu.vector_store %arg6[%c0_15, %c0_16], %17 {strides = array<i32>} : memref<32x128xf32, #tpu.memory_space<vmem>>, vector<32x128xf32>,
    } else {
    }
    return
  }
  func.func @transform_0(%arg0: i32, %arg1: i32, %arg2: i32) -> (i32, i32) {
    %c0_i32 = arith.constant 0 : i32
    return %arg0, %arg2 : i32, i32
  }
  func.func @transform_1(%arg0: i32, %arg1: i32, %arg2: i32) -> (i32, i32) {
    %c0_i32 = arith.constant 0 : i32
    return %arg2, %arg1 : i32, i32
  }
  func.func @transform_2(%arg0: i32, %arg1: i32, %arg2: i32) -> (i32, i32) {
    %c0_i32 = arith.constant 0 : i32
    %c0_i32_0 = arith.constant 0 : i32
    return %c0_i32, %arg1 : i32, i32
  }
  func.func @transform_3(%arg0: i32, %arg1: i32, %arg2: i32) -> (i32, i32) {
    %c0_i32 = arith.constant 0 : i32
    return %arg0, %arg1 : i32, i32
  }
}

module attributes {stable_mosaic.version = 11 : i64} {
  func.func @_mm_res_kernel(%arg0: i32, %arg1: i32, %arg2: i32, %arg3: memref<32x128xbf16, #tpu.memory_space<vmem>>, %arg4: memref<128x128xbf16, #tpu.memory_space<vmem>>, %arg5: memref<1x128xf32, #tpu.memory_space<vmem>>, %arg6: memref<32x128xf32, #tpu.memory_space<vmem>>, %arg7: memref<32x128xf32, #tpu.memory_space<vmem>>, %arg8: memref<32x128xf32, #tpu.memory_space<vmem>>) attributes {dimension_semantics = [#tpu.dimension_semantics<parallel>, #tpu.dimension_semantics<parallel>, #tpu.dimension_semantics<arbitrary>], iteration_bounds = array<i64: 1, 1, 1>, scalar_prefetch = 0 : i64, scratch_operands = 1 : i64, tpu.core_type = #tpu.core_type<tc>, window_params = [{transform_indices = @transform_0, window_bounds = array<i64: 32, 128>}, {transform_indices = @transform_1, window_bounds = array<i64: 128, 128>}, {transform_indices = @transform_2, window_bounds = array<i64: 1, 128>}, {transform_indices = @transform_3, window_bounds = array<i64: 32, 128>}, {transform_indices = @transform_4, window_bounds = array<i64: 32, 128>}]} {
    %c0_i32 = arith.constant 0 : i32
    %0 = arith.cmpi eq, %arg2, %c0_i32 : i32
    %1 = arith.extui %0 : i1 to i32
    %c0_i32_0 = arith.constant 0 : i32
    %2 = arith.cmpi ne, %1, %c0_i32_0 : i32
    scf.if %2 {
      %cst_10 = arith.constant 0.000000e+00 : f32
      %12 = vector.broadcast %cst_10 : f32 to vector<32x128xf32>
      %c0_11 = arith.constant 0 : index
      %c0_12 = arith.constant 0 : index
      %13 = vector.load %arg8[%c0_11, %c0_12] : memref<32x128xf32, #tpu.memory_space<vmem>>, vector<32x128xf32>
      tpu.vector_store %arg8[%c0_11, %c0_12], %12 {strides = array<i32>} : memref<32x128xf32, #tpu.memory_space<vmem>>, vector<32x128xf32>,
    } else {
    }
    %c0 = arith.constant 0 : index
    %c0_1 = arith.constant 0 : index
    %3 = vector.load %arg8[%c0, %c0_1] : memref<32x128xf32, #tpu.memory_space<vmem>>, vector<32x128xf32>
    %c0_2 = arith.constant 0 : index
    %c0_3 = arith.constant 0 : index
    %4 = vector.load %arg3[%c0_2, %c0_3] : memref<32x128xbf16, #tpu.memory_space<vmem>>, vector<32x128xbf16>
    %c0_4 = arith.constant 0 : index
    %c0_5 = arith.constant 0 : index
    %5 = vector.load %arg4[%c0_4, %c0_5] : memref<128x128xbf16, #tpu.memory_space<vmem>>, vector<128x128xbf16>
    %cst = arith.constant dense<0.000000e+00> : vector<32x128xf32>
    %6 = tpu.matmul %4, %5, %cst {dimension_numbers = #tpu.dot_dimension_numbers<[1], [0], [0], [1], [0, 0, 1, 1], [], []>} : vector<32x128xbf16>, vector<128x128xbf16>, vector<32x128xf32> -> vector<32x128xf32>
    %7 = arith.addf %3, %6 : vector<32x128xf32>
    %c0_6 = arith.constant 0 : index
    %c0_7 = arith.constant 0 : index
    %8 = vector.load %arg8[%c0_6, %c0_7] : memref<32x128xf32, #tpu.memory_space<vmem>>, vector<32x128xf32>
    tpu.vector_store %arg8[%c0_6, %c0_7], %7 {strides = array<i32>} : memref<32x128xf32, #tpu.memory_space<vmem>>, vector<32x128xf32>,
    %c0_i32_8 = arith.constant 0 : i32
    %9 = arith.cmpi eq, %arg2, %c0_i32_8 : i32
    %10 = arith.extui %9 : i1 to i32
    %c0_i32_9 = arith.constant 0 : i32
    %11 = arith.cmpi ne, %10, %c0_i32_9 : i32
    scf.if %11 {
      %c0_10 = arith.constant 0 : index
      %c0_11 = arith.constant 0 : index
      %12 = vector.load %arg8[%c0_10, %c0_11] : memref<32x128xf32, #tpu.memory_space<vmem>>, vector<32x128xf32>
      %c0_12 = arith.constant 0 : index
      %c0_13 = arith.constant 0 : index
      %13 = vector.load %arg5[%c0_12, %c0_13] : memref<1x128xf32, #tpu.memory_space<vmem>>, vector<1x128xf32>
      %14 = vector.broadcast %13 : vector<1x128xf32> to vector<32x128xf32>
      %15 = arith.addf %12, %14 : vector<32x128xf32>
      %c0_14 = arith.constant 0 : index
      %c0_15 = arith.constant 0 : index
      %16 = vector.load %arg6[%c0_14, %c0_15] : memref<32x128xf32, #tpu.memory_space<vmem>>, vector<32x128xf32>
      %17 = arith.addf %15, %16 : vector<32x128xf32>
      %cst_16 = arith.constant 0.000000e+00 : f32
      %18 = vector.broadcast %cst_16 : f32 to vector<32x128xf32>
      %19 = arith.maximumf %17, %18 : vector<32x128xf32>
      %c0_17 = arith.constant 0 : index
      %c0_18 = arith.constant 0 : index
      %20 = vector.load %arg7[%c0_17, %c0_18] : memref<32x128xf32, #tpu.memory_space<vmem>>, vector<32x128xf32>
      tpu.vector_store %arg7[%c0_17, %c0_18], %19 {strides = array<i32>} : memref<32x128xf32, #tpu.memory_space<vmem>>, vector<32x128xf32>,
    } else {
    }
    return
  }
  func.func @transform_0(%arg0: i32, %arg1: i32, %arg2: i32) -> (i32, i32) {
    %c0_i32 = arith.constant 0 : i32
    return %arg0, %arg2 : i32, i32
  }
  func.func @transform_1(%arg0: i32, %arg1: i32, %arg2: i32) -> (i32, i32) {
    %c0_i32 = arith.constant 0 : i32
    return %arg2, %arg1 : i32, i32
  }
  func.func @transform_2(%arg0: i32, %arg1: i32, %arg2: i32) -> (i32, i32) {
    %c0_i32 = arith.constant 0 : i32
    %c0_i32_0 = arith.constant 0 : i32
    return %c0_i32, %arg1 : i32, i32
  }
  func.func @transform_3(%arg0: i32, %arg1: i32, %arg2: i32) -> (i32, i32) {
    %c0_i32 = arith.constant 0 : i32
    return %arg0, %arg1 : i32, i32
  }
  func.func @transform_4(%arg0: i32, %arg1: i32, %arg2: i32) -> (i32, i32) {
    %c0_i32 = arith.constant 0 : i32
    return %arg0, %arg1 : i32, i32
  }
}

module attributes {stable_mosaic.version = 11 : i64} {
  func.func @_mm_kernel(%arg0: i32, %arg1: i32, %arg2: i32, %arg3: memref<32x128xbf16, #tpu.memory_space<vmem>>, %arg4: memref<128x128xbf16, #tpu.memory_space<vmem>>, %arg5: memref<1x128xf32, #tpu.memory_space<vmem>>, %arg6: memref<32x128xf32, #tpu.memory_space<vmem>>, %arg7: memref<32x128xf32, #tpu.memory_space<vmem>>) attributes {dimension_semantics = [#tpu.dimension_semantics<parallel>, #tpu.dimension_semantics<parallel>, #tpu.dimension_semantics<arbitrary>], iteration_bounds = array<i64: 1, 1, 1>, scalar_prefetch = 0 : i64, scratch_operands = 1 : i64, tpu.core_type = #tpu.core_type<tc>, window_params = [{transform_indices = @transform_0, window_bounds = array<i64: 32, 128>}, {transform_indices = @transform_1, window_bounds = array<i64: 128, 128>}, {transform_indices = @transform_2, window_bounds = array<i64: 1, 128>}, {transform_indices = @transform_3, window_bounds = array<i64: 32, 128>}]} {
    %c0_i32 = arith.constant 0 : i32
    %0 = arith.cmpi eq, %arg2, %c0_i32 : i32
    %1 = arith.extui %0 : i1 to i32
    %c0_i32_0 = arith.constant 0 : i32
    %2 = arith.cmpi ne, %1, %c0_i32_0 : i32
    scf.if %2 {
      %cst_10 = arith.constant 0.000000e+00 : f32
      %12 = vector.broadcast %cst_10 : f32 to vector<32x128xf32>
      %c0_11 = arith.constant 0 : index
      %c0_12 = arith.constant 0 : index
      %13 = vector.load %arg7[%c0_11, %c0_12] : memref<32x128xf32, #tpu.memory_space<vmem>>, vector<32x128xf32>
      tpu.vector_store %arg7[%c0_11, %c0_12], %12 {strides = array<i32>} : memref<32x128xf32, #tpu.memory_space<vmem>>, vector<32x128xf32>,
    } else {
    }
    %c0 = arith.constant 0 : index
    %c0_1 = arith.constant 0 : index
    %3 = vector.load %arg7[%c0, %c0_1] : memref<32x128xf32, #tpu.memory_space<vmem>>, vector<32x128xf32>
    %c0_2 = arith.constant 0 : index
    %c0_3 = arith.constant 0 : index
    %4 = vector.load %arg3[%c0_2, %c0_3] : memref<32x128xbf16, #tpu.memory_space<vmem>>, vector<32x128xbf16>
    %c0_4 = arith.constant 0 : index
    %c0_5 = arith.constant 0 : index
    %5 = vector.load %arg4[%c0_4, %c0_5] : memref<128x128xbf16, #tpu.memory_space<vmem>>, vector<128x128xbf16>
    %cst = arith.constant dense<0.000000e+00> : vector<32x128xf32>
    %6 = tpu.matmul %4, %5, %cst {dimension_numbers = #tpu.dot_dimension_numbers<[1], [0], [0], [1], [0, 0, 1, 1], [], []>} : vector<32x128xbf16>, vector<128x128xbf16>, vector<32x128xf32> -> vector<32x128xf32>
    %7 = arith.addf %3, %6 : vector<32x128xf32>
    %c0_6 = arith.constant 0 : index
    %c0_7 = arith.constant 0 : index
    %8 = vector.load %arg7[%c0_6, %c0_7] : memref<32x128xf32, #tpu.memory_space<vmem>>, vector<32x128xf32>
    tpu.vector_store %arg7[%c0_6, %c0_7], %7 {strides = array<i32>} : memref<32x128xf32, #tpu.memory_space<vmem>>, vector<32x128xf32>,
    %c0_i32_8 = arith.constant 0 : i32
    %9 = arith.cmpi eq, %arg2, %c0_i32_8 : i32
    %10 = arith.extui %9 : i1 to i32
    %c0_i32_9 = arith.constant 0 : i32
    %11 = arith.cmpi ne, %10, %c0_i32_9 : i32
    scf.if %11 {
      %c0_10 = arith.constant 0 : index
      %c0_11 = arith.constant 0 : index
      %12 = vector.load %arg7[%c0_10, %c0_11] : memref<32x128xf32, #tpu.memory_space<vmem>>, vector<32x128xf32>
      %c0_12 = arith.constant 0 : index
      %c0_13 = arith.constant 0 : index
      %13 = vector.load %arg5[%c0_12, %c0_13] : memref<1x128xf32, #tpu.memory_space<vmem>>, vector<1x128xf32>
      %14 = vector.broadcast %13 : vector<1x128xf32> to vector<32x128xf32>
      %15 = arith.addf %12, %14 : vector<32x128xf32>
      %cst_14 = arith.constant 0.000000e+00 : f32
      %16 = vector.broadcast %cst_14 : f32 to vector<32x128xf32>
      %17 = arith.maximumf %15, %16 : vector<32x128xf32>
      %c0_15 = arith.constant 0 : index
      %c0_16 = arith.constant 0 : index
      %18 = vector.load %arg6[%c0_15, %c0_16] : memref<32x128xf32, #tpu.memory_space<vmem>>, vector<32x128xf32>
      tpu.vector_store %arg6[%c0_15, %c0_16], %17 {strides = array<i32>} : memref<32x128xf32, #tpu.memory_space<vmem>>, vector<32x128xf32>,
    } else {
    }
    return
  }
  func.func @transform_0(%arg0: i32, %arg1: i32, %arg2: i32) -> (i32, i32) {
    %c0_i32 = arith.constant 0 : i32
    return %arg0, %arg2 : i32, i32
  }
  func.func @transform_1(%arg0: i32, %arg1: i32, %arg2: i32) -> (i32, i32) {
    %c0_i32 = arith.constant 0 : i32
    return %arg2, %arg1 : i32, i32
  }
  func.func @transform_2(%arg0: i32, %arg1: i32, %arg2: i32) -> (i32, i32) {
    %c0_i32 = arith.constant 0 : i32
    %c0_i32_0 = arith.constant 0 : i32
    return %c0_i32, %arg1 : i32, i32
  }
  func.func @transform_3(%arg0: i32, %arg1: i32, %arg2: i32) -> (i32, i32) {
    %c0_i32 = arith.constant 0 : i32
    return %arg0, %arg1 : i32, i32
  }
}

module attributes {stable_mosaic.version = 11 : i64} {
  func.func @_mm_kernel(%arg0: i32, %arg1: i32, %arg2: i32, %arg3: memref<32x128xbf16, #tpu.memory_space<vmem>>, %arg4: memref<128x128xbf16, #tpu.memory_space<vmem>>, %arg5: memref<1x128xf32, #tpu.memory_space<vmem>>, %arg6: memref<32x128xf32, #tpu.memory_space<vmem>>, %arg7: memref<32x128xf32, #tpu.memory_space<vmem>>) attributes {dimension_semantics = [#tpu.dimension_semantics<parallel>, #tpu.dimension_semantics<parallel>, #tpu.dimension_semantics<arbitrary>], iteration_bounds = array<i64: 1, 1, 1>, scalar_prefetch = 0 : i64, scratch_operands = 1 : i64, tpu.core_type = #tpu.core_type<tc>, window_params = [{transform_indices = @transform_0, window_bounds = array<i64: 32, 128>}, {transform_indices = @transform_1, window_bounds = array<i64: 128, 128>}, {transform_indices = @transform_2, window_bounds = array<i64: 1, 128>}, {transform_indices = @transform_3, window_bounds = array<i64: 32, 128>}]} {
    %c0_i32 = arith.constant 0 : i32
    %0 = arith.cmpi eq, %arg2, %c0_i32 : i32
    %1 = arith.extui %0 : i1 to i32
    %c0_i32_0 = arith.constant 0 : i32
    %2 = arith.cmpi ne, %1, %c0_i32_0 : i32
    scf.if %2 {
      %cst_10 = arith.constant 0.000000e+00 : f32
      %12 = vector.broadcast %cst_10 : f32 to vector<32x128xf32>
      %c0_11 = arith.constant 0 : index
      %c0_12 = arith.constant 0 : index
      %13 = vector.load %arg7[%c0_11, %c0_12] : memref<32x128xf32, #tpu.memory_space<vmem>>, vector<32x128xf32>
      tpu.vector_store %arg7[%c0_11, %c0_12], %12 {strides = array<i32>} : memref<32x128xf32, #tpu.memory_space<vmem>>, vector<32x128xf32>,
    } else {
    }
    %c0 = arith.constant 0 : index
    %c0_1 = arith.constant 0 : index
    %3 = vector.load %arg7[%c0, %c0_1] : memref<32x128xf32, #tpu.memory_space<vmem>>, vector<32x128xf32>
    %c0_2 = arith.constant 0 : index
    %c0_3 = arith.constant 0 : index
    %4 = vector.load %arg3[%c0_2, %c0_3] : memref<32x128xbf16, #tpu.memory_space<vmem>>, vector<32x128xbf16>
    %c0_4 = arith.constant 0 : index
    %c0_5 = arith.constant 0 : index
    %5 = vector.load %arg4[%c0_4, %c0_5] : memref<128x128xbf16, #tpu.memory_space<vmem>>, vector<128x128xbf16>
    %cst = arith.constant dense<0.000000e+00> : vector<32x128xf32>
    %6 = tpu.matmul %4, %5, %cst {dimension_numbers = #tpu.dot_dimension_numbers<[1], [0], [0], [1], [0, 0, 1, 1], [], []>} : vector<32x128xbf16>, vector<128x128xbf16>, vector<32x128xf32> -> vector<32x128xf32>
    %7 = arith.addf %3, %6 : vector<32x128xf32>
    %c0_6 = arith.constant 0 : index
    %c0_7 = arith.constant 0 : index
    %8 = vector.load %arg7[%c0_6, %c0_7] : memref<32x128xf32, #tpu.memory_space<vmem>>, vector<32x128xf32>
    tpu.vector_store %arg7[%c0_6, %c0_7], %7 {strides = array<i32>} : memref<32x128xf32, #tpu.memory_space<vmem>>, vector<32x128xf32>,
    %c0_i32_8 = arith.constant 0 : i32
    %9 = arith.cmpi eq, %arg2, %c0_i32_8 : i32
    %10 = arith.extui %9 : i1 to i32
    %c0_i32_9 = arith.constant 0 : i32
    %11 = arith.cmpi ne, %10, %c0_i32_9 : i32
    scf.if %11 {
      %c0_10 = arith.constant 0 : index
      %c0_11 = arith.constant 0 : index
      %12 = vector.load %arg7[%c0_10, %c0_11] : memref<32x128xf32, #tpu.memory_space<vmem>>, vector<32x128xf32>
      %c0_12 = arith.constant 0 : index
      %c0_13 = arith.constant 0 : index
      %13 = vector.load %arg5[%c0_12, %c0_13] : memref<1x128xf32, #tpu.memory_space<vmem>>, vector<1x128xf32>
      %14 = vector.broadcast %13 : vector<1x128xf32> to vector<32x128xf32>
      %15 = arith.addf %12, %14 : vector<32x128xf32>
      %c0_14 = arith.constant 0 : index
      %c0_15 = arith.constant 0 : index
      %16 = vector.load %arg6[%c0_14, %c0_15] : memref<32x128xf32, #tpu.memory_space<vmem>>, vector<32x128xf32>
      tpu.vector_store %arg6[%c0_14, %c0_15], %15 {strides = array<i32>} : memref<32x128xf32, #tpu.memory_space<vmem>>, vector<32x128xf32>,
    } else {
    }
    return
  }
  func.func @transform_0(%arg0: i32, %arg1: i32, %arg2: i32) -> (i32, i32) {
    %c0_i32 = arith.constant 0 : i32
    return %arg0, %arg2 : i32, i32
  }
  func.func @transform_1(%arg0: i32, %arg1: i32, %arg2: i32) -> (i32, i32) {
    %c0_i32 = arith.constant 0 : i32
    return %arg2, %arg1 : i32, i32
  }
  func.func @transform_2(%arg0: i32, %arg1: i32, %arg2: i32) -> (i32, i32) {
    %c0_i32 = arith.constant 0 : i32
    %c0_i32_0 = arith.constant 0 : i32
    return %c0_i32, %arg1 : i32, i32
  }
  func.func @transform_3(%arg0: i32, %arg1: i32, %arg2: i32) -> (i32, i32) {
    %c0_i32 = arith.constant 0 : i32
    return %arg0, %arg1 : i32, i32
  }
}

module attributes {stable_mosaic.version = 11 : i64} {
  func.func @_mm_kernel(%arg0: i32, %arg1: i32, %arg2: i32, %arg3: memref<8x256xbf16, #tpu.memory_space<vmem>>, %arg4: memref<256x128xbf16, #tpu.memory_space<vmem>>, %arg5: memref<1x128xf32, #tpu.memory_space<vmem>>, %arg6: memref<8x128xf32, #tpu.memory_space<vmem>>, %arg7: memref<8x128xf32, #tpu.memory_space<vmem>>) attributes {dimension_semantics = [#tpu.dimension_semantics<parallel>, #tpu.dimension_semantics<parallel>, #tpu.dimension_semantics<arbitrary>], iteration_bounds = array<i64: 1, 1, 1>, scalar_prefetch = 0 : i64, scratch_operands = 1 : i64, tpu.core_type = #tpu.core_type<tc>, window_params = [{transform_indices = @transform_0, window_bounds = array<i64: 8, 256>}, {transform_indices = @transform_1, window_bounds = array<i64: 256, 128>}, {transform_indices = @transform_2, window_bounds = array<i64: 1, 128>}, {transform_indices = @transform_3, window_bounds = array<i64: 8, 128>}]} {
    %c0_i32 = arith.constant 0 : i32
    %0 = arith.cmpi eq, %arg2, %c0_i32 : i32
    %1 = arith.extui %0 : i1 to i32
    %c0_i32_0 = arith.constant 0 : i32
    %2 = arith.cmpi ne, %1, %c0_i32_0 : i32
    scf.if %2 {
      %cst_10 = arith.constant 0.000000e+00 : f32
      %12 = vector.broadcast %cst_10 : f32 to vector<8x128xf32>
      %c0_11 = arith.constant 0 : index
      %c0_12 = arith.constant 0 : index
      %13 = vector.load %arg7[%c0_11, %c0_12] : memref<8x128xf32, #tpu.memory_space<vmem>>, vector<8x128xf32>
      tpu.vector_store %arg7[%c0_11, %c0_12], %12 {strides = array<i32>} : memref<8x128xf32, #tpu.memory_space<vmem>>, vector<8x128xf32>,
    } else {
    }
    %c0 = arith.constant 0 : index
    %c0_1 = arith.constant 0 : index
    %3 = vector.load %arg7[%c0, %c0_1] : memref<8x128xf32, #tpu.memory_space<vmem>>, vector<8x128xf32>
    %c0_2 = arith.constant 0 : index
    %c0_3 = arith.constant 0 : index
    %4 = vector.load %arg3[%c0_2, %c0_3] : memref<8x256xbf16, #tpu.memory_space<vmem>>, vector<8x256xbf16>
    %c0_4 = arith.constant 0 : index
    %c0_5 = arith.constant 0 : index
    %5 = vector.load %arg4[%c0_4, %c0_5] : memref<256x128xbf16, #tpu.memory_space<vmem>>, vector<256x128xbf16>
    %cst = arith.constant dense<0.000000e+00> : vector<8x128xf32>
    %6 = tpu.matmul %4, %5, %cst {dimension_numbers = #tpu.dot_dimension_numbers<[1], [0], [0], [1], [0, 0, 1, 1], [], []>} : vector<8x256xbf16>, vector<256x128xbf16>, vector<8x128xf32> -> vector<8x128xf32>
    %7 = arith.addf %3, %6 : vector<8x128xf32>
    %c0_6 = arith.constant 0 : index
    %c0_7 = arith.constant 0 : index
    %8 = vector.load %arg7[%c0_6, %c0_7] : memref<8x128xf32, #tpu.memory_space<vmem>>, vector<8x128xf32>
    tpu.vector_store %arg7[%c0_6, %c0_7], %7 {strides = array<i32>} : memref<8x128xf32, #tpu.memory_space<vmem>>, vector<8x128xf32>,
    %c0_i32_8 = arith.constant 0 : i32
    %9 = arith.cmpi eq, %arg2, %c0_i32_8 : i32
    %10 = arith.extui %9 : i1 to i32
    %c0_i32_9 = arith.constant 0 : i32
    %11 = arith.cmpi ne, %10, %c0_i32_9 : i32
    scf.if %11 {
      %c0_10 = arith.constant 0 : index
      %c0_11 = arith.constant 0 : index
      %12 = vector.load %arg7[%c0_10, %c0_11] : memref<8x128xf32, #tpu.memory_space<vmem>>, vector<8x128xf32>
      %c0_12 = arith.constant 0 : index
      %c0_13 = arith.constant 0 : index
      %13 = vector.load %arg5[%c0_12, %c0_13] : memref<1x128xf32, #tpu.memory_space<vmem>>, vector<1x128xf32>
      %14 = vector.broadcast %13 : vector<1x128xf32> to vector<8x128xf32>
      %15 = arith.addf %12, %14 : vector<8x128xf32>
      %cst_14 = arith.constant 0.000000e+00 : f32
      %16 = vector.broadcast %cst_14 : f32 to vector<8x128xf32>
      %17 = arith.maximumf %15, %16 : vector<8x128xf32>
      %c0_15 = arith.constant 0 : index
      %c0_16 = arith.constant 0 : index
      %18 = vector.load %arg6[%c0_15, %c0_16] : memref<8x128xf32, #tpu.memory_space<vmem>>, vector<8x128xf32>
      tpu.vector_store %arg6[%c0_15, %c0_16], %17 {strides = array<i32>} : memref<8x128xf32, #tpu.memory_space<vmem>>, vector<8x128xf32>,
    } else {
    }
    return
  }
  func.func @transform_0(%arg0: i32, %arg1: i32, %arg2: i32) -> (i32, i32) {
    %c0_i32 = arith.constant 0 : i32
    return %arg0, %arg2 : i32, i32
  }
  func.func @transform_1(%arg0: i32, %arg1: i32, %arg2: i32) -> (i32, i32) {
    %c0_i32 = arith.constant 0 : i32
    return %arg2, %arg1 : i32, i32
  }
  func.func @transform_2(%arg0: i32, %arg1: i32, %arg2: i32) -> (i32, i32) {
    %c0_i32 = arith.constant 0 : i32
    %c0_i32_0 = arith.constant 0 : i32
    return %c0_i32, %arg1 : i32, i32
  }
  func.func @transform_3(%arg0: i32, %arg1: i32, %arg2: i32) -> (i32, i32) {
    %c0_i32 = arith.constant 0 : i32
    return %arg0, %arg1 : i32, i32
  }
}

module attributes {stable_mosaic.version = 11 : i64} {
  func.func @_mm_res_kernel(%arg0: i32, %arg1: i32, %arg2: i32, %arg3: memref<8x128xbf16, #tpu.memory_space<vmem>>, %arg4: memref<128x128xbf16, #tpu.memory_space<vmem>>, %arg5: memref<1x128xf32, #tpu.memory_space<vmem>>, %arg6: memref<8x128xf32, #tpu.memory_space<vmem>>, %arg7: memref<8x128xf32, #tpu.memory_space<vmem>>, %arg8: memref<8x128xf32, #tpu.memory_space<vmem>>) attributes {dimension_semantics = [#tpu.dimension_semantics<parallel>, #tpu.dimension_semantics<parallel>, #tpu.dimension_semantics<arbitrary>], iteration_bounds = array<i64: 1, 1, 1>, scalar_prefetch = 0 : i64, scratch_operands = 1 : i64, tpu.core_type = #tpu.core_type<tc>, window_params = [{transform_indices = @transform_0, window_bounds = array<i64: 8, 128>}, {transform_indices = @transform_1, window_bounds = array<i64: 128, 128>}, {transform_indices = @transform_2, window_bounds = array<i64: 1, 128>}, {transform_indices = @transform_3, window_bounds = array<i64: 8, 128>}, {transform_indices = @transform_4, window_bounds = array<i64: 8, 128>}]} {
    %c0_i32 = arith.constant 0 : i32
    %0 = arith.cmpi eq, %arg2, %c0_i32 : i32
    %1 = arith.extui %0 : i1 to i32
    %c0_i32_0 = arith.constant 0 : i32
    %2 = arith.cmpi ne, %1, %c0_i32_0 : i32
    scf.if %2 {
      %cst_10 = arith.constant 0.000000e+00 : f32
      %12 = vector.broadcast %cst_10 : f32 to vector<8x128xf32>
      %c0_11 = arith.constant 0 : index
      %c0_12 = arith.constant 0 : index
      %13 = vector.load %arg8[%c0_11, %c0_12] : memref<8x128xf32, #tpu.memory_space<vmem>>, vector<8x128xf32>
      tpu.vector_store %arg8[%c0_11, %c0_12], %12 {strides = array<i32>} : memref<8x128xf32, #tpu.memory_space<vmem>>, vector<8x128xf32>,
    } else {
    }
    %c0 = arith.constant 0 : index
    %c0_1 = arith.constant 0 : index
    %3 = vector.load %arg8[%c0, %c0_1] : memref<8x128xf32, #tpu.memory_space<vmem>>, vector<8x128xf32>
    %c0_2 = arith.constant 0 : index
    %c0_3 = arith.constant 0 : index
    %4 = vector.load %arg3[%c0_2, %c0_3] : memref<8x128xbf16, #tpu.memory_space<vmem>>, vector<8x128xbf16>
    %c0_4 = arith.constant 0 : index
    %c0_5 = arith.constant 0 : index
    %5 = vector.load %arg4[%c0_4, %c0_5] : memref<128x128xbf16, #tpu.memory_space<vmem>>, vector<128x128xbf16>
    %cst = arith.constant dense<0.000000e+00> : vector<8x128xf32>
    %6 = tpu.matmul %4, %5, %cst {dimension_numbers = #tpu.dot_dimension_numbers<[1], [0], [0], [1], [0, 0, 1, 1], [], []>} : vector<8x128xbf16>, vector<128x128xbf16>, vector<8x128xf32> -> vector<8x128xf32>
    %7 = arith.addf %3, %6 : vector<8x128xf32>
    %c0_6 = arith.constant 0 : index
    %c0_7 = arith.constant 0 : index
    %8 = vector.load %arg8[%c0_6, %c0_7] : memref<8x128xf32, #tpu.memory_space<vmem>>, vector<8x128xf32>
    tpu.vector_store %arg8[%c0_6, %c0_7], %7 {strides = array<i32>} : memref<8x128xf32, #tpu.memory_space<vmem>>, vector<8x128xf32>,
    %c0_i32_8 = arith.constant 0 : i32
    %9 = arith.cmpi eq, %arg2, %c0_i32_8 : i32
    %10 = arith.extui %9 : i1 to i32
    %c0_i32_9 = arith.constant 0 : i32
    %11 = arith.cmpi ne, %10, %c0_i32_9 : i32
    scf.if %11 {
      %c0_10 = arith.constant 0 : index
      %c0_11 = arith.constant 0 : index
      %12 = vector.load %arg8[%c0_10, %c0_11] : memref<8x128xf32, #tpu.memory_space<vmem>>, vector<8x128xf32>
      %c0_12 = arith.constant 0 : index
      %c0_13 = arith.constant 0 : index
      %13 = vector.load %arg5[%c0_12, %c0_13] : memref<1x128xf32, #tpu.memory_space<vmem>>, vector<1x128xf32>
      %14 = vector.broadcast %13 : vector<1x128xf32> to vector<8x128xf32>
      %15 = arith.addf %12, %14 : vector<8x128xf32>
      %c0_14 = arith.constant 0 : index
      %c0_15 = arith.constant 0 : index
      %16 = vector.load %arg6[%c0_14, %c0_15] : memref<8x128xf32, #tpu.memory_space<vmem>>, vector<8x128xf32>
      %17 = arith.addf %15, %16 : vector<8x128xf32>
      %cst_16 = arith.constant 0.000000e+00 : f32
      %18 = vector.broadcast %cst_16 : f32 to vector<8x128xf32>
      %19 = arith.maximumf %17, %18 : vector<8x128xf32>
      %c0_17 = arith.constant 0 : index
      %c0_18 = arith.constant 0 : index
      %20 = vector.load %arg7[%c0_17, %c0_18] : memref<8x128xf32, #tpu.memory_space<vmem>>, vector<8x128xf32>
      tpu.vector_store %arg7[%c0_17, %c0_18], %19 {strides = array<i32>} : memref<8x128xf32, #tpu.memory_space<vmem>>, vector<8x128xf32>,
    } else {
    }
    return
  }
  func.func @transform_0(%arg0: i32, %arg1: i32, %arg2: i32) -> (i32, i32) {
    %c0_i32 = arith.constant 0 : i32
    return %arg0, %arg2 : i32, i32
  }
  func.func @transform_1(%arg0: i32, %arg1: i32, %arg2: i32) -> (i32, i32) {
    %c0_i32 = arith.constant 0 : i32
    return %arg2, %arg1 : i32, i32
  }
  func.func @transform_2(%arg0: i32, %arg1: i32, %arg2: i32) -> (i32, i32) {
    %c0_i32 = arith.constant 0 : i32
    %c0_i32_0 = arith.constant 0 : i32
    return %c0_i32, %arg1 : i32, i32
  }
  func.func @transform_3(%arg0: i32, %arg1: i32, %arg2: i32) -> (i32, i32) {
    %c0_i32 = arith.constant 0 : i32
    return %arg0, %arg1 : i32, i32
  }
  func.func @transform_4(%arg0: i32, %arg1: i32, %arg2: i32) -> (i32, i32) {
    %c0_i32 = arith.constant 0 : i32
    return %arg0, %arg1 : i32, i32
  }
}

module attributes {stable_mosaic.version = 11 : i64} {
  func.func @_mm_kernel(%arg0: i32, %arg1: i32, %arg2: i32, %arg3: memref<8x128xbf16, #tpu.memory_space<vmem>>, %arg4: memref<128x128xbf16, #tpu.memory_space<vmem>>, %arg5: memref<1x128xf32, #tpu.memory_space<vmem>>, %arg6: memref<8x128xf32, #tpu.memory_space<vmem>>, %arg7: memref<8x128xf32, #tpu.memory_space<vmem>>) attributes {dimension_semantics = [#tpu.dimension_semantics<parallel>, #tpu.dimension_semantics<parallel>, #tpu.dimension_semantics<arbitrary>], iteration_bounds = array<i64: 1, 1, 1>, scalar_prefetch = 0 : i64, scratch_operands = 1 : i64, tpu.core_type = #tpu.core_type<tc>, window_params = [{transform_indices = @transform_0, window_bounds = array<i64: 8, 128>}, {transform_indices = @transform_1, window_bounds = array<i64: 128, 128>}, {transform_indices = @transform_2, window_bounds = array<i64: 1, 128>}, {transform_indices = @transform_3, window_bounds = array<i64: 8, 128>}]} {
    %c0_i32 = arith.constant 0 : i32
    %0 = arith.cmpi eq, %arg2, %c0_i32 : i32
    %1 = arith.extui %0 : i1 to i32
    %c0_i32_0 = arith.constant 0 : i32
    %2 = arith.cmpi ne, %1, %c0_i32_0 : i32
    scf.if %2 {
      %cst_10 = arith.constant 0.000000e+00 : f32
      %12 = vector.broadcast %cst_10 : f32 to vector<8x128xf32>
      %c0_11 = arith.constant 0 : index
      %c0_12 = arith.constant 0 : index
      %13 = vector.load %arg7[%c0_11, %c0_12] : memref<8x128xf32, #tpu.memory_space<vmem>>, vector<8x128xf32>
      tpu.vector_store %arg7[%c0_11, %c0_12], %12 {strides = array<i32>} : memref<8x128xf32, #tpu.memory_space<vmem>>, vector<8x128xf32>,
    } else {
    }
    %c0 = arith.constant 0 : index
    %c0_1 = arith.constant 0 : index
    %3 = vector.load %arg7[%c0, %c0_1] : memref<8x128xf32, #tpu.memory_space<vmem>>, vector<8x128xf32>
    %c0_2 = arith.constant 0 : index
    %c0_3 = arith.constant 0 : index
    %4 = vector.load %arg3[%c0_2, %c0_3] : memref<8x128xbf16, #tpu.memory_space<vmem>>, vector<8x128xbf16>
    %c0_4 = arith.constant 0 : index
    %c0_5 = arith.constant 0 : index
    %5 = vector.load %arg4[%c0_4, %c0_5] : memref<128x128xbf16, #tpu.memory_space<vmem>>, vector<128x128xbf16>
    %cst = arith.constant dense<0.000000e+00> : vector<8x128xf32>
    %6 = tpu.matmul %4, %5, %cst {dimension_numbers = #tpu.dot_dimension_numbers<[1], [0], [0], [1], [0, 0, 1, 1], [], []>} : vector<8x128xbf16>, vector<128x128xbf16>, vector<8x128xf32> -> vector<8x128xf32>
    %7 = arith.addf %3, %6 : vector<8x128xf32>
    %c0_6 = arith.constant 0 : index
    %c0_7 = arith.constant 0 : index
    %8 = vector.load %arg7[%c0_6, %c0_7] : memref<8x128xf32, #tpu.memory_space<vmem>>, vector<8x128xf32>
    tpu.vector_store %arg7[%c0_6, %c0_7], %7 {strides = array<i32>} : memref<8x128xf32, #tpu.memory_space<vmem>>, vector<8x128xf32>,
    %c0_i32_8 = arith.constant 0 : i32
    %9 = arith.cmpi eq, %arg2, %c0_i32_8 : i32
    %10 = arith.extui %9 : i1 to i32
    %c0_i32_9 = arith.constant 0 : i32
    %11 = arith.cmpi ne, %10, %c0_i32_9 : i32
    scf.if %11 {
      %c0_10 = arith.constant 0 : index
      %c0_11 = arith.constant 0 : index
      %12 = vector.load %arg7[%c0_10, %c0_11] : memref<8x128xf32, #tpu.memory_space<vmem>>, vector<8x128xf32>
      %c0_12 = arith.constant 0 : index
      %c0_13 = arith.constant 0 : index
      %13 = vector.load %arg5[%c0_12, %c0_13] : memref<1x128xf32, #tpu.memory_space<vmem>>, vector<1x128xf32>
      %14 = vector.broadcast %13 : vector<1x128xf32> to vector<8x128xf32>
      %15 = arith.addf %12, %14 : vector<8x128xf32>
      %c0_14 = arith.constant 0 : index
      %c0_15 = arith.constant 0 : index
      %16 = vector.load %arg6[%c0_14, %c0_15] : memref<8x128xf32, #tpu.memory_space<vmem>>, vector<8x128xf32>
      tpu.vector_store %arg6[%c0_14, %c0_15], %15 {strides = array<i32>} : memref<8x128xf32, #tpu.memory_space<vmem>>, vector<8x128xf32>,
    } else {
    }
    return
  }
  func.func @transform_0(%arg0: i32, %arg1: i32, %arg2: i32) -> (i32, i32) {
    %c0_i32 = arith.constant 0 : i32
    return %arg0, %arg2 : i32, i32
  }
  func.func @transform_1(%arg0: i32, %arg1: i32, %arg2: i32) -> (i32, i32) {
    %c0_i32 = arith.constant 0 : i32
    return %arg2, %arg1 : i32, i32
  }
  func.func @transform_2(%arg0: i32, %arg1: i32, %arg2: i32) -> (i32, i32) {
    %c0_i32 = arith.constant 0 : i32
    %c0_i32_0 = arith.constant 0 : i32
    return %c0_i32, %arg1 : i32, i32
  }
  func.func @transform_3(%arg0: i32, %arg1: i32, %arg2: i32) -> (i32, i32) {
    %c0_i32 = arith.constant 0 : i32
    return %arg0, %arg1 : i32, i32
  }
}

module attributes {stable_mosaic.version = 11 : i64} {
  func.func @_mm_kernel(%arg0: i32, %arg1: i32, %arg2: i32, %arg3: memref<8x128xbf16, #tpu.memory_space<vmem>>, %arg4: memref<128x128xbf16, #tpu.memory_space<vmem>>, %arg5: memref<1x128xf32, #tpu.memory_space<vmem>>, %arg6: memref<8x128xf32, #tpu.memory_space<vmem>>, %arg7: memref<8x128xf32, #tpu.memory_space<vmem>>) attributes {dimension_semantics = [#tpu.dimension_semantics<parallel>, #tpu.dimension_semantics<parallel>, #tpu.dimension_semantics<arbitrary>], iteration_bounds = array<i64: 1, 1, 1>, scalar_prefetch = 0 : i64, scratch_operands = 1 : i64, tpu.core_type = #tpu.core_type<tc>, window_params = [{transform_indices = @transform_0, window_bounds = array<i64: 8, 128>}, {transform_indices = @transform_1, window_bounds = array<i64: 128, 128>}, {transform_indices = @transform_2, window_bounds = array<i64: 1, 128>}, {transform_indices = @transform_3, window_bounds = array<i64: 8, 128>}]} {
    %c0_i32 = arith.constant 0 : i32
    %0 = arith.cmpi eq, %arg2, %c0_i32 : i32
    %1 = arith.extui %0 : i1 to i32
    %c0_i32_0 = arith.constant 0 : i32
    %2 = arith.cmpi ne, %1, %c0_i32_0 : i32
    scf.if %2 {
      %cst_10 = arith.constant 0.000000e+00 : f32
      %12 = vector.broadcast %cst_10 : f32 to vector<8x128xf32>
      %c0_11 = arith.constant 0 : index
      %c0_12 = arith.constant 0 : index
      %13 = vector.load %arg7[%c0_11, %c0_12] : memref<8x128xf32, #tpu.memory_space<vmem>>, vector<8x128xf32>
      tpu.vector_store %arg7[%c0_11, %c0_12], %12 {strides = array<i32>} : memref<8x128xf32, #tpu.memory_space<vmem>>, vector<8x128xf32>,
    } else {
    }
    %c0 = arith.constant 0 : index
    %c0_1 = arith.constant 0 : index
    %3 = vector.load %arg7[%c0, %c0_1] : memref<8x128xf32, #tpu.memory_space<vmem>>, vector<8x128xf32>
    %c0_2 = arith.constant 0 : index
    %c0_3 = arith.constant 0 : index
    %4 = vector.load %arg3[%c0_2, %c0_3] : memref<8x128xbf16, #tpu.memory_space<vmem>>, vector<8x128xbf16>
    %c0_4 = arith.constant 0 : index
    %c0_5 = arith.constant 0 : index
    %5 = vector.load %arg4[%c0_4, %c0_5] : memref<128x128xbf16, #tpu.memory_space<vmem>>, vector<128x128xbf16>
    %cst = arith.constant dense<0.000000e+00> : vector<8x128xf32>
    %6 = tpu.matmul %4, %5, %cst {dimension_numbers = #tpu.dot_dimension_numbers<[1], [0], [0], [1], [0, 0, 1, 1], [], []>} : vector<8x128xbf16>, vector<128x128xbf16>, vector<8x128xf32> -> vector<8x128xf32>
    %7 = arith.addf %3, %6 : vector<8x128xf32>
    %c0_6 = arith.constant 0 : index
    %c0_7 = arith.constant 0 : index
    %8 = vector.load %arg7[%c0_6, %c0_7] : memref<8x128xf32, #tpu.memory_space<vmem>>, vector<8x128xf32>
    tpu.vector_store %arg7[%c0_6, %c0_7], %7 {strides = array<i32>} : memref<8x128xf32, #tpu.memory_space<vmem>>, vector<8x128xf32>,
    %c0_i32_8 = arith.constant 0 : i32
    %9 = arith.cmpi eq, %arg2, %c0_i32_8 : i32
    %10 = arith.extui %9 : i1 to i32
    %c0_i32_9 = arith.constant 0 : i32
    %11 = arith.cmpi ne, %10, %c0_i32_9 : i32
    scf.if %11 {
      %c0_10 = arith.constant 0 : index
      %c0_11 = arith.constant 0 : index
      %12 = vector.load %arg7[%c0_10, %c0_11] : memref<8x128xf32, #tpu.memory_space<vmem>>, vector<8x128xf32>
      %c0_12 = arith.constant 0 : index
      %c0_13 = arith.constant 0 : index
      %13 = vector.load %arg5[%c0_12, %c0_13] : memref<1x128xf32, #tpu.memory_space<vmem>>, vector<1x128xf32>
      %14 = vector.broadcast %13 : vector<1x128xf32> to vector<8x128xf32>
      %15 = arith.addf %12, %14 : vector<8x128xf32>
      %cst_14 = arith.constant 0.000000e+00 : f32
      %16 = vector.broadcast %cst_14 : f32 to vector<8x128xf32>
      %17 = arith.maximumf %15, %16 : vector<8x128xf32>
      %c0_15 = arith.constant 0 : index
      %c0_16 = arith.constant 0 : index
      %18 = vector.load %arg6[%c0_15, %c0_16] : memref<8x128xf32, #tpu.memory_space<vmem>>, vector<8x128xf32>
      tpu.vector_store %arg6[%c0_15, %c0_16], %17 {strides = array<i32>} : memref<8x128xf32, #tpu.memory_space<vmem>>, vector<8x128xf32>,
    } else {
    }
    return
  }
  func.func @transform_0(%arg0: i32, %arg1: i32, %arg2: i32) -> (i32, i32) {
    %c0_i32 = arith.constant 0 : i32
    return %arg0, %arg2 : i32, i32
  }
  func.func @transform_1(%arg0: i32, %arg1: i32, %arg2: i32) -> (i32, i32) {
    %c0_i32 = arith.constant 0 : i32
    return %arg2, %arg1 : i32, i32
  }
  func.func @transform_2(%arg0: i32, %arg1: i32, %arg2: i32) -> (i32, i32) {
    %c0_i32 = arith.constant 0 : i32
    %c0_i32_0 = arith.constant 0 : i32
    return %c0_i32, %arg1 : i32, i32
  }
  func.func @transform_3(%arg0: i32, %arg1: i32, %arg2: i32) -> (i32, i32) {
    %c0_i32 = arith.constant 0 : i32
    return %arg0, %arg1 : i32, i32
  }
}

module attributes {stable_mosaic.version = 11 : i64} {
  func.func @_mm_kernel(%arg0: i32, %arg1: i32, %arg2: i32, %arg3: memref<512x384xbf16, #tpu.memory_space<vmem>>, %arg4: memref<384x128xbf16, #tpu.memory_space<vmem>>, %arg5: memref<1x128xf32, #tpu.memory_space<vmem>>, %arg6: memref<512x128xf32, #tpu.memory_space<vmem>>, %arg7: memref<512x128xf32, #tpu.memory_space<vmem>>) attributes {dimension_semantics = [#tpu.dimension_semantics<parallel>, #tpu.dimension_semantics<parallel>, #tpu.dimension_semantics<arbitrary>], iteration_bounds = array<i64: 1, 1, 1>, scalar_prefetch = 0 : i64, scratch_operands = 1 : i64, tpu.core_type = #tpu.core_type<tc>, window_params = [{transform_indices = @transform_0, window_bounds = array<i64: 512, 384>}, {transform_indices = @transform_1, window_bounds = array<i64: 384, 128>}, {transform_indices = @transform_2, window_bounds = array<i64: 1, 128>}, {transform_indices = @transform_3, window_bounds = array<i64: 512, 128>}]} {
    %c0_i32 = arith.constant 0 : i32
    %0 = arith.cmpi eq, %arg2, %c0_i32 : i32
    %1 = arith.extui %0 : i1 to i32
    %c0_i32_0 = arith.constant 0 : i32
    %2 = arith.cmpi ne, %1, %c0_i32_0 : i32
    scf.if %2 {
      %cst_10 = arith.constant 0.000000e+00 : f32
      %12 = vector.broadcast %cst_10 : f32 to vector<512x128xf32>
      %c0_11 = arith.constant 0 : index
      %c0_12 = arith.constant 0 : index
      %13 = vector.load %arg7[%c0_11, %c0_12] : memref<512x128xf32, #tpu.memory_space<vmem>>, vector<512x128xf32>
      tpu.vector_store %arg7[%c0_11, %c0_12], %12 {strides = array<i32>} : memref<512x128xf32, #tpu.memory_space<vmem>>, vector<512x128xf32>,
    } else {
    }
    %c0 = arith.constant 0 : index
    %c0_1 = arith.constant 0 : index
    %3 = vector.load %arg7[%c0, %c0_1] : memref<512x128xf32, #tpu.memory_space<vmem>>, vector<512x128xf32>
    %c0_2 = arith.constant 0 : index
    %c0_3 = arith.constant 0 : index
    %4 = vector.load %arg3[%c0_2, %c0_3] : memref<512x384xbf16, #tpu.memory_space<vmem>>, vector<512x384xbf16>
    %c0_4 = arith.constant 0 : index
    %c0_5 = arith.constant 0 : index
    %5 = vector.load %arg4[%c0_4, %c0_5] : memref<384x128xbf16, #tpu.memory_space<vmem>>, vector<384x128xbf16>
    %cst = arith.constant dense<0.000000e+00> : vector<512x128xf32>
    %6 = tpu.matmul %4, %5, %cst {dimension_numbers = #tpu.dot_dimension_numbers<[1], [0], [0], [1], [0, 0, 1, 1], [], []>} : vector<512x384xbf16>, vector<384x128xbf16>, vector<512x128xf32> -> vector<512x128xf32>
    %7 = arith.addf %3, %6 : vector<512x128xf32>
    %c0_6 = arith.constant 0 : index
    %c0_7 = arith.constant 0 : index
    %8 = vector.load %arg7[%c0_6, %c0_7] : memref<512x128xf32, #tpu.memory_space<vmem>>, vector<512x128xf32>
    tpu.vector_store %arg7[%c0_6, %c0_7], %7 {strides = array<i32>} : memref<512x128xf32, #tpu.memory_space<vmem>>, vector<512x128xf32>,
    %c0_i32_8 = arith.constant 0 : i32
    %9 = arith.cmpi eq, %arg2, %c0_i32_8 : i32
    %10 = arith.extui %9 : i1 to i32
    %c0_i32_9 = arith.constant 0 : i32
    %11 = arith.cmpi ne, %10, %c0_i32_9 : i32
    scf.if %11 {
      %c0_10 = arith.constant 0 : index
      %c0_11 = arith.constant 0 : index
      %12 = vector.load %arg7[%c0_10, %c0_11] : memref<512x128xf32, #tpu.memory_space<vmem>>, vector<512x128xf32>
      %c0_12 = arith.constant 0 : index
      %c0_13 = arith.constant 0 : index
      %13 = vector.load %arg5[%c0_12, %c0_13] : memref<1x128xf32, #tpu.memory_space<vmem>>, vector<1x128xf32>
      %14 = vector.broadcast %13 : vector<1x128xf32> to vector<512x128xf32>
      %15 = arith.addf %12, %14 : vector<512x128xf32>
      %cst_14 = arith.constant 0.000000e+00 : f32
      %16 = vector.broadcast %cst_14 : f32 to vector<512x128xf32>
      %17 = arith.maximumf %15, %16 : vector<512x128xf32>
      %c0_15 = arith.constant 0 : index
      %c0_16 = arith.constant 0 : index
      %18 = vector.load %arg6[%c0_15, %c0_16] : memref<512x128xf32, #tpu.memory_space<vmem>>, vector<512x128xf32>
      tpu.vector_store %arg6[%c0_15, %c0_16], %17 {strides = array<i32>} : memref<512x128xf32, #tpu.memory_space<vmem>>, vector<512x128xf32>,
    } else {
    }
    return
  }
  func.func @transform_0(%arg0: i32, %arg1: i32, %arg2: i32) -> (i32, i32) {
    %c0_i32 = arith.constant 0 : i32
    return %arg0, %arg2 : i32, i32
  }
  func.func @transform_1(%arg0: i32, %arg1: i32, %arg2: i32) -> (i32, i32) {
    %c0_i32 = arith.constant 0 : i32
    return %arg2, %arg1 : i32, i32
  }
  func.func @transform_2(%arg0: i32, %arg1: i32, %arg2: i32) -> (i32, i32) {
    %c0_i32 = arith.constant 0 : i32
    %c0_i32_0 = arith.constant 0 : i32
    return %c0_i32, %arg1 : i32, i32
  }
  func.func @transform_3(%arg0: i32, %arg1: i32, %arg2: i32) -> (i32, i32) {
    %c0_i32 = arith.constant 0 : i32
    return %arg0, %arg1 : i32, i32
  }
}

module attributes {stable_mosaic.version = 11 : i64} {
  func.func @_mm_res_kernel(%arg0: i32, %arg1: i32, %arg2: i32, %arg3: memref<512x384xbf16, #tpu.memory_space<vmem>>, %arg4: memref<384x128xbf16, #tpu.memory_space<vmem>>, %arg5: memref<1x128xf32, #tpu.memory_space<vmem>>, %arg6: memref<512x128xf32, #tpu.memory_space<vmem>>, %arg7: memref<512x128xf32, #tpu.memory_space<vmem>>, %arg8: memref<512x128xf32, #tpu.memory_space<vmem>>) attributes {dimension_semantics = [#tpu.dimension_semantics<parallel>, #tpu.dimension_semantics<parallel>, #tpu.dimension_semantics<arbitrary>], iteration_bounds = array<i64: 1, 1, 1>, scalar_prefetch = 0 : i64, scratch_operands = 1 : i64, tpu.core_type = #tpu.core_type<tc>, window_params = [{transform_indices = @transform_0, window_bounds = array<i64: 512, 384>}, {transform_indices = @transform_1, window_bounds = array<i64: 384, 128>}, {transform_indices = @transform_2, window_bounds = array<i64: 1, 128>}, {transform_indices = @transform_3, window_bounds = array<i64: 512, 128>}, {transform_indices = @transform_4, window_bounds = array<i64: 512, 128>}]} {
    %c0_i32 = arith.constant 0 : i32
    %0 = arith.cmpi eq, %arg2, %c0_i32 : i32
    %1 = arith.extui %0 : i1 to i32
    %c0_i32_0 = arith.constant 0 : i32
    %2 = arith.cmpi ne, %1, %c0_i32_0 : i32
    scf.if %2 {
      %cst_10 = arith.constant 0.000000e+00 : f32
      %12 = vector.broadcast %cst_10 : f32 to vector<512x128xf32>
      %c0_11 = arith.constant 0 : index
      %c0_12 = arith.constant 0 : index
      %13 = vector.load %arg8[%c0_11, %c0_12] : memref<512x128xf32, #tpu.memory_space<vmem>>, vector<512x128xf32>
      tpu.vector_store %arg8[%c0_11, %c0_12], %12 {strides = array<i32>} : memref<512x128xf32, #tpu.memory_space<vmem>>, vector<512x128xf32>,
    } else {
    }
    %c0 = arith.constant 0 : index
    %c0_1 = arith.constant 0 : index
    %3 = vector.load %arg8[%c0, %c0_1] : memref<512x128xf32, #tpu.memory_space<vmem>>, vector<512x128xf32>
    %c0_2 = arith.constant 0 : index
    %c0_3 = arith.constant 0 : index
    %4 = vector.load %arg3[%c0_2, %c0_3] : memref<512x384xbf16, #tpu.memory_space<vmem>>, vector<512x384xbf16>
    %c0_4 = arith.constant 0 : index
    %c0_5 = arith.constant 0 : index
    %5 = vector.load %arg4[%c0_4, %c0_5] : memref<384x128xbf16, #tpu.memory_space<vmem>>, vector<384x128xbf16>
    %cst = arith.constant dense<0.000000e+00> : vector<512x128xf32>
    %6 = tpu.matmul %4, %5, %cst {dimension_numbers = #tpu.dot_dimension_numbers<[1], [0], [0], [1], [0, 0, 1, 1], [], []>} : vector<512x384xbf16>, vector<384x128xbf16>, vector<512x128xf32> -> vector<512x128xf32>
    %7 = arith.addf %3, %6 : vector<512x128xf32>
    %c0_6 = arith.constant 0 : index
    %c0_7 = arith.constant 0 : index
    %8 = vector.load %arg8[%c0_6, %c0_7] : memref<512x128xf32, #tpu.memory_space<vmem>>, vector<512x128xf32>
    tpu.vector_store %arg8[%c0_6, %c0_7], %7 {strides = array<i32>} : memref<512x128xf32, #tpu.memory_space<vmem>>, vector<512x128xf32>,
    %c0_i32_8 = arith.constant 0 : i32
    %9 = arith.cmpi eq, %arg2, %c0_i32_8 : i32
    %10 = arith.extui %9 : i1 to i32
    %c0_i32_9 = arith.constant 0 : i32
    %11 = arith.cmpi ne, %10, %c0_i32_9 : i32
    scf.if %11 {
      %c0_10 = arith.constant 0 : index
      %c0_11 = arith.constant 0 : index
      %12 = vector.load %arg8[%c0_10, %c0_11] : memref<512x128xf32, #tpu.memory_space<vmem>>, vector<512x128xf32>
      %c0_12 = arith.constant 0 : index
      %c0_13 = arith.constant 0 : index
      %13 = vector.load %arg5[%c0_12, %c0_13] : memref<1x128xf32, #tpu.memory_space<vmem>>, vector<1x128xf32>
      %14 = vector.broadcast %13 : vector<1x128xf32> to vector<512x128xf32>
      %15 = arith.addf %12, %14 : vector<512x128xf32>
      %c0_14 = arith.constant 0 : index
      %c0_15 = arith.constant 0 : index
      %16 = vector.load %arg6[%c0_14, %c0_15] : memref<512x128xf32, #tpu.memory_space<vmem>>, vector<512x128xf32>
      %17 = arith.addf %15, %16 : vector<512x128xf32>
      %c0_16 = arith.constant 0 : index
      %c0_17 = arith.constant 0 : index
      %18 = vector.load %arg7[%c0_16, %c0_17] : memref<512x128xf32, #tpu.memory_space<vmem>>, vector<512x128xf32>
      tpu.vector_store %arg7[%c0_16, %c0_17], %17 {strides = array<i32>} : memref<512x128xf32, #tpu.memory_space<vmem>>, vector<512x128xf32>,
    } else {
    }
    return
  }
  func.func @transform_0(%arg0: i32, %arg1: i32, %arg2: i32) -> (i32, i32) {
    %c0_i32 = arith.constant 0 : i32
    return %arg0, %arg2 : i32, i32
  }
  func.func @transform_1(%arg0: i32, %arg1: i32, %arg2: i32) -> (i32, i32) {
    %c0_i32 = arith.constant 0 : i32
    return %arg2, %arg1 : i32, i32
  }
  func.func @transform_2(%arg0: i32, %arg1: i32, %arg2: i32) -> (i32, i32) {
    %c0_i32 = arith.constant 0 : i32
    %c0_i32_0 = arith.constant 0 : i32
    return %c0_i32, %arg1 : i32, i32
  }
  func.func @transform_3(%arg0: i32, %arg1: i32, %arg2: i32) -> (i32, i32) {
    %c0_i32 = arith.constant 0 : i32
    return %arg0, %arg1 : i32, i32
  }
  func.func @transform_4(%arg0: i32, %arg1: i32, %arg2: i32) -> (i32, i32) {
    %c0_i32 = arith.constant 0 : i32
    return %arg0, %arg1 : i32, i32
  }
}

</mosaic_0001>

<llo_original>
// kernel: syn_model_forward.209
$region0: #{syn_model_forward.209}
  #allocation0 [shape = 'u32[]', space=smem, size = 0x4, offset = 0x4, fixed_abs, tag = 'smem constant byte address 0x4 - core index']
  #allocation1 [shape = 'u32[72,128]{1,0:T(1,128)}', space=vmem, size = 0x9000, scoped, tag = 'internal scratch']
  #allocation2 [shape = 'f32[512,128]{1,0:T(8,128)}', space=vmem, size = 0x40000, scoped, tag = 'scratch operand']
  %s0 = inlined_call_operand.vmem [shape: bf16[512,128], index: 0, kind: input, shape index: {}]
  %s1 = inlined_call_operand.vmem [shape: bf16[128,128], index: 1, kind: input, shape index: {}]
  %s2 = inlined_call_operand.vmem [shape: f32[1,128], index: 2, kind: input, shape index: {}]
  %s3 = inlined_call_operand.vmem [shape: f32[512,128], index: 3, kind: output, shape index: {}]
  %s4 = sld [smem:[#allocation0]]
  $region30: #{syn_model_forward.209} parent=0
    _
  %s6 = ssub.s32 1, %s4
  %s7 = scalar_select 0, %s6, %s4
  // Predicated region
  $region2: #{syn_model_forward.209} parent=0 // pred_check
    _
  $region3: #{syn_model_forward.209} parent=0 // pred_check_branch
    %9 = sbr.rel (0) target = $region5
  $region4: #{syn_model_forward.209} parent=0 // pred_region
    _
  $region5: #{syn_model_forward.209} parent=0 // pred_fallthru
    _
  // Predicated region
  $region6: #{syn_model_forward.209} parent=0 // pred_check
    _
  $region7: #{syn_model_forward.209} parent=0 // pred_check_branch
    %11 = sbr.rel (0) target = $region9
  $region8: #{syn_model_forward.209} parent=0 // pred_region
    _
  $region9: #{syn_model_forward.209} parent=0 // pred_fallthru
    _
  // Predicated region
  $region10: #{syn_model_forward.209} parent=0 // pred_check
    _
  $region11: #{syn_model_forward.209} parent=0 // pred_check_branch
    %13 = sbr.rel (0) target = $region13
  $region12: #{syn_model_forward.209} parent=0 // pred_region
    _
  $region13: #{syn_model_forward.209} parent=0 // pred_fallthru
    _
  %p14 = scmp.eq.s32.totalorder 0, 0
  // Predicated region
  $region14: #{syn_model_forward.209} parent=0 // pred_check
    %p15 = pneg %p14
  $region15: #{syn_model_forward.209} parent=0 // pred_check_branch
    %17 = sbr.rel (%p15) target = $region17
  $region16: #{syn_model_forward.209} parent=0 // pred_region
    %18 = vst [vmem:[#allocation2] sm:$0xff] 0.0
    %19 = vst [vmem:[#allocation2 + $0x8] sm:$0xff] 0.0
    %20 = vst [vmem:[#allocation2 + $0x10] sm:$0xff] 0.0
    %21 = vst [vmem:[#allocation2 + $0x18] sm:$0xff] 0.0
    %22 = vst [vmem:[#allocation2 + $0x20] sm:$0xff] 0.0
    %23 = vst [vmem:[#allocation2 + $0x28] sm:$0xff] 0.0
    %24 = vst [vmem:[#allocation2 + $0x30] sm:$0xff] 0.0
    %25 = vst [vmem:[#allocation2 + $0x38] sm:$0xff] 0.0
    %26 = vst [vmem:[#allocation2 + $0x40] sm:$0xff] 0.0
    %27 = vst [vmem:[#allocation2 + $0x48] sm:$0xff] 0.0
    %28 = vst [vmem:[#allocation2 + $0x50] sm:$0xff] 0.0
    %29 = vst [vmem:[#allocation2 + $0x58] sm:$0xff] 0.0
    %30 = vst [vmem:[#allocation2 + $0x60] sm:$0xff] 0.0
    %31 = vst [vmem:[#allocation2 + $0x68] sm:$0xff] 0.0
    %32 = vst [vmem:[#allocation2 + $0x70] sm:$0xff] 0.0
    %33 = vst [vmem:[#allocation2 + $0x78] sm:$0xff] 0.0
    %34 = vst [vmem:[#allocation2 + $0x80] sm:$0xff] 0.0
    %35 = vst [vmem:[#allocation2 + $0x88] sm:$0xff] 0.0
    %36 = vst [vmem:[#allocation2 + $0x90] sm:$0xff] 0.0
    %37 = vst [vmem:[#allocation2 + $0x98] sm:$0xff] 0.0
    %38 = vst [vmem:[#allocation2 + $0xa0] sm:$0xff] 0.0
    %39 = vst [vmem:[#allocation2 + $0xa8] sm:$0xff] 0.0
    %40 = vst [vmem:[#allocation2 + $0xb0] sm:$0xff] 0.0
    %41 = vst [vmem:[#allocation2 + $0xb8] sm:$0xff] 0.0
    %42 = vst [vmem:[#allocation2 + $0xc0] sm:$0xff] 0.0
    %43 = vst [vmem:[#allocation2 + $0xc8] sm:$0xff] 0.0
    %44 = vst [vmem:[#allocation2 + $0xd0] sm:$0xff] 0.0
    %45 = vst [vmem:[#allocation2 + $0xd8] sm:$0xff] 0.0
    %46 = vst [vmem:[#allocation2 + $0xe0] sm:$0xff] 0.0
    %47 = vst [vmem:[#allocation2 + $0xe8] sm:$0xff] 0.0
    %48 = vst [vmem:[#allocation2 + $0xf0] sm:$0xff] 0.0
    %49 = vst [vmem:[#allocation2 + $0xf8] sm:$0xff] 0.0
    %50 = vst [vmem:[#allocation2 + $0x100] sm:$0xff] 0.0
    %51 = vst [vmem:[#allocation2 + $0x108] sm:$0xff] 0.0
    %52 = vst [vmem:[#allocation2 + $0x110] sm:$0xff] 0.0
    %53 = vst [vmem:[#allocation2 + $0x118] sm:$0xff] 0.0
    %54 = vst [vmem:[#allocation2 + $0x120] sm:$0xff] 0.0
    %55 = vst [vmem:[#allocation2 + $0x128] sm:$0xff] 0.0
    %56 = vst [vmem:[#allocation2 + $0x130] sm:$0xff] 0.0
    %57 = vst [vmem:[#allocation2 + $0x138] sm:$0xff] 0.0
    %58 = vst [vmem:[#allocation2 + $0x140] sm:$0xff] 0.0
    %59 = vst [vmem:[#allocation2 + $0x148] sm:$0xff] 0.0
    %60 = vst [vmem:[#allocation2 + $0x150] sm:$0xff] 0.0
    %61 = vst [vmem:[#allocation2 + $0x158] sm:$0xff] 0.0
    %62 = vst [vmem:[#allocation2 + $0x160] sm:$0xff] 0.0
    %63 = vst [vmem:[#allocation2 + $0x168] sm:$0xff] 0.0
    %64 = vst [vmem:[#allocation2 + $0x170] sm:$0xff] 0.0
    %65 = vst [vmem:[#allocation2 + $0x178] sm:$0xff] 0.0
    %66 = vst [vmem:[#allocation2 + $0x180] sm:$0xff] 0.0
    %67 = vst [vmem:[#allocation2 + $0x188] sm:$0xff] 0.0
    %68 = vst [vmem:[#allocation2 + $0x190] sm:$0xff] 0.0
    %69 = vst [vmem:[#allocation2 + $0x198] sm:$0xff] 0.0
    %70 = vst [vmem:[#allocation2 + $0x1a0] sm:$0xff] 0.0
    %71 = vst [vmem:[#allocation2 + $0x1a8] sm:$0xff] 0.0
    %72 = vst [vmem:[#allocation2 + $0x1b0] sm:$0xff] 0.0
    %73 = vst [vmem:[#allocation2 + $0x1b8] sm:$0xff] 0.0
    %74 = vst [vmem:[#allocation2 + $0x1c0] sm:$0xff] 0.0
    %75 = vst [vmem:[#allocation2 + $0x1c8] sm:$0xff] 0.0
    %76 = vst [vmem:[#allocation2 + $0x1d0] sm:$0xff] 0.0
    %77 = vst [vmem:[#allocation2 + $0x1d8] sm:$0xff] 0.0
    %78 = vst [vmem:[#allocation2 + $0x1e0] sm:$0xff] 0.0
    %79 = vst [vmem:[#allocation2 + $0x1e8] sm:$0xff] 0.0
    %80 = vst [vmem:[#allocation2 + $0x1f0] sm:$0xff] 0.0
    %81 = vst [vmem:[#allocation2 + $0x1f8] sm:$0xff] 0.0
  $region17: #{syn_model_forward.209} parent=0 // pred_fallthru
    _
  %v82 = vld [vmem:[#allocation2] sm:$0xff]
  %v83 = vld [vmem:[#allocation2 + $0x8] sm:$0xff]
  %v84 = vld [vmem:[#allocation2 + $0x10] sm:$0xff]
  %v85 = vld [vmem:[#allocation2 + $0x18] sm:$0xff]
  %v86 = vld [vmem:[#allocation2 + $0x20] sm:$0xff]
  %v87 = vld [vmem:[#allocation2 + $0x28] sm:$0xff]
  %v88 = vld [vmem:[#allocation2 + $0x30] sm:$0xff]
  %v89 = vld [vmem:[#allocation2 + $0x38] sm:$0xff]
  %v90 = vld [vmem:[#allocation2 + $0x40] sm:$0xff]
  %v91 = vld [vmem:[#allocation2 + $0x48] sm:$0xff]
  %v92 = vld [vmem:[#allocation2 + $0x50] sm:$0xff]
  %v93 = vld [vmem:[#allocation2 + $0x58] sm:$0xff]
  %v94 = vld [vmem:[#allocation2 + $0x60] sm:$0xff]
  %v95 = vld [vmem:[#allocation2 + $0x68] sm:$0xff]
  %v96 = vld [vmem:[#allocation2 + $0x70] sm:$0xff]
  %v97 = vld [vmem:[#allocation2 + $0x78] sm:$0xff]
  %v98 = vld [vmem:[#allocation2 + $0x80] sm:$0xff]
  %v99 = vld [vmem:[#allocation2 + $0x88] sm:$0xff]
  %v100 = vld [vmem:[#allocation2 + $0x90] sm:$0xff]
  %v101 = vld [vmem:[#allocation2 + $0x98] sm:$0xff]
  %v102 = vld [vmem:[#allocation2 + $0xa0] sm:$0xff]
  %v103 = vld [vmem:[#allocation2 + $0xa8] sm:$0xff]
  %v104 = vld [vmem:[#allocation2 + $0xb0] sm:$0xff]
  %v105 = vld [vmem:[#allocation2 + $0xb8] sm:$0xff]
  %v106 = vld [vmem:[#allocation2 + $0xc0] sm:$0xff]
  %v107 = vld [vmem:[#allocation2 + $0xc8] sm:$0xff]
  %v108 = vld [vmem:[#allocation2 + $0xd0] sm:$0xff]
  %v109 = vld [vmem:[#allocation2 + $0xd8] sm:$0xff]
  %v110 = vld [vmem:[#allocation2 + $0xe0] sm:$0xff]
  %v111 = vld [vmem:[#allocation2 + $0xe8] sm:$0xff]
  %v112 = vld [vmem:[#allocation2 + $0xf0] sm:$0xff]
  %v113 = vld [vmem:[#allocation2 + $0xf8] sm:$0xff]
  %v114 = vld [vmem:[#allocation2 + $0x100] sm:$0xff]
  %v115 = vld [vmem:[#allocation2 + $0x108] sm:$0xff]
  %v116 = vld [vmem:[#allocation2 + $0x110] sm:$0xff]
  %v117 = vld [vmem:[#allocation2 + $0x118] sm:$0xff]
  %v118 = vld [vmem:[#allocation2 + $0x120] sm:$0xff]
  %v119 = vld [vmem:[#allocation2 + $0x128] sm:$0xff]
  %v120 = vld [vmem:[#allocation2 + $0x130] sm:$0xff]
  %v121 = vld [vmem:[#allocation2 + $0x138] sm:$0xff]
  %v122 = vld [vmem:[#allocation2 + $0x140] sm:$0xff]
  %v123 = vld [vmem:[#allocation2 + $0x148] sm:$0xff]
  %v124 = vld [vmem:[#allocation2 + $0x150] sm:$0xff]
  %v125 = vld [vmem:[#allocation2 + $0x158] sm:$0xff]
  %v126 = vld [vmem:[#allocation2 + $0x160] sm:$0xff]
  %v127 = vld [vmem:[#allocation2 + $0x168] sm:$0xff]
  %v128 = vld [vmem:[#allocation2 + $0x170] sm:$0xff]
  %v129 = vld [vmem:[#allocation2 + $0x178] sm:$0xff]
  %v130 = vld [vmem:[#allocation2 + $0x180] sm:$0xff]
  %v131 = vld [vmem:[#allocation2 + $0x188] sm:$0xff]
  %v132 = vld [vmem:[#allocation2 + $0x190] sm:$0xff]
  %v133 = vld [vmem:[#allocation2 + $0x198] sm:$0xff]
  %v134 = vld [vmem:[#allocation2 + $0x1a0] sm:$0xff]
  %v135 = vld [vmem:[#allocation2 + $0x1a8] sm:$0xff]
  %v136 = vld [vmem:[#allocation2 + $0x1b0] sm:$0xff]
  %v137 = vld [vmem:[#allocation2 + $0x1b8] sm:$0xff]
  %v138 = vld [vmem:[#allocation2 + $0x1c0] sm:$0xff]
  %v139 = vld [vmem:[#allocation2 + $0x1c8] sm:$0xff]
  %v140 = vld [vmem:[#allocation2 + $0x1d0] sm:$0xff]
  %v141 = vld [vmem:[#allocation2 + $0x1d8] sm:$0xff]
  %v142 = vld [vmem:[#allocation2 + $0x1e0] sm:$0xff]
  %v143 = vld [vmem:[#allocation2 + $0x1e8] sm:$0xff]
  %v144 = vld [vmem:[#allocation2 + $0x1f0] sm:$0xff]
  %v145 = vld [vmem:[#allocation2 + $0x1f8] sm:$0xff]
  %v146 = vld [vmem:[%s0] sm:$0xf]
  %v147 = vld [vmem:[%s0 + $0x4] sm:$0xf]
  %v148 = vld [vmem:[%s0 + $0x8] sm:$0xf]
  %v149 = vld [vmem:[%s0 + $0xc] sm:$0xf]
  %v150 = vld [vmem:[%s0 + $0x10] sm:$0xf]
  %v151 = vld [vmem:[%s0 + $0x14] sm:$0xf]
  %v152 = vld [vmem:[%s0 + $0x18] sm:$0xf]
  %v153 = vld [vmem:[%s0 + $0x1c] sm:$0xf]
  %v154 = vld [vmem:[%s0 + $0x20] sm:$0xf]
  %v155 = vld [vmem:[%s0 + $0x24] sm:$0xf]
  %v156 = vld [vmem:[%s0 + $0x28] sm:$0xf]
  %v157 = vld [vmem:[%s0 + $0x2c] sm:$0xf]
  %v158 = vld [vmem:[%s0 + $0x30] sm:$0xf]
  %v159 = vld [vmem:[%s0 + $0x34] sm:$0xf]
  %v160 = vld [vmem:[%s0 + $0x38] sm:$0xf]
  %v161 = vld [vmem:[%s0 + $0x3c] sm:$0xf]
  %v162 = vld [vmem:[%s0 + $0x40] sm:$0xf]
  %v163 = vld [vmem:[%s0 + $0x44] sm:$0xf]
  %v164 = vld [vmem:[%s0 + $0x48] sm:$0xf]
  %v165 = vld [vmem:[%s0 + $0x4c] sm:$0xf]
  %v166 = vld [vmem:[%s0 + $0x50] sm:$0xf]
  %v167 = vld [vmem:[%s0 + $0x54] sm:$0xf]
  %v168 = vld [vmem:[%s0 + $0x58] sm:$0xf]
  %v169 = vld [vmem:[%s0 + $0x5c] sm:$0xf]
  %v170 = vld [vmem:[%s0 + $0x60] sm:$0xf]
  %v171 = vld [vmem:[%s0 + $0x64] sm:$0xf]
  %v172 = vld [vmem:[%s0 + $0x68] sm:$0xf]
  %v173 = vld [vmem:[%s0 + $0x6c] sm:$0xf]
  %v174 = vld [vmem:[%s0 + $0x70] sm:$0xf]
  %v175 = vld [vmem:[%s0 + $0x74] sm:$0xf]
  %v176 = vld [vmem:[%s0 + $0x78] sm:$0xf]
  %v177 = vld [vmem:[%s0 + $0x7c] sm:$0xf]
  %v178 = vld [vmem:[%s0 + $0x80] sm:$0xf]
  %v179 = vld [vmem:[%s0 + $0x84] sm:$0xf]
  %v180 = vld [vmem:[%s0 + $0x88] sm:$0xf]
  %v181 = vld [vmem:[%s0 + $0x8c] sm:$0xf]
  %v182 = vld [vmem:[%s0 + $0x90] sm:$0xf]
  %v183 = vld [vmem:[%s0 + $0x94] sm:$0xf]
  %v184 = vld [vmem:[%s0 + $0x98] sm:$0xf]
  %v185 = vld [vmem:[%s0 + $0x9c] sm:$0xf]
  %v186 = vld [vmem:[%s0 + $0xa0] sm:$0xf]
  %v187 = vld [vmem:[%s0 + $0xa4] sm:$0xf]
  %v188 = vld [vmem:[%s0 + $0xa8] sm:$0xf]
  %v189 = vld [vmem:[%s0 + $0xac] sm:$0xf]
  %v190 = vld [vmem:[%s0 + $0xb0] sm:$0xf]
  %v191 = vld [vmem:[%s0 + $0xb4] sm:$0xf]
  %v192 = vld [vmem:[%s0 + $0xb8] sm:$0xf]
  %v193 = vld [vmem:[%s0 + $0xbc] sm:$0xf]
  %v194 = vld [vmem:[%s0 + $0xc0] sm:$0xf]
  %v195 = vld [vmem:[%s0 + $0xc4] sm:$0xf]
  %v196 = vld [vmem:[%s0 + $0xc8] sm:$0xf]
  %v197 = vld [vmem:[%s0 + $0xcc] sm:$0xf]
  %v198 = vld [vmem:[%s0 + $0xd0] sm:$0xf]
  %v199 = vld [vmem:[%s0 + $0xd4] sm:$0xf]
  %v200 = vld [vmem:[%s0 + $0xd8] sm:$0xf]
  %v201 = vld [vmem:[%s0 + $0xdc] sm:$0xf]
  %v202 = vld [vmem:[%s0 + $0xe0] sm:$0xf]
  %v203 = vld [vmem:[%s0 + $0xe4] sm:$0xf]
  %v204 = vld [vmem:[%s0 + $0xe8] sm:$0xf]
  %v205 = vld [vmem:[%s0 + $0xec] sm:$0xf]
  %v206 = vld [vmem:[%s0 + $0xf0] sm:$0xf]
  %v207 = vld [vmem:[%s0 + $0xf4] sm:$0xf]
  %v208 = vld [vmem:[%s0 + $0xf8] sm:$0xf]
  %v209 = vld [vmem:[%s0 + $0xfc] sm:$0xf]
  %v210 = vld [vmem:[%s1] sm:$0xf]
  %v211 = vld [vmem:[%s1 + $0x4] sm:$0xf]
  %v212 = vld [vmem:[%s1 + $0x8] sm:$0xf]
  %v213 = vld [vmem:[%s1 + $0xc] sm:$0xf]
  %v214 = vld [vmem:[%s1 + $0x10] sm:$0xf]
  %v215 = vld [vmem:[%s1 + $0x14] sm:$0xf]
  %v216 = vld [vmem:[%s1 + $0x18] sm:$0xf]
  %v217 = vld [vmem:[%s1 + $0x1c] sm:$0xf]
  %v218 = vld [vmem:[%s1 + $0x20] sm:$0xf]
  %v219 = vld [vmem:[%s1 + $0x24] sm:$0xf]
  %v220 = vld [vmem:[%s1 + $0x28] sm:$0xf]
  %v221 = vld [vmem:[%s1 + $0x2c] sm:$0xf]
  %v222 = vld [vmem:[%s1 + $0x30] sm:$0xf]
  %v223 = vld [vmem:[%s1 + $0x34] sm:$0xf]
  %v224 = vld [vmem:[%s1 + $0x38] sm:$0xf]
  %v225 = vld [vmem:[%s1 + $0x3c] sm:$0xf]
  %v290 = vunpack.c.l.b16 %v146
  %v291 = vunpack.c.l.b16 %v147
  %v292 = vunpack.c.l.b16 %v148
  %v293 = vunpack.c.l.b16 %v149
  %v294 = vunpack.c.l.b16 %v150
  %v295 = vunpack.c.l.b16 %v151
  %v296 = vunpack.c.l.b16 %v152
  %v297 = vunpack.c.l.b16 %v153
  %v298 = vunpack.c.l.b16 %v154
  %v299 = vunpack.c.l.b16 %v155
  %v300 = vunpack.c.l.b16 %v156
  %v301 = vunpack.c.l.b16 %v157
  %v302 = vunpack.c.l.b16 %v158
  %v303 = vunpack.c.l.b16 %v159
  %v304 = vunpack.c.l.b16 %v160
  %v305 = vunpack.c.l.b16 %v161
  %v306 = vunpack.c.l.b16 %v162
  %v307 = vunpack.c.l.b16 %v163
  %v308 = vunpack.c.l.b16 %v164
  %v309 = vunpack.c.l.b16 %v165
  %v310 = vunpack.c.l.b16 %v166
  %v311 = vunpack.c.l.b16 %v167
  %v312 = vunpack.c.l.b16 %v168
  %v313 = vunpack.c.l.b16 %v169
  %v314 = vunpack.c.l.b16 %v170
  %v315 = vunpack.c.l.b16 %v171
  %v316 = vunpack.c.l.b16 %v172
  %v317 = vunpack.c.l.b16 %v173
  %v318 = vunpack.c.l.b16 %v174
  %v319 = vunpack.c.l.b16 %v175
  %v320 = vunpack.c.l.b16 %v176
  %v321 = vunpack.c.l.b16 %v177
  %v322 = vunpack.c.l.b16 %v178
  %v323 = vunpack.c.l.b16 %v179
  %v324 = vunpack.c.l.b16 %v180
  %v325 = vunpack.c.l.b16 %v181
  %v326 = vunpack.c.l.b16 %v182
  %v327 = vunpack.c.l.b16 %v183
  %v328 = vunpack.c.l.b16 %v184
  %v329 = vunpack.c.l.b16 %v185
  %v330 = vunpack.c.l.b16 %v186
  %v331 = vunpack.c.l.b16 %v187
  %v332 = vunpack.c.l.b16 %v188
  %v333 = vunpack.c.l.b16 %v189
  %v334 = vunpack.c.l.b16 %v190
  %v335 = vunpack.c.l.b16 %v191
  %v336 = vunpack.c.l.b16 %v192
  %v337 = vunpack.c.l.b16 %v193
  %v338 = vunpack.c.l.b16 %v194
  %v339 = vunpack.c.l.b16 %v195
  %v340 = vunpack.c.l.b16 %v196
  %v341 = vunpack.c.l.b16 %v197
  %v342 = vunpack.c.l.b16 %v198
  %v343 = vunpack.c.l.b16 %v199
  %v344 = vunpack.c.l.b16 %v200
  %v345 = vunpack.c.l.b16 %v201
  %v346 = vunpack.c.l.b16 %v202
  %v347 = vunpack.c.l.b16 %v203
  %v348 = vunpack.c.l.b16 %v204
  %v349 = vunpack.c.l.b16 %v205
  %v350 = vunpack.c.l.b16 %v206
  %v351 = vunpack.c.l.b16 %v207
  %v352 = vunpack.c.l.b16 %v208
  %v353 = vunpack.c.l.b16 %v209
  %v354 = vpack.c.b16 %v291, %v290
  %v355 = vpack.c.b16 %v293, %v292
  %v356 = vpack.c.b16 %v295, %v294
  %v357 = vpack.c.b16 %v297, %v296
  %v358 = vpack.c.b16 %v299, %v298
  %v359 = vpack.c.b16 %v301, %v300
  %v360 = vpack.c.b16 %v303, %v302
  %v361 = vpack.c.b16 %v305, %v304
  %v362 = vpack.c.b16 %v307, %v306
  %v363 = vpack.c.b16 %v309, %v308
  %v364 = vpack.c.b16 %v311, %v310
  %v365 = vpack.c.b16 %v313, %v312
  %v366 = vpack.c.b16 %v315, %v314
  %v367 = vpack.c.b16 %v317, %v316
  %v368 = vpack.c.b16 %v319, %v318
  %v369 = vpack.c.b16 %v321, %v320
  %v370 = vpack.c.b16 %v323, %v322
  %v371 = vpack.c.b16 %v325, %v324
  %v372 = vpack.c.b16 %v327, %v326
  %v373 = vpack.c.b16 %v329, %v328
  %v374 = vpack.c.b16 %v331, %v330
  %v375 = vpack.c.b16 %v333, %v332
  %v376 = vpack.c.b16 %v335, %v334
  %v377 = vpack.c.b16 %v337, %v336
  %v378 = vpack.c.b16 %v339, %v338
  %v379 = vpack.c.b16 %v341, %v340
  %v380 = vpack.c.b16 %v343, %v342
  %v381 = vpack.c.b16 %v345, %v344
  %v382 = vpack.c.b16 %v347, %v346
  %v383 = vpack.c.b16 %v349, %v348
  %v384 = vpack.c.b16 %v351, %v350
  %v385 = vpack.c.b16 %v353, %v352
  %v434 = vunpack.c.l.b16 %v210
  %v435 = vunpack.c.l.b16 %v211
  %v436 = vunpack.c.l.b16 %v212
  %v437 = vunpack.c.l.b16 %v213
  %v438 = vunpack.c.l.b16 %v214
  %v439 = vunpack.c.l.b16 %v215
  %v440 = vunpack.c.l.b16 %v216
  %v441 = vunpack.c.l.b16 %v217
  %v442 = vunpack.c.l.b16 %v218
  %v443 = vunpack.c.l.b16 %v219
  %v444 = vunpack.c.l.b16 %v220
  %v445 = vunpack.c.l.b16 %v221
  %v446 = vunpack.c.l.b16 %v222
  %v447 = vunpack.c.l.b16 %v223
  %v448 = vunpack.c.l.b16 %v224
  %v449 = vunpack.c.l.b16 %v225
  %v450 = vpack.c.b16 %v435, %v434
  %v451 = vpack.c.b16 %v437, %v436
  %v452 = vpack.c.b16 %v439, %v438
  %v453 = vpack.c.b16 %v441, %v440
  %v454 = vpack.c.b16 %v443, %v442
  %v455 = vpack.c.b16 %v445, %v444
  %v456 = vpack.c.b16 %v447, %v446
  %v457 = vpack.c.b16 %v449, %v448
  %466 = vmatpush.bf16.msra.mxu0 %v457
  %467 = vmatpush.bf16.msra.mxu0 %v456
  %468 = vmatpush.bf16.msra.mxu0 %v455
  %469 = vmatpush.bf16.msra.mxu0 %v454
  %470 = vmatpush.bf16.msra.mxu0 %v453
  %471 = vmatpush.bf16.msra.mxu0 %v452
  %472 = vmatpush.bf16.msra.mxu0 %v451
  %473 = vmatpush.bf16.msra.mxu0 %v450
  %474 = vmatmul.bf16.gmra.mxu0 %v354
  %v475 = vpop.f32.mrf.mxu0
  %v476 = vadd.f32 0.0, %v475
  %v477 = vpop.f32.mrf.mxu0
  %v478 = vadd.f32 0.0, %v477
  %479 = vmatmul.bf16.gmra.mxu0 %v355
  %v480 = vpop.f32.mrf.mxu0
  %v481 = vadd.f32 0.0, %v480
  %v482 = vpop.f32.mrf.mxu0
  %v483 = vadd.f32 0.0, %v482
  %484 = vmatmul.bf16.gmra.mxu0 %v356
  %v485 = vpop.f32.mrf.mxu0
  %v486 = vadd.f32 0.0, %v485
  %v487 = vpop.f32.mrf.mxu0
  %v488 = vadd.f32 0.0, %v487
  %489 = vmatmul.bf16.gmra.mxu0 %v357
  %v490 = vpop.f32.mrf.mxu0
  %v491 = vadd.f32 0.0, %v490
  %v492 = vpop.f32.mrf.mxu0
  %v493 = vadd.f32 0.0, %v492
  %494 = vmatmul.bf16.gmra.mxu0 %v358
  %v495 = vpop.f32.mrf.mxu0
  %v496 = vadd.f32 0.0, %v495
  %v497 = vpop.f32.mrf.mxu0
  %v498 = vadd.f32 0.0, %v497
  %499 = vmatmul.bf16.gmra.mxu0 %v359
  %v500 = vpop.f32.mrf.mxu0
  %v501 = vadd.f32 0.0, %v500
  %v502 = vpop.f32.mrf.mxu0
  %v503 = vadd.f32 0.0, %v502
  %504 = vmatmul.bf16.gmra.mxu0 %v360
  %v505 = vpop.f32.mrf.mxu0
  %v506 = vadd.f32 0.0, %v505
  %v507 = vpop.f32.mrf.mxu0
  %v508 = vadd.f32 0.0, %v507
  %509 = vmatmul.bf16.gmra.mxu0 %v361
  %v510 = vpop.f32.mrf.mxu0
  %v511 = vadd.f32 0.0, %v510
  %v512 = vpop.f32.mrf.mxu0
  %v513 = vadd.f32 0.0, %v512
  %514 = vmatmul.bf16.gmra.mxu0 %v362
  %v515 = vpop.f32.mrf.mxu0
  %v516 = vadd.f32 0.0, %v515
  %v517 = vpop.f32.mrf.mxu0
  %v518 = vadd.f32 0.0, %v517
  %519 = vmatmul.bf16.gmra.mxu0 %v363
  %v520 = vpop.f32.mrf.mxu0
  %v521 = vadd.f32 0.0, %v520
  %v522 = vpop.f32.mrf.mxu0
  %v523 = vadd.f32 0.0, %v522
  %524 = vmatmul.bf16.gmra.mxu0 %v364
  %v525 = vpop.f32.mrf.mxu0
  %v526 = vadd.f32 0.0, %v525
  %v527 = vpop.f32.mrf.mxu0
  %v528 = vadd.f32 0.0, %v527
  %529 = vmatmul.bf16.gmra.mxu0 %v365
  %v530 = vpop.f32.mrf.mxu0
  %v531 = vadd.f32 0.0, %v530
  %v532 = vpop.f32.mrf.mxu0
  %v533 = vadd.f32 0.0, %v532
  %534 = vmatmul.bf16.gmra.mxu0 %v366
  %v535 = vpop.f32.mrf.mxu0
  %v536 = vadd.f32 0.0, %v535
  %v537 = vpop.f32.mrf.mxu0
  %v538 = vadd.f32 0.0, %v537
  %539 = vmatmul.bf16.gmra.mxu0 %v367
  %v540 = vpop.f32.mrf.mxu0
  %v541 = vadd.f32 0.0, %v540
  %v542 = vpop.f32.mrf.mxu0
  %v543 = vadd.f32 0.0, %v542
  %544 = vmatmul.bf16.gmra.mxu0 %v368
  %v545 = vpop.f32.mrf.mxu0
  %v546 = vadd.f32 0.0, %v545
  %v547 = vpop.f32.mrf.mxu0
  %v548 = vadd.f32 0.0, %v547
  %549 = vmatmul.bf16.gmra.mxu0 %v369
  %v550 = vpop.f32.mrf.mxu0
  %v551 = vadd.f32 0.0, %v550
  %v552 = vpop.f32.mrf.mxu0
  %v553 = vadd.f32 0.0, %v552
  %554 = vmatmul.bf16.gmra.mxu0 %v370
  %v555 = vpop.f32.mrf.mxu0
  %v556 = vadd.f32 0.0, %v555
  %v557 = vpop.f32.mrf.mxu0
  %v558 = vadd.f32 0.0, %v557
  %559 = vmatmul.bf16.gmra.mxu0 %v371
  %v560 = vpop.f32.mrf.mxu0
  %v561 = vadd.f32 0.0, %v560
  %v562 = vpop.f32.mrf.mxu0
  %v563 = vadd.f32 0.0, %v562
  %564 = vmatmul.bf16.gmra.mxu0 %v372
  %v565 = vpop.f32.mrf.mxu0
  %v566 = vadd.f32 0.0, %v565
  %v567 = vpop.f32.mrf.mxu0
  %v568 = vadd.f32 0.0, %v567
  %569 = vmatmul.bf16.gmra.mxu0 %v373
  %v570 = vpop.f32.mrf.mxu0
  %v571 = vadd.f32 0.0, %v570
  %v572 = vpop.f32.mrf.mxu0
  %v573 = vadd.f32 0.0, %v572
  %574 = vmatmul.bf16.gmra.mxu0 %v374
  %v575 = vpop.f32.mrf.mxu0
  %v576 = vadd.f32 0.0, %v575
  %v577 = vpop.f32.mrf.mxu0
  %v578 = vadd.f32 0.0, %v577
  %579 = vmatmul.bf16.gmra.mxu0 %v375
  %v580 = vpop.f32.mrf.mxu0
  %v581 = vadd.f32 0.0, %v580
  %v582 = vpop.f32.mrf.mxu0
  %v583 = vadd.f32 0.0, %v582
  %584 = vmatmul.bf16.gmra.mxu0 %v376
  %v585 = vpop.f32.mrf.mxu0
  %v586 = vadd.f32 0.0, %v585
  %v587 = vpop.f32.mrf.mxu0
  %v588 = vadd.f32 0.0, %v587
  %589 = vmatmul.bf16.gmra.mxu0 %v377
  %v590 = vpop.f32.mrf.mxu0
  %v591 = vadd.f32 0.0, %v590
  %v592 = vpop.f32.mrf.mxu0
  %v593 = vadd.f32 0.0, %v592
  %594 = vmatmul.bf16.gmra.mxu0 %v378
  %v595 = vpop.f32.mrf.mxu0
  %v596 = vadd.f32 0.0, %v595
  %v597 = vpop.f32.mrf.mxu0
  %v598 = vadd.f32 0.0, %v597
  %599 = vmatmul.bf16.gmra.mxu0 %v379
  %v600 = vpop.f32.mrf.mxu0
  %v601 = vadd.f32 0.0, %v600
  %v602 = vpop.f32.mrf.mxu0
  %v603 = vadd.f32 0.0, %v602
  %604 = vmatmul.bf16.gmra.mxu0 %v380
  %v605 = vpop.f32.mrf.mxu0
  %v606 = vadd.f32 0.0, %v605
  %v607 = vpop.f32.mrf.mxu0
  %v608 = vadd.f32 0.0, %v607
  %609 = vmatmul.bf16.gmra.mxu0 %v381
  %v610 = vpop.f32.mrf.mxu0
  %v611 = vadd.f32 0.0, %v610
  %v612 = vpop.f32.mrf.mxu0
  %v613 = vadd.f32 0.0, %v612
  %614 = vmatmul.bf16.gmra.mxu0 %v382
  %v615 = vpop.f32.mrf.mxu0
  %v616 = vadd.f32 0.0, %v615
  %v617 = vpop.f32.mrf.mxu0
  %v618 = vadd.f32 0.0, %v617
  %619 = vmatmul.bf16.gmra.mxu0 %v383
  %v620 = vpop.f32.mrf.mxu0
  %v621 = vadd.f32 0.0, %v620
  %v622 = vpop.f32.mrf.mxu0
  %v623 = vadd.f32 0.0, %v622
  %624 = vmatmul.bf16.gmra.mxu0 %v384
  %v625 = vpop.f32.mrf.mxu0
  %v626 = vadd.f32 0.0, %v625
  %v627 = vpop.f32.mrf.mxu0
  %v628 = vadd.f32 0.0, %v627
  %629 = vmatmul.bf16.gmra.mxu0 %v385
  %v630 = vpop.f32.mrf.mxu0
  %v631 = vadd.f32 0.0, %v630
  %v632 = vpop.f32.mrf.mxu0
  %v633 = vadd.f32 0.0, %v632
  %634 = vdwg.mxu0
  %v635 = vadd.f32 %v82, %v476
  %v636 = vadd.f32 %v83, %v478
  %v637 = vadd.f32 %v84, %v481
  %v638 = vadd.f32 %v85, %v483
  %v639 = vadd.f32 %v86, %v486
  %v640 = vadd.f32 %v87, %v488
  %v641 = vadd.f32 %v88, %v491
  %v642 = vadd.f32 %v89, %v493
  %v643 = vadd.f32 %v90, %v496
  %v644 = vadd.f32 %v91, %v498
  %v645 = vadd.f32 %v92, %v501
  %v646 = vadd.f32 %v93, %v503
  %v647 = vadd.f32 %v94, %v506
  %v648 = vadd.f32 %v95, %v508
  %v649 = vadd.f32 %v96, %v511
  %v650 = vadd.f32 %v97, %v513
  %v651 = vadd.f32 %v98, %v516
  %v652 = vadd.f32 %v99, %v518
  %v653 = vadd.f32 %v100, %v521
  %v654 = vadd.f32 %v101, %v523
  %v655 = vadd.f32 %v102, %v526
  %v656 = vadd.f32 %v103, %v528
  %v657 = vadd.f32 %v104, %v531
  %v658 = vadd.f32 %v105, %v533
  %v659 = vadd.f32 %v106, %v536
  %v660 = vadd.f32 %v107, %v538
  %v661 = vadd.f32 %v108, %v541
  %v662 = vadd.f32 %v109, %v543
  %v663 = vadd.f32 %v110, %v546
  %v664 = vadd.f32 %v111, %v548
  %v665 = vadd.f32 %v112, %v551
  %v666 = vadd.f32 %v113, %v553
  %v667 = vadd.f32 %v114, %v556
  %v668 = vadd.f32 %v115, %v558
  %v669 = vadd.f32 %v116, %v561
  %v670 = vadd.f32 %v117, %v563
  %v671 = vadd.f32 %v118, %v566
  %v672 = vadd.f32 %v119, %v568
  %v673 = vadd.f32 %v120, %v571
  %v674 = vadd.f32 %v121, %v573
  %v675 = vadd.f32 %v122, %v576
  %v676 = vadd.f32 %v123, %v578
  %v677 = vadd.f32 %v124, %v581
  %v678 = vadd.f32 %v125, %v583
  %v679 = vadd.f32 %v126, %v586
  %v680 = vadd.f32 %v127, %v588
  %v681 = vadd.f32 %v128, %v591
  %v682 = vadd.f32 %v129, %v593
  %v683 = vadd.f32 %v130, %v596
  %v684 = vadd.f32 %v131, %v598
  %v685 = vadd.f32 %v132, %v601
  %v686 = vadd.f32 %v133, %v603
  %v687 = vadd.f32 %v134, %v606
  %v688 = vadd.f32 %v135, %v608
  %v689 = vadd.f32 %v136, %v611
  %v690 = vadd.f32 %v137, %v613
  %v691 = vadd.f32 %v138, %v616
  %v692 = vadd.f32 %v139, %v618
  %v693 = vadd.f32 %v140, %v621
  %v694 = vadd.f32 %v141, %v623
  %v695 = vadd.f32 %v142, %v626
  %v696 = vadd.f32 %v143, %v628
  %v697 = vadd.f32 %v144, %v631
  %v698 = vadd.f32 %v145, %v633
  %699 = vst [vmem:[#allocation2] sm:$0xff] %v635
  %700 = vst [vmem:[#allocation2 + $0x8] sm:$0xff] %v636
  %701 = vst [vmem:[#allocation2 + $0x10] sm:$0xff] %v637
  %702 = vst [vmem:[#allocation2 + $0x18] sm:$0xff] %v638
  %703 = vst [vmem:[#allocation2 + $0x20] sm:$0xff] %v639
  %704 = vst [vmem:[#allocation2 + $0x28] sm:$0xff] %v640
  %705 = vst [vmem:[#allocation2 + $0x30] sm:$0xff] %v641
  %706 = vst [vmem:[#allocation2 + $0x38] sm:$0xff] %v642
  %707 = vst [vmem:[#allocation2 + $0x40] sm:$0xff] %v643
  %708 = vst [vmem:[#allocation2 + $0x48] sm:$0xff] %v644
  %709 = vst [vmem:[#allocation2 + $0x50] sm:$0xff] %v645
  %710 = vst [vmem:[#allocation2 + $0x58] sm:$0xff] %v646
  %711 = vst [vmem:[#allocation2 + $0x60] sm:$0xff] %v647
  %712 = vst [vmem:[#allocation2 + $0x68] sm:$0xff] %v648
  %713 = vst [vmem:[#allocation2 + $0x70] sm:$0xff] %v649
  %714 = vst [vmem:[#allocation2 + $0x78] sm:$0xff] %v650
  %715 = vst [vmem:[#allocation2 + $0x80] sm:$0xff] %v651
  %716 = vst [vmem:[#allocation2 + $0x88] sm:$0xff] %v652
  %717 = vst [vmem:[#allocation2 + $0x90] sm:$0xff] %v653
  %718 = vst [vmem:[#allocation2 + $0x98] sm:$0xff] %v654
  %719 = vst [vmem:[#allocation2 + $0xa0] sm:$0xff] %v655
  %720 = vst [vmem:[#allocation2 + $0xa8] sm:$0xff] %v656
  %721 = vst [vmem:[#allocation2 + $0xb0] sm:$0xff] %v657
  %722 = vst [vmem:[#allocation2 + $0xb8] sm:$0xff] %v658
  %723 = vst [vmem:[#allocation2 + $0xc0] sm:$0xff] %v659
  %724 = vst [vmem:[#allocation2 + $0xc8] sm:$0xff] %v660
  %725 = vst [vmem:[#allocation2 + $0xd0] sm:$0xff] %v661
  %726 = vst [vmem:[#allocation2 + $0xd8] sm:$0xff] %v662
  %727 = vst [vmem:[#allocation2 + $0xe0] sm:$0xff] %v663
  %728 = vst [vmem:[#allocation2 + $0xe8] sm:$0xff] %v664
  %729 = vst [vmem:[#allocation2 + $0xf0] sm:$0xff] %v665
  %730 = vst [vmem:[#allocation2 + $0xf8] sm:$0xff] %v666
  %731 = vst [vmem:[#allocation2 + $0x100] sm:$0xff] %v667
  %732 = vst [vmem:[#allocation2 + $0x108] sm:$0xff] %v668
  %733 = vst [vmem:[#allocation2 + $0x110] sm:$0xff] %v669
  %734 = vst [vmem:[#allocation2 + $0x118] sm:$0xff] %v670
  %735 = vst [vmem:[#allocation2 + $0x120] sm:$0xff] %v671
  %736 = vst [vmem:[#allocation2 + $0x128] sm:$0xff] %v672
  %737 = vst [vmem:[#allocation2 + $0x130] sm:$0xff] %v673
  %738 = vst [vmem:[#allocation2 + $0x138] sm:$0xff] %v674
  %739 = vst [vmem:[#allocation2 + $0x140] sm:$0xff] %v675
  %740 = vst [vmem:[#allocation2 + $0x148] sm:$0xff] %v676
  %741 = vst [vmem:[#allocation2 + $0x150] sm:$0xff] %v677
  %742 = vst [vmem:[#allocation2 + $0x158] sm:$0xff] %v678
  %743 = vst [vmem:[#allocation2 + $0x160] sm:$0xff] %v679
  %744 = vst [vmem:[#allocation2 + $0x168] sm:$0xff] %v680
  %745 = vst [vmem:[#allocation2 + $0x170] sm:$0xff] %v681
  %746 = vst [vmem:[#allocation2 + $0x178] sm:$0xff] %v682
  %747 = vst [vmem:[#allocation2 + $0x180] sm:$0xff] %v683
  %748 = vst [vmem:[#allocation2 + $0x188] sm:$0xff] %v684
  %749 = vst [vmem:[#allocation2 + $0x190] sm:$0xff] %v685
  %750 = vst [vmem:[#allocation2 + $0x198] sm:$0xff] %v686
  %751 = vst [vmem:[#allocation2 + $0x1a0] sm:$0xff] %v687
  %752 = vst [vmem:[#allocation2 + $0x1a8] sm:$0xff] %v688
  %753 = vst [vmem:[#allocation2 + $0x1b0] sm:$0xff] %v689
  %754 = vst [vmem:[#allocation2 + $0x1b8] sm:$0xff] %v690
  %755 = vst [vmem:[#allocation2 + $0x1c0] sm:$0xff] %v691
  %756 = vst [vmem:[#allocation2 + $0x1c8] sm:$0xff] %v692
  %757 = vst [vmem:[#allocation2 + $0x1d0] sm:$0xff] %v693
  %758 = vst [vmem:[#allocation2 + $0x1d8] sm:$0xff] %v694
  %759 = vst [vmem:[#allocation2 + $0x1e0] sm:$0xff] %v695
  %760 = vst [vmem:[#allocation2 + $0x1e8] sm:$0xff] %v696
  %761 = vst [vmem:[#allocation2 + $0x1f0] sm:$0xff] %v697
  %762 = vst [vmem:[#allocation2 + $0x1f8] sm:$0xff] %v698
  // Predicated region
  $region18: #{syn_model_forward.209} parent=0 // pred_check
    %p763 = pneg %p14
  $region19: #{syn_model_forward.209} parent=0 // pred_check_branch
    %765 = sbr.rel (%p763) target = $region21
  $region20: #{syn_model_forward.209} parent=0 // pred_region
    %v766 = vld [vmem:[#allocation2] sm:$0xff]
    %v767 = vld [vmem:[#allocation2 + $0x8] sm:$0xff]
    %v768 = vld [vmem:[#allocation2 + $0x10] sm:$0xff]
    %v769 = vld [vmem:[#allocation2 + $0x18] sm:$0xff]
    %v770 = vld [vmem:[#allocation2 + $0x20] sm:$0xff]
    %v771 = vld [vmem:[#allocation2 + $0x28] sm:$0xff]
    %v772 = vld [vmem:[#allocation2 + $0x30] sm:$0xff]
    %v773 = vld [vmem:[#allocation2 + $0x38] sm:$0xff]
    %v774 = vld [vmem:[#allocation2 + $0x40] sm:$0xff]
    %v775 = vld [vmem:[#allocation2 + $0x48] sm:$0xff]
    %v776 = vld [vmem:[#allocation2 + $0x50] sm:$0xff]
    %v777 = vld [vmem:[#allocation2 + $0x58] sm:$0xff]
    %v778 = vld [vmem:[#allocation2 + $0x60] sm:$0xff]
    %v779 = vld [vmem:[#allocation2 + $0x68] sm:$0xff]
    %v780 = vld [vmem:[#allocation2 + $0x70] sm:$0xff]
    %v781 = vld [vmem:[#allocation2 + $0x78] sm:$0xff]
    %v782 = vld [vmem:[#allocation2 + $0x80] sm:$0xff]
    %v783 = vld [vmem:[#allocation2 + $0x88] sm:$0xff]
    %v784 = vld [vmem:[#allocation2 + $0x90] sm:$0xff]
    %v785 = vld [vmem:[#allocation2 + $0x98] sm:$0xff]
    %v786 = vld [vmem:[#allocation2 + $0xa0] sm:$0xff]
    %v787 = vld [vmem:[#allocation2 + $0xa8] sm:$0xff]
    %v788 = vld [vmem:[#allocation2 + $0xb0] sm:$0xff]
    %v789 = vld [vmem:[#allocation2 + $0xb8] sm:$0xff]
    %v790 = vld [vmem:[#allocation2 + $0xc0] sm:$0xff]
    %v791 = vld [vmem:[#allocation2 + $0xc8] sm:$0xff]
    %v792 = vld [vmem:[#allocation2 + $0xd0] sm:$0xff]
    %v793 = vld [vmem:[#allocation2 + $0xd8] sm:$0xff]
    %v794 = vld [vmem:[#allocation2 + $0xe0] sm:$0xff]
    %v795 = vld [vmem:[#allocation2 + $0xe8] sm:$0xff]
    %v796 = vld [vmem:[#allocation2 + $0xf0] sm:$0xff]
    %v797 = vld [vmem:[#allocation2 + $0xf8] sm:$0xff]
    %v798 = vld [vmem:[#allocation2 + $0x100] sm:$0xff]
    %v799 = vld [vmem:[#allocation2 + $0x108] sm:$0xff]
    %v800 = vld [vmem:[#allocation2 + $0x110] sm:$0xff]
    %v801 = vld [vmem:[#allocation2 + $0x118] sm:$0xff]
    %v802 = vld [vmem:[#allocation2 + $0x120] sm:$0xff]
    %v803 = vld [vmem:[#allocation2 + $0x128] sm:$0xff]
    %v804 = vld [vmem:[#allocation2 + $0x130] sm:$0xff]
    %v805 = vld [vmem:[#allocation2 + $0x138] sm:$0xff]
    %v806 = vld [vmem:[#allocation2 + $0x140] sm:$0xff]
    %v807 = vld [vmem:[#allocation2 + $0x148] sm:$0xff]
    %v808 = vld [vmem:[#allocation2 + $0x150] sm:$0xff]
    %v809 = vld [vmem:[#allocation2 + $0x158] sm:$0xff]
    %v810 = vld [vmem:[#allocation2 + $0x160] sm:$0xff]
    %v811 = vld [vmem:[#allocation2 + $0x168] sm:$0xff]
    %v812 = vld [vmem:[#allocation2 + $0x170] sm:$0xff]
    %v813 = vld [vmem:[#allocation2 + $0x178] sm:$0xff]
    %v814 = vld [vmem:[#allocation2 + $0x180] sm:$0xff]
    %v815 = vld [vmem:[#allocation2 + $0x188] sm:$0xff]
    %v816 = vld [vmem:[#allocation2 + $0x190] sm:$0xff]
    %v817 = vld [vmem:[#allocation2 + $0x198] sm:$0xff]
    %v818 = vld [vmem:[#allocation2 + $0x1a0] sm:$0xff]
    %v819 = vld [vmem:[#allocation2 + $0x1a8] sm:$0xff]
    %v820 = vld [vmem:[#allocation2 + $0x1b0] sm:$0xff]
    %v821 = vld [vmem:[#allocation2 + $0x1b8] sm:$0xff]
    %v822 = vld [vmem:[#allocation2 + $0x1c0] sm:$0xff]
    %v823 = vld [vmem:[#allocation2 + $0x1c8] sm:$0xff]
    %v824 = vld [vmem:[#allocation2 + $0x1d0] sm:$0xff]
    %v825 = vld [vmem:[#allocation2 + $0x1d8] sm:$0xff]
    %v826 = vld [vmem:[#allocation2 + $0x1e0] sm:$0xff]
    %v827 = vld [vmem:[#allocation2 + $0x1e8] sm:$0xff]
    %v828 = vld [vmem:[#allocation2 + $0x1f0] sm:$0xff]
    %v829 = vld [vmem:[#allocation2 + $0x1f8] sm:$0xff]
    %v830 = vld [vmem:[%s2] sm:$0x1]
    %v832 = vperm.slane %v830, 0
    %v834 = vadd.f32 %v766, %v832
    %v835 = vadd.f32 %v767, %v832
    %v836 = vadd.f32 %v768, %v832
    %v837 = vadd.f32 %v769, %v832
    %v838 = vadd.f32 %v770, %v832
    %v839 = vadd.f32 %v771, %v832
    %v840 = vadd.f32 %v772, %v832
    %v841 = vadd.f32 %v773, %v832
    %v842 = vadd.f32 %v774, %v832
    %v843 = vadd.f32 %v775, %v832
    %v844 = vadd.f32 %v776, %v832
    %v845 = vadd.f32 %v777, %v832
    %v846 = vadd.f32 %v778, %v832
    %v847 = vadd.f32 %v779, %v832
    %v848 = vadd.f32 %v780, %v832
    %v849 = vadd.f32 %v781, %v832
    %v850 = vadd.f32 %v782, %v832
    %v851 = vadd.f32 %v783, %v832
    %v852 = vadd.f32 %v784, %v832
    %v853 = vadd.f32 %v785, %v832
    %v854 = vadd.f32 %v786, %v832
    %v855 = vadd.f32 %v787, %v832
    %v856 = vadd.f32 %v788, %v832
    %v857 = vadd.f32 %v789, %v832
    %v858 = vadd.f32 %v790, %v832
    %v859 = vadd.f32 %v791, %v832
    %v860 = vadd.f32 %v792, %v832
    %v861 = vadd.f32 %v793, %v832
    %v862 = vadd.f32 %v794, %v832
    %v863 = vadd.f32 %v795, %v832
    %v864 = vadd.f32 %v796, %v832
    %v865 = vadd.f32 %v797, %v832
    %v866 = vadd.f32 %v798, %v832
    %v867 = vadd.f32 %v799, %v832
    %v868 = vadd.f32 %v800, %v832
    %v869 = vadd.f32 %v801, %v832
    %v870 = vadd.f32 %v802, %v832
    %v871 = vadd.f32 %v803, %v832
    %v872 = vadd.f32 %v804, %v832
    %v873 = vadd.f32 %v805, %v832
    %v874 = vadd.f32 %v806, %v832
    %v875 = vadd.f32 %v807, %v832
    %v876 = vadd.f32 %v808, %v832
    %v877 = vadd.f32 %v809, %v832
    %v878 = vadd.f32 %v810, %v832
    %v879 = vadd.f32 %v811, %v832
    %v880 = vadd.f32 %v812, %v832
    %v881 = vadd.f32 %v813, %v832
    %v882 = vadd.f32 %v814, %v832
    %v883 = vadd.f32 %v815, %v832
    %v884 = vadd.f32 %v816, %v832
    %v885 = vadd.f32 %v817, %v832
    %v886 = vadd.f32 %v818, %v832
    %v887 = vadd.f32 %v819, %v832
    %v888 = vadd.f32 %v820, %v832
    %v889 = vadd.f32 %v821, %v832
    %v890 = vadd.f32 %v822, %v832
    %v891 = vadd.f32 %v823, %v832
    %v892 = vadd.f32 %v824, %v832
    %v893 = vadd.f32 %v825, %v832
    %v894 = vadd.f32 %v826, %v832
    %v895 = vadd.f32 %v827, %v832
    %v896 = vadd.f32 %v828, %v832
    %v897 = vadd.f32 %v829, %v832
    %v898 = vmax.f32 %v834, 0.0
    %v899 = vmax.f32 %v835, 0.0
    %v900 = vmax.f32 %v836, 0.0
    %v901 = vmax.f32 %v837, 0.0
    %v902 = vmax.f32 %v838, 0.0
    %v903 = vmax.f32 %v839, 0.0
    %v904 = vmax.f32 %v840, 0.0
    %v905 = vmax.f32 %v841, 0.0
    %v906 = vmax.f32 %v842, 0.0
    %v907 = vmax.f32 %v843, 0.0
    %v908 = vmax.f32 %v844, 0.0
    %v909 = vmax.f32 %v845, 0.0
    %v910 = vmax.f32 %v846, 0.0
    %v911 = vmax.f32 %v847, 0.0
    %v912 = vmax.f32 %v848, 0.0
    %v913 = vmax.f32 %v849, 0.0
    %v914 = vmax.f32 %v850, 0.0
    %v915 = vmax.f32 %v851, 0.0
    %v916 = vmax.f32 %v852, 0.0
    %v917 = vmax.f32 %v853, 0.0
    %v918 = vmax.f32 %v854, 0.0
    %v919 = vmax.f32 %v855, 0.0
    %v920 = vmax.f32 %v856, 0.0
    %v921 = vmax.f32 %v857, 0.0
    %v922 = vmax.f32 %v858, 0.0
    %v923 = vmax.f32 %v859, 0.0
    %v924 = vmax.f32 %v860, 0.0
    %v925 = vmax.f32 %v861, 0.0
    %v926 = vmax.f32 %v862, 0.0
    %v927 = vmax.f32 %v863, 0.0
    %v928 = vmax.f32 %v864, 0.0
    %v929 = vmax.f32 %v865, 0.0
    %v930 = vmax.f32 %v866, 0.0
    %v931 = vmax.f32 %v867, 0.0
    %v932 = vmax.f32 %v868, 0.0
    %v933 = vmax.f32 %v869, 0.0
    %v934 = vmax.f32 %v870, 0.0
    %v935 = vmax.f32 %v871, 0.0
    %v936 = vmax.f32 %v872, 0.0
    %v937 = vmax.f32 %v873, 0.0
    %v938 = vmax.f32 %v874, 0.0
    %v939 = vmax.f32 %v875, 0.0
    %v940 = vmax.f32 %v876, 0.0
    %v941 = vmax.f32 %v877, 0.0
    %v942 = vmax.f32 %v878, 0.0
    %v943 = vmax.f32 %v879, 0.0
    %v944 = vmax.f32 %v880, 0.0
    %v945 = vmax.f32 %v881, 0.0
    %v946 = vmax.f32 %v882, 0.0
    %v947 = vmax.f32 %v883, 0.0
    %v948 = vmax.f32 %v884, 0.0
    %v949 = vmax.f32 %v885, 0.0
    %v950 = vmax.f32 %v886, 0.0
    %v951 = vmax.f32 %v887, 0.0
    %v952 = vmax.f32 %v888, 0.0
    %v953 = vmax.f32 %v889, 0.0
    %v954 = vmax.f32 %v890, 0.0
    %v955 = vmax.f32 %v891, 0.0
    %v956 = vmax.f32 %v892, 0.0
    %v957 = vmax.f32 %v893, 0.0
    %v958 = vmax.f32 %v894, 0.0
    %v959 = vmax.f32 %v895, 0.0
    %v960 = vmax.f32 %v896, 0.0
    %v961 = vmax.f32 %v897, 0.0
    %962 = vst [vmem:[%s3] sm:$0xff] %v898
    %963 = vst [vmem:[%s3 + $0x8] sm:$0xff] %v899
    %964 = vst [vmem:[%s3 + $0x10] sm:$0xff] %v900
    %965 = vst [vmem:[%s3 + $0x18] sm:$0xff] %v901
    %966 = vst [vmem:[%s3 + $0x20] sm:$0xff] %v902
    %967 = vst [vmem:[%s3 + $0x28] sm:$0xff] %v903
    %968 = vst [vmem:[%s3 + $0x30] sm:$0xff] %v904
    %969 = vst [vmem:[%s3 + $0x38] sm:$0xff] %v905
    %970 = vst [vmem:[%s3 + $0x40] sm:$0xff] %v906
    %971 = vst [vmem:[%s3 + $0x48] sm:$0xff] %v907
    %972 = vst [vmem:[%s3 + $0x50] sm:$0xff] %v908
    %973 = vst [vmem:[%s3 + $0x58] sm:$0xff] %v909
    %974 = vst [vmem:[%s3 + $0x60] sm:$0xff] %v910
    %975 = vst [vmem:[%s3 + $0x68] sm:$0xff] %v911
    %976 = vst [vmem:[%s3 + $0x70] sm:$0xff] %v912
    %977 = vst [vmem:[%s3 + $0x78] sm:$0xff] %v913
    %978 = vst [vmem:[%s3 + $0x80] sm:$0xff] %v914
    %979 = vst [vmem:[%s3 + $0x88] sm:$0xff] %v915
    %980 = vst [vmem:[%s3 + $0x90] sm:$0xff] %v916
    %981 = vst [vmem:[%s3 + $0x98] sm:$0xff] %v917
    %982 = vst [vmem:[%s3 + $0xa0] sm:$0xff] %v918
    %983 = vst [vmem:[%s3 + $0xa8] sm:$0xff] %v919
    %984 = vst [vmem:[%s3 + $0xb0] sm:$0xff] %v920
    %985 = vst [vmem:[%s3 + $0xb8] sm:$0xff] %v921
    %986 = vst [vmem:[%s3 + $0xc0] sm:$0xff] %v922
    %987 = vst [vmem:[%s3 + $0xc8] sm:$0xff] %v923
    %988 = vst [vmem:[%s3 + $0xd0] sm:$0xff] %v924
    %989 = vst [vmem:[%s3 + $0xd8] sm:$0xff] %v925
    %990 = vst [vmem:[%s3 + $0xe0] sm:$0xff] %v926
    %991 = vst [vmem:[%s3 + $0xe8] sm:$0xff] %v927
    %992 = vst [vmem:[%s3 + $0xf0] sm:$0xff] %v928
    %993 = vst [vmem:[%s3 + $0xf8] sm:$0xff] %v929
    %994 = vst [vmem:[%s3 + $0x100] sm:$0xff] %v930
    %995 = vst [vmem:[%s3 + $0x108] sm:$0xff] %v931
    %996 = vst [vmem:[%s3 + $0x110] sm:$0xff] %v932
    %997 = vst [vmem:[%s3 + $0x118] sm:$0xff] %v933
    %998 = vst [vmem:[%s3 + $0x120] sm:$0xff] %v934
    %999 = vst [vmem:[%s3 + $0x128] sm:$0xff] %v935
    %1000 = vst [vmem:[%s3 + $0x130] sm:$0xff] %v936
    %1001 = vst [vmem:[%s3 + $0x138] sm:$0xff] %v937
    %1002 = vst [vmem:[%s3 + $0x140] sm:$0xff] %v938
    %1003 = vst [vmem:[%s3 + $0x148] sm:$0xff] %v939
    %1004 = vst [vmem:[%s3 + $0x150] sm:$0xff] %v940
    %1005 = vst [vmem:[%s3 + $0x158] sm:$0xff] %v941
    %1006 = vst [vmem:[%s3 + $0x160] sm:$0xff] %v942
    %1007 = vst [vmem:[%s3 + $0x168] sm:$0xff] %v943
    %1008 = vst [vmem:[%s3 + $0x170] sm:$0xff] %v944
    %1009 = vst [vmem:[%s3 + $0x178] sm:$0xff] %v945
    %1010 = vst [vmem:[%s3 + $0x180] sm:$0xff] %v946
    %1011 = vst [vmem:[%s3 + $0x188] sm:$0xff] %v947
    %1012 = vst [vmem:[%s3 + $0x190] sm:$0xff] %v948
    %1013 = vst [vmem:[%s3 + $0x198] sm:$0xff] %v949
    %1014 = vst [vmem:[%s3 + $0x1a0] sm:$0xff] %v950
    %1015 = vst [vmem:[%s3 + $0x1a8] sm:$0xff] %v951
    %1016 = vst [vmem:[%s3 + $0x1b0] sm:$0xff] %v952
    %1017 = vst [vmem:[%s3 + $0x1b8] sm:$0xff] %v953
    %1018 = vst [vmem:[%s3 + $0x1c0] sm:$0xff] %v954
    %1019 = vst [vmem:[%s3 + $0x1c8] sm:$0xff] %v955
    %1020 = vst [vmem:[%s3 + $0x1d0] sm:$0xff] %v956
    %1021 = vst [vmem:[%s3 + $0x1d8] sm:$0xff] %v957
    %1022 = vst [vmem:[%s3 + $0x1e0] sm:$0xff] %v958
    %1023 = vst [vmem:[%s3 + $0x1e8] sm:$0xff] %v959
    %1024 = vst [vmem:[%s3 + $0x1f0] sm:$0xff] %v960
    %1025 = vst [vmem:[%s3 + $0x1f8] sm:$0xff] %v961
  $region21: #{syn_model_forward.209} parent=0 // pred_fallthru
    _
  // Predicated region
  $region22: #{syn_model_forward.209} parent=0 // pred_check
    _
  $region23: #{syn_model_forward.209} parent=0 // pred_check_branch
    %1027 = sbr.rel (0) target = $region25
  $region24: #{syn_model_forward.209} parent=0 // pred_region
    _
  $region25: #{syn_model_forward.209} parent=0 // pred_fallthru
    _
  // Predicated region
  $region26: #{syn_model_forward.209} parent=0 // pred_check
    _
  $region27: #{syn_model_forward.209} parent=0 // pred_check_branch
    %1029 = sbr.rel (0) target = $region29
  $region28: #{syn_model_forward.209} parent=0 // pred_region
    _
  $region29: #{syn_model_forward.209} parent=0 // pred_fallthru
    _

// kernel: syn_model_forward.214
$region0: #{syn_model_forward.214}
  #allocation0 [shape = 'u32[]', space=smem, size = 0x4, offset = 0x4, fixed_abs, tag = 'smem constant byte address 0x4 - core index']
  #allocation1 [shape = 'u32[72,128]{1,0:T(1,128)}', space=vmem, size = 0x9000, scoped, tag = 'internal scratch']
  #allocation2 [shape = 'f32[512,128]{1,0:T(8,128)}', space=vmem, size = 0x40000, scoped, tag = 'scratch operand']
  %s0 = inlined_call_operand.vmem [shape: bf16[512,128], index: 0, kind: input, shape index: {}]
  %s1 = inlined_call_operand.vmem [shape: bf16[128,128], index: 1, kind: input, shape index: {}]
  %s2 = inlined_call_operand.vmem [shape: f32[1,128], index: 2, kind: input, shape index: {}]
  %s3 = inlined_call_operand.vmem [shape: f32[512,128], index: 3, kind: output, shape index: {}]
  %s4 = sld [smem:[#allocation0]]
  $region30: #{syn_model_forward.214} parent=0
    _
  %s6 = ssub.s32 1, %s4
  %s7 = scalar_select 0, %s6, %s4
  // Predicated region
  $region2: #{syn_model_forward.214} parent=0 // pred_check
    _
  $region3: #{syn_model_forward.214} parent=0 // pred_check_branch
    %9 = sbr.rel (0) target = $region5
  $region4: #{syn_model_forward.214} parent=0 // pred_region
    _
  $region5: #{syn_model_forward.214} parent=0 // pred_fallthru
    _
  // Predicated region
  $region6: #{syn_model_forward.214} parent=0 // pred_check
    _
  $region7: #{syn_model_forward.214} parent=0 // pred_check_branch
    %11 = sbr.rel (0) target = $region9
  $region8: #{syn_model_forward.214} parent=0 // pred_region
    _
  $region9: #{syn_model_forward.214} parent=0 // pred_fallthru
    _
  // Predicated region
  $region10: #{syn_model_forward.214} parent=0 // pred_check
    _
  $region11: #{syn_model_forward.214} parent=0 // pred_check_branch
    %13 = sbr.rel (0) target = $region13
  $region12: #{syn_model_forward.214} parent=0 // pred_region
    _
  $region13: #{syn_model_forward.214} parent=0 // pred_fallthru
    _
  %p14 = scmp.eq.s32.totalorder 0, 0
  // Predicated region
  $region14: #{syn_model_forward.214} parent=0 // pred_check
    %p15 = pneg %p14
  $region15: #{syn_model_forward.214} parent=0 // pred_check_branch
    %17 = sbr.rel (%p15) target = $region17
  $region16: #{syn_model_forward.214} parent=0 // pred_region
    %18 = vst [vmem:[#allocation2] sm:$0xff] 0.0
    %19 = vst [vmem:[#allocation2 + $0x8] sm:$0xff] 0.0
    %20 = vst [vmem:[#allocation2 + $0x10] sm:$0xff] 0.0
    %21 = vst [vmem:[#allocation2 + $0x18] sm:$0xff] 0.0
    %22 = vst [vmem:[#allocation2 + $0x20] sm:$0xff] 0.0
    %23 = vst [vmem:[#allocation2 + $0x28] sm:$0xff] 0.0
    %24 = vst [vmem:[#allocation2 + $0x30] sm:$0xff] 0.0
    %25 = vst [vmem:[#allocation2 + $0x38] sm:$0xff] 0.0
    %26 = vst [vmem:[#allocation2 + $0x40] sm:$0xff] 0.0
    %27 = vst [vmem:[#allocation2 + $0x48] sm:$0xff] 0.0
    %28 = vst [vmem:[#allocation2 + $0x50] sm:$0xff] 0.0
    %29 = vst [vmem:[#allocation2 + $0x58] sm:$0xff] 0.0
    %30 = vst [vmem:[#allocation2 + $0x60] sm:$0xff] 0.0
    %31 = vst [vmem:[#allocation2 + $0x68] sm:$0xff] 0.0
    %32 = vst [vmem:[#allocation2 + $0x70] sm:$0xff] 0.0
    %33 = vst [vmem:[#allocation2 + $0x78] sm:$0xff] 0.0
    %34 = vst [vmem:[#allocation2 + $0x80] sm:$0xff] 0.0
    %35 = vst [vmem:[#allocation2 + $0x88] sm:$0xff] 0.0
    %36 = vst [vmem:[#allocation2 + $0x90] sm:$0xff] 0.0
    %37 = vst [vmem:[#allocation2 + $0x98] sm:$0xff] 0.0
    %38 = vst [vmem:[#allocation2 + $0xa0] sm:$0xff] 0.0
    %39 = vst [vmem:[#allocation2 + $0xa8] sm:$0xff] 0.0
    %40 = vst [vmem:[#allocation2 + $0xb0] sm:$0xff] 0.0
    %41 = vst [vmem:[#allocation2 + $0xb8] sm:$0xff] 0.0
    %42 = vst [vmem:[#allocation2 + $0xc0] sm:$0xff] 0.0
    %43 = vst [vmem:[#allocation2 + $0xc8] sm:$0xff] 0.0
    %44 = vst [vmem:[#allocation2 + $0xd0] sm:$0xff] 0.0
    %45 = vst [vmem:[#allocation2 + $0xd8] sm:$0xff] 0.0
    %46 = vst [vmem:[#allocation2 + $0xe0] sm:$0xff] 0.0
    %47 = vst [vmem:[#allocation2 + $0xe8] sm:$0xff] 0.0
    %48 = vst [vmem:[#allocation2 + $0xf0] sm:$0xff] 0.0
    %49 = vst [vmem:[#allocation2 + $0xf8] sm:$0xff] 0.0
    %50 = vst [vmem:[#allocation2 + $0x100] sm:$0xff] 0.0
    %51 = vst [vmem:[#allocation2 + $0x108] sm:$0xff] 0.0
    %52 = vst [vmem:[#allocation2 + $0x110] sm:$0xff] 0.0
    %53 = vst [vmem:[#allocation2 + $0x118] sm:$0xff] 0.0
    %54 = vst [vmem:[#allocation2 + $0x120] sm:$0xff] 0.0
    %55 = vst [vmem:[#allocation2 + $0x128] sm:$0xff] 0.0
    %56 = vst [vmem:[#allocation2 + $0x130] sm:$0xff] 0.0
    %57 = vst [vmem:[#allocation2 + $0x138] sm:$0xff] 0.0
    %58 = vst [vmem:[#allocation2 + $0x140] sm:$0xff] 0.0
    %59 = vst [vmem:[#allocation2 + $0x148] sm:$0xff] 0.0
    %60 = vst [vmem:[#allocation2 + $0x150] sm:$0xff] 0.0
    %61 = vst [vmem:[#allocation2 + $0x158] sm:$0xff] 0.0
    %62 = vst [vmem:[#allocation2 + $0x160] sm:$0xff] 0.0
    %63 = vst [vmem:[#allocation2 + $0x168] sm:$0xff] 0.0
    %64 = vst [vmem:[#allocation2 + $0x170] sm:$0xff] 0.0
    %65 = vst [vmem:[#allocation2 + $0x178] sm:$0xff] 0.0
    %66 = vst [vmem:[#allocation2 + $0x180] sm:$0xff] 0.0
    %67 = vst [vmem:[#allocation2 + $0x188] sm:$0xff] 0.0
    %68 = vst [vmem:[#allocation2 + $0x190] sm:$0xff] 0.0
    %69 = vst [vmem:[#allocation2 + $0x198] sm:$0xff] 0.0
    %70 = vst [vmem:[#allocation2 + $0x1a0] sm:$0xff] 0.0
    %71 = vst [vmem:[#allocation2 + $0x1a8] sm:$0xff] 0.0
    %72 = vst [vmem:[#allocation2 + $0x1b0] sm:$0xff] 0.0
    %73 = vst [vmem:[#allocation2 + $0x1b8] sm:$0xff] 0.0
    %74 = vst [vmem:[#allocation2 + $0x1c0] sm:$0xff] 0.0
    %75 = vst [vmem:[#allocation2 + $0x1c8] sm:$0xff] 0.0
    %76 = vst [vmem:[#allocation2 + $0x1d0] sm:$0xff] 0.0
    %77 = vst [vmem:[#allocation2 + $0x1d8] sm:$0xff] 0.0
    %78 = vst [vmem:[#allocation2 + $0x1e0] sm:$0xff] 0.0
    %79 = vst [vmem:[#allocation2 + $0x1e8] sm:$0xff] 0.0
    %80 = vst [vmem:[#allocation2 + $0x1f0] sm:$0xff] 0.0
    %81 = vst [vmem:[#allocation2 + $0x1f8] sm:$0xff] 0.0
  $region17: #{syn_model_forward.214} parent=0 // pred_fallthru
    _
  %v82 = vld [vmem:[#allocation2] sm:$0xff]
  %v83 = vld [vmem:[#allocation2 + $0x8] sm:$0xff]
  %v84 = vld [vmem:[#allocation2 + $0x10] sm:$0xff]
  %v85 = vld [vmem:[#allocation2 + $0x18] sm:$0xff]
  %v86 = vld [vmem:[#allocation2 + $0x20] sm:$0xff]
  %v87 = vld [vmem:[#allocation2 + $0x28] sm:$0xff]
  %v88 = vld [vmem:[#allocation2 + $0x30] sm:$0xff]
  %v89 = vld [vmem:[#allocation2 + $0x38] sm:$0xff]
  %v90 = vld [vmem:[#allocation2 + $0x40] sm:$0xff]
  %v91 = vld [vmem:[#allocation2 + $0x48] sm:$0xff]
  %v92 = vld [vmem:[#allocation2 + $0x50] sm:$0xff]
  %v93 = vld [vmem:[#allocation2 + $0x58] sm:$0xff]
  %v94 = vld [vmem:[#allocation2 + $0x60] sm:$0xff]
  %v95 = vld [vmem:[#allocation2 + $0x68] sm:$0xff]
  %v96 = vld [vmem:[#allocation2 + $0x70] sm:$0xff]
  %v97 = vld [vmem:[#allocation2 + $0x78] sm:$0xff]
  %v98 = vld [vmem:[#allocation2 + $0x80] sm:$0xff]
  %v99 = vld [vmem:[#allocation2 + $0x88] sm:$0xff]
  %v100 = vld [vmem:[#allocation2 + $0x90] sm:$0xff]
  %v101 = vld [vmem:[#allocation2 + $0x98] sm:$0xff]
  %v102 = vld [vmem:[#allocation2 + $0xa0] sm:$0xff]
  %v103 = vld [vmem:[#allocation2 + $0xa8] sm:$0xff]
  %v104 = vld [vmem:[#allocation2 + $0xb0] sm:$0xff]
  %v105 = vld [vmem:[#allocation2 + $0xb8] sm:$0xff]
  %v106 = vld [vmem:[#allocation2 + $0xc0] sm:$0xff]
  %v107 = vld [vmem:[#allocation2 + $0xc8] sm:$0xff]
  %v108 = vld [vmem:[#allocation2 + $0xd0] sm:$0xff]
  %v109 = vld [vmem:[#allocation2 + $0xd8] sm:$0xff]
  %v110 = vld [vmem:[#allocation2 + $0xe0] sm:$0xff]
  %v111 = vld [vmem:[#allocation2 + $0xe8] sm:$0xff]
  %v112 = vld [vmem:[#allocation2 + $0xf0] sm:$0xff]
  %v113 = vld [vmem:[#allocation2 + $0xf8] sm:$0xff]
  %v114 = vld [vmem:[#allocation2 + $0x100] sm:$0xff]
  %v115 = vld [vmem:[#allocation2 + $0x108] sm:$0xff]
  %v116 = vld [vmem:[#allocation2 + $0x110] sm:$0xff]
  %v117 = vld [vmem:[#allocation2 + $0x118] sm:$0xff]
  %v118 = vld [vmem:[#allocation2 + $0x120] sm:$0xff]
  %v119 = vld [vmem:[#allocation2 + $0x128] sm:$0xff]
  %v120 = vld [vmem:[#allocation2 + $0x130] sm:$0xff]
  %v121 = vld [vmem:[#allocation2 + $0x138] sm:$0xff]
  %v122 = vld [vmem:[#allocation2 + $0x140] sm:$0xff]
  %v123 = vld [vmem:[#allocation2 + $0x148] sm:$0xff]
  %v124 = vld [vmem:[#allocation2 + $0x150] sm:$0xff]
  %v125 = vld [vmem:[#allocation2 + $0x158] sm:$0xff]
  %v126 = vld [vmem:[#allocation2 + $0x160] sm:$0xff]
  %v127 = vld [vmem:[#allocation2 + $0x168] sm:$0xff]
  %v128 = vld [vmem:[#allocation2 + $0x170] sm:$0xff]
  %v129 = vld [vmem:[#allocation2 + $0x178] sm:$0xff]
  %v130 = vld [vmem:[#allocation2 + $0x180] sm:$0xff]
  %v131 = vld [vmem:[#allocation2 + $0x188] sm:$0xff]
  %v132 = vld [vmem:[#allocation2 + $0x190] sm:$0xff]
  %v133 = vld [vmem:[#allocation2 + $0x198] sm:$0xff]
  %v134 = vld [vmem:[#allocation2 + $0x1a0] sm:$0xff]
  %v135 = vld [vmem:[#allocation2 + $0x1a8] sm:$0xff]
  %v136 = vld [vmem:[#allocation2 + $0x1b0] sm:$0xff]
  %v137 = vld [vmem:[#allocation2 + $0x1b8] sm:$0xff]
  %v138 = vld [vmem:[#allocation2 + $0x1c0] sm:$0xff]
  %v139 = vld [vmem:[#allocation2 + $0x1c8] sm:$0xff]
  %v140 = vld [vmem:[#allocation2 + $0x1d0] sm:$0xff]
  %v141 = vld [vmem:[#allocation2 + $0x1d8] sm:$0xff]
  %v142 = vld [vmem:[#allocation2 + $0x1e0] sm:$0xff]
  %v143 = vld [vmem:[#allocation2 + $0x1e8] sm:$0xff]
  %v144 = vld [vmem:[#allocation2 + $0x1f0] sm:$0xff]
  %v145 = vld [vmem:[#allocation2 + $0x1f8] sm:$0xff]
  %v146 = vld [vmem:[%s0] sm:$0xf]
  %v147 = vld [vmem:[%s0 + $0x4] sm:$0xf]
  %v148 = vld [vmem:[%s0 + $0x8] sm:$0xf]
  %v149 = vld [vmem:[%s0 + $0xc] sm:$0xf]
  %v150 = vld [vmem:[%s0 + $0x10] sm:$0xf]
  %v151 = vld [vmem:[%s0 + $0x14] sm:$0xf]
  %v152 = vld [vmem:[%s0 + $0x18] sm:$0xf]
  %v153 = vld [vmem:[%s0 + $0x1c] sm:$0xf]
  %v154 = vld [vmem:[%s0 + $0x20] sm:$0xf]
  %v155 = vld [vmem:[%s0 + $0x24] sm:$0xf]
  %v156 = vld [vmem:[%s0 + $0x28] sm:$0xf]
  %v157 = vld [vmem:[%s0 + $0x2c] sm:$0xf]
  %v158 = vld [vmem:[%s0 + $0x30] sm:$0xf]
  %v159 = vld [vmem:[%s0 + $0x34] sm:$0xf]
  %v160 = vld [vmem:[%s0 + $0x38] sm:$0xf]
  %v161 = vld [vmem:[%s0 + $0x3c] sm:$0xf]
  %v162 = vld [vmem:[%s0 + $0x40] sm:$0xf]
  %v163 = vld [vmem:[%s0 + $0x44] sm:$0xf]
  %v164 = vld [vmem:[%s0 + $0x48] sm:$0xf]
  %v165 = vld [vmem:[%s0 + $0x4c] sm:$0xf]
  %v166 = vld [vmem:[%s0 + $0x50] sm:$0xf]
  %v167 = vld [vmem:[%s0 + $0x54] sm:$0xf]
  %v168 = vld [vmem:[%s0 + $0x58] sm:$0xf]
  %v169 = vld [vmem:[%s0 + $0x5c] sm:$0xf]
  %v170 = vld [vmem:[%s0 + $0x60] sm:$0xf]
  %v171 = vld [vmem:[%s0 + $0x64] sm:$0xf]
  %v172 = vld [vmem:[%s0 + $0x68] sm:$0xf]
  %v173 = vld [vmem:[%s0 + $0x6c] sm:$0xf]
  %v174 = vld [vmem:[%s0 + $0x70] sm:$0xf]
  %v175 = vld [vmem:[%s0 + $0x74] sm:$0xf]
  %v176 = vld [vmem:[%s0 + $0x78] sm:$0xf]
  %v177 = vld [vmem:[%s0 + $0x7c] sm:$0xf]
  %v178 = vld [vmem:[%s0 + $0x80] sm:$0xf]
  %v179 = vld [vmem:[%s0 + $0x84] sm:$0xf]
  %v180 = vld [vmem:[%s0 + $0x88] sm:$0xf]
  %v181 = vld [vmem:[%s0 + $0x8c] sm:$0xf]
  %v182 = vld [vmem:[%s0 + $0x90] sm:$0xf]
  %v183 = vld [vmem:[%s0 + $0x94] sm:$0xf]
  %v184 = vld [vmem:[%s0 + $0x98] sm:$0xf]
  %v185 = vld [vmem:[%s0 + $0x9c] sm:$0xf]
  %v186 = vld [vmem:[%s0 + $0xa0] sm:$0xf]
  %v187 = vld [vmem:[%s0 + $0xa4] sm:$0xf]
  %v188 = vld [vmem:[%s0 + $0xa8] sm:$0xf]
  %v189 = vld [vmem:[%s0 + $0xac] sm:$0xf]
  %v190 = vld [vmem:[%s0 + $0xb0] sm:$0xf]
  %v191 = vld [vmem:[%s0 + $0xb4] sm:$0xf]
  %v192 = vld [vmem:[%s0 + $0xb8] sm:$0xf]
  %v193 = vld [vmem:[%s0 + $0xbc] sm:$0xf]
  %v194 = vld [vmem:[%s0 + $0xc0] sm:$0xf]
  %v195 = vld [vmem:[%s0 + $0xc4] sm:$0xf]
  %v196 = vld [vmem:[%s0 + $0xc8] sm:$0xf]
  %v197 = vld [vmem:[%s0 + $0xcc] sm:$0xf]
  %v198 = vld [vmem:[%s0 + $0xd0] sm:$0xf]
  %v199 = vld [vmem:[%s0 + $0xd4] sm:$0xf]
  %v200 = vld [vmem:[%s0 + $0xd8] sm:$0xf]
  %v201 = vld [vmem:[%s0 + $0xdc] sm:$0xf]
  %v202 = vld [vmem:[%s0 + $0xe0] sm:$0xf]
  %v203 = vld [vmem:[%s0 + $0xe4] sm:$0xf]
  %v204 = vld [vmem:[%s0 + $0xe8] sm:$0xf]
  %v205 = vld [vmem:[%s0 + $0xec] sm:$0xf]
  %v206 = vld [vmem:[%s0 + $0xf0] sm:$0xf]
  %v207 = vld [vmem:[%s0 + $0xf4] sm:$0xf]
  %v208 = vld [vmem:[%s0 + $0xf8] sm:$0xf]
  %v209 = vld [vmem:[%s0 + $0xfc] sm:$0xf]
  %v210 = vld [vmem:[%s1] sm:$0xf]
  %v211 = vld [vmem:[%s1 + $0x4] sm:$0xf]
  %v212 = vld [vmem:[%s1 + $0x8] sm:$0xf]
  %v213 = vld [vmem:[%s1 + $0xc] sm:$0xf]
  %v214 = vld [vmem:[%s1 + $0x10] sm:$0xf]
  %v215 = vld [vmem:[%s1 + $0x14] sm:$0xf]
  %v216 = vld [vmem:[%s1 + $0x18] sm:$0xf]
  %v217 = vld [vmem:[%s1 + $0x1c] sm:$0xf]
  %v218 = vld [vmem:[%s1 + $0x20] sm:$0xf]
  %v219 = vld [vmem:[%s1 + $0x24] sm:$0xf]
  %v220 = vld [vmem:[%s1 + $0x28] sm:$0xf]
  %v221 = vld [vmem:[%s1 + $0x2c] sm:$0xf]
  %v222 = vld [vmem:[%s1 + $0x30] sm:$0xf]
  %v223 = vld [vmem:[%s1 + $0x34] sm:$0xf]
  %v224 = vld [vmem:[%s1 + $0x38] sm:$0xf]
  %v225 = vld [vmem:[%s1 + $0x3c] sm:$0xf]
  %v290 = vunpack.c.l.b16 %v146
  %v291 = vunpack.c.l.b16 %v147
  %v292 = vunpack.c.l.b16 %v148
  %v293 = vunpack.c.l.b16 %v149
  %v294 = vunpack.c.l.b16 %v150
  %v295 = vunpack.c.l.b16 %v151
  %v296 = vunpack.c.l.b16 %v152
  %v297 = vunpack.c.l.b16 %v153
  %v298 = vunpack.c.l.b16 %v154
  %v299 = vunpack.c.l.b16 %v155
  %v300 = vunpack.c.l.b16 %v156
  %v301 = vunpack.c.l.b16 %v157
  %v302 = vunpack.c.l.b16 %v158
  %v303 = vunpack.c.l.b16 %v159
  %v304 = vunpack.c.l.b16 %v160
  %v305 = vunpack.c.l.b16 %v161
  %v306 = vunpack.c.l.b16 %v162
  %v307 = vunpack.c.l.b16 %v163
  %v308 = vunpack.c.l.b16 %v164
  %v309 = vunpack.c.l.b16 %v165
  %v310 = vunpack.c.l.b16 %v166
  %v311 = vunpack.c.l.b16 %v167
  %v312 = vunpack.c.l.b16 %v168
  %v313 = vunpack.c.l.b16 %v169
  %v314 = vunpack.c.l.b16 %v170
  %v315 = vunpack.c.l.b16 %v171
  %v316 = vunpack.c.l.b16 %v172
  %v317 = vunpack.c.l.b16 %v173
  %v318 = vunpack.c.l.b16 %v174
  %v319 = vunpack.c.l.b16 %v175
  %v320 = vunpack.c.l.b16 %v176
  %v321 = vunpack.c.l.b16 %v177
  %v322 = vunpack.c.l.b16 %v178
  %v323 = vunpack.c.l.b16 %v179
  %v324 = vunpack.c.l.b16 %v180
  %v325 = vunpack.c.l.b16 %v181
  %v326 = vunpack.c.l.b16 %v182
  %v327 = vunpack.c.l.b16 %v183
  %v328 = vunpack.c.l.b16 %v184
  %v329 = vunpack.c.l.b16 %v185
  %v330 = vunpack.c.l.b16 %v186
  %v331 = vunpack.c.l.b16 %v187
  %v332 = vunpack.c.l.b16 %v188
  %v333 = vunpack.c.l.b16 %v189
  %v334 = vunpack.c.l.b16 %v190
  %v335 = vunpack.c.l.b16 %v191
  %v336 = vunpack.c.l.b16 %v192
  %v337 = vunpack.c.l.b16 %v193
  %v338 = vunpack.c.l.b16 %v194
  %v339 = vunpack.c.l.b16 %v195
  %v340 = vunpack.c.l.b16 %v196
  %v341 = vunpack.c.l.b16 %v197
  %v342 = vunpack.c.l.b16 %v198
  %v343 = vunpack.c.l.b16 %v199
  %v344 = vunpack.c.l.b16 %v200
  %v345 = vunpack.c.l.b16 %v201
  %v346 = vunpack.c.l.b16 %v202
  %v347 = vunpack.c.l.b16 %v203
  %v348 = vunpack.c.l.b16 %v204
  %v349 = vunpack.c.l.b16 %v205
  %v350 = vunpack.c.l.b16 %v206
  %v351 = vunpack.c.l.b16 %v207
  %v352 = vunpack.c.l.b16 %v208
  %v353 = vunpack.c.l.b16 %v209
  %v354 = vpack.c.b16 %v291, %v290
  %v355 = vpack.c.b16 %v293, %v292
  %v356 = vpack.c.b16 %v295, %v294
  %v357 = vpack.c.b16 %v297, %v296
  %v358 = vpack.c.b16 %v299, %v298
  %v359 = vpack.c.b16 %v301, %v300
  %v360 = vpack.c.b16 %v303, %v302
  %v361 = vpack.c.b16 %v305, %v304
  %v362 = vpack.c.b16 %v307, %v306
  %v363 = vpack.c.b16 %v309, %v308
  %v364 = vpack.c.b16 %v311, %v310
  %v365 = vpack.c.b16 %v313, %v312
  %v366 = vpack.c.b16 %v315, %v314
  %v367 = vpack.c.b16 %v317, %v316
  %v368 = vpack.c.b16 %v319, %v318
  %v369 = vpack.c.b16 %v321, %v320
  %v370 = vpack.c.b16 %v323, %v322
  %v371 = vpack.c.b16 %v325, %v324
  %v372 = vpack.c.b16 %v327, %v326
  %v373 = vpack.c.b16 %v329, %v328
  %v374 = vpack.c.b16 %v331, %v330
  %v375 = vpack.c.b16 %v333, %v332
  %v376 = vpack.c.b16 %v335, %v334
  %v377 = vpack.c.b16 %v337, %v336
  %v378 = vpack.c.b16 %v339, %v338
  %v379 = vpack.c.b16 %v341, %v340
  %v380 = vpack.c.b16 %v343, %v342
  %v381 = vpack.c.b16 %v345, %v344
  %v382 = vpack.c.b16 %v347, %v346
  %v383 = vpack.c.b16 %v349, %v348
  %v384 = vpack.c.b16 %v351, %v350
  %v385 = vpack.c.b16 %v353, %v352
  %v434 = vunpack.c.l.b16 %v210
  %v435 = vunpack.c.l.b16 %v211
  %v436 = vunpack.c.l.b16 %v212
  %v437 = vunpack.c.l.b16 %v213
  %v438 = vunpack.c.l.b16 %v214
  %v439 = vunpack.c.l.b16 %v215
  %v440 = vunpack.c.l.b16 %v216
  %v441 = vunpack.c.l.b16 %v217
  %v442 = vunpack.c.l.b16 %v218
  %v443 = vunpack.c.l.b16 %v219
  %v444 = vunpack.c.l.b16 %v220
  %v445 = vunpack.c.l.b16 %v221
  %v446 = vunpack.c.l.b16 %v222
  %v447 = vunpack.c.l.b16 %v223
  %v448 = vunpack.c.l.b16 %v224
  %v449 = vunpack.c.l.b16 %v225
  %v450 = vpack.c.b16 %v435, %v434
  %v451 = vpack.c.b16 %v437, %v436
  %v452 = vpack.c.b16 %v439, %v438
  %v453 = vpack.c.b16 %v441, %v440
  %v454 = vpack.c.b16 %v443, %v442
  %v455 = vpack.c.b16 %v445, %v444
  %v456 = vpack.c.b16 %v447, %v446
  %v457 = vpack.c.b16 %v449, %v448
  %466 = vmatpush.bf16.msra.mxu0 %v457
  %467 = vmatpush.bf16.msra.mxu0 %v456
  %468 = vmatpush.bf16.msra.mxu0 %v455
  %469 = vmatpush.bf16.msra.mxu0 %v454
  %470 = vmatpush.bf16.msra.mxu0 %v453
  %471 = vmatpush.bf16.msra.mxu0 %v452
  %472 = vmatpush.bf16.msra.mxu0 %v451
  %473 = vmatpush.bf16.msra.mxu0 %v450
  %474 = vmatmul.bf16.gmra.mxu0 %v354
  %v475 = vpop.f32.mrf.mxu0
  %v476 = vadd.f32 0.0, %v475
  %v477 = vpop.f32.mrf.mxu0
  %v478 = vadd.f32 0.0, %v477
  %479 = vmatmul.bf16.gmra.mxu0 %v355
  %v480 = vpop.f32.mrf.mxu0
  %v481 = vadd.f32 0.0, %v480
  %v482 = vpop.f32.mrf.mxu0
  %v483 = vadd.f32 0.0, %v482
  %484 = vmatmul.bf16.gmra.mxu0 %v356
  %v485 = vpop.f32.mrf.mxu0
  %v486 = vadd.f32 0.0, %v485
  %v487 = vpop.f32.mrf.mxu0
  %v488 = vadd.f32 0.0, %v487
  %489 = vmatmul.bf16.gmra.mxu0 %v357
  %v490 = vpop.f32.mrf.mxu0
  %v491 = vadd.f32 0.0, %v490
  %v492 = vpop.f32.mrf.mxu0
  %v493 = vadd.f32 0.0, %v492
  %494 = vmatmul.bf16.gmra.mxu0 %v358
  %v495 = vpop.f32.mrf.mxu0
  %v496 = vadd.f32 0.0, %v495
  %v497 = vpop.f32.mrf.mxu0
  %v498 = vadd.f32 0.0, %v497
  %499 = vmatmul.bf16.gmra.mxu0 %v359
  %v500 = vpop.f32.mrf.mxu0
  %v501 = vadd.f32 0.0, %v500
  %v502 = vpop.f32.mrf.mxu0
  %v503 = vadd.f32 0.0, %v502
  %504 = vmatmul.bf16.gmra.mxu0 %v360
  %v505 = vpop.f32.mrf.mxu0
  %v506 = vadd.f32 0.0, %v505
  %v507 = vpop.f32.mrf.mxu0
  %v508 = vadd.f32 0.0, %v507
  %509 = vmatmul.bf16.gmra.mxu0 %v361
  %v510 = vpop.f32.mrf.mxu0
  %v511 = vadd.f32 0.0, %v510
  %v512 = vpop.f32.mrf.mxu0
  %v513 = vadd.f32 0.0, %v512
  %514 = vmatmul.bf16.gmra.mxu0 %v362
  %v515 = vpop.f32.mrf.mxu0
  %v516 = vadd.f32 0.0, %v515
  %v517 = vpop.f32.mrf.mxu0
  %v518 = vadd.f32 0.0, %v517
  %519 = vmatmul.bf16.gmra.mxu0 %v363
  %v520 = vpop.f32.mrf.mxu0
  %v521 = vadd.f32 0.0, %v520
  %v522 = vpop.f32.mrf.mxu0
  %v523 = vadd.f32 0.0, %v522
  %524 = vmatmul.bf16.gmra.mxu0 %v364
  %v525 = vpop.f32.mrf.mxu0
  %v526 = vadd.f32 0.0, %v525
  %v527 = vpop.f32.mrf.mxu0
  %v528 = vadd.f32 0.0, %v527
  %529 = vmatmul.bf16.gmra.mxu0 %v365
  %v530 = vpop.f32.mrf.mxu0
  %v531 = vadd.f32 0.0, %v530
  %v532 = vpop.f32.mrf.mxu0
  %v533 = vadd.f32 0.0, %v532
  %534 = vmatmul.bf16.gmra.mxu0 %v366
  %v535 = vpop.f32.mrf.mxu0
  %v536 = vadd.f32 0.0, %v535
  %v537 = vpop.f32.mrf.mxu0
  %v538 = vadd.f32 0.0, %v537
  %539 = vmatmul.bf16.gmra.mxu0 %v367
  %v540 = vpop.f32.mrf.mxu0
  %v541 = vadd.f32 0.0, %v540
  %v542 = vpop.f32.mrf.mxu0
  %v543 = vadd.f32 0.0, %v542
  %544 = vmatmul.bf16.gmra.mxu0 %v368
  %v545 = vpop.f32.mrf.mxu0
  %v546 = vadd.f32 0.0, %v545
  %v547 = vpop.f32.mrf.mxu0
  %v548 = vadd.f32 0.0, %v547
  %549 = vmatmul.bf16.gmra.mxu0 %v369
  %v550 = vpop.f32.mrf.mxu0
  %v551 = vadd.f32 0.0, %v550
  %v552 = vpop.f32.mrf.mxu0
  %v553 = vadd.f32 0.0, %v552
  %554 = vmatmul.bf16.gmra.mxu0 %v370
  %v555 = vpop.f32.mrf.mxu0
  %v556 = vadd.f32 0.0, %v555
  %v557 = vpop.f32.mrf.mxu0
  %v558 = vadd.f32 0.0, %v557
  %559 = vmatmul.bf16.gmra.mxu0 %v371
  %v560 = vpop.f32.mrf.mxu0
  %v561 = vadd.f32 0.0, %v560
  %v562 = vpop.f32.mrf.mxu0
  %v563 = vadd.f32 0.0, %v562
  %564 = vmatmul.bf16.gmra.mxu0 %v372
  %v565 = vpop.f32.mrf.mxu0
  %v566 = vadd.f32 0.0, %v565
  %v567 = vpop.f32.mrf.mxu0
  %v568 = vadd.f32 0.0, %v567
  %569 = vmatmul.bf16.gmra.mxu0 %v373
  %v570 = vpop.f32.mrf.mxu0
  %v571 = vadd.f32 0.0, %v570
  %v572 = vpop.f32.mrf.mxu0
  %v573 = vadd.f32 0.0, %v572
  %574 = vmatmul.bf16.gmra.mxu0 %v374
  %v575 = vpop.f32.mrf.mxu0
  %v576 = vadd.f32 0.0, %v575
  %v577 = vpop.f32.mrf.mxu0
  %v578 = vadd.f32 0.0, %v577
  %579 = vmatmul.bf16.gmra.mxu0 %v375
  %v580 = vpop.f32.mrf.mxu0
  %v581 = vadd.f32 0.0, %v580
  %v582 = vpop.f32.mrf.mxu0
  %v583 = vadd.f32 0.0, %v582
  %584 = vmatmul.bf16.gmra.mxu0 %v376
  %v585 = vpop.f32.mrf.mxu0
  %v586 = vadd.f32 0.0, %v585
  %v587 = vpop.f32.mrf.mxu0
  %v588 = vadd.f32 0.0, %v587
  %589 = vmatmul.bf16.gmra.mxu0 %v377
  %v590 = vpop.f32.mrf.mxu0
  %v591 = vadd.f32 0.0, %v590
  %v592 = vpop.f32.mrf.mxu0
  %v593 = vadd.f32 0.0, %v592
  %594 = vmatmul.bf16.gmra.mxu0 %v378
  %v595 = vpop.f32.mrf.mxu0
  %v596 = vadd.f32 0.0, %v595
  %v597 = vpop.f32.mrf.mxu0
  %v598 = vadd.f32 0.0, %v597
  %599 = vmatmul.bf16.gmra.mxu0 %v379
  %v600 = vpop.f32.mrf.mxu0
  %v601 = vadd.f32 0.0, %v600
  %v602 = vpop.f32.mrf.mxu0
  %v603 = vadd.f32 0.0, %v602
  %604 = vmatmul.bf16.gmra.mxu0 %v380
  %v605 = vpop.f32.mrf.mxu0
  %v606 = vadd.f32 0.0, %v605
  %v607 = vpop.f32.mrf.mxu0
  %v608 = vadd.f32 0.0, %v607
  %609 = vmatmul.bf16.gmra.mxu0 %v381
  %v610 = vpop.f32.mrf.mxu0
  %v611 = vadd.f32 0.0, %v610
  %v612 = vpop.f32.mrf.mxu0
  %v613 = vadd.f32 0.0, %v612
  %614 = vmatmul.bf16.gmra.mxu0 %v382
  %v615 = vpop.f32.mrf.mxu0
  %v616 = vadd.f32 0.0, %v615
  %v617 = vpop.f32.mrf.mxu0
  %v618 = vadd.f32 0.0, %v617
  %619 = vmatmul.bf16.gmra.mxu0 %v383
  %v620 = vpop.f32.mrf.mxu0
  %v621 = vadd.f32 0.0, %v620
  %v622 = vpop.f32.mrf.mxu0
  %v623 = vadd.f32 0.0, %v622
  %624 = vmatmul.bf16.gmra.mxu0 %v384
  %v625 = vpop.f32.mrf.mxu0
  %v626 = vadd.f32 0.0, %v625
  %v627 = vpop.f32.mrf.mxu0
  %v628 = vadd.f32 0.0, %v627
  %629 = vmatmul.bf16.gmra.mxu0 %v385
  %v630 = vpop.f32.mrf.mxu0
  %v631 = vadd.f32 0.0, %v630
  %v632 = vpop.f32.mrf.mxu0
  %v633 = vadd.f32 0.0, %v632
  %634 = vdwg.mxu0
  %v635 = vadd.f32 %v82, %v476
  %v636 = vadd.f32 %v83, %v478
  %v637 = vadd.f32 %v84, %v481
  %v638 = vadd.f32 %v85, %v483
  %v639 = vadd.f32 %v86, %v486
  %v640 = vadd.f32 %v87, %v488
  %v641 = vadd.f32 %v88, %v491
  %v642 = vadd.f32 %v89, %v493
  %v643 = vadd.f32 %v90, %v496
  %v644 = vadd.f32 %v91, %v498
  %v645 = vadd.f32 %v92, %v501
  %v646 = vadd.f32 %v93, %v503
  %v647 = vadd.f32 %v94, %v506
  %v648 = vadd.f32 %v95, %v508
  %v649 = vadd.f32 %v96, %v511
  %v650 = vadd.f32 %v97, %v513
  %v651 = vadd.f32 %v98, %v516
  %v652 = vadd.f32 %v99, %v518
  %v653 = vadd.f32 %v100, %v521
  %v654 = vadd.f32 %v101, %v523
  %v655 = vadd.f32 %v102, %v526
  %v656 = vadd.f32 %v103, %v528
  %v657 = vadd.f32 %v104, %v531
  %v658 = vadd.f32 %v105, %v533
  %v659 = vadd.f32 %v106, %v536
  %v660 = vadd.f32 %v107, %v538
  %v661 = vadd.f32 %v108, %v541
  %v662 = vadd.f32 %v109, %v543
  %v663 = vadd.f32 %v110, %v546
  %v664 = vadd.f32 %v111, %v548
  %v665 = vadd.f32 %v112, %v551
  %v666 = vadd.f32 %v113, %v553
  %v667 = vadd.f32 %v114, %v556
  %v668 = vadd.f32 %v115, %v558
  %v669 = vadd.f32 %v116, %v561
  %v670 = vadd.f32 %v117, %v563
  %v671 = vadd.f32 %v118, %v566
  %v672 = vadd.f32 %v119, %v568
  %v673 = vadd.f32 %v120, %v571
  %v674 = vadd.f32 %v121, %v573
  %v675 = vadd.f32 %v122, %v576
  %v676 = vadd.f32 %v123, %v578
  %v677 = vadd.f32 %v124, %v581
  %v678 = vadd.f32 %v125, %v583
  %v679 = vadd.f32 %v126, %v586
  %v680 = vadd.f32 %v127, %v588
  %v681 = vadd.f32 %v128, %v591
  %v682 = vadd.f32 %v129, %v593
  %v683 = vadd.f32 %v130, %v596
  %v684 = vadd.f32 %v131, %v598
  %v685 = vadd.f32 %v132, %v601
  %v686 = vadd.f32 %v133, %v603
  %v687 = vadd.f32 %v134, %v606
  %v688 = vadd.f32 %v135, %v608
  %v689 = vadd.f32 %v136, %v611
  %v690 = vadd.f32 %v137, %v613
  %v691 = vadd.f32 %v138, %v616
  %v692 = vadd.f32 %v139, %v618
  %v693 = vadd.f32 %v140, %v621
  %v694 = vadd.f32 %v141, %v623
  %v695 = vadd.f32 %v142, %v626
  %v696 = vadd.f32 %v143, %v628
  %v697 = vadd.f32 %v144, %v631
  %v698 = vadd.f32 %v145, %v633
  %699 = vst [vmem:[#allocation2] sm:$0xff] %v635
  %700 = vst [vmem:[#allocation2 + $0x8] sm:$0xff] %v636
  %701 = vst [vmem:[#allocation2 + $0x10] sm:$0xff] %v637
  %702 = vst [vmem:[#allocation2 + $0x18] sm:$0xff] %v638
  %703 = vst [vmem:[#allocation2 + $0x20] sm:$0xff] %v639
  %704 = vst [vmem:[#allocation2 + $0x28] sm:$0xff] %v640
  %705 = vst [vmem:[#allocation2 + $0x30] sm:$0xff] %v641
  %706 = vst [vmem:[#allocation2 + $0x38] sm:$0xff] %v642
  %707 = vst [vmem:[#allocation2 + $0x40] sm:$0xff] %v643
  %708 = vst [vmem:[#allocation2 + $0x48] sm:$0xff] %v644
  %709 = vst [vmem:[#allocation2 + $0x50] sm:$0xff] %v645
  %710 = vst [vmem:[#allocation2 + $0x58] sm:$0xff] %v646
  %711 = vst [vmem:[#allocation2 + $0x60] sm:$0xff] %v647
  %712 = vst [vmem:[#allocation2 + $0x68] sm:$0xff] %v648
  %713 = vst [vmem:[#allocation2 + $0x70] sm:$0xff] %v649
  %714 = vst [vmem:[#allocation2 + $0x78] sm:$0xff] %v650
  %715 = vst [vmem:[#allocation2 + $0x80] sm:$0xff] %v651
  %716 = vst [vmem:[#allocation2 + $0x88] sm:$0xff] %v652
  %717 = vst [vmem:[#allocation2 + $0x90] sm:$0xff] %v653
  %718 = vst [vmem:[#allocation2 + $0x98] sm:$0xff] %v654
  %719 = vst [vmem:[#allocation2 + $0xa0] sm:$0xff] %v655
  %720 = vst [vmem:[#allocation2 + $0xa8] sm:$0xff] %v656
  %721 = vst [vmem:[#allocation2 + $0xb0] sm:$0xff] %v657
  %722 = vst [vmem:[#allocation2 + $0xb8] sm:$0xff] %v658
  %723 = vst [vmem:[#allocation2 + $0xc0] sm:$0xff] %v659
  %724 = vst [vmem:[#allocation2 + $0xc8] sm:$0xff] %v660
  %725 = vst [vmem:[#allocation2 + $0xd0] sm:$0xff] %v661
  %726 = vst [vmem:[#allocation2 + $0xd8] sm:$0xff] %v662
  %727 = vst [vmem:[#allocation2 + $0xe0] sm:$0xff] %v663
  %728 = vst [vmem:[#allocation2 + $0xe8] sm:$0xff] %v664
  %729 = vst [vmem:[#allocation2 + $0xf0] sm:$0xff] %v665
  %730 = vst [vmem:[#allocation2 + $0xf8] sm:$0xff] %v666
  %731 = vst [vmem:[#allocation2 + $0x100] sm:$0xff] %v667
  %732 = vst [vmem:[#allocation2 + $0x108] sm:$0xff] %v668
  %733 = vst [vmem:[#allocation2 + $0x110] sm:$0xff] %v669
  %734 = vst [vmem:[#allocation2 + $0x118] sm:$0xff] %v670
  %735 = vst [vmem:[#allocation2 + $0x120] sm:$0xff] %v671
  %736 = vst [vmem:[#allocation2 + $0x128] sm:$0xff] %v672
  %737 = vst [vmem:[#allocation2 + $0x130] sm:$0xff] %v673
  %738 = vst [vmem:[#allocation2 + $0x138] sm:$0xff] %v674
  %739 = vst [vmem:[#allocation2 + $0x140] sm:$0xff] %v675
  %740 = vst [vmem:[#allocation2 + $0x148] sm:$0xff] %v676
  %741 = vst [vmem:[#allocation2 + $0x150] sm:$0xff] %v677
  %742 = vst [vmem:[#allocation2 + $0x158] sm:$0xff] %v678
  %743 = vst [vmem:[#allocation2 + $0x160] sm:$0xff] %v679
  %744 = vst [vmem:[#allocation2 + $0x168] sm:$0xff] %v680
  %745 = vst [vmem:[#allocation2 + $0x170] sm:$0xff] %v681
  %746 = vst [vmem:[#allocation2 + $0x178] sm:$0xff] %v682
  %747 = vst [vmem:[#allocation2 + $0x180] sm:$0xff] %v683
  %748 = vst [vmem:[#allocation2 + $0x188] sm:$0xff] %v684
  %749 = vst [vmem:[#allocation2 + $0x190] sm:$0xff] %v685
  %750 = vst [vmem:[#allocation2 + $0x198] sm:$0xff] %v686
  %751 = vst [vmem:[#allocation2 + $0x1a0] sm:$0xff] %v687
  %752 = vst [vmem:[#allocation2 + $0x1a8] sm:$0xff] %v688
  %753 = vst [vmem:[#allocation2 + $0x1b0] sm:$0xff] %v689
  %754 = vst [vmem:[#allocation2 + $0x1b8] sm:$0xff] %v690
  %755 = vst [vmem:[#allocation2 + $0x1c0] sm:$0xff] %v691
  %756 = vst [vmem:[#allocation2 + $0x1c8] sm:$0xff] %v692
  %757 = vst [vmem:[#allocation2 + $0x1d0] sm:$0xff] %v693
  %758 = vst [vmem:[#allocation2 + $0x1d8] sm:$0xff] %v694
  %759 = vst [vmem:[#allocation2 + $0x1e0] sm:$0xff] %v695
  %760 = vst [vmem:[#allocation2 + $0x1e8] sm:$0xff] %v696
  %761 = vst [vmem:[#allocation2 + $0x1f0] sm:$0xff] %v697
  %762 = vst [vmem:[#allocation2 + $0x1f8] sm:$0xff] %v698
  // Predicated region
  $region18: #{syn_model_forward.214} parent=0 // pred_check
    %p763 = pneg %p14
  $region19: #{syn_model_forward.214} parent=0 // pred_check_branch
    %765 = sbr.rel (%p763) target = $region21
  $region20: #{syn_model_forward.214} parent=0 // pred_region
    %v766 = vld [vmem:[#allocation2] sm:$0xff]
    %v767 = vld [vmem:[#allocation2 + $0x8] sm:$0xff]
    %v768 = vld [vmem:[#allocation2 + $0x10] sm:$0xff]
    %v769 = vld [vmem:[#allocation2 + $0x18] sm:$0xff]
    %v770 = vld [vmem:[#allocation2 + $0x20] sm:$0xff]
    %v771 = vld [vmem:[#allocation2 + $0x28] sm:$0xff]
    %v772 = vld [vmem:[#allocation2 + $0x30] sm:$0xff]
    %v773 = vld [vmem:[#allocation2 + $0x38] sm:$0xff]
    %v774 = vld [vmem:[#allocation2 + $0x40] sm:$0xff]
    %v775 = vld [vmem:[#allocation2 + $0x48] sm:$0xff]
    %v776 = vld [vmem:[#allocation2 + $0x50] sm:$0xff]
    %v777 = vld [vmem:[#allocation2 + $0x58] sm:$0xff]
    %v778 = vld [vmem:[#allocation2 + $0x60] sm:$0xff]
    %v779 = vld [vmem:[#allocation2 + $0x68] sm:$0xff]
    %v780 = vld [vmem:[#allocation2 + $0x70] sm:$0xff]
    %v781 = vld [vmem:[#allocation2 + $0x78] sm:$0xff]
    %v782 = vld [vmem:[#allocation2 + $0x80] sm:$0xff]
    %v783 = vld [vmem:[#allocation2 + $0x88] sm:$0xff]
    %v784 = vld [vmem:[#allocation2 + $0x90] sm:$0xff]
    %v785 = vld [vmem:[#allocation2 + $0x98] sm:$0xff]
    %v786 = vld [vmem:[#allocation2 + $0xa0] sm:$0xff]
    %v787 = vld [vmem:[#allocation2 + $0xa8] sm:$0xff]
    %v788 = vld [vmem:[#allocation2 + $0xb0] sm:$0xff]
    %v789 = vld [vmem:[#allocation2 + $0xb8] sm:$0xff]
    %v790 = vld [vmem:[#allocation2 + $0xc0] sm:$0xff]
    %v791 = vld [vmem:[#allocation2 + $0xc8] sm:$0xff]
    %v792 = vld [vmem:[#allocation2 + $0xd0] sm:$0xff]
    %v793 = vld [vmem:[#allocation2 + $0xd8] sm:$0xff]
    %v794 = vld [vmem:[#allocation2 + $0xe0] sm:$0xff]
    %v795 = vld [vmem:[#allocation2 + $0xe8] sm:$0xff]
    %v796 = vld [vmem:[#allocation2 + $0xf0] sm:$0xff]
    %v797 = vld [vmem:[#allocation2 + $0xf8] sm:$0xff]
    %v798 = vld [vmem:[#allocation2 + $0x100] sm:$0xff]
    %v799 = vld [vmem:[#allocation2 + $0x108] sm:$0xff]
    %v800 = vld [vmem:[#allocation2 + $0x110] sm:$0xff]
    %v801 = vld [vmem:[#allocation2 + $0x118] sm:$0xff]
    %v802 = vld [vmem:[#allocation2 + $0x120] sm:$0xff]
    %v803 = vld [vmem:[#allocation2 + $0x128] sm:$0xff]
    %v804 = vld [vmem:[#allocation2 + $0x130] sm:$0xff]
    %v805 = vld [vmem:[#allocation2 + $0x138] sm:$0xff]
    %v806 = vld [vmem:[#allocation2 + $0x140] sm:$0xff]
    %v807 = vld [vmem:[#allocation2 + $0x148] sm:$0xff]
    %v808 = vld [vmem:[#allocation2 + $0x150] sm:$0xff]
    %v809 = vld [vmem:[#allocation2 + $0x158] sm:$0xff]
    %v810 = vld [vmem:[#allocation2 + $0x160] sm:$0xff]
    %v811 = vld [vmem:[#allocation2 + $0x168] sm:$0xff]
    %v812 = vld [vmem:[#allocation2 + $0x170] sm:$0xff]
    %v813 = vld [vmem:[#allocation2 + $0x178] sm:$0xff]
    %v814 = vld [vmem:[#allocation2 + $0x180] sm:$0xff]
    %v815 = vld [vmem:[#allocation2 + $0x188] sm:$0xff]
    %v816 = vld [vmem:[#allocation2 + $0x190] sm:$0xff]
    %v817 = vld [vmem:[#allocation2 + $0x198] sm:$0xff]
    %v818 = vld [vmem:[#allocation2 + $0x1a0] sm:$0xff]
    %v819 = vld [vmem:[#allocation2 + $0x1a8] sm:$0xff]
    %v820 = vld [vmem:[#allocation2 + $0x1b0] sm:$0xff]
    %v821 = vld [vmem:[#allocation2 + $0x1b8] sm:$0xff]
    %v822 = vld [vmem:[#allocation2 + $0x1c0] sm:$0xff]
    %v823 = vld [vmem:[#allocation2 + $0x1c8] sm:$0xff]
    %v824 = vld [vmem:[#allocation2 + $0x1d0] sm:$0xff]
    %v825 = vld [vmem:[#allocation2 + $0x1d8] sm:$0xff]
    %v826 = vld [vmem:[#allocation2 + $0x1e0] sm:$0xff]
    %v827 = vld [vmem:[#allocation2 + $0x1e8] sm:$0xff]
    %v828 = vld [vmem:[#allocation2 + $0x1f0] sm:$0xff]
    %v829 = vld [vmem:[#allocation2 + $0x1f8] sm:$0xff]
    %v830 = vld [vmem:[%s2] sm:$0x1]
    %v832 = vperm.slane %v830, 0
    %v834 = vadd.f32 %v766, %v832
    %v835 = vadd.f32 %v767, %v832
    %v836 = vadd.f32 %v768, %v832
    %v837 = vadd.f32 %v769, %v832
    %v838 = vadd.f32 %v770, %v832
    %v839 = vadd.f32 %v771, %v832
    %v840 = vadd.f32 %v772, %v832
    %v841 = vadd.f32 %v773, %v832
    %v842 = vadd.f32 %v774, %v832
    %v843 = vadd.f32 %v775, %v832
    %v844 = vadd.f32 %v776, %v832
    %v845 = vadd.f32 %v777, %v832
    %v846 = vadd.f32 %v778, %v832
    %v847 = vadd.f32 %v779, %v832
    %v848 = vadd.f32 %v780, %v832
    %v849 = vadd.f32 %v781, %v832
    %v850 = vadd.f32 %v782, %v832
    %v851 = vadd.f32 %v783, %v832
    %v852 = vadd.f32 %v784, %v832
    %v853 = vadd.f32 %v785, %v832
    %v854 = vadd.f32 %v786, %v832
    %v855 = vadd.f32 %v787, %v832
    %v856 = vadd.f32 %v788, %v832
    %v857 = vadd.f32 %v789, %v832
    %v858 = vadd.f32 %v790, %v832
    %v859 = vadd.f32 %v791, %v832
    %v860 = vadd.f32 %v792, %v832
    %v861 = vadd.f32 %v793, %v832
    %v862 = vadd.f32 %v794, %v832
    %v863 = vadd.f32 %v795, %v832
    %v864 = vadd.f32 %v796, %v832
    %v865 = vadd.f32 %v797, %v832
    %v866 = vadd.f32 %v798, %v832
    %v867 = vadd.f32 %v799, %v832
    %v868 = vadd.f32 %v800, %v832
    %v869 = vadd.f32 %v801, %v832
    %v870 = vadd.f32 %v802, %v832
    %v871 = vadd.f32 %v803, %v832
    %v872 = vadd.f32 %v804, %v832
    %v873 = vadd.f32 %v805, %v832
    %v874 = vadd.f32 %v806, %v832
    %v875 = vadd.f32 %v807, %v832
    %v876 = vadd.f32 %v808, %v832
    %v877 = vadd.f32 %v809, %v832
    %v878 = vadd.f32 %v810, %v832
    %v879 = vadd.f32 %v811, %v832
    %v880 = vadd.f32 %v812, %v832
    %v881 = vadd.f32 %v813, %v832
    %v882 = vadd.f32 %v814, %v832
    %v883 = vadd.f32 %v815, %v832
    %v884 = vadd.f32 %v816, %v832
    %v885 = vadd.f32 %v817, %v832
    %v886 = vadd.f32 %v818, %v832
    %v887 = vadd.f32 %v819, %v832
    %v888 = vadd.f32 %v820, %v832
    %v889 = vadd.f32 %v821, %v832
    %v890 = vadd.f32 %v822, %v832
    %v891 = vadd.f32 %v823, %v832
    %v892 = vadd.f32 %v824, %v832
    %v893 = vadd.f32 %v825, %v832
    %v894 = vadd.f32 %v826, %v832
    %v895 = vadd.f32 %v827, %v832
    %v896 = vadd.f32 %v828, %v832
    %v897 = vadd.f32 %v829, %v832
    %898 = vst [vmem:[%s3] sm:$0xff] %v834
    %899 = vst [vmem:[%s3 + $0x8] sm:$0xff] %v835
    %900 = vst [vmem:[%s3 + $0x10] sm:$0xff] %v836
    %901 = vst [vmem:[%s3 + $0x18] sm:$0xff] %v837
    %902 = vst [vmem:[%s3 + $0x20] sm:$0xff] %v838
    %903 = vst [vmem:[%s3 + $0x28] sm:$0xff] %v839
    %904 = vst [vmem:[%s3 + $0x30] sm:$0xff] %v840
    %905 = vst [vmem:[%s3 + $0x38] sm:$0xff] %v841
    %906 = vst [vmem:[%s3 + $0x40] sm:$0xff] %v842
    %907 = vst [vmem:[%s3 + $0x48] sm:$0xff] %v843
    %908 = vst [vmem:[%s3 + $0x50] sm:$0xff] %v844
    %909 = vst [vmem:[%s3 + $0x58] sm:$0xff] %v845
    %910 = vst [vmem:[%s3 + $0x60] sm:$0xff] %v846
    %911 = vst [vmem:[%s3 + $0x68] sm:$0xff] %v847
    %912 = vst [vmem:[%s3 + $0x70] sm:$0xff] %v848
    %913 = vst [vmem:[%s3 + $0x78] sm:$0xff] %v849
    %914 = vst [vmem:[%s3 + $0x80] sm:$0xff] %v850
    %915 = vst [vmem:[%s3 + $0x88] sm:$0xff] %v851
    %916 = vst [vmem:[%s3 + $0x90] sm:$0xff] %v852
    %917 = vst [vmem:[%s3 + $0x98] sm:$0xff] %v853
    %918 = vst [vmem:[%s3 + $0xa0] sm:$0xff] %v854
    %919 = vst [vmem:[%s3 + $0xa8] sm:$0xff] %v855
    %920 = vst [vmem:[%s3 + $0xb0] sm:$0xff] %v856
    %921 = vst [vmem:[%s3 + $0xb8] sm:$0xff] %v857
    %922 = vst [vmem:[%s3 + $0xc0] sm:$0xff] %v858
    %923 = vst [vmem:[%s3 + $0xc8] sm:$0xff] %v859
    %924 = vst [vmem:[%s3 + $0xd0] sm:$0xff] %v860
    %925 = vst [vmem:[%s3 + $0xd8] sm:$0xff] %v861
    %926 = vst [vmem:[%s3 + $0xe0] sm:$0xff] %v862
    %927 = vst [vmem:[%s3 + $0xe8] sm:$0xff] %v863
    %928 = vst [vmem:[%s3 + $0xf0] sm:$0xff] %v864
    %929 = vst [vmem:[%s3 + $0xf8] sm:$0xff] %v865
    %930 = vst [vmem:[%s3 + $0x100] sm:$0xff] %v866
    %931 = vst [vmem:[%s3 + $0x108] sm:$0xff] %v867
    %932 = vst [vmem:[%s3 + $0x110] sm:$0xff] %v868
    %933 = vst [vmem:[%s3 + $0x118] sm:$0xff] %v869
    %934 = vst [vmem:[%s3 + $0x120] sm:$0xff] %v870
    %935 = vst [vmem:[%s3 + $0x128] sm:$0xff] %v871
    %936 = vst [vmem:[%s3 + $0x130] sm:$0xff] %v872
    %937 = vst [vmem:[%s3 + $0x138] sm:$0xff] %v873
    %938 = vst [vmem:[%s3 + $0x140] sm:$0xff] %v874
    %939 = vst [vmem:[%s3 + $0x148] sm:$0xff] %v875
    %940 = vst [vmem:[%s3 + $0x150] sm:$0xff] %v876
    %941 = vst [vmem:[%s3 + $0x158] sm:$0xff] %v877
    %942 = vst [vmem:[%s3 + $0x160] sm:$0xff] %v878
    %943 = vst [vmem:[%s3 + $0x168] sm:$0xff] %v879
    %944 = vst [vmem:[%s3 + $0x170] sm:$0xff] %v880
    %945 = vst [vmem:[%s3 + $0x178] sm:$0xff] %v881
    %946 = vst [vmem:[%s3 + $0x180] sm:$0xff] %v882
    %947 = vst [vmem:[%s3 + $0x188] sm:$0xff] %v883
    %948 = vst [vmem:[%s3 + $0x190] sm:$0xff] %v884
    %949 = vst [vmem:[%s3 + $0x198] sm:$0xff] %v885
    %950 = vst [vmem:[%s3 + $0x1a0] sm:$0xff] %v886
    %951 = vst [vmem:[%s3 + $0x1a8] sm:$0xff] %v887
    %952 = vst [vmem:[%s3 + $0x1b0] sm:$0xff] %v888
    %953 = vst [vmem:[%s3 + $0x1b8] sm:$0xff] %v889
    %954 = vst [vmem:[%s3 + $0x1c0] sm:$0xff] %v890
    %955 = vst [vmem:[%s3 + $0x1c8] sm:$0xff] %v891
    %956 = vst [vmem:[%s3 + $0x1d0] sm:$0xff] %v892
    %957 = vst [vmem:[%s3 + $0x1d8] sm:$0xff] %v893
    %958 = vst [vmem:[%s3 + $0x1e0] sm:$0xff] %v894
    %959 = vst [vmem:[%s3 + $0x1e8] sm:$0xff] %v895
    %960 = vst [vmem:[%s3 + $0x1f0] sm:$0xff] %v896
    %961 = vst [vmem:[%s3 + $0x1f8] sm:$0xff] %v897
  $region21: #{syn_model_forward.214} parent=0 // pred_fallthru
    _
  // Predicated region
  $region22: #{syn_model_forward.214} parent=0 // pred_check
    _
  $region23: #{syn_model_forward.214} parent=0 // pred_check_branch
    %963 = sbr.rel (0) target = $region25
  $region24: #{syn_model_forward.214} parent=0 // pred_region
    _
  $region25: #{syn_model_forward.214} parent=0 // pred_fallthru
    _
  // Predicated region
  $region26: #{syn_model_forward.214} parent=0 // pred_check
    _
  $region27: #{syn_model_forward.214} parent=0 // pred_check_branch
    %965 = sbr.rel (0) target = $region29
  $region28: #{syn_model_forward.214} parent=0 // pred_region
    _
  $region29: #{syn_model_forward.214} parent=0 // pred_fallthru
    _

// kernel: syn_model_forward.215
$region0: #{syn_model_forward.215}
  #allocation0 [shape = 'u32[]', space=smem, size = 0x4, offset = 0x4, fixed_abs, tag = 'smem constant byte address 0x4 - core index']
  #allocation1 [shape = 'u32[72,128]{1,0:T(1,128)}', space=vmem, size = 0x9000, scoped, tag = 'internal scratch']
  #allocation2 [shape = 'f32[512,128]{1,0:T(8,128)}', space=vmem, size = 0x40000, scoped, tag = 'scratch operand']
  %s0 = inlined_call_operand.vmem [shape: bf16[512,128], index: 0, kind: input, shape index: {}]
  %s1 = inlined_call_operand.vmem [shape: bf16[128,128], index: 1, kind: input, shape index: {}]
  %s2 = inlined_call_operand.vmem [shape: f32[1,128], index: 2, kind: input, shape index: {}]
  %s3 = inlined_call_operand.vmem [shape: f32[512,128], index: 3, kind: input, shape index: {}]
  %s4 = inlined_call_operand.vmem [shape: f32[512,128], index: 4, kind: output, shape index: {}]
  %s5 = sld [smem:[#allocation0]]
  $region34: #{syn_model_forward.215} parent=0
    _
  %s7 = ssub.s32 1, %s5
  %s8 = scalar_select 0, %s7, %s5
  // Predicated region
  $region2: #{syn_model_forward.215} parent=0 // pred_check
    _
  $region3: #{syn_model_forward.215} parent=0 // pred_check_branch
    %10 = sbr.rel (0) target = $region5
  $region4: #{syn_model_forward.215} parent=0 // pred_region
    _
  $region5: #{syn_model_forward.215} parent=0 // pred_fallthru
    _
  // Predicated region
  $region6: #{syn_model_forward.215} parent=0 // pred_check
    _
  $region7: #{syn_model_forward.215} parent=0 // pred_check_branch
    %12 = sbr.rel (0) target = $region9
  $region8: #{syn_model_forward.215} parent=0 // pred_region
    _
  $region9: #{syn_model_forward.215} parent=0 // pred_fallthru
    _
  // Predicated region
  $region10: #{syn_model_forward.215} parent=0 // pred_check
    _
  $region11: #{syn_model_forward.215} parent=0 // pred_check_branch
    %14 = sbr.rel (0) target = $region13
  $region12: #{syn_model_forward.215} parent=0 // pred_region
    _
  $region13: #{syn_model_forward.215} parent=0 // pred_fallthru
    _
  // Predicated region
  $region14: #{syn_model_forward.215} parent=0 // pred_check
    _
  $region15: #{syn_model_forward.215} parent=0 // pred_check_branch
    %16 = sbr.rel (0) target = $region17
  $region16: #{syn_model_forward.215} parent=0 // pred_region
    _
  $region17: #{syn_model_forward.215} parent=0 // pred_fallthru
    _
  %p17 = scmp.eq.s32.totalorder 0, 0
  // Predicated region
  $region18: #{syn_model_forward.215} parent=0 // pred_check
    %p18 = pneg %p17
  $region19: #{syn_model_forward.215} parent=0 // pred_check_branch
    %20 = sbr.rel (%p18) target = $region21
  $region20: #{syn_model_forward.215} parent=0 // pred_region
    %21 = vst [vmem:[#allocation2] sm:$0xff] 0.0
    %22 = vst [vmem:[#allocation2 + $0x8] sm:$0xff] 0.0
    %23 = vst [vmem:[#allocation2 + $0x10] sm:$0xff] 0.0
    %24 = vst [vmem:[#allocation2 + $0x18] sm:$0xff] 0.0
    %25 = vst [vmem:[#allocation2 + $0x20] sm:$0xff] 0.0
    %26 = vst [vmem:[#allocation2 + $0x28] sm:$0xff] 0.0
    %27 = vst [vmem:[#allocation2 + $0x30] sm:$0xff] 0.0
    %28 = vst [vmem:[#allocation2 + $0x38] sm:$0xff] 0.0
    %29 = vst [vmem:[#allocation2 + $0x40] sm:$0xff] 0.0
    %30 = vst [vmem:[#allocation2 + $0x48] sm:$0xff] 0.0
    %31 = vst [vmem:[#allocation2 + $0x50] sm:$0xff] 0.0
    %32 = vst [vmem:[#allocation2 + $0x58] sm:$0xff] 0.0
    %33 = vst [vmem:[#allocation2 + $0x60] sm:$0xff] 0.0
    %34 = vst [vmem:[#allocation2 + $0x68] sm:$0xff] 0.0
    %35 = vst [vmem:[#allocation2 + $0x70] sm:$0xff] 0.0
    %36 = vst [vmem:[#allocation2 + $0x78] sm:$0xff] 0.0
    %37 = vst [vmem:[#allocation2 + $0x80] sm:$0xff] 0.0
    %38 = vst [vmem:[#allocation2 + $0x88] sm:$0xff] 0.0
    %39 = vst [vmem:[#allocation2 + $0x90] sm:$0xff] 0.0
    %40 = vst [vmem:[#allocation2 + $0x98] sm:$0xff] 0.0
    %41 = vst [vmem:[#allocation2 + $0xa0] sm:$0xff] 0.0
    %42 = vst [vmem:[#allocation2 + $0xa8] sm:$0xff] 0.0
    %43 = vst [vmem:[#allocation2 + $0xb0] sm:$0xff] 0.0
    %44 = vst [vmem:[#allocation2 + $0xb8] sm:$0xff] 0.0
    %45 = vst [vmem:[#allocation2 + $0xc0] sm:$0xff] 0.0
    %46 = vst [vmem:[#allocation2 + $0xc8] sm:$0xff] 0.0
    %47 = vst [vmem:[#allocation2 + $0xd0] sm:$0xff] 0.0
    %48 = vst [vmem:[#allocation2 + $0xd8] sm:$0xff] 0.0
    %49 = vst [vmem:[#allocation2 + $0xe0] sm:$0xff] 0.0
    %50 = vst [vmem:[#allocation2 + $0xe8] sm:$0xff] 0.0
    %51 = vst [vmem:[#allocation2 + $0xf0] sm:$0xff] 0.0
    %52 = vst [vmem:[#allocation2 + $0xf8] sm:$0xff] 0.0
    %53 = vst [vmem:[#allocation2 + $0x100] sm:$0xff] 0.0
    %54 = vst [vmem:[#allocation2 + $0x108] sm:$0xff] 0.0
    %55 = vst [vmem:[#allocation2 + $0x110] sm:$0xff] 0.0
    %56 = vst [vmem:[#allocation2 + $0x118] sm:$0xff] 0.0
    %57 = vst [vmem:[#allocation2 + $0x120] sm:$0xff] 0.0
    %58 = vst [vmem:[#allocation2 + $0x128] sm:$0xff] 0.0
    %59 = vst [vmem:[#allocation2 + $0x130] sm:$0xff] 0.0
    %60 = vst [vmem:[#allocation2 + $0x138] sm:$0xff] 0.0
    %61 = vst [vmem:[#allocation2 + $0x140] sm:$0xff] 0.0
    %62 = vst [vmem:[#allocation2 + $0x148] sm:$0xff] 0.0
    %63 = vst [vmem:[#allocation2 + $0x150] sm:$0xff] 0.0
    %64 = vst [vmem:[#allocation2 + $0x158] sm:$0xff] 0.0
    %65 = vst [vmem:[#allocation2 + $0x160] sm:$0xff] 0.0
    %66 = vst [vmem:[#allocation2 + $0x168] sm:$0xff] 0.0
    %67 = vst [vmem:[#allocation2 + $0x170] sm:$0xff] 0.0
    %68 = vst [vmem:[#allocation2 + $0x178] sm:$0xff] 0.0
    %69 = vst [vmem:[#allocation2 + $0x180] sm:$0xff] 0.0
    %70 = vst [vmem:[#allocation2 + $0x188] sm:$0xff] 0.0
    %71 = vst [vmem:[#allocation2 + $0x190] sm:$0xff] 0.0
    %72 = vst [vmem:[#allocation2 + $0x198] sm:$0xff] 0.0
    %73 = vst [vmem:[#allocation2 + $0x1a0] sm:$0xff] 0.0
    %74 = vst [vmem:[#allocation2 + $0x1a8] sm:$0xff] 0.0
    %75 = vst [vmem:[#allocation2 + $0x1b0] sm:$0xff] 0.0
    %76 = vst [vmem:[#allocation2 + $0x1b8] sm:$0xff] 0.0
    %77 = vst [vmem:[#allocation2 + $0x1c0] sm:$0xff] 0.0
    %78 = vst [vmem:[#allocation2 + $0x1c8] sm:$0xff] 0.0
    %79 = vst [vmem:[#allocation2 + $0x1d0] sm:$0xff] 0.0
    %80 = vst [vmem:[#allocation2 + $0x1d8] sm:$0xff] 0.0
    %81 = vst [vmem:[#allocation2 + $0x1e0] sm:$0xff] 0.0
    %82 = vst [vmem:[#allocation2 + $0x1e8] sm:$0xff] 0.0
    %83 = vst [vmem:[#allocation2 + $0x1f0] sm:$0xff] 0.0
    %84 = vst [vmem:[#allocation2 + $0x1f8] sm:$0xff] 0.0
  $region21: #{syn_model_forward.215} parent=0 // pred_fallthru
    _
  %v85 = vld [vmem:[#allocation2] sm:$0xff]
  %v86 = vld [vmem:[#allocation2 + $0x8] sm:$0xff]
  %v87 = vld [vmem:[#allocation2 + $0x10] sm:$0xff]
  %v88 = vld [vmem:[#allocation2 + $0x18] sm:$0xff]
  %v89 = vld [vmem:[#allocation2 + $0x20] sm:$0xff]
  %v90 = vld [vmem:[#allocation2 + $0x28] sm:$0xff]
  %v91 = vld [vmem:[#allocation2 + $0x30] sm:$0xff]
  %v92 = vld [vmem:[#allocation2 + $0x38] sm:$0xff]
  %v93 = vld [vmem:[#allocation2 + $0x40] sm:$0xff]
  %v94 = vld [vmem:[#allocation2 + $0x48] sm:$0xff]
  %v95 = vld [vmem:[#allocation2 + $0x50] sm:$0xff]
  %v96 = vld [vmem:[#allocation2 + $0x58] sm:$0xff]
  %v97 = vld [vmem:[#allocation2 + $0x60] sm:$0xff]
  %v98 = vld [vmem:[#allocation2 + $0x68] sm:$0xff]
  %v99 = vld [vmem:[#allocation2 + $0x70] sm:$0xff]
  %v100 = vld [vmem:[#allocation2 + $0x78] sm:$0xff]
  %v101 = vld [vmem:[#allocation2 + $0x80] sm:$0xff]
  %v102 = vld [vmem:[#allocation2 + $0x88] sm:$0xff]
  %v103 = vld [vmem:[#allocation2 + $0x90] sm:$0xff]
  %v104 = vld [vmem:[#allocation2 + $0x98] sm:$0xff]
  %v105 = vld [vmem:[#allocation2 + $0xa0] sm:$0xff]
  %v106 = vld [vmem:[#allocation2 + $0xa8] sm:$0xff]
  %v107 = vld [vmem:[#allocation2 + $0xb0] sm:$0xff]
  %v108 = vld [vmem:[#allocation2 + $0xb8] sm:$0xff]
  %v109 = vld [vmem:[#allocation2 + $0xc0] sm:$0xff]
  %v110 = vld [vmem:[#allocation2 + $0xc8] sm:$0xff]
  %v111 = vld [vmem:[#allocation2 + $0xd0] sm:$0xff]
  %v112 = vld [vmem:[#allocation2 + $0xd8] sm:$0xff]
  %v113 = vld [vmem:[#allocation2 + $0xe0] sm:$0xff]
  %v114 = vld [vmem:[#allocation2 + $0xe8] sm:$0xff]
  %v115 = vld [vmem:[#allocation2 + $0xf0] sm:$0xff]
  %v116 = vld [vmem:[#allocation2 + $0xf8] sm:$0xff]
  %v117 = vld [vmem:[#allocation2 + $0x100] sm:$0xff]
  %v118 = vld [vmem:[#allocation2 + $0x108] sm:$0xff]
  %v119 = vld [vmem:[#allocation2 + $0x110] sm:$0xff]
  %v120 = vld [vmem:[#allocation2 + $0x118] sm:$0xff]
  %v121 = vld [vmem:[#allocation2 + $0x120] sm:$0xff]
  %v122 = vld [vmem:[#allocation2 + $0x128] sm:$0xff]
  %v123 = vld [vmem:[#allocation2 + $0x130] sm:$0xff]
  %v124 = vld [vmem:[#allocation2 + $0x138] sm:$0xff]
  %v125 = vld [vmem:[#allocation2 + $0x140] sm:$0xff]
  %v126 = vld [vmem:[#allocation2 + $0x148] sm:$0xff]
  %v127 = vld [vmem:[#allocation2 + $0x150] sm:$0xff]
  %v128 = vld [vmem:[#allocation2 + $0x158] sm:$0xff]
  %v129 = vld [vmem:[#allocation2 + $0x160] sm:$0xff]
  %v130 = vld [vmem:[#allocation2 + $0x168] sm:$0xff]
  %v131 = vld [vmem:[#allocation2 + $0x170] sm:$0xff]
  %v132 = vld [vmem:[#allocation2 + $0x178] sm:$0xff]
  %v133 = vld [vmem:[#allocation2 + $0x180] sm:$0xff]
  %v134 = vld [vmem:[#allocation2 + $0x188] sm:$0xff]
  %v135 = vld [vmem:[#allocation2 + $0x190] sm:$0xff]
  %v136 = vld [vmem:[#allocation2 + $0x198] sm:$0xff]
  %v137 = vld [vmem:[#allocation2 + $0x1a0] sm:$0xff]
  %v138 = vld [vmem:[#allocation2 + $0x1a8] sm:$0xff]
  %v139 = vld [vmem:[#allocation2 + $0x1b0] sm:$0xff]
  %v140 = vld [vmem:[#allocation2 + $0x1b8] sm:$0xff]
  %v141 = vld [vmem:[#allocation2 + $0x1c0] sm:$0xff]
  %v142 = vld [vmem:[#allocation2 + $0x1c8] sm:$0xff]
  %v143 = vld [vmem:[#allocation2 + $0x1d0] sm:$0xff]
  %v144 = vld [vmem:[#allocation2 + $0x1d8] sm:$0xff]
  %v145 = vld [vmem:[#allocation2 + $0x1e0] sm:$0xff]
  %v146 = vld [vmem:[#allocation2 + $0x1e8] sm:$0xff]
  %v147 = vld [vmem:[#allocation2 + $0x1f0] sm:$0xff]
  %v148 = vld [vmem:[#allocation2 + $0x1f8] sm:$0xff]
  %v149 = vld [vmem:[%s0] sm:$0xf]
  %v150 = vld [vmem:[%s0 + $0x4] sm:$0xf]
  %v151 = vld [vmem:[%s0 + $0x8] sm:$0xf]
  %v152 = vld [vmem:[%s0 + $0xc] sm:$0xf]
  %v153 = vld [vmem:[%s0 + $0x10] sm:$0xf]
  %v154 = vld [vmem:[%s0 + $0x14] sm:$0xf]
  %v155 = vld [vmem:[%s0 + $0x18] sm:$0xf]
  %v156 = vld [vmem:[%s0 + $0x1c] sm:$0xf]
  %v157 = vld [vmem:[%s0 + $0x20] sm:$0xf]
  %v158 = vld [vmem:[%s0 + $0x24] sm:$0xf]
  %v159 = vld [vmem:[%s0 + $0x28] sm:$0xf]
  %v160 = vld [vmem:[%s0 + $0x2c] sm:$0xf]
  %v161 = vld [vmem:[%s0 + $0x30] sm:$0xf]
  %v162 = vld [vmem:[%s0 + $0x34] sm:$0xf]
  %v163 = vld [vmem:[%s0 + $0x38] sm:$0xf]
  %v164 = vld [vmem:[%s0 + $0x3c] sm:$0xf]
  %v165 = vld [vmem:[%s0 + $0x40] sm:$0xf]
  %v166 = vld [vmem:[%s0 + $0x44] sm:$0xf]
  %v167 = vld [vmem:[%s0 + $0x48] sm:$0xf]
  %v168 = vld [vmem:[%s0 + $0x4c] sm:$0xf]
  %v169 = vld [vmem:[%s0 + $0x50] sm:$0xf]
  %v170 = vld [vmem:[%s0 + $0x54] sm:$0xf]
  %v171 = vld [vmem:[%s0 + $0x58] sm:$0xf]
  %v172 = vld [vmem:[%s0 + $0x5c] sm:$0xf]
  %v173 = vld [vmem:[%s0 + $0x60] sm:$0xf]
  %v174 = vld [vmem:[%s0 + $0x64] sm:$0xf]
  %v175 = vld [vmem:[%s0 + $0x68] sm:$0xf]
  %v176 = vld [vmem:[%s0 + $0x6c] sm:$0xf]
  %v177 = vld [vmem:[%s0 + $0x70] sm:$0xf]
  %v178 = vld [vmem:[%s0 + $0x74] sm:$0xf]
  %v179 = vld [vmem:[%s0 + $0x78] sm:$0xf]
  %v180 = vld [vmem:[%s0 + $0x7c] sm:$0xf]
  %v181 = vld [vmem:[%s0 + $0x80] sm:$0xf]
  %v182 = vld [vmem:[%s0 + $0x84] sm:$0xf]
  %v183 = vld [vmem:[%s0 + $0x88] sm:$0xf]
  %v184 = vld [vmem:[%s0 + $0x8c] sm:$0xf]
  %v185 = vld [vmem:[%s0 + $0x90] sm:$0xf]
  %v186 = vld [vmem:[%s0 + $0x94] sm:$0xf]
  %v187 = vld [vmem:[%s0 + $0x98] sm:$0xf]
  %v188 = vld [vmem:[%s0 + $0x9c] sm:$0xf]
  %v189 = vld [vmem:[%s0 + $0xa0] sm:$0xf]
  %v190 = vld [vmem:[%s0 + $0xa4] sm:$0xf]
  %v191 = vld [vmem:[%s0 + $0xa8] sm:$0xf]
  %v192 = vld [vmem:[%s0 + $0xac] sm:$0xf]
  %v193 = vld [vmem:[%s0 + $0xb0] sm:$0xf]
  %v194 = vld [vmem:[%s0 + $0xb4] sm:$0xf]
  %v195 = vld [vmem:[%s0 + $0xb8] sm:$0xf]
  %v196 = vld [vmem:[%s0 + $0xbc] sm:$0xf]
  %v197 = vld [vmem:[%s0 + $0xc0] sm:$0xf]
  %v198 = vld [vmem:[%s0 + $0xc4] sm:$0xf]
  %v199 = vld [vmem:[%s0 + $0xc8] sm:$0xf]
  %v200 = vld [vmem:[%s0 + $0xcc] sm:$0xf]
  %v201 = vld [vmem:[%s0 + $0xd0] sm:$0xf]
  %v202 = vld [vmem:[%s0 + $0xd4] sm:$0xf]
  %v203 = vld [vmem:[%s0 + $0xd8] sm:$0xf]
  %v204 = vld [vmem:[%s0 + $0xdc] sm:$0xf]
  %v205 = vld [vmem:[%s0 + $0xe0] sm:$0xf]
  %v206 = vld [vmem:[%s0 + $0xe4] sm:$0xf]
  %v207 = vld [vmem:[%s0 + $0xe8] sm:$0xf]
  %v208 = vld [vmem:[%s0 + $0xec] sm:$0xf]
  %v209 = vld [vmem:[%s0 + $0xf0] sm:$0xf]
  %v210 = vld [vmem:[%s0 + $0xf4] sm:$0xf]
  %v211 = vld [vmem:[%s0 + $0xf8] sm:$0xf]
  %v212 = vld [vmem:[%s0 + $0xfc] sm:$0xf]
  %v213 = vld [vmem:[%s1] sm:$0xf]
  %v214 = vld [vmem:[%s1 + $0x4] sm:$0xf]
  %v215 = vld [vmem:[%s1 + $0x8] sm:$0xf]
  %v216 = vld [vmem:[%s1 + $0xc] sm:$0xf]
  %v217 = vld [vmem:[%s1 + $0x10] sm:$0xf]
  %v218 = vld [vmem:[%s1 + $0x14] sm:$0xf]
  %v219 = vld [vmem:[%s1 + $0x18] sm:$0xf]
  %v220 = vld [vmem:[%s1 + $0x1c] sm:$0xf]
  %v221 = vld [vmem:[%s1 + $0x20] sm:$0xf]
  %v222 = vld [vmem:[%s1 + $0x24] sm:$0xf]
  %v223 = vld [vmem:[%s1 + $0x28] sm:$0xf]
  %v224 = vld [vmem:[%s1 + $0x2c] sm:$0xf]
  %v225 = vld [vmem:[%s1 + $0x30] sm:$0xf]
  %v226 = vld [vmem:[%s1 + $0x34] sm:$0xf]
  %v227 = vld [vmem:[%s1 + $0x38] sm:$0xf]
  %v228 = vld [vmem:[%s1 + $0x3c] sm:$0xf]
  %v293 = vunpack.c.l.b16 %v149
  %v294 = vunpack.c.l.b16 %v150
  %v295 = vunpack.c.l.b16 %v151
  %v296 = vunpack.c.l.b16 %v152
  %v297 = vunpack.c.l.b16 %v153
  %v298 = vunpack.c.l.b16 %v154
  %v299 = vunpack.c.l.b16 %v155
  %v300 = vunpack.c.l.b16 %v156
  %v301 = vunpack.c.l.b16 %v157
  %v302 = vunpack.c.l.b16 %v158
  %v303 = vunpack.c.l.b16 %v159
  %v304 = vunpack.c.l.b16 %v160
  %v305 = vunpack.c.l.b16 %v161
  %v306 = vunpack.c.l.b16 %v162
  %v307 = vunpack.c.l.b16 %v163
  %v308 = vunpack.c.l.b16 %v164
  %v309 = vunpack.c.l.b16 %v165
  %v310 = vunpack.c.l.b16 %v166
  %v311 = vunpack.c.l.b16 %v167
  %v312 = vunpack.c.l.b16 %v168
  %v313 = vunpack.c.l.b16 %v169
  %v314 = vunpack.c.l.b16 %v170
  %v315 = vunpack.c.l.b16 %v171
  %v316 = vunpack.c.l.b16 %v172
  %v317 = vunpack.c.l.b16 %v173
  %v318 = vunpack.c.l.b16 %v174
  %v319 = vunpack.c.l.b16 %v175
  %v320 = vunpack.c.l.b16 %v176
  %v321 = vunpack.c.l.b16 %v177
  %v322 = vunpack.c.l.b16 %v178
  %v323 = vunpack.c.l.b16 %v179
  %v324 = vunpack.c.l.b16 %v180
  %v325 = vunpack.c.l.b16 %v181
  %v326 = vunpack.c.l.b16 %v182
  %v327 = vunpack.c.l.b16 %v183
  %v328 = vunpack.c.l.b16 %v184
  %v329 = vunpack.c.l.b16 %v185
  %v330 = vunpack.c.l.b16 %v186
  %v331 = vunpack.c.l.b16 %v187
  %v332 = vunpack.c.l.b16 %v188
  %v333 = vunpack.c.l.b16 %v189
  %v334 = vunpack.c.l.b16 %v190
  %v335 = vunpack.c.l.b16 %v191
  %v336 = vunpack.c.l.b16 %v192
  %v337 = vunpack.c.l.b16 %v193
  %v338 = vunpack.c.l.b16 %v194
  %v339 = vunpack.c.l.b16 %v195
  %v340 = vunpack.c.l.b16 %v196
  %v341 = vunpack.c.l.b16 %v197
  %v342 = vunpack.c.l.b16 %v198
  %v343 = vunpack.c.l.b16 %v199
  %v344 = vunpack.c.l.b16 %v200
  %v345 = vunpack.c.l.b16 %v201
  %v346 = vunpack.c.l.b16 %v202
  %v347 = vunpack.c.l.b16 %v203
  %v348 = vunpack.c.l.b16 %v204
  %v349 = vunpack.c.l.b16 %v205
  %v350 = vunpack.c.l.b16 %v206
  %v351 = vunpack.c.l.b16 %v207
  %v352 = vunpack.c.l.b16 %v208
  %v353 = vunpack.c.l.b16 %v209
  %v354 = vunpack.c.l.b16 %v210
  %v355 = vunpack.c.l.b16 %v211
  %v356 = vunpack.c.l.b16 %v212
  %v357 = vpack.c.b16 %v294, %v293
  %v358 = vpack.c.b16 %v296, %v295
  %v359 = vpack.c.b16 %v298, %v297
  %v360 = vpack.c.b16 %v300, %v299
  %v361 = vpack.c.b16 %v302, %v301
  %v362 = vpack.c.b16 %v304, %v303
  %v363 = vpack.c.b16 %v306, %v305
  %v364 = vpack.c.b16 %v308, %v307
  %v365 = vpack.c.b16 %v310, %v309
  %v366 = vpack.c.b16 %v312, %v311
  %v367 = vpack.c.b16 %v314, %v313
  %v368 = vpack.c.b16 %v316, %v315
  %v369 = vpack.c.b16 %v318, %v317
  %v370 = vpack.c.b16 %v320, %v319
  %v371 = vpack.c.b16 %v322, %v321
  %v372 = vpack.c.b16 %v324, %v323
  %v373 = vpack.c.b16 %v326, %v325
  %v374 = vpack.c.b16 %v328, %v327
  %v375 = vpack.c.b16 %v330, %v329
  %v376 = vpack.c.b16 %v332, %v331
  %v377 = vpack.c.b16 %v334, %v333
  %v378 = vpack.c.b16 %v336, %v335
  %v379 = vpack.c.b16 %v338, %v337
  %v380 = vpack.c.b16 %v340, %v339
  %v381 = vpack.c.b16 %v342, %v341
  %v382 = vpack.c.b16 %v344, %v343
  %v383 = vpack.c.b16 %v346, %v345
  %v384 = vpack.c.b16 %v348, %v347
  %v385 = vpack.c.b16 %v350, %v349
  %v386 = vpack.c.b16 %v352, %v351
  %v387 = vpack.c.b16 %v354, %v353
  %v388 = vpack.c.b16 %v356, %v355
  %v437 = vunpack.c.l.b16 %v213
  %v438 = vunpack.c.l.b16 %v214
  %v439 = vunpack.c.l.b16 %v215
  %v440 = vunpack.c.l.b16 %v216
  %v441 = vunpack.c.l.b16 %v217
  %v442 = vunpack.c.l.b16 %v218
  %v443 = vunpack.c.l.b16 %v219
  %v444 = vunpack.c.l.b16 %v220
  %v445 = vunpack.c.l.b16 %v221
  %v446 = vunpack.c.l.b16 %v222
  %v447 = vunpack.c.l.b16 %v223
  %v448 = vunpack.c.l.b16 %v224
  %v449 = vunpack.c.l.b16 %v225
  %v450 = vunpack.c.l.b16 %v226
  %v451 = vunpack.c.l.b16 %v227
  %v452 = vunpack.c.l.b16 %v228
  %v453 = vpack.c.b16 %v438, %v437
  %v454 = vpack.c.b16 %v440, %v439
  %v455 = vpack.c.b16 %v442, %v441
  %v456 = vpack.c.b16 %v444, %v443
  %v457 = vpack.c.b16 %v446, %v445
  %v458 = vpack.c.b16 %v448, %v447
  %v459 = vpack.c.b16 %v450, %v449
  %v460 = vpack.c.b16 %v452, %v451
  %469 = vmatpush.bf16.msra.mxu0 %v460
  %470 = vmatpush.bf16.msra.mxu0 %v459
  %471 = vmatpush.bf16.msra.mxu0 %v458
  %472 = vmatpush.bf16.msra.mxu0 %v457
  %473 = vmatpush.bf16.msra.mxu0 %v456
  %474 = vmatpush.bf16.msra.mxu0 %v455
  %475 = vmatpush.bf16.msra.mxu0 %v454
  %476 = vmatpush.bf16.msra.mxu0 %v453
  %477 = vmatmul.bf16.gmra.mxu0 %v357
  %v478 = vpop.f32.mrf.mxu0
  %v479 = vadd.f32 0.0, %v478
  %v480 = vpop.f32.mrf.mxu0
  %v481 = vadd.f32 0.0, %v480
  %482 = vmatmul.bf16.gmra.mxu0 %v358
  %v483 = vpop.f32.mrf.mxu0
  %v484 = vadd.f32 0.0, %v483
  %v485 = vpop.f32.mrf.mxu0
  %v486 = vadd.f32 0.0, %v485
  %487 = vmatmul.bf16.gmra.mxu0 %v359
  %v488 = vpop.f32.mrf.mxu0
  %v489 = vadd.f32 0.0, %v488
  %v490 = vpop.f32.mrf.mxu0
  %v491 = vadd.f32 0.0, %v490
  %492 = vmatmul.bf16.gmra.mxu0 %v360
  %v493 = vpop.f32.mrf.mxu0
  %v494 = vadd.f32 0.0, %v493
  %v495 = vpop.f32.mrf.mxu0
  %v496 = vadd.f32 0.0, %v495
  %497 = vmatmul.bf16.gmra.mxu0 %v361
  %v498 = vpop.f32.mrf.mxu0
  %v499 = vadd.f32 0.0, %v498
  %v500 = vpop.f32.mrf.mxu0
  %v501 = vadd.f32 0.0, %v500
  %502 = vmatmul.bf16.gmra.mxu0 %v362
  %v503 = vpop.f32.mrf.mxu0
  %v504 = vadd.f32 0.0, %v503
  %v505 = vpop.f32.mrf.mxu0
  %v506 = vadd.f32 0.0, %v505
  %507 = vmatmul.bf16.gmra.mxu0 %v363
  %v508 = vpop.f32.mrf.mxu0
  %v509 = vadd.f32 0.0, %v508
  %v510 = vpop.f32.mrf.mxu0
  %v511 = vadd.f32 0.0, %v510
  %512 = vmatmul.bf16.gmra.mxu0 %v364
  %v513 = vpop.f32.mrf.mxu0
  %v514 = vadd.f32 0.0, %v513
  %v515 = vpop.f32.mrf.mxu0
  %v516 = vadd.f32 0.0, %v515
  %517 = vmatmul.bf16.gmra.mxu0 %v365
  %v518 = vpop.f32.mrf.mxu0
  %v519 = vadd.f32 0.0, %v518
  %v520 = vpop.f32.mrf.mxu0
  %v521 = vadd.f32 0.0, %v520
  %522 = vmatmul.bf16.gmra.mxu0 %v366
  %v523 = vpop.f32.mrf.mxu0
  %v524 = vadd.f32 0.0, %v523
  %v525 = vpop.f32.mrf.mxu0
  %v526 = vadd.f32 0.0, %v525
  %527 = vmatmul.bf16.gmra.mxu0 %v367
  %v528 = vpop.f32.mrf.mxu0
  %v529 = vadd.f32 0.0, %v528
  %v530 = vpop.f32.mrf.mxu0
  %v531 = vadd.f32 0.0, %v530
  %532 = vmatmul.bf16.gmra.mxu0 %v368
  %v533 = vpop.f32.mrf.mxu0
  %v534 = vadd.f32 0.0, %v533
  %v535 = vpop.f32.mrf.mxu0
  %v536 = vadd.f32 0.0, %v535
  %537 = vmatmul.bf16.gmra.mxu0 %v369
  %v538 = vpop.f32.mrf.mxu0
  %v539 = vadd.f32 0.0, %v538
  %v540 = vpop.f32.mrf.mxu0
  %v541 = vadd.f32 0.0, %v540
  %542 = vmatmul.bf16.gmra.mxu0 %v370
  %v543 = vpop.f32.mrf.mxu0
  %v544 = vadd.f32 0.0, %v543
  %v545 = vpop.f32.mrf.mxu0
  %v546 = vadd.f32 0.0, %v545
  %547 = vmatmul.bf16.gmra.mxu0 %v371
  %v548 = vpop.f32.mrf.mxu0
  %v549 = vadd.f32 0.0, %v548
  %v550 = vpop.f32.mrf.mxu0
  %v551 = vadd.f32 0.0, %v550
  %552 = vmatmul.bf16.gmra.mxu0 %v372
  %v553 = vpop.f32.mrf.mxu0
  %v554 = vadd.f32 0.0, %v553
  %v555 = vpop.f32.mrf.mxu0
  %v556 = vadd.f32 0.0, %v555
  %557 = vmatmul.bf16.gmra.mxu0 %v373
  %v558 = vpop.f32.mrf.mxu0
  %v559 = vadd.f32 0.0, %v558
  %v560 = vpop.f32.mrf.mxu0
  %v561 = vadd.f32 0.0, %v560
  %562 = vmatmul.bf16.gmra.mxu0 %v374
  %v563 = vpop.f32.mrf.mxu0
  %v564 = vadd.f32 0.0, %v563
  %v565 = vpop.f32.mrf.mxu0
  %v566 = vadd.f32 0.0, %v565
  %567 = vmatmul.bf16.gmra.mxu0 %v375
  %v568 = vpop.f32.mrf.mxu0
  %v569 = vadd.f32 0.0, %v568
  %v570 = vpop.f32.mrf.mxu0
  %v571 = vadd.f32 0.0, %v570
  %572 = vmatmul.bf16.gmra.mxu0 %v376
  %v573 = vpop.f32.mrf.mxu0
  %v574 = vadd.f32 0.0, %v573
  %v575 = vpop.f32.mrf.mxu0
  %v576 = vadd.f32 0.0, %v575
  %577 = vmatmul.bf16.gmra.mxu0 %v377
  %v578 = vpop.f32.mrf.mxu0
  %v579 = vadd.f32 0.0, %v578
  %v580 = vpop.f32.mrf.mxu0
  %v581 = vadd.f32 0.0, %v580
  %582 = vmatmul.bf16.gmra.mxu0 %v378
  %v583 = vpop.f32.mrf.mxu0
  %v584 = vadd.f32 0.0, %v583
  %v585 = vpop.f32.mrf.mxu0
  %v586 = vadd.f32 0.0, %v585
  %587 = vmatmul.bf16.gmra.mxu0 %v379
  %v588 = vpop.f32.mrf.mxu0
  %v589 = vadd.f32 0.0, %v588
  %v590 = vpop.f32.mrf.mxu0
  %v591 = vadd.f32 0.0, %v590
  %592 = vmatmul.bf16.gmra.mxu0 %v380
  %v593 = vpop.f32.mrf.mxu0
  %v594 = vadd.f32 0.0, %v593
  %v595 = vpop.f32.mrf.mxu0
  %v596 = vadd.f32 0.0, %v595
  %597 = vmatmul.bf16.gmra.mxu0 %v381
  %v598 = vpop.f32.mrf.mxu0
  %v599 = vadd.f32 0.0, %v598
  %v600 = vpop.f32.mrf.mxu0
  %v601 = vadd.f32 0.0, %v600
  %602 = vmatmul.bf16.gmra.mxu0 %v382
  %v603 = vpop.f32.mrf.mxu0
  %v604 = vadd.f32 0.0, %v603
  %v605 = vpop.f32.mrf.mxu0
  %v606 = vadd.f32 0.0, %v605
  %607 = vmatmul.bf16.gmra.mxu0 %v383
  %v608 = vpop.f32.mrf.mxu0
  %v609 = vadd.f32 0.0, %v608
  %v610 = vpop.f32.mrf.mxu0
  %v611 = vadd.f32 0.0, %v610
  %612 = vmatmul.bf16.gmra.mxu0 %v384
  %v613 = vpop.f32.mrf.mxu0
  %v614 = vadd.f32 0.0, %v613
  %v615 = vpop.f32.mrf.mxu0
  %v616 = vadd.f32 0.0, %v615
  %617 = vmatmul.bf16.gmra.mxu0 %v385
  %v618 = vpop.f32.mrf.mxu0
  %v619 = vadd.f32 0.0, %v618
  %v620 = vpop.f32.mrf.mxu0
  %v621 = vadd.f32 0.0, %v620
  %622 = vmatmul.bf16.gmra.mxu0 %v386
  %v623 = vpop.f32.mrf.mxu0
  %v624 = vadd.f32 0.0, %v623
  %v625 = vpop.f32.mrf.mxu0
  %v626 = vadd.f32 0.0, %v625
  %627 = vmatmul.bf16.gmra.mxu0 %v387
  %v628 = vpop.f32.mrf.mxu0
  %v629 = vadd.f32 0.0, %v628
  %v630 = vpop.f32.mrf.mxu0
  %v631 = vadd.f32 0.0, %v630
  %632 = vmatmul.bf16.gmra.mxu0 %v388
  %v633 = vpop.f32.mrf.mxu0
  %v634 = vadd.f32 0.0, %v633
  %v635 = vpop.f32.mrf.mxu0
  %v636 = vadd.f32 0.0, %v635
  %637 = vdwg.mxu0
  %v638 = vadd.f32 %v85, %v479
  %v639 = vadd.f32 %v86, %v481
  %v640 = vadd.f32 %v87, %v484
  %v641 = vadd.f32 %v88, %v486
  %v642 = vadd.f32 %v89, %v489
  %v643 = vadd.f32 %v90, %v491
  %v644 = vadd.f32 %v91, %v494
  %v645 = vadd.f32 %v92, %v496
  %v646 = vadd.f32 %v93, %v499
  %v647 = vadd.f32 %v94, %v501
  %v648 = vadd.f32 %v95, %v504
  %v649 = vadd.f32 %v96, %v506
  %v650 = vadd.f32 %v97, %v509
  %v651 = vadd.f32 %v98, %v511
  %v652 = vadd.f32 %v99, %v514
  %v653 = vadd.f32 %v100, %v516
  %v654 = vadd.f32 %v101, %v519
  %v655 = vadd.f32 %v102, %v521
  %v656 = vadd.f32 %v103, %v524
  %v657 = vadd.f32 %v104, %v526
  %v658 = vadd.f32 %v105, %v529
  %v659 = vadd.f32 %v106, %v531
  %v660 = vadd.f32 %v107, %v534
  %v661 = vadd.f32 %v108, %v536
  %v662 = vadd.f32 %v109, %v539
  %v663 = vadd.f32 %v110, %v541
  %v664 = vadd.f32 %v111, %v544
  %v665 = vadd.f32 %v112, %v546
  %v666 = vadd.f32 %v113, %v549
  %v667 = vadd.f32 %v114, %v551
  %v668 = vadd.f32 %v115, %v554
  %v669 = vadd.f32 %v116, %v556
  %v670 = vadd.f32 %v117, %v559
  %v671 = vadd.f32 %v118, %v561
  %v672 = vadd.f32 %v119, %v564
  %v673 = vadd.f32 %v120, %v566
  %v674 = vadd.f32 %v121, %v569
  %v675 = vadd.f32 %v122, %v571
  %v676 = vadd.f32 %v123, %v574
  %v677 = vadd.f32 %v124, %v576
  %v678 = vadd.f32 %v125, %v579
  %v679 = vadd.f32 %v126, %v581
  %v680 = vadd.f32 %v127, %v584
  %v681 = vadd.f32 %v128, %v586
  %v682 = vadd.f32 %v129, %v589
  %v683 = vadd.f32 %v130, %v591
  %v684 = vadd.f32 %v131, %v594
  %v685 = vadd.f32 %v132, %v596
  %v686 = vadd.f32 %v133, %v599
  %v687 = vadd.f32 %v134, %v601
  %v688 = vadd.f32 %v135, %v604
  %v689 = vadd.f32 %v136, %v606
  %v690 = vadd.f32 %v137, %v609
  %v691 = vadd.f32 %v138, %v611
  %v692 = vadd.f32 %v139, %v614
  %v693 = vadd.f32 %v140, %v616
  %v694 = vadd.f32 %v141, %v619
  %v695 = vadd.f32 %v142, %v621
  %v696 = vadd.f32 %v143, %v624
  %v697 = vadd.f32 %v144, %v626
  %v698 = vadd.f32 %v145, %v629
  %v699 = vadd.f32 %v146, %v631
  %v700 = vadd.f32 %v147, %v634
  %v701 = vadd.f32 %v148, %v636
  %702 = vst [vmem:[#allocation2] sm:$0xff] %v638
  %703 = vst [vmem:[#allocation2 + $0x8] sm:$0xff] %v639
  %704 = vst [vmem:[#allocation2 + $0x10] sm:$0xff] %v640
  %705 = vst [vmem:[#allocation2 + $0x18] sm:$0xff] %v641
  %706 = vst [vmem:[#allocation2 + $0x20] sm:$0xff] %v642
  %707 = vst [vmem:[#allocation2 + $0x28] sm:$0xff] %v643
  %708 = vst [vmem:[#allocation2 + $0x30] sm:$0xff] %v644
  %709 = vst [vmem:[#allocation2 + $0x38] sm:$0xff] %v645
  %710 = vst [vmem:[#allocation2 + $0x40] sm:$0xff] %v646
  %711 = vst [vmem:[#allocation2 + $0x48] sm:$0xff] %v647
  %712 = vst [vmem:[#allocation2 + $0x50] sm:$0xff] %v648
  %713 = vst [vmem:[#allocation2 + $0x58] sm:$0xff] %v649
  %714 = vst [vmem:[#allocation2 + $0x60] sm:$0xff] %v650
  %715 = vst [vmem:[#allocation2 + $0x68] sm:$0xff] %v651
  %716 = vst [vmem:[#allocation2 + $0x70] sm:$0xff] %v652
  %717 = vst [vmem:[#allocation2 + $0x78] sm:$0xff] %v653
  %718 = vst [vmem:[#allocation2 + $0x80] sm:$0xff] %v654
  %719 = vst [vmem:[#allocation2 + $0x88] sm:$0xff] %v655
  %720 = vst [vmem:[#allocation2 + $0x90] sm:$0xff] %v656
  %721 = vst [vmem:[#allocation2 + $0x98] sm:$0xff] %v657
  %722 = vst [vmem:[#allocation2 + $0xa0] sm:$0xff] %v658
  %723 = vst [vmem:[#allocation2 + $0xa8] sm:$0xff] %v659
  %724 = vst [vmem:[#allocation2 + $0xb0] sm:$0xff] %v660
  %725 = vst [vmem:[#allocation2 + $0xb8] sm:$0xff] %v661
  %726 = vst [vmem:[#allocation2 + $0xc0] sm:$0xff] %v662
  %727 = vst [vmem:[#allocation2 + $0xc8] sm:$0xff] %v663
  %728 = vst [vmem:[#allocation2 + $0xd0] sm:$0xff] %v664
  %729 = vst [vmem:[#allocation2 + $0xd8] sm:$0xff] %v665
  %730 = vst [vmem:[#allocation2 + $0xe0] sm:$0xff] %v666
  %731 = vst [vmem:[#allocation2 + $0xe8] sm:$0xff] %v667
  %732 = vst [vmem:[#allocation2 + $0xf0] sm:$0xff] %v668
  %733 = vst [vmem:[#allocation2 + $0xf8] sm:$0xff] %v669
  %734 = vst [vmem:[#allocation2 + $0x100] sm:$0xff] %v670
  %735 = vst [vmem:[#allocation2 + $0x108] sm:$0xff] %v671
  %736 = vst [vmem:[#allocation2 + $0x110] sm:$0xff] %v672
  %737 = vst [vmem:[#allocation2 + $0x118] sm:$0xff] %v673
  %738 = vst [vmem:[#allocation2 + $0x120] sm:$0xff] %v674
  %739 = vst [vmem:[#allocation2 + $0x128] sm:$0xff] %v675
  %740 = vst [vmem:[#allocation2 + $0x130] sm:$0xff] %v676
  %741 = vst [vmem:[#allocation2 + $0x138] sm:$0xff] %v677
  %742 = vst [vmem:[#allocation2 + $0x140] sm:$0xff] %v678
  %743 = vst [vmem:[#allocation2 + $0x148] sm:$0xff] %v679
  %744 = vst [vmem:[#allocation2 + $0x150] sm:$0xff] %v680
  %745 = vst [vmem:[#allocation2 + $0x158] sm:$0xff] %v681
  %746 = vst [vmem:[#allocation2 + $0x160] sm:$0xff] %v682
  %747 = vst [vmem:[#allocation2 + $0x168] sm:$0xff] %v683
  %748 = vst [vmem:[#allocation2 + $0x170] sm:$0xff] %v684
  %749 = vst [vmem:[#allocation2 + $0x178] sm:$0xff] %v685
  %750 = vst [vmem:[#allocation2 + $0x180] sm:$0xff] %v686
  %751 = vst [vmem:[#allocation2 + $0x188] sm:$0xff] %v687
  %752 = vst [vmem:[#allocation2 + $0x190] sm:$0xff] %v688
  %753 = vst [vmem:[#allocation2 + $0x198] sm:$0xff] %v689
  %754 = vst [vmem:[#allocation2 + $0x1a0] sm:$0xff] %v690
  %755 = vst [vmem:[#allocation2 + $0x1a8] sm:$0xff] %v691
  %756 = vst [vmem:[#allocation2 + $0x1b0] sm:$0xff] %v692
  %757 = vst [vmem:[#allocation2 + $0x1b8] sm:$0xff] %v693
  %758 = vst [vmem:[#allocation2 + $0x1c0] sm:$0xff] %v694
  %759 = vst [vmem:[#allocation2 + $0x1c8] sm:$0xff] %v695
  %760 = vst [vmem:[#allocation2 + $0x1d0] sm:$0xff] %v696
  %761 = vst [vmem:[#allocation2 + $0x1d8] sm:$0xff] %v697
  %762 = vst [vmem:[#allocation2 + $0x1e0] sm:$0xff] %v698
  %763 = vst [vmem:[#allocation2 + $0x1e8] sm:$0xff] %v699
  %764 = vst [vmem:[#allocation2 + $0x1f0] sm:$0xff] %v700
  %765 = vst [vmem:[#allocation2 + $0x1f8] sm:$0xff] %v701
  // Predicated region
  $region22: #{syn_model_forward.215} parent=0 // pred_check
    %p766 = pneg %p17
  $region23: #{syn_model_forward.215} parent=0 // pred_check_branch
    %768 = sbr.rel (%p766) target = $region25
  $region24: #{syn_model_forward.215} parent=0 // pred_region
    %v769 = vld [vmem:[#allocation2] sm:$0xff]
    %v770 = vld [vmem:[#allocation2 + $0x8] sm:$0xff]
    %v771 = vld [vmem:[#allocation2 + $0x10] sm:$0xff]
    %v772 = vld [vmem:[#allocation2 + $0x18] sm:$0xff]
    %v773 = vld [vmem:[#allocation2 + $0x20] sm:$0xff]
    %v774 = vld [vmem:[#allocation2 + $0x28] sm:$0xff]
    %v775 = vld [vmem:[#allocation2 + $0x30] sm:$0xff]
    %v776 = vld [vmem:[#allocation2 + $0x38] sm:$0xff]
    %v777 = vld [vmem:[#allocation2 + $0x40] sm:$0xff]
    %v778 = vld [vmem:[#allocation2 + $0x48] sm:$0xff]
    %v779 = vld [vmem:[#allocation2 + $0x50] sm:$0xff]
    %v780 = vld [vmem:[#allocation2 + $0x58] sm:$0xff]
    %v781 = vld [vmem:[#allocation2 + $0x60] sm:$0xff]
    %v782 = vld [vmem:[#allocation2 + $0x68] sm:$0xff]
    %v783 = vld [vmem:[#allocation2 + $0x70] sm:$0xff]
    %v784 = vld [vmem:[#allocation2 + $0x78] sm:$0xff]
    %v785 = vld [vmem:[#allocation2 + $0x80] sm:$0xff]
    %v786 = vld [vmem:[#allocation2 + $0x88] sm:$0xff]
    %v787 = vld [vmem:[#allocation2 + $0x90] sm:$0xff]
    %v788 = vld [vmem:[#allocation2 + $0x98] sm:$0xff]
    %v789 = vld [vmem:[#allocation2 + $0xa0] sm:$0xff]
    %v790 = vld [vmem:[#allocation2 + $0xa8] sm:$0xff]
    %v791 = vld [vmem:[#allocation2 + $0xb0] sm:$0xff]
    %v792 = vld [vmem:[#allocation2 + $0xb8] sm:$0xff]
    %v793 = vld [vmem:[#allocation2 + $0xc0] sm:$0xff]
    %v794 = vld [vmem:[#allocation2 + $0xc8] sm:$0xff]
    %v795 = vld [vmem:[#allocation2 + $0xd0] sm:$0xff]
    %v796 = vld [vmem:[#allocation2 + $0xd8] sm:$0xff]
    %v797 = vld [vmem:[#allocation2 + $0xe0] sm:$0xff]
    %v798 = vld [vmem:[#allocation2 + $0xe8] sm:$0xff]
    %v799 = vld [vmem:[#allocation2 + $0xf0] sm:$0xff]
    %v800 = vld [vmem:[#allocation2 + $0xf8] sm:$0xff]
    %v801 = vld [vmem:[#allocation2 + $0x100] sm:$0xff]
    %v802 = vld [vmem:[#allocation2 + $0x108] sm:$0xff]
    %v803 = vld [vmem:[#allocation2 + $0x110] sm:$0xff]
    %v804 = vld [vmem:[#allocation2 + $0x118] sm:$0xff]
    %v805 = vld [vmem:[#allocation2 + $0x120] sm:$0xff]
    %v806 = vld [vmem:[#allocation2 + $0x128] sm:$0xff]
    %v807 = vld [vmem:[#allocation2 + $0x130] sm:$0xff]
    %v808 = vld [vmem:[#allocation2 + $0x138] sm:$0xff]
    %v809 = vld [vmem:[#allocation2 + $0x140] sm:$0xff]
    %v810 = vld [vmem:[#allocation2 + $0x148] sm:$0xff]
    %v811 = vld [vmem:[#allocation2 + $0x150] sm:$0xff]
    %v812 = vld [vmem:[#allocation2 + $0x158] sm:$0xff]
    %v813 = vld [vmem:[#allocation2 + $0x160] sm:$0xff]
    %v814 = vld [vmem:[#allocation2 + $0x168] sm:$0xff]
    %v815 = vld [vmem:[#allocation2 + $0x170] sm:$0xff]
    %v816 = vld [vmem:[#allocation2 + $0x178] sm:$0xff]
    %v817 = vld [vmem:[#allocation2 + $0x180] sm:$0xff]
    %v818 = vld [vmem:[#allocation2 + $0x188] sm:$0xff]
    %v819 = vld [vmem:[#allocation2 + $0x190] sm:$0xff]
    %v820 = vld [vmem:[#allocation2 + $0x198] sm:$0xff]
    %v821 = vld [vmem:[#allocation2 + $0x1a0] sm:$0xff]
    %v822 = vld [vmem:[#allocation2 + $0x1a8] sm:$0xff]
    %v823 = vld [vmem:[#allocation2 + $0x1b0] sm:$0xff]
    %v824 = vld [vmem:[#allocation2 + $0x1b8] sm:$0xff]
    %v825 = vld [vmem:[#allocation2 + $0x1c0] sm:$0xff]
    %v826 = vld [vmem:[#allocation2 + $0x1c8] sm:$0xff]
    %v827 = vld [vmem:[#allocation2 + $0x1d0] sm:$0xff]
    %v828 = vld [vmem:[#allocation2 + $0x1d8] sm:$0xff]
    %v829 = vld [vmem:[#allocation2 + $0x1e0] sm:$0xff]
    %v830 = vld [vmem:[#allocation2 + $0x1e8] sm:$0xff]
    %v831 = vld [vmem:[#allocation2 + $0x1f0] sm:$0xff]
    %v832 = vld [vmem:[#allocation2 + $0x1f8] sm:$0xff]
    %v833 = vld [vmem:[%s2] sm:$0x1]
    %v835 = vperm.slane %v833, 0
    %v837 = vadd.f32 %v769, %v835
    %v838 = vadd.f32 %v770, %v835
    %v839 = vadd.f32 %v771, %v835
    %v840 = vadd.f32 %v772, %v835
    %v841 = vadd.f32 %v773, %v835
    %v842 = vadd.f32 %v774, %v835
    %v843 = vadd.f32 %v775, %v835
    %v844 = vadd.f32 %v776, %v835
    %v845 = vadd.f32 %v777, %v835
    %v846 = vadd.f32 %v778, %v835
    %v847 = vadd.f32 %v779, %v835
    %v848 = vadd.f32 %v780, %v835
    %v849 = vadd.f32 %v781, %v835
    %v850 = vadd.f32 %v782, %v835
    %v851 = vadd.f32 %v783, %v835
    %v852 = vadd.f32 %v784, %v835
    %v853 = vadd.f32 %v785, %v835
    %v854 = vadd.f32 %v786, %v835
    %v855 = vadd.f32 %v787, %v835
    %v856 = vadd.f32 %v788, %v835
    %v857 = vadd.f32 %v789, %v835
    %v858 = vadd.f32 %v790, %v835
    %v859 = vadd.f32 %v791, %v835
    %v860 = vadd.f32 %v792, %v835
    %v861 = vadd.f32 %v793, %v835
    %v862 = vadd.f32 %v794, %v835
    %v863 = vadd.f32 %v795, %v835
    %v864 = vadd.f32 %v796, %v835
    %v865 = vadd.f32 %v797, %v835
    %v866 = vadd.f32 %v798, %v835
    %v867 = vadd.f32 %v799, %v835
    %v868 = vadd.f32 %v800, %v835
    %v869 = vadd.f32 %v801, %v835
    %v870 = vadd.f32 %v802, %v835
    %v871 = vadd.f32 %v803, %v835
    %v872 = vadd.f32 %v804, %v835
    %v873 = vadd.f32 %v805, %v835
    %v874 = vadd.f32 %v806, %v835
    %v875 = vadd.f32 %v807, %v835
    %v876 = vadd.f32 %v808, %v835
    %v877 = vadd.f32 %v809, %v835
    %v878 = vadd.f32 %v810, %v835
    %v879 = vadd.f32 %v811, %v835
    %v880 = vadd.f32 %v812, %v835
    %v881 = vadd.f32 %v813, %v835
    %v882 = vadd.f32 %v814, %v835
    %v883 = vadd.f32 %v815, %v835
    %v884 = vadd.f32 %v816, %v835
    %v885 = vadd.f32 %v817, %v835
    %v886 = vadd.f32 %v818, %v835
    %v887 = vadd.f32 %v819, %v835
    %v888 = vadd.f32 %v820, %v835
    %v889 = vadd.f32 %v821, %v835
    %v890 = vadd.f32 %v822, %v835
    %v891 = vadd.f32 %v823, %v835
    %v892 = vadd.f32 %v824, %v835
    %v893 = vadd.f32 %v825, %v835
    %v894 = vadd.f32 %v826, %v835
    %v895 = vadd.f32 %v827, %v835
    %v896 = vadd.f32 %v828, %v835
    %v897 = vadd.f32 %v829, %v835
    %v898 = vadd.f32 %v830, %v835
    %v899 = vadd.f32 %v831, %v835
    %v900 = vadd.f32 %v832, %v835
    %v901 = vld [vmem:[%s3] sm:$0xff]
    %v902 = vld [vmem:[%s3 + $0x8] sm:$0xff]
    %v903 = vld [vmem:[%s3 + $0x10] sm:$0xff]
    %v904 = vld [vmem:[%s3 + $0x18] sm:$0xff]
    %v905 = vld [vmem:[%s3 + $0x20] sm:$0xff]
    %v906 = vld [vmem:[%s3 + $0x28] sm:$0xff]
    %v907 = vld [vmem:[%s3 + $0x30] sm:$0xff]
    %v908 = vld [vmem:[%s3 + $0x38] sm:$0xff]
    %v909 = vld [vmem:[%s3 + $0x40] sm:$0xff]
    %v910 = vld [vmem:[%s3 + $0x48] sm:$0xff]
    %v911 = vld [vmem:[%s3 + $0x50] sm:$0xff]
    %v912 = vld [vmem:[%s3 + $0x58] sm:$0xff]
    %v913 = vld [vmem:[%s3 + $0x60] sm:$0xff]
    %v914 = vld [vmem:[%s3 + $0x68] sm:$0xff]
    %v915 = vld [vmem:[%s3 + $0x70] sm:$0xff]
    %v916 = vld [vmem:[%s3 + $0x78] sm:$0xff]
    %v917 = vld [vmem:[%s3 + $0x80] sm:$0xff]
    %v918 = vld [vmem:[%s3 + $0x88] sm:$0xff]
    %v919 = vld [vmem:[%s3 + $0x90] sm:$0xff]
    %v920 = vld [vmem:[%s3 + $0x98] sm:$0xff]
    %v921 = vld [vmem:[%s3 + $0xa0] sm:$0xff]
    %v922 = vld [vmem:[%s3 + $0xa8] sm:$0xff]
    %v923 = vld [vmem:[%s3 + $0xb0] sm:$0xff]
    %v924 = vld [vmem:[%s3 + $0xb8] sm:$0xff]
    %v925 = vld [vmem:[%s3 + $0xc0] sm:$0xff]
    %v926 = vld [vmem:[%s3 + $0xc8] sm:$0xff]
    %v927 = vld [vmem:[%s3 + $0xd0] sm:$0xff]
    %v928 = vld [vmem:[%s3 + $0xd8] sm:$0xff]
    %v929 = vld [vmem:[%s3 + $0xe0] sm:$0xff]
    %v930 = vld [vmem:[%s3 + $0xe8] sm:$0xff]
    %v931 = vld [vmem:[%s3 + $0xf0] sm:$0xff]
    %v932 = vld [vmem:[%s3 + $0xf8] sm:$0xff]
    %v933 = vld [vmem:[%s3 + $0x100] sm:$0xff]
    %v934 = vld [vmem:[%s3 + $0x108] sm:$0xff]
    %v935 = vld [vmem:[%s3 + $0x110] sm:$0xff]
    %v936 = vld [vmem:[%s3 + $0x118] sm:$0xff]
    %v937 = vld [vmem:[%s3 + $0x120] sm:$0xff]
    %v938 = vld [vmem:[%s3 + $0x128] sm:$0xff]
    %v939 = vld [vmem:[%s3 + $0x130] sm:$0xff]
    %v940 = vld [vmem:[%s3 + $0x138] sm:$0xff]
    %v941 = vld [vmem:[%s3 + $0x140] sm:$0xff]
    %v942 = vld [vmem:[%s3 + $0x148] sm:$0xff]
    %v943 = vld [vmem:[%s3 + $0x150] sm:$0xff]
    %v944 = vld [vmem:[%s3 + $0x158] sm:$0xff]
    %v945 = vld [vmem:[%s3 + $0x160] sm:$0xff]
    %v946 = vld [vmem:[%s3 + $0x168] sm:$0xff]
    %v947 = vld [vmem:[%s3 + $0x170] sm:$0xff]
    %v948 = vld [vmem:[%s3 + $0x178] sm:$0xff]
    %v949 = vld [vmem:[%s3 + $0x180] sm:$0xff]
    %v950 = vld [vmem:[%s3 + $0x188] sm:$0xff]
    %v951 = vld [vmem:[%s3 + $0x190] sm:$0xff]
    %v952 = vld [vmem:[%s3 + $0x198] sm:$0xff]
    %v953 = vld [vmem:[%s3 + $0x1a0] sm:$0xff]
    %v954 = vld [vmem:[%s3 + $0x1a8] sm:$0xff]
    %v955 = vld [vmem:[%s3 + $0x1b0] sm:$0xff]
    %v956 = vld [vmem:[%s3 + $0x1b8] sm:$0xff]
    %v957 = vld [vmem:[%s3 + $0x1c0] sm:$0xff]
    %v958 = vld [vmem:[%s3 + $0x1c8] sm:$0xff]
    %v959 = vld [vmem:[%s3 + $0x1d0] sm:$0xff]
    %v960 = vld [vmem:[%s3 + $0x1d8] sm:$0xff]
    %v961 = vld [vmem:[%s3 + $0x1e0] sm:$0xff]
    %v962 = vld [vmem:[%s3 + $0x1e8] sm:$0xff]
    %v963 = vld [vmem:[%s3 + $0x1f0] sm:$0xff]
    %v964 = vld [vmem:[%s3 + $0x1f8] sm:$0xff]
    %v965 = vadd.f32 %v837, %v901
    %v966 = vadd.f32 %v838, %v902
    %v967 = vadd.f32 %v839, %v903
    %v968 = vadd.f32 %v840, %v904
    %v969 = vadd.f32 %v841, %v905
    %v970 = vadd.f32 %v842, %v906
    %v971 = vadd.f32 %v843, %v907
    %v972 = vadd.f32 %v844, %v908
    %v973 = vadd.f32 %v845, %v909
    %v974 = vadd.f32 %v846, %v910
    %v975 = vadd.f32 %v847, %v911
    %v976 = vadd.f32 %v848, %v912
    %v977 = vadd.f32 %v849, %v913
    %v978 = vadd.f32 %v850, %v914
    %v979 = vadd.f32 %v851, %v915
    %v980 = vadd.f32 %v852, %v916
    %v981 = vadd.f32 %v853, %v917
    %v982 = vadd.f32 %v854, %v918
    %v983 = vadd.f32 %v855, %v919
    %v984 = vadd.f32 %v856, %v920
    %v985 = vadd.f32 %v857, %v921
    %v986 = vadd.f32 %v858, %v922
    %v987 = vadd.f32 %v859, %v923
    %v988 = vadd.f32 %v860, %v924
    %v989 = vadd.f32 %v861, %v925
    %v990 = vadd.f32 %v862, %v926
    %v991 = vadd.f32 %v863, %v927
    %v992 = vadd.f32 %v864, %v928
    %v993 = vadd.f32 %v865, %v929
    %v994 = vadd.f32 %v866, %v930
    %v995 = vadd.f32 %v867, %v931
    %v996 = vadd.f32 %v868, %v932
    %v997 = vadd.f32 %v869, %v933
    %v998 = vadd.f32 %v870, %v934
    %v999 = vadd.f32 %v871, %v935
    %v1000 = vadd.f32 %v872, %v936
    %v1001 = vadd.f32 %v873, %v937
    %v1002 = vadd.f32 %v874, %v938
    %v1003 = vadd.f32 %v875, %v939
    %v1004 = vadd.f32 %v876, %v940
    %v1005 = vadd.f32 %v877, %v941
    %v1006 = vadd.f32 %v878, %v942
    %v1007 = vadd.f32 %v879, %v943
    %v1008 = vadd.f32 %v880, %v944
    %v1009 = vadd.f32 %v881, %v945
    %v1010 = vadd.f32 %v882, %v946
    %v1011 = vadd.f32 %v883, %v947
    %v1012 = vadd.f32 %v884, %v948
    %v1013 = vadd.f32 %v885, %v949
    %v1014 = vadd.f32 %v886, %v950
    %v1015 = vadd.f32 %v887, %v951
    %v1016 = vadd.f32 %v888, %v952
    %v1017 = vadd.f32 %v889, %v953
    %v1018 = vadd.f32 %v890, %v954
    %v1019 = vadd.f32 %v891, %v955
    %v1020 = vadd.f32 %v892, %v956
    %v1021 = vadd.f32 %v893, %v957
    %v1022 = vadd.f32 %v894, %v958
    %v1023 = vadd.f32 %v895, %v959
    %v1024 = vadd.f32 %v896, %v960
    %v1025 = vadd.f32 %v897, %v961
    %v1026 = vadd.f32 %v898, %v962
    %v1027 = vadd.f32 %v899, %v963
    %v1028 = vadd.f32 %v900, %v964
    %v1029 = vmax.f32 %v965, 0.0
    %v1030 = vmax.f32 %v966, 0.0
    %v1031 = vmax.f32 %v967, 0.0
    %v1032 = vmax.f32 %v968, 0.0
    %v1033 = vmax.f32 %v969, 0.0
    %v1034 = vmax.f32 %v970, 0.0
    %v1035 = vmax.f32 %v971, 0.0
    %v1036 = vmax.f32 %v972, 0.0
    %v1037 = vmax.f32 %v973, 0.0
    %v1038 = vmax.f32 %v974, 0.0
    %v1039 = vmax.f32 %v975, 0.0
    %v1040 = vmax.f32 %v976, 0.0
    %v1041 = vmax.f32 %v977, 0.0
    %v1042 = vmax.f32 %v978, 0.0
    %v1043 = vmax.f32 %v979, 0.0
    %v1044 = vmax.f32 %v980, 0.0
    %v1045 = vmax.f32 %v981, 0.0
    %v1046 = vmax.f32 %v982, 0.0
    %v1047 = vmax.f32 %v983, 0.0
    %v1048 = vmax.f32 %v984, 0.0
    %v1049 = vmax.f32 %v985, 0.0
    %v1050 = vmax.f32 %v986, 0.0
    %v1051 = vmax.f32 %v987, 0.0
    %v1052 = vmax.f32 %v988, 0.0
    %v1053 = vmax.f32 %v989, 0.0
    %v1054 = vmax.f32 %v990, 0.0
    %v1055 = vmax.f32 %v991, 0.0
    %v1056 = vmax.f32 %v992, 0.0
    %v1057 = vmax.f32 %v993, 0.0
    %v1058 = vmax.f32 %v994, 0.0
    %v1059 = vmax.f32 %v995, 0.0
    %v1060 = vmax.f32 %v996, 0.0
    %v1061 = vmax.f32 %v997, 0.0
    %v1062 = vmax.f32 %v998, 0.0
    %v1063 = vmax.f32 %v999, 0.0
    %v1064 = vmax.f32 %v1000, 0.0
    %v1065 = vmax.f32 %v1001, 0.0
    %v1066 = vmax.f32 %v1002, 0.0
    %v1067 = vmax.f32 %v1003, 0.0
    %v1068 = vmax.f32 %v1004, 0.0
    %v1069 = vmax.f32 %v1005, 0.0
    %v1070 = vmax.f32 %v1006, 0.0
    %v1071 = vmax.f32 %v1007, 0.0
    %v1072 = vmax.f32 %v1008, 0.0
    %v1073 = vmax.f32 %v1009, 0.0
    %v1074 = vmax.f32 %v1010, 0.0
    %v1075 = vmax.f32 %v1011, 0.0
    %v1076 = vmax.f32 %v1012, 0.0
    %v1077 = vmax.f32 %v1013, 0.0
    %v1078 = vmax.f32 %v1014, 0.0
    %v1079 = vmax.f32 %v1015, 0.0
    %v1080 = vmax.f32 %v1016, 0.0
    %v1081 = vmax.f32 %v1017, 0.0
    %v1082 = vmax.f32 %v1018, 0.0
    %v1083 = vmax.f32 %v1019, 0.0
    %v1084 = vmax.f32 %v1020, 0.0
    %v1085 = vmax.f32 %v1021, 0.0
    %v1086 = vmax.f32 %v1022, 0.0
    %v1087 = vmax.f32 %v1023, 0.0
    %v1088 = vmax.f32 %v1024, 0.0
    %v1089 = vmax.f32 %v1025, 0.0
    %v1090 = vmax.f32 %v1026, 0.0
    %v1091 = vmax.f32 %v1027, 0.0
    %v1092 = vmax.f32 %v1028, 0.0
    %1093 = vst [vmem:[%s4] sm:$0xff] %v1029
    %1094 = vst [vmem:[%s4 + $0x8] sm:$0xff] %v1030
    %1095 = vst [vmem:[%s4 + $0x10] sm:$0xff] %v1031
    %1096 = vst [vmem:[%s4 + $0x18] sm:$0xff] %v1032
    %1097 = vst [vmem:[%s4 + $0x20] sm:$0xff] %v1033
    %1098 = vst [vmem:[%s4 + $0x28] sm:$0xff] %v1034
    %1099 = vst [vmem:[%s4 + $0x30] sm:$0xff] %v1035
    %1100 = vst [vmem:[%s4 + $0x38] sm:$0xff] %v1036
    %1101 = vst [vmem:[%s4 + $0x40] sm:$0xff] %v1037
    %1102 = vst [vmem:[%s4 + $0x48] sm:$0xff] %v1038
    %1103 = vst [vmem:[%s4 + $0x50] sm:$0xff] %v1039
    %1104 = vst [vmem:[%s4 + $0x58] sm:$0xff] %v1040
    %1105 = vst [vmem:[%s4 + $0x60] sm:$0xff] %v1041
    %1106 = vst [vmem:[%s4 + $0x68] sm:$0xff] %v1042
    %1107 = vst [vmem:[%s4 + $0x70] sm:$0xff] %v1043
    %1108 = vst [vmem:[%s4 + $0x78] sm:$0xff] %v1044
    %1109 = vst [vmem:[%s4 + $0x80] sm:$0xff] %v1045
    %1110 = vst [vmem:[%s4 + $0x88] sm:$0xff] %v1046
    %1111 = vst [vmem:[%s4 + $0x90] sm:$0xff] %v1047
    %1112 = vst [vmem:[%s4 + $0x98] sm:$0xff] %v1048
    %1113 = vst [vmem:[%s4 + $0xa0] sm:$0xff] %v1049
    %1114 = vst [vmem:[%s4 + $0xa8] sm:$0xff] %v1050
    %1115 = vst [vmem:[%s4 + $0xb0] sm:$0xff] %v1051
    %1116 = vst [vmem:[%s4 + $0xb8] sm:$0xff] %v1052
    %1117 = vst [vmem:[%s4 + $0xc0] sm:$0xff] %v1053
    %1118 = vst [vmem:[%s4 + $0xc8] sm:$0xff] %v1054
    %1119 = vst [vmem:[%s4 + $0xd0] sm:$0xff] %v1055
    %1120 = vst [vmem:[%s4 + $0xd8] sm:$0xff] %v1056
    %1121 = vst [vmem:[%s4 + $0xe0] sm:$0xff] %v1057
    %1122 = vst [vmem:[%s4 + $0xe8] sm:$0xff] %v1058
    %1123 = vst [vmem:[%s4 + $0xf0] sm:$0xff] %v1059
    %1124 = vst [vmem:[%s4 + $0xf8] sm:$0xff] %v1060
    %1125 = vst [vmem:[%s4 + $0x100] sm:$0xff] %v1061
    %1126 = vst [vmem:[%s4 + $0x108] sm:$0xff] %v1062
    %1127 = vst [vmem:[%s4 + $0x110] sm:$0xff] %v1063
    %1128 = vst [vmem:[%s4 + $0x118] sm:$0xff] %v1064
    %1129 = vst [vmem:[%s4 + $0x120] sm:$0xff] %v1065
    %1130 = vst [vmem:[%s4 + $0x128] sm:$0xff] %v1066
    %1131 = vst [vmem:[%s4 + $0x130] sm:$0xff] %v1067
    %1132 = vst [vmem:[%s4 + $0x138] sm:$0xff] %v1068
    %1133 = vst [vmem:[%s4 + $0x140] sm:$0xff] %v1069
    %1134 = vst [vmem:[%s4 + $0x148] sm:$0xff] %v1070
    %1135 = vst [vmem:[%s4 + $0x150] sm:$0xff] %v1071
    %1136 = vst [vmem:[%s4 + $0x158] sm:$0xff] %v1072
    %1137 = vst [vmem:[%s4 + $0x160] sm:$0xff] %v1073
    %1138 = vst [vmem:[%s4 + $0x168] sm:$0xff] %v1074
    %1139 = vst [vmem:[%s4 + $0x170] sm:$0xff] %v1075
    %1140 = vst [vmem:[%s4 + $0x178] sm:$0xff] %v1076
    %1141 = vst [vmem:[%s4 + $0x180] sm:$0xff] %v1077
    %1142 = vst [vmem:[%s4 + $0x188] sm:$0xff] %v1078
    %1143 = vst [vmem:[%s4 + $0x190] sm:$0xff] %v1079
    %1144 = vst [vmem:[%s4 + $0x198] sm:$0xff] %v1080
    %1145 = vst [vmem:[%s4 + $0x1a0] sm:$0xff] %v1081
    %1146 = vst [vmem:[%s4 + $0x1a8] sm:$0xff] %v1082
    %1147 = vst [vmem:[%s4 + $0x1b0] sm:$0xff] %v1083
    %1148 = vst [vmem:[%s4 + $0x1b8] sm:$0xff] %v1084
    %1149 = vst [vmem:[%s4 + $0x1c0] sm:$0xff] %v1085
    %1150 = vst [vmem:[%s4 + $0x1c8] sm:$0xff] %v1086
    %1151 = vst [vmem:[%s4 + $0x1d0] sm:$0xff] %v1087
    %1152 = vst [vmem:[%s4 + $0x1d8] sm:$0xff] %v1088
    %1153 = vst [vmem:[%s4 + $0x1e0] sm:$0xff] %v1089
    %1154 = vst [vmem:[%s4 + $0x1e8] sm:$0xff] %v1090
    %1155 = vst [vmem:[%s4 + $0x1f0] sm:$0xff] %v1091
    %1156 = vst [vmem:[%s4 + $0x1f8] sm:$0xff] %v1092
  $region25: #{syn_model_forward.215} parent=0 // pred_fallthru
    _
  // Predicated region
  $region26: #{syn_model_forward.215} parent=0 // pred_check
    _
  $region27: #{syn_model_forward.215} parent=0 // pred_check_branch
    %1158 = sbr.rel (0) target = $region29
  $region28: #{syn_model_forward.215} parent=0 // pred_region
    _
  $region29: #{syn_model_forward.215} parent=0 // pred_fallthru
    _
  // Predicated region
  $region30: #{syn_model_forward.215} parent=0 // pred_check
    _
  $region31: #{syn_model_forward.215} parent=0 // pred_check_branch
    %1160 = sbr.rel (0) target = $region33
  $region32: #{syn_model_forward.215} parent=0 // pred_region
    _
  $region33: #{syn_model_forward.215} parent=0 // pred_fallthru
    _

// kernel: syn_model_forward.227
$region0: #{syn_model_forward.227}
  #allocation0 [shape = 'u32[]', space=smem, size = 0x4, offset = 0x4, fixed_abs, tag = 'smem constant byte address 0x4 - core index']
  #allocation1 [shape = 'u32[72,128]{1,0:T(1,128)}', space=vmem, size = 0x9000, scoped, tag = 'internal scratch']
  #allocation2 [shape = 'f32[128,128]{1,0:T(8,128)}', space=vmem, size = 0x10000, scoped, tag = 'scratch operand']
  %s0 = inlined_call_operand.vmem [shape: bf16[128,128], index: 0, kind: input, shape index: {}]
  %s1 = inlined_call_operand.vmem [shape: bf16[128,128], index: 1, kind: input, shape index: {}]
  %s2 = inlined_call_operand.vmem [shape: f32[1,128], index: 2, kind: input, shape index: {}]
  %s3 = inlined_call_operand.vmem [shape: f32[128,128], index: 3, kind: output, shape index: {}]
  %s4 = sld [smem:[#allocation0]]
  $region30: #{syn_model_forward.227} parent=0
    _
  %s6 = ssub.s32 1, %s4
  %s7 = scalar_select 0, %s6, %s4
  // Predicated region
  $region2: #{syn_model_forward.227} parent=0 // pred_check
    _
  $region3: #{syn_model_forward.227} parent=0 // pred_check_branch
    %9 = sbr.rel (0) target = $region5
  $region4: #{syn_model_forward.227} parent=0 // pred_region
    _
  $region5: #{syn_model_forward.227} parent=0 // pred_fallthru
    _
  // Predicated region
  $region6: #{syn_model_forward.227} parent=0 // pred_check
    _
  $region7: #{syn_model_forward.227} parent=0 // pred_check_branch
    %11 = sbr.rel (0) target = $region9
  $region8: #{syn_model_forward.227} parent=0 // pred_region
    _
  $region9: #{syn_model_forward.227} parent=0 // pred_fallthru
    _
  // Predicated region
  $region10: #{syn_model_forward.227} parent=0 // pred_check
    _
  $region11: #{syn_model_forward.227} parent=0 // pred_check_branch
    %13 = sbr.rel (0) target = $region13
  $region12: #{syn_model_forward.227} parent=0 // pred_region
    _
  $region13: #{syn_model_forward.227} parent=0 // pred_fallthru
    _
  %p14 = scmp.eq.s32.totalorder 0, 0
  // Predicated region
  $region14: #{syn_model_forward.227} parent=0 // pred_check
    %p15 = pneg %p14
  $region15: #{syn_model_forward.227} parent=0 // pred_check_branch
    %17 = sbr.rel (%p15) target = $region17
  $region16: #{syn_model_forward.227} parent=0 // pred_region
    %18 = vst [vmem:[#allocation2] sm:$0xff] 0.0
    %19 = vst [vmem:[#allocation2 + $0x8] sm:$0xff] 0.0
    %20 = vst [vmem:[#allocation2 + $0x10] sm:$0xff] 0.0
    %21 = vst [vmem:[#allocation2 + $0x18] sm:$0xff] 0.0
    %22 = vst [vmem:[#allocation2 + $0x20] sm:$0xff] 0.0
    %23 = vst [vmem:[#allocation2 + $0x28] sm:$0xff] 0.0
    %24 = vst [vmem:[#allocation2 + $0x30] sm:$0xff] 0.0
    %25 = vst [vmem:[#allocation2 + $0x38] sm:$0xff] 0.0
    %26 = vst [vmem:[#allocation2 + $0x40] sm:$0xff] 0.0
    %27 = vst [vmem:[#allocation2 + $0x48] sm:$0xff] 0.0
    %28 = vst [vmem:[#allocation2 + $0x50] sm:$0xff] 0.0
    %29 = vst [vmem:[#allocation2 + $0x58] sm:$0xff] 0.0
    %30 = vst [vmem:[#allocation2 + $0x60] sm:$0xff] 0.0
    %31 = vst [vmem:[#allocation2 + $0x68] sm:$0xff] 0.0
    %32 = vst [vmem:[#allocation2 + $0x70] sm:$0xff] 0.0
    %33 = vst [vmem:[#allocation2 + $0x78] sm:$0xff] 0.0
  $region17: #{syn_model_forward.227} parent=0 // pred_fallthru
    _
  %v34 = vld [vmem:[#allocation2] sm:$0xff]
  %v35 = vld [vmem:[#allocation2 + $0x8] sm:$0xff]
  %v36 = vld [vmem:[#allocation2 + $0x10] sm:$0xff]
  %v37 = vld [vmem:[#allocation2 + $0x18] sm:$0xff]
  %v38 = vld [vmem:[#allocation2 + $0x20] sm:$0xff]
  %v39 = vld [vmem:[#allocation2 + $0x28] sm:$0xff]
  %v40 = vld [vmem:[#allocation2 + $0x30] sm:$0xff]
  %v41 = vld [vmem:[#allocation2 + $0x38] sm:$0xff]
  %v42 = vld [vmem:[#allocation2 + $0x40] sm:$0xff]
  %v43 = vld [vmem:[#allocation2 + $0x48] sm:$0xff]
  %v44 = vld [vmem:[#allocation2 + $0x50] sm:$0xff]
  %v45 = vld [vmem:[#allocation2 + $0x58] sm:$0xff]
  %v46 = vld [vmem:[#allocation2 + $0x60] sm:$0xff]
  %v47 = vld [vmem:[#allocation2 + $0x68] sm:$0xff]
  %v48 = vld [vmem:[#allocation2 + $0x70] sm:$0xff]
  %v49 = vld [vmem:[#allocation2 + $0x78] sm:$0xff]
  %v50 = vld [vmem:[%s0] sm:$0xf]
  %v51 = vld [vmem:[%s0 + $0x4] sm:$0xf]
  %v52 = vld [vmem:[%s0 + $0x8] sm:$0xf]
  %v53 = vld [vmem:[%s0 + $0xc] sm:$0xf]
  %v54 = vld [vmem:[%s0 + $0x10] sm:$0xf]
  %v55 = vld [vmem:[%s0 + $0x14] sm:$0xf]
  %v56 = vld [vmem:[%s0 + $0x18] sm:$0xf]
  %v57 = vld [vmem:[%s0 + $0x1c] sm:$0xf]
  %v58 = vld [vmem:[%s0 + $0x20] sm:$0xf]
  %v59 = vld [vmem:[%s0 + $0x24] sm:$0xf]
  %v60 = vld [vmem:[%s0 + $0x28] sm:$0xf]
  %v61 = vld [vmem:[%s0 + $0x2c] sm:$0xf]
  %v62 = vld [vmem:[%s0 + $0x30] sm:$0xf]
  %v63 = vld [vmem:[%s0 + $0x34] sm:$0xf]
  %v64 = vld [vmem:[%s0 + $0x38] sm:$0xf]
  %v65 = vld [vmem:[%s0 + $0x3c] sm:$0xf]
  %v66 = vld [vmem:[%s1] sm:$0xf]
  %v67 = vld [vmem:[%s1 + $0x4] sm:$0xf]
  %v68 = vld [vmem:[%s1 + $0x8] sm:$0xf]
  %v69 = vld [vmem:[%s1 + $0xc] sm:$0xf]
  %v70 = vld [vmem:[%s1 + $0x10] sm:$0xf]
  %v71 = vld [vmem:[%s1 + $0x14] sm:$0xf]
  %v72 = vld [vmem:[%s1 + $0x18] sm:$0xf]
  %v73 = vld [vmem:[%s1 + $0x1c] sm:$0xf]
  %v74 = vld [vmem:[%s1 + $0x20] sm:$0xf]
  %v75 = vld [vmem:[%s1 + $0x24] sm:$0xf]
  %v76 = vld [vmem:[%s1 + $0x28] sm:$0xf]
  %v77 = vld [vmem:[%s1 + $0x2c] sm:$0xf]
  %v78 = vld [vmem:[%s1 + $0x30] sm:$0xf]
  %v79 = vld [vmem:[%s1 + $0x34] sm:$0xf]
  %v80 = vld [vmem:[%s1 + $0x38] sm:$0xf]
  %v81 = vld [vmem:[%s1 + $0x3c] sm:$0xf]
  %v98 = vunpack.c.l.b16 %v50
  %v99 = vunpack.c.l.b16 %v51
  %v100 = vunpack.c.l.b16 %v52
  %v101 = vunpack.c.l.b16 %v53
  %v102 = vunpack.c.l.b16 %v54
  %v103 = vunpack.c.l.b16 %v55
  %v104 = vunpack.c.l.b16 %v56
  %v105 = vunpack.c.l.b16 %v57
  %v106 = vunpack.c.l.b16 %v58
  %v107 = vunpack.c.l.b16 %v59
  %v108 = vunpack.c.l.b16 %v60
  %v109 = vunpack.c.l.b16 %v61
  %v110 = vunpack.c.l.b16 %v62
  %v111 = vunpack.c.l.b16 %v63
  %v112 = vunpack.c.l.b16 %v64
  %v113 = vunpack.c.l.b16 %v65
  %v114 = vpack.c.b16 %v99, %v98
  %v115 = vpack.c.b16 %v101, %v100
  %v116 = vpack.c.b16 %v103, %v102
  %v117 = vpack.c.b16 %v105, %v104
  %v118 = vpack.c.b16 %v107, %v106
  %v119 = vpack.c.b16 %v109, %v108
  %v120 = vpack.c.b16 %v111, %v110
  %v121 = vpack.c.b16 %v113, %v112
  %v146 = vunpack.c.l.b16 %v66
  %v147 = vunpack.c.l.b16 %v67
  %v148 = vunpack.c.l.b16 %v68
  %v149 = vunpack.c.l.b16 %v69
  %v150 = vunpack.c.l.b16 %v70
  %v151 = vunpack.c.l.b16 %v71
  %v152 = vunpack.c.l.b16 %v72
  %v153 = vunpack.c.l.b16 %v73
  %v154 = vunpack.c.l.b16 %v74
  %v155 = vunpack.c.l.b16 %v75
  %v156 = vunpack.c.l.b16 %v76
  %v157 = vunpack.c.l.b16 %v77
  %v158 = vunpack.c.l.b16 %v78
  %v159 = vunpack.c.l.b16 %v79
  %v160 = vunpack.c.l.b16 %v80
  %v161 = vunpack.c.l.b16 %v81
  %v162 = vpack.c.b16 %v147, %v146
  %v163 = vpack.c.b16 %v149, %v148
  %v164 = vpack.c.b16 %v151, %v150
  %v165 = vpack.c.b16 %v153, %v152
  %v166 = vpack.c.b16 %v155, %v154
  %v167 = vpack.c.b16 %v157, %v156
  %v168 = vpack.c.b16 %v159, %v158
  %v169 = vpack.c.b16 %v161, %v160
  %178 = vmatpush.bf16.msra.mxu0 %v169
  %179 = vmatpush.bf16.msra.mxu0 %v168
  %180 = vmatpush.bf16.msra.mxu0 %v167
  %181 = vmatpush.bf16.msra.mxu0 %v166
  %182 = vmatpush.bf16.msra.mxu0 %v165
  %183 = vmatpush.bf16.msra.mxu0 %v164
  %184 = vmatpush.bf16.msra.mxu0 %v163
  %185 = vmatpush.bf16.msra.mxu0 %v162
  %186 = vmatmul.bf16.gmra.mxu0 %v114
  %v187 = vpop.f32.mrf.mxu0
  %v188 = vadd.f32 0.0, %v187
  %v189 = vpop.f32.mrf.mxu0
  %v190 = vadd.f32 0.0, %v189
  %191 = vmatmul.bf16.gmra.mxu0 %v115
  %v192 = vpop.f32.mrf.mxu0
  %v193 = vadd.f32 0.0, %v192
  %v194 = vpop.f32.mrf.mxu0
  %v195 = vadd.f32 0.0, %v194
  %196 = vmatmul.bf16.gmra.mxu0 %v116
  %v197 = vpop.f32.mrf.mxu0
  %v198 = vadd.f32 0.0, %v197
  %v199 = vpop.f32.mrf.mxu0
  %v200 = vadd.f32 0.0, %v199
  %201 = vmatmul.bf16.gmra.mxu0 %v117
  %v202 = vpop.f32.mrf.mxu0
  %v203 = vadd.f32 0.0, %v202
  %v204 = vpop.f32.mrf.mxu0
  %v205 = vadd.f32 0.0, %v204
  %206 = vmatmul.bf16.gmra.mxu0 %v118
  %v207 = vpop.f32.mrf.mxu0
  %v208 = vadd.f32 0.0, %v207
  %v209 = vpop.f32.mrf.mxu0
  %v210 = vadd.f32 0.0, %v209
  %211 = vmatmul.bf16.gmra.mxu0 %v119
  %v212 = vpop.f32.mrf.mxu0
  %v213 = vadd.f32 0.0, %v212
  %v214 = vpop.f32.mrf.mxu0
  %v215 = vadd.f32 0.0, %v214
  %216 = vmatmul.bf16.gmra.mxu0 %v120
  %v217 = vpop.f32.mrf.mxu0
  %v218 = vadd.f32 0.0, %v217
  %v219 = vpop.f32.mrf.mxu0
  %v220 = vadd.f32 0.0, %v219
  %221 = vmatmul.bf16.gmra.mxu0 %v121
  %v222 = vpop.f32.mrf.mxu0
  %v223 = vadd.f32 0.0, %v222
  %v224 = vpop.f32.mrf.mxu0
  %v225 = vadd.f32 0.0, %v224
  %226 = vdwg.mxu0
  %v227 = vadd.f32 %v34, %v188
  %v228 = vadd.f32 %v35, %v190
  %v229 = vadd.f32 %v36, %v193
  %v230 = vadd.f32 %v37, %v195
  %v231 = vadd.f32 %v38, %v198
  %v232 = vadd.f32 %v39, %v200
  %v233 = vadd.f32 %v40, %v203
  %v234 = vadd.f32 %v41, %v205
  %v235 = vadd.f32 %v42, %v208
  %v236 = vadd.f32 %v43, %v210
  %v237 = vadd.f32 %v44, %v213
  %v238 = vadd.f32 %v45, %v215
  %v239 = vadd.f32 %v46, %v218
  %v240 = vadd.f32 %v47, %v220
  %v241 = vadd.f32 %v48, %v223
  %v242 = vadd.f32 %v49, %v225
  %243 = vst [vmem:[#allocation2] sm:$0xff] %v227
  %244 = vst [vmem:[#allocation2 + $0x8] sm:$0xff] %v228
  %245 = vst [vmem:[#allocation2 + $0x10] sm:$0xff] %v229
  %246 = vst [vmem:[#allocation2 + $0x18] sm:$0xff] %v230
  %247 = vst [vmem:[#allocation2 + $0x20] sm:$0xff] %v231
  %248 = vst [vmem:[#allocation2 + $0x28] sm:$0xff] %v232
  %249 = vst [vmem:[#allocation2 + $0x30] sm:$0xff] %v233
  %250 = vst [vmem:[#allocation2 + $0x38] sm:$0xff] %v234
  %251 = vst [vmem:[#allocation2 + $0x40] sm:$0xff] %v235
  %252 = vst [vmem:[#allocation2 + $0x48] sm:$0xff] %v236
  %253 = vst [vmem:[#allocation2 + $0x50] sm:$0xff] %v237
  %254 = vst [vmem:[#allocation2 + $0x58] sm:$0xff] %v238
  %255 = vst [vmem:[#allocation2 + $0x60] sm:$0xff] %v239
  %256 = vst [vmem:[#allocation2 + $0x68] sm:$0xff] %v240
  %257 = vst [vmem:[#allocation2 + $0x70] sm:$0xff] %v241
  %258 = vst [vmem:[#allocation2 + $0x78] sm:$0xff] %v242
  // Predicated region
  $region18: #{syn_model_forward.227} parent=0 // pred_check
    %p259 = pneg %p14
  $region19: #{syn_model_forward.227} parent=0 // pred_check_branch
    %261 = sbr.rel (%p259) target = $region21
  $region20: #{syn_model_forward.227} parent=0 // pred_region
    %v262 = vld [vmem:[#allocation2] sm:$0xff]
    %v263 = vld [vmem:[#allocation2 + $0x8] sm:$0xff]
    %v264 = vld [vmem:[#allocation2 + $0x10] sm:$0xff]
    %v265 = vld [vmem:[#allocation2 + $0x18] sm:$0xff]
    %v266 = vld [vmem:[#allocation2 + $0x20] sm:$0xff]
    %v267 = vld [vmem:[#allocation2 + $0x28] sm:$0xff]
    %v268 = vld [vmem:[#allocation2 + $0x30] sm:$0xff]
    %v269 = vld [vmem:[#allocation2 + $0x38] sm:$0xff]
    %v270 = vld [vmem:[#allocation2 + $0x40] sm:$0xff]
    %v271 = vld [vmem:[#allocation2 + $0x48] sm:$0xff]
    %v272 = vld [vmem:[#allocation2 + $0x50] sm:$0xff]
    %v273 = vld [vmem:[#allocation2 + $0x58] sm:$0xff]
    %v274 = vld [vmem:[#allocation2 + $0x60] sm:$0xff]
    %v275 = vld [vmem:[#allocation2 + $0x68] sm:$0xff]
    %v276 = vld [vmem:[#allocation2 + $0x70] sm:$0xff]
    %v277 = vld [vmem:[#allocation2 + $0x78] sm:$0xff]
    %v278 = vld [vmem:[%s2] sm:$0x1]
    %v280 = vperm.slane %v278, 0
    %v282 = vadd.f32 %v262, %v280
    %v283 = vadd.f32 %v263, %v280
    %v284 = vadd.f32 %v264, %v280
    %v285 = vadd.f32 %v265, %v280
    %v286 = vadd.f32 %v266, %v280
    %v287 = vadd.f32 %v267, %v280
    %v288 = vadd.f32 %v268, %v280
    %v289 = vadd.f32 %v269, %v280
    %v290 = vadd.f32 %v270, %v280
    %v291 = vadd.f32 %v271, %v280
    %v292 = vadd.f32 %v272, %v280
    %v293 = vadd.f32 %v273, %v280
    %v294 = vadd.f32 %v274, %v280
    %v295 = vadd.f32 %v275, %v280
    %v296 = vadd.f32 %v276, %v280
    %v297 = vadd.f32 %v277, %v280
    %v298 = vmax.f32 %v282, 0.0
    %v299 = vmax.f32 %v283, 0.0
    %v300 = vmax.f32 %v284, 0.0
    %v301 = vmax.f32 %v285, 0.0
    %v302 = vmax.f32 %v286, 0.0
    %v303 = vmax.f32 %v287, 0.0
    %v304 = vmax.f32 %v288, 0.0
    %v305 = vmax.f32 %v289, 0.0
    %v306 = vmax.f32 %v290, 0.0
    %v307 = vmax.f32 %v291, 0.0
    %v308 = vmax.f32 %v292, 0.0
    %v309 = vmax.f32 %v293, 0.0
    %v310 = vmax.f32 %v294, 0.0
    %v311 = vmax.f32 %v295, 0.0
    %v312 = vmax.f32 %v296, 0.0
    %v313 = vmax.f32 %v297, 0.0
    %314 = vst [vmem:[%s3] sm:$0xff] %v298
    %315 = vst [vmem:[%s3 + $0x8] sm:$0xff] %v299
    %316 = vst [vmem:[%s3 + $0x10] sm:$0xff] %v300
    %317 = vst [vmem:[%s3 + $0x18] sm:$0xff] %v301
    %318 = vst [vmem:[%s3 + $0x20] sm:$0xff] %v302
    %319 = vst [vmem:[%s3 + $0x28] sm:$0xff] %v303
    %320 = vst [vmem:[%s3 + $0x30] sm:$0xff] %v304
    %321 = vst [vmem:[%s3 + $0x38] sm:$0xff] %v305
    %322 = vst [vmem:[%s3 + $0x40] sm:$0xff] %v306
    %323 = vst [vmem:[%s3 + $0x48] sm:$0xff] %v307
    %324 = vst [vmem:[%s3 + $0x50] sm:$0xff] %v308
    %325 = vst [vmem:[%s3 + $0x58] sm:$0xff] %v309
    %326 = vst [vmem:[%s3 + $0x60] sm:$0xff] %v310
    %327 = vst [vmem:[%s3 + $0x68] sm:$0xff] %v311
    %328 = vst [vmem:[%s3 + $0x70] sm:$0xff] %v312
    %329 = vst [vmem:[%s3 + $0x78] sm:$0xff] %v313
  $region21: #{syn_model_forward.227} parent=0 // pred_fallthru
    _
  // Predicated region
  $region22: #{syn_model_forward.227} parent=0 // pred_check
    _
  $region23: #{syn_model_forward.227} parent=0 // pred_check_branch
    %331 = sbr.rel (0) target = $region25
  $region24: #{syn_model_forward.227} parent=0 // pred_region
    _
  $region25: #{syn_model_forward.227} parent=0 // pred_fallthru
    _
  // Predicated region
  $region26: #{syn_model_forward.227} parent=0 // pred_check
    _
  $region27: #{syn_model_forward.227} parent=0 // pred_check_branch
    %333 = sbr.rel (0) target = $region29
  $region28: #{syn_model_forward.227} parent=0 // pred_region
    _
  $region29: #{syn_model_forward.227} parent=0 // pred_fallthru
    _

// kernel: syn_model_forward.230
$region0: #{syn_model_forward.230}
  #allocation0 [shape = 'u32[]', space=smem, size = 0x4, offset = 0x4, fixed_abs, tag = 'smem constant byte address 0x4 - core index']
  #allocation1 [shape = 'u32[72,128]{1,0:T(1,128)}', space=vmem, size = 0x9000, scoped, tag = 'internal scratch']
  #allocation2 [shape = 'f32[128,128]{1,0:T(8,128)}', space=vmem, size = 0x10000, scoped, tag = 'scratch operand']
  %s0 = inlined_call_operand.vmem [shape: bf16[128,128], index: 0, kind: input, shape index: {}]
  %s1 = inlined_call_operand.vmem [shape: bf16[128,128], index: 1, kind: input, shape index: {}]
  %s2 = inlined_call_operand.vmem [shape: f32[1,128], index: 2, kind: input, shape index: {}]
  %s3 = inlined_call_operand.vmem [shape: f32[128,128], index: 3, kind: output, shape index: {}]
  %s4 = sld [smem:[#allocation0]]
  $region30: #{syn_model_forward.230} parent=0
    _
  %s6 = ssub.s32 1, %s4
  %s7 = scalar_select 0, %s6, %s4
  // Predicated region
  $region2: #{syn_model_forward.230} parent=0 // pred_check
    _
  $region3: #{syn_model_forward.230} parent=0 // pred_check_branch
    %9 = sbr.rel (0) target = $region5
  $region4: #{syn_model_forward.230} parent=0 // pred_region
    _
  $region5: #{syn_model_forward.230} parent=0 // pred_fallthru
    _
  // Predicated region
  $region6: #{syn_model_forward.230} parent=0 // pred_check
    _
  $region7: #{syn_model_forward.230} parent=0 // pred_check_branch
    %11 = sbr.rel (0) target = $region9
  $region8: #{syn_model_forward.230} parent=0 // pred_region
    _
  $region9: #{syn_model_forward.230} parent=0 // pred_fallthru
    _
  // Predicated region
  $region10: #{syn_model_forward.230} parent=0 // pred_check
    _
  $region11: #{syn_model_forward.230} parent=0 // pred_check_branch
    %13 = sbr.rel (0) target = $region13
  $region12: #{syn_model_forward.230} parent=0 // pred_region
    _
  $region13: #{syn_model_forward.230} parent=0 // pred_fallthru
    _
  %p14 = scmp.eq.s32.totalorder 0, 0
  // Predicated region
  $region14: #{syn_model_forward.230} parent=0 // pred_check
    %p15 = pneg %p14
  $region15: #{syn_model_forward.230} parent=0 // pred_check_branch
    %17 = sbr.rel (%p15) target = $region17
  $region16: #{syn_model_forward.230} parent=0 // pred_region
    %18 = vst [vmem:[#allocation2] sm:$0xff] 0.0
    %19 = vst [vmem:[#allocation2 + $0x8] sm:$0xff] 0.0
    %20 = vst [vmem:[#allocation2 + $0x10] sm:$0xff] 0.0
    %21 = vst [vmem:[#allocation2 + $0x18] sm:$0xff] 0.0
    %22 = vst [vmem:[#allocation2 + $0x20] sm:$0xff] 0.0
    %23 = vst [vmem:[#allocation2 + $0x28] sm:$0xff] 0.0
    %24 = vst [vmem:[#allocation2 + $0x30] sm:$0xff] 0.0
    %25 = vst [vmem:[#allocation2 + $0x38] sm:$0xff] 0.0
    %26 = vst [vmem:[#allocation2 + $0x40] sm:$0xff] 0.0
    %27 = vst [vmem:[#allocation2 + $0x48] sm:$0xff] 0.0
    %28 = vst [vmem:[#allocation2 + $0x50] sm:$0xff] 0.0
    %29 = vst [vmem:[#allocation2 + $0x58] sm:$0xff] 0.0
    %30 = vst [vmem:[#allocation2 + $0x60] sm:$0xff] 0.0
    %31 = vst [vmem:[#allocation2 + $0x68] sm:$0xff] 0.0
    %32 = vst [vmem:[#allocation2 + $0x70] sm:$0xff] 0.0
    %33 = vst [vmem:[#allocation2 + $0x78] sm:$0xff] 0.0
  $region17: #{syn_model_forward.230} parent=0 // pred_fallthru
    _
  %v34 = vld [vmem:[#allocation2] sm:$0xff]
  %v35 = vld [vmem:[#allocation2 + $0x8] sm:$0xff]
  %v36 = vld [vmem:[#allocation2 + $0x10] sm:$0xff]
  %v37 = vld [vmem:[#allocation2 + $0x18] sm:$0xff]
  %v38 = vld [vmem:[#allocation2 + $0x20] sm:$0xff]
  %v39 = vld [vmem:[#allocation2 + $0x28] sm:$0xff]
  %v40 = vld [vmem:[#allocation2 + $0x30] sm:$0xff]
  %v41 = vld [vmem:[#allocation2 + $0x38] sm:$0xff]
  %v42 = vld [vmem:[#allocation2 + $0x40] sm:$0xff]
  %v43 = vld [vmem:[#allocation2 + $0x48] sm:$0xff]
  %v44 = vld [vmem:[#allocation2 + $0x50] sm:$0xff]
  %v45 = vld [vmem:[#allocation2 + $0x58] sm:$0xff]
  %v46 = vld [vmem:[#allocation2 + $0x60] sm:$0xff]
  %v47 = vld [vmem:[#allocation2 + $0x68] sm:$0xff]
  %v48 = vld [vmem:[#allocation2 + $0x70] sm:$0xff]
  %v49 = vld [vmem:[#allocation2 + $0x78] sm:$0xff]
  %v50 = vld [vmem:[%s0] sm:$0xf]
  %v51 = vld [vmem:[%s0 + $0x4] sm:$0xf]
  %v52 = vld [vmem:[%s0 + $0x8] sm:$0xf]
  %v53 = vld [vmem:[%s0 + $0xc] sm:$0xf]
  %v54 = vld [vmem:[%s0 + $0x10] sm:$0xf]
  %v55 = vld [vmem:[%s0 + $0x14] sm:$0xf]
  %v56 = vld [vmem:[%s0 + $0x18] sm:$0xf]
  %v57 = vld [vmem:[%s0 + $0x1c] sm:$0xf]
  %v58 = vld [vmem:[%s0 + $0x20] sm:$0xf]
  %v59 = vld [vmem:[%s0 + $0x24] sm:$0xf]
  %v60 = vld [vmem:[%s0 + $0x28] sm:$0xf]
  %v61 = vld [vmem:[%s0 + $0x2c] sm:$0xf]
  %v62 = vld [vmem:[%s0 + $0x30] sm:$0xf]
  %v63 = vld [vmem:[%s0 + $0x34] sm:$0xf]
  %v64 = vld [vmem:[%s0 + $0x38] sm:$0xf]
  %v65 = vld [vmem:[%s0 + $0x3c] sm:$0xf]
  %v66 = vld [vmem:[%s1] sm:$0xf]
  %v67 = vld [vmem:[%s1 + $0x4] sm:$0xf]
  %v68 = vld [vmem:[%s1 + $0x8] sm:$0xf]
  %v69 = vld [vmem:[%s1 + $0xc] sm:$0xf]
  %v70 = vld [vmem:[%s1 + $0x10] sm:$0xf]
  %v71 = vld [vmem:[%s1 + $0x14] sm:$0xf]
  %v72 = vld [vmem:[%s1 + $0x18] sm:$0xf]
  %v73 = vld [vmem:[%s1 + $0x1c] sm:$0xf]
  %v74 = vld [vmem:[%s1 + $0x20] sm:$0xf]
  %v75 = vld [vmem:[%s1 + $0x24] sm:$0xf]
  %v76 = vld [vmem:[%s1 + $0x28] sm:$0xf]
  %v77 = vld [vmem:[%s1 + $0x2c] sm:$0xf]
  %v78 = vld [vmem:[%s1 + $0x30] sm:$0xf]
  %v79 = vld [vmem:[%s1 + $0x34] sm:$0xf]
  %v80 = vld [vmem:[%s1 + $0x38] sm:$0xf]
  %v81 = vld [vmem:[%s1 + $0x3c] sm:$0xf]
  %v98 = vunpack.c.l.b16 %v50
  %v99 = vunpack.c.l.b16 %v51
  %v100 = vunpack.c.l.b16 %v52
  %v101 = vunpack.c.l.b16 %v53
  %v102 = vunpack.c.l.b16 %v54
  %v103 = vunpack.c.l.b16 %v55
  %v104 = vunpack.c.l.b16 %v56
  %v105 = vunpack.c.l.b16 %v57
  %v106 = vunpack.c.l.b16 %v58
  %v107 = vunpack.c.l.b16 %v59
  %v108 = vunpack.c.l.b16 %v60
  %v109 = vunpack.c.l.b16 %v61
  %v110 = vunpack.c.l.b16 %v62
  %v111 = vunpack.c.l.b16 %v63
  %v112 = vunpack.c.l.b16 %v64
  %v113 = vunpack.c.l.b16 %v65
  %v114 = vpack.c.b16 %v99, %v98
  %v115 = vpack.c.b16 %v101, %v100
  %v116 = vpack.c.b16 %v103, %v102
  %v117 = vpack.c.b16 %v105, %v104
  %v118 = vpack.c.b16 %v107, %v106
  %v119 = vpack.c.b16 %v109, %v108
  %v120 = vpack.c.b16 %v111, %v110
  %v121 = vpack.c.b16 %v113, %v112
  %v146 = vunpack.c.l.b16 %v66
  %v147 = vunpack.c.l.b16 %v67
  %v148 = vunpack.c.l.b16 %v68
  %v149 = vunpack.c.l.b16 %v69
  %v150 = vunpack.c.l.b16 %v70
  %v151 = vunpack.c.l.b16 %v71
  %v152 = vunpack.c.l.b16 %v72
  %v153 = vunpack.c.l.b16 %v73
  %v154 = vunpack.c.l.b16 %v74
  %v155 = vunpack.c.l.b16 %v75
  %v156 = vunpack.c.l.b16 %v76
  %v157 = vunpack.c.l.b16 %v77
  %v158 = vunpack.c.l.b16 %v78
  %v159 = vunpack.c.l.b16 %v79
  %v160 = vunpack.c.l.b16 %v80
  %v161 = vunpack.c.l.b16 %v81
  %v162 = vpack.c.b16 %v147, %v146
  %v163 = vpack.c.b16 %v149, %v148
  %v164 = vpack.c.b16 %v151, %v150
  %v165 = vpack.c.b16 %v153, %v152
  %v166 = vpack.c.b16 %v155, %v154
  %v167 = vpack.c.b16 %v157, %v156
  %v168 = vpack.c.b16 %v159, %v158
  %v169 = vpack.c.b16 %v161, %v160
  %178 = vmatpush.bf16.msra.mxu0 %v169
  %179 = vmatpush.bf16.msra.mxu0 %v168
  %180 = vmatpush.bf16.msra.mxu0 %v167
  %181 = vmatpush.bf16.msra.mxu0 %v166
  %182 = vmatpush.bf16.msra.mxu0 %v165
  %183 = vmatpush.bf16.msra.mxu0 %v164
  %184 = vmatpush.bf16.msra.mxu0 %v163
  %185 = vmatpush.bf16.msra.mxu0 %v162
  %186 = vmatmul.bf16.gmra.mxu0 %v114
  %v187 = vpop.f32.mrf.mxu0
  %v188 = vadd.f32 0.0, %v187
  %v189 = vpop.f32.mrf.mxu0
  %v190 = vadd.f32 0.0, %v189
  %191 = vmatmul.bf16.gmra.mxu0 %v115
  %v192 = vpop.f32.mrf.mxu0
  %v193 = vadd.f32 0.0, %v192
  %v194 = vpop.f32.mrf.mxu0
  %v195 = vadd.f32 0.0, %v194
  %196 = vmatmul.bf16.gmra.mxu0 %v116
  %v197 = vpop.f32.mrf.mxu0
  %v198 = vadd.f32 0.0, %v197
  %v199 = vpop.f32.mrf.mxu0
  %v200 = vadd.f32 0.0, %v199
  %201 = vmatmul.bf16.gmra.mxu0 %v117
  %v202 = vpop.f32.mrf.mxu0
  %v203 = vadd.f32 0.0, %v202
  %v204 = vpop.f32.mrf.mxu0
  %v205 = vadd.f32 0.0, %v204
  %206 = vmatmul.bf16.gmra.mxu0 %v118
  %v207 = vpop.f32.mrf.mxu0
  %v208 = vadd.f32 0.0, %v207
  %v209 = vpop.f32.mrf.mxu0
  %v210 = vadd.f32 0.0, %v209
  %211 = vmatmul.bf16.gmra.mxu0 %v119
  %v212 = vpop.f32.mrf.mxu0
  %v213 = vadd.f32 0.0, %v212
  %v214 = vpop.f32.mrf.mxu0
  %v215 = vadd.f32 0.0, %v214
  %216 = vmatmul.bf16.gmra.mxu0 %v120
  %v217 = vpop.f32.mrf.mxu0
  %v218 = vadd.f32 0.0, %v217
  %v219 = vpop.f32.mrf.mxu0
  %v220 = vadd.f32 0.0, %v219
  %221 = vmatmul.bf16.gmra.mxu0 %v121
  %v222 = vpop.f32.mrf.mxu0
  %v223 = vadd.f32 0.0, %v222
  %v224 = vpop.f32.mrf.mxu0
  %v225 = vadd.f32 0.0, %v224
  %226 = vdwg.mxu0
  %v227 = vadd.f32 %v34, %v188
  %v228 = vadd.f32 %v35, %v190
  %v229 = vadd.f32 %v36, %v193
  %v230 = vadd.f32 %v37, %v195
  %v231 = vadd.f32 %v38, %v198
  %v232 = vadd.f32 %v39, %v200
  %v233 = vadd.f32 %v40, %v203
  %v234 = vadd.f32 %v41, %v205
  %v235 = vadd.f32 %v42, %v208
  %v236 = vadd.f32 %v43, %v210
  %v237 = vadd.f32 %v44, %v213
  %v238 = vadd.f32 %v45, %v215
  %v239 = vadd.f32 %v46, %v218
  %v240 = vadd.f32 %v47, %v220
  %v241 = vadd.f32 %v48, %v223
  %v242 = vadd.f32 %v49, %v225
  %243 = vst [vmem:[#allocation2] sm:$0xff] %v227
  %244 = vst [vmem:[#allocation2 + $0x8] sm:$0xff] %v228
  %245 = vst [vmem:[#allocation2 + $0x10] sm:$0xff] %v229
  %246 = vst [vmem:[#allocation2 + $0x18] sm:$0xff] %v230
  %247 = vst [vmem:[#allocation2 + $0x20] sm:$0xff] %v231
  %248 = vst [vmem:[#allocation2 + $0x28] sm:$0xff] %v232
  %249 = vst [vmem:[#allocation2 + $0x30] sm:$0xff] %v233
  %250 = vst [vmem:[#allocation2 + $0x38] sm:$0xff] %v234
  %251 = vst [vmem:[#allocation2 + $0x40] sm:$0xff] %v235
  %252 = vst [vmem:[#allocation2 + $0x48] sm:$0xff] %v236
  %253 = vst [vmem:[#allocation2 + $0x50] sm:$0xff] %v237
  %254 = vst [vmem:[#allocation2 + $0x58] sm:$0xff] %v238
  %255 = vst [vmem:[#allocation2 + $0x60] sm:$0xff] %v239
  %256 = vst [vmem:[#allocation2 + $0x68] sm:$0xff] %v240
  %257 = vst [vmem:[#allocation2 + $0x70] sm:$0xff] %v241
  %258 = vst [vmem:[#allocation2 + $0x78] sm:$0xff] %v242
  // Predicated region
  $region18: #{syn_model_forward.230} parent=0 // pred_check
    %p259 = pneg %p14
  $region19: #{syn_model_forward.230} parent=0 // pred_check_branch
    %261 = sbr.rel (%p259) target = $region21
  $region20: #{syn_model_forward.230} parent=0 // pred_region
    %v262 = vld [vmem:[#allocation2] sm:$0xff]
    %v263 = vld [vmem:[#allocation2 + $0x8] sm:$0xff]
    %v264 = vld [vmem:[#allocation2 + $0x10] sm:$0xff]
    %v265 = vld [vmem:[#allocation2 + $0x18] sm:$0xff]
    %v266 = vld [vmem:[#allocation2 + $0x20] sm:$0xff]
    %v267 = vld [vmem:[#allocation2 + $0x28] sm:$0xff]
    %v268 = vld [vmem:[#allocation2 + $0x30] sm:$0xff]
    %v269 = vld [vmem:[#allocation2 + $0x38] sm:$0xff]
    %v270 = vld [vmem:[#allocation2 + $0x40] sm:$0xff]
    %v271 = vld [vmem:[#allocation2 + $0x48] sm:$0xff]
    %v272 = vld [vmem:[#allocation2 + $0x50] sm:$0xff]
    %v273 = vld [vmem:[#allocation2 + $0x58] sm:$0xff]
    %v274 = vld [vmem:[#allocation2 + $0x60] sm:$0xff]
    %v275 = vld [vmem:[#allocation2 + $0x68] sm:$0xff]
    %v276 = vld [vmem:[#allocation2 + $0x70] sm:$0xff]
    %v277 = vld [vmem:[#allocation2 + $0x78] sm:$0xff]
    %v278 = vld [vmem:[%s2] sm:$0x1]
    %v280 = vperm.slane %v278, 0
    %v282 = vadd.f32 %v262, %v280
    %v283 = vadd.f32 %v263, %v280
    %v284 = vadd.f32 %v264, %v280
    %v285 = vadd.f32 %v265, %v280
    %v286 = vadd.f32 %v266, %v280
    %v287 = vadd.f32 %v267, %v280
    %v288 = vadd.f32 %v268, %v280
    %v289 = vadd.f32 %v269, %v280
    %v290 = vadd.f32 %v270, %v280
    %v291 = vadd.f32 %v271, %v280
    %v292 = vadd.f32 %v272, %v280
    %v293 = vadd.f32 %v273, %v280
    %v294 = vadd.f32 %v274, %v280
    %v295 = vadd.f32 %v275, %v280
    %v296 = vadd.f32 %v276, %v280
    %v297 = vadd.f32 %v277, %v280
    %298 = vst [vmem:[%s3] sm:$0xff] %v282
    %299 = vst [vmem:[%s3 + $0x8] sm:$0xff] %v283
    %300 = vst [vmem:[%s3 + $0x10] sm:$0xff] %v284
    %301 = vst [vmem:[%s3 + $0x18] sm:$0xff] %v285
    %302 = vst [vmem:[%s3 + $0x20] sm:$0xff] %v286
    %303 = vst [vmem:[%s3 + $0x28] sm:$0xff] %v287
    %304 = vst [vmem:[%s3 + $0x30] sm:$0xff] %v288
    %305 = vst [vmem:[%s3 + $0x38] sm:$0xff] %v289
    %306 = vst [vmem:[%s3 + $0x40] sm:$0xff] %v290
    %307 = vst [vmem:[%s3 + $0x48] sm:$0xff] %v291
    %308 = vst [vmem:[%s3 + $0x50] sm:$0xff] %v292
    %309 = vst [vmem:[%s3 + $0x58] sm:$0xff] %v293
    %310 = vst [vmem:[%s3 + $0x60] sm:$0xff] %v294
    %311 = vst [vmem:[%s3 + $0x68] sm:$0xff] %v295
    %312 = vst [vmem:[%s3 + $0x70] sm:$0xff] %v296
    %313 = vst [vmem:[%s3 + $0x78] sm:$0xff] %v297
  $region21: #{syn_model_forward.230} parent=0 // pred_fallthru
    _
  // Predicated region
  $region22: #{syn_model_forward.230} parent=0 // pred_check
    _
  $region23: #{syn_model_forward.230} parent=0 // pred_check_branch
    %315 = sbr.rel (0) target = $region25
  $region24: #{syn_model_forward.230} parent=0 // pred_region
    _
  $region25: #{syn_model_forward.230} parent=0 // pred_fallthru
    _
  // Predicated region
  $region26: #{syn_model_forward.230} parent=0 // pred_check
    _
  $region27: #{syn_model_forward.230} parent=0 // pred_check_branch
    %317 = sbr.rel (0) target = $region29
  $region28: #{syn_model_forward.230} parent=0 // pred_region
    _
  $region29: #{syn_model_forward.230} parent=0 // pred_fallthru
    _

// kernel: syn_model_forward.231
$region0: #{syn_model_forward.231}
  #allocation0 [shape = 'u32[]', space=smem, size = 0x4, offset = 0x4, fixed_abs, tag = 'smem constant byte address 0x4 - core index']
  #allocation1 [shape = 'u32[72,128]{1,0:T(1,128)}', space=vmem, size = 0x9000, scoped, tag = 'internal scratch']
  #allocation2 [shape = 'f32[128,128]{1,0:T(8,128)}', space=vmem, size = 0x10000, scoped, tag = 'scratch operand']
  %s0 = inlined_call_operand.vmem [shape: bf16[128,128], index: 0, kind: input, shape index: {}]
  %s1 = inlined_call_operand.vmem [shape: bf16[128,128], index: 1, kind: input, shape index: {}]
  %s2 = inlined_call_operand.vmem [shape: f32[1,128], index: 2, kind: input, shape index: {}]
  %s3 = inlined_call_operand.vmem [shape: f32[128,128], index: 3, kind: input, shape index: {}]
  %s4 = inlined_call_operand.vmem [shape: f32[128,128], index: 4, kind: output, shape index: {}]
  %s5 = sld [smem:[#allocation0]]
  $region34: #{syn_model_forward.231} parent=0
    _
  %s7 = ssub.s32 1, %s5
  %s8 = scalar_select 0, %s7, %s5
  // Predicated region
  $region2: #{syn_model_forward.231} parent=0 // pred_check
    _
  $region3: #{syn_model_forward.231} parent=0 // pred_check_branch
    %10 = sbr.rel (0) target = $region5
  $region4: #{syn_model_forward.231} parent=0 // pred_region
    _
  $region5: #{syn_model_forward.231} parent=0 // pred_fallthru
    _
  // Predicated region
  $region6: #{syn_model_forward.231} parent=0 // pred_check
    _
  $region7: #{syn_model_forward.231} parent=0 // pred_check_branch
    %12 = sbr.rel (0) target = $region9
  $region8: #{syn_model_forward.231} parent=0 // pred_region
    _
  $region9: #{syn_model_forward.231} parent=0 // pred_fallthru
    _
  // Predicated region
  $region10: #{syn_model_forward.231} parent=0 // pred_check
    _
  $region11: #{syn_model_forward.231} parent=0 // pred_check_branch
    %14 = sbr.rel (0) target = $region13
  $region12: #{syn_model_forward.231} parent=0 // pred_region
    _
  $region13: #{syn_model_forward.231} parent=0 // pred_fallthru
    _
  // Predicated region
  $region14: #{syn_model_forward.231} parent=0 // pred_check
    _
  $region15: #{syn_model_forward.231} parent=0 // pred_check_branch
    %16 = sbr.rel (0) target = $region17
  $region16: #{syn_model_forward.231} parent=0 // pred_region
    _
  $region17: #{syn_model_forward.231} parent=0 // pred_fallthru
    _
  %p17 = scmp.eq.s32.totalorder 0, 0
  // Predicated region
  $region18: #{syn_model_forward.231} parent=0 // pred_check
    %p18 = pneg %p17
  $region19: #{syn_model_forward.231} parent=0 // pred_check_branch
    %20 = sbr.rel (%p18) target = $region21
  $region20: #{syn_model_forward.231} parent=0 // pred_region
    %21 = vst [vmem:[#allocation2] sm:$0xff] 0.0
    %22 = vst [vmem:[#allocation2 + $0x8] sm:$0xff] 0.0
    %23 = vst [vmem:[#allocation2 + $0x10] sm:$0xff] 0.0
    %24 = vst [vmem:[#allocation2 + $0x18] sm:$0xff] 0.0
    %25 = vst [vmem:[#allocation2 + $0x20] sm:$0xff] 0.0
    %26 = vst [vmem:[#allocation2 + $0x28] sm:$0xff] 0.0
    %27 = vst [vmem:[#allocation2 + $0x30] sm:$0xff] 0.0
    %28 = vst [vmem:[#allocation2 + $0x38] sm:$0xff] 0.0
    %29 = vst [vmem:[#allocation2 + $0x40] sm:$0xff] 0.0
    %30 = vst [vmem:[#allocation2 + $0x48] sm:$0xff] 0.0
    %31 = vst [vmem:[#allocation2 + $0x50] sm:$0xff] 0.0
    %32 = vst [vmem:[#allocation2 + $0x58] sm:$0xff] 0.0
    %33 = vst [vmem:[#allocation2 + $0x60] sm:$0xff] 0.0
    %34 = vst [vmem:[#allocation2 + $0x68] sm:$0xff] 0.0
    %35 = vst [vmem:[#allocation2 + $0x70] sm:$0xff] 0.0
    %36 = vst [vmem:[#allocation2 + $0x78] sm:$0xff] 0.0
  $region21: #{syn_model_forward.231} parent=0 // pred_fallthru
    _
  %v37 = vld [vmem:[#allocation2] sm:$0xff]
  %v38 = vld [vmem:[#allocation2 + $0x8] sm:$0xff]
  %v39 = vld [vmem:[#allocation2 + $0x10] sm:$0xff]
  %v40 = vld [vmem:[#allocation2 + $0x18] sm:$0xff]
  %v41 = vld [vmem:[#allocation2 + $0x20] sm:$0xff]
  %v42 = vld [vmem:[#allocation2 + $0x28] sm:$0xff]
  %v43 = vld [vmem:[#allocation2 + $0x30] sm:$0xff]
  %v44 = vld [vmem:[#allocation2 + $0x38] sm:$0xff]
  %v45 = vld [vmem:[#allocation2 + $0x40] sm:$0xff]
  %v46 = vld [vmem:[#allocation2 + $0x48] sm:$0xff]
  %v47 = vld [vmem:[#allocation2 + $0x50] sm:$0xff]
  %v48 = vld [vmem:[#allocation2 + $0x58] sm:$0xff]
  %v49 = vld [vmem:[#allocation2 + $0x60] sm:$0xff]
  %v50 = vld [vmem:[#allocation2 + $0x68] sm:$0xff]
  %v51 = vld [vmem:[#allocation2 + $0x70] sm:$0xff]
  %v52 = vld [vmem:[#allocation2 + $0x78] sm:$0xff]
  %v53 = vld [vmem:[%s0] sm:$0xf]
  %v54 = vld [vmem:[%s0 + $0x4] sm:$0xf]
  %v55 = vld [vmem:[%s0 + $0x8] sm:$0xf]
  %v56 = vld [vmem:[%s0 + $0xc] sm:$0xf]
  %v57 = vld [vmem:[%s0 + $0x10] sm:$0xf]
  %v58 = vld [vmem:[%s0 + $0x14] sm:$0xf]
  %v59 = vld [vmem:[%s0 + $0x18] sm:$0xf]
  %v60 = vld [vmem:[%s0 + $0x1c] sm:$0xf]
  %v61 = vld [vmem:[%s0 + $0x20] sm:$0xf]
  %v62 = vld [vmem:[%s0 + $0x24] sm:$0xf]
  %v63 = vld [vmem:[%s0 + $0x28] sm:$0xf]
  %v64 = vld [vmem:[%s0 + $0x2c] sm:$0xf]
  %v65 = vld [vmem:[%s0 + $0x30] sm:$0xf]
  %v66 = vld [vmem:[%s0 + $0x34] sm:$0xf]
  %v67 = vld [vmem:[%s0 + $0x38] sm:$0xf]
  %v68 = vld [vmem:[%s0 + $0x3c] sm:$0xf]
  %v69 = vld [vmem:[%s1] sm:$0xf]
  %v70 = vld [vmem:[%s1 + $0x4] sm:$0xf]
  %v71 = vld [vmem:[%s1 + $0x8] sm:$0xf]
  %v72 = vld [vmem:[%s1 + $0xc] sm:$0xf]
  %v73 = vld [vmem:[%s1 + $0x10] sm:$0xf]
  %v74 = vld [vmem:[%s1 + $0x14] sm:$0xf]
  %v75 = vld [vmem:[%s1 + $0x18] sm:$0xf]
  %v76 = vld [vmem:[%s1 + $0x1c] sm:$0xf]
  %v77 = vld [vmem:[%s1 + $0x20] sm:$0xf]
  %v78 = vld [vmem:[%s1 + $0x24] sm:$0xf]
  %v79 = vld [vmem:[%s1 + $0x28] sm:$0xf]
  %v80 = vld [vmem:[%s1 + $0x2c] sm:$0xf]
  %v81 = vld [vmem:[%s1 + $0x30] sm:$0xf]
  %v82 = vld [vmem:[%s1 + $0x34] sm:$0xf]
  %v83 = vld [vmem:[%s1 + $0x38] sm:$0xf]
  %v84 = vld [vmem:[%s1 + $0x3c] sm:$0xf]
  %v101 = vunpack.c.l.b16 %v53
  %v102 = vunpack.c.l.b16 %v54
  %v103 = vunpack.c.l.b16 %v55
  %v104 = vunpack.c.l.b16 %v56
  %v105 = vunpack.c.l.b16 %v57
  %v106 = vunpack.c.l.b16 %v58
  %v107 = vunpack.c.l.b16 %v59
  %v108 = vunpack.c.l.b16 %v60
  %v109 = vunpack.c.l.b16 %v61
  %v110 = vunpack.c.l.b16 %v62
  %v111 = vunpack.c.l.b16 %v63
  %v112 = vunpack.c.l.b16 %v64
  %v113 = vunpack.c.l.b16 %v65
  %v114 = vunpack.c.l.b16 %v66
  %v115 = vunpack.c.l.b16 %v67
  %v116 = vunpack.c.l.b16 %v68
  %v117 = vpack.c.b16 %v102, %v101
  %v118 = vpack.c.b16 %v104, %v103
  %v119 = vpack.c.b16 %v106, %v105
  %v120 = vpack.c.b16 %v108, %v107
  %v121 = vpack.c.b16 %v110, %v109
  %v122 = vpack.c.b16 %v112, %v111
  %v123 = vpack.c.b16 %v114, %v113
  %v124 = vpack.c.b16 %v116, %v115
  %v149 = vunpack.c.l.b16 %v69
  %v150 = vunpack.c.l.b16 %v70
  %v151 = vunpack.c.l.b16 %v71
  %v152 = vunpack.c.l.b16 %v72
  %v153 = vunpack.c.l.b16 %v73
  %v154 = vunpack.c.l.b16 %v74
  %v155 = vunpack.c.l.b16 %v75
  %v156 = vunpack.c.l.b16 %v76
  %v157 = vunpack.c.l.b16 %v77
  %v158 = vunpack.c.l.b16 %v78
  %v159 = vunpack.c.l.b16 %v79
  %v160 = vunpack.c.l.b16 %v80
  %v161 = vunpack.c.l.b16 %v81
  %v162 = vunpack.c.l.b16 %v82
  %v163 = vunpack.c.l.b16 %v83
  %v164 = vunpack.c.l.b16 %v84
  %v165 = vpack.c.b16 %v150, %v149
  %v166 = vpack.c.b16 %v152, %v151
  %v167 = vpack.c.b16 %v154, %v153
  %v168 = vpack.c.b16 %v156, %v155
  %v169 = vpack.c.b16 %v158, %v157
  %v170 = vpack.c.b16 %v160, %v159
  %v171 = vpack.c.b16 %v162, %v161
  %v172 = vpack.c.b16 %v164, %v163
  %181 = vmatpush.bf16.msra.mxu0 %v172
  %182 = vmatpush.bf16.msra.mxu0 %v171
  %183 = vmatpush.bf16.msra.mxu0 %v170
  %184 = vmatpush.bf16.msra.mxu0 %v169
  %185 = vmatpush.bf16.msra.mxu0 %v168
  %186 = vmatpush.bf16.msra.mxu0 %v167
  %187 = vmatpush.bf16.msra.mxu0 %v166
  %188 = vmatpush.bf16.msra.mxu0 %v165
  %189 = vmatmul.bf16.gmra.mxu0 %v117
  %v190 = vpop.f32.mrf.mxu0
  %v191 = vadd.f32 0.0, %v190
  %v192 = vpop.f32.mrf.mxu0
  %v193 = vadd.f32 0.0, %v192
  %194 = vmatmul.bf16.gmra.mxu0 %v118
  %v195 = vpop.f32.mrf.mxu0
  %v196 = vadd.f32 0.0, %v195
  %v197 = vpop.f32.mrf.mxu0
  %v198 = vadd.f32 0.0, %v197
  %199 = vmatmul.bf16.gmra.mxu0 %v119
  %v200 = vpop.f32.mrf.mxu0
  %v201 = vadd.f32 0.0, %v200
  %v202 = vpop.f32.mrf.mxu0
  %v203 = vadd.f32 0.0, %v202
  %204 = vmatmul.bf16.gmra.mxu0 %v120
  %v205 = vpop.f32.mrf.mxu0
  %v206 = vadd.f32 0.0, %v205
  %v207 = vpop.f32.mrf.mxu0
  %v208 = vadd.f32 0.0, %v207
  %209 = vmatmul.bf16.gmra.mxu0 %v121
  %v210 = vpop.f32.mrf.mxu0
  %v211 = vadd.f32 0.0, %v210
  %v212 = vpop.f32.mrf.mxu0
  %v213 = vadd.f32 0.0, %v212
  %214 = vmatmul.bf16.gmra.mxu0 %v122
  %v215 = vpop.f32.mrf.mxu0
  %v216 = vadd.f32 0.0, %v215
  %v217 = vpop.f32.mrf.mxu0
  %v218 = vadd.f32 0.0, %v217
  %219 = vmatmul.bf16.gmra.mxu0 %v123
  %v220 = vpop.f32.mrf.mxu0
  %v221 = vadd.f32 0.0, %v220
  %v222 = vpop.f32.mrf.mxu0
  %v223 = vadd.f32 0.0, %v222
  %224 = vmatmul.bf16.gmra.mxu0 %v124
  %v225 = vpop.f32.mrf.mxu0
  %v226 = vadd.f32 0.0, %v225
  %v227 = vpop.f32.mrf.mxu0
  %v228 = vadd.f32 0.0, %v227
  %229 = vdwg.mxu0
  %v230 = vadd.f32 %v37, %v191
  %v231 = vadd.f32 %v38, %v193
  %v232 = vadd.f32 %v39, %v196
  %v233 = vadd.f32 %v40, %v198
  %v234 = vadd.f32 %v41, %v201
  %v235 = vadd.f32 %v42, %v203
  %v236 = vadd.f32 %v43, %v206
  %v237 = vadd.f32 %v44, %v208
  %v238 = vadd.f32 %v45, %v211
  %v239 = vadd.f32 %v46, %v213
  %v240 = vadd.f32 %v47, %v216
  %v241 = vadd.f32 %v48, %v218
  %v242 = vadd.f32 %v49, %v221
  %v243 = vadd.f32 %v50, %v223
  %v244 = vadd.f32 %v51, %v226
  %v245 = vadd.f32 %v52, %v228
  %246 = vst [vmem:[#allocation2] sm:$0xff] %v230
  %247 = vst [vmem:[#allocation2 + $0x8] sm:$0xff] %v231
  %248 = vst [vmem:[#allocation2 + $0x10] sm:$0xff] %v232
  %249 = vst [vmem:[#allocation2 + $0x18] sm:$0xff] %v233
  %250 = vst [vmem:[#allocation2 + $0x20] sm:$0xff] %v234
  %251 = vst [vmem:[#allocation2 + $0x28] sm:$0xff] %v235
  %252 = vst [vmem:[#allocation2 + $0x30] sm:$0xff] %v236
  %253 = vst [vmem:[#allocation2 + $0x38] sm:$0xff] %v237
  %254 = vst [vmem:[#allocation2 + $0x40] sm:$0xff] %v238
  %255 = vst [vmem:[#allocation2 + $0x48] sm:$0xff] %v239
  %256 = vst [vmem:[#allocation2 + $0x50] sm:$0xff] %v240
  %257 = vst [vmem:[#allocation2 + $0x58] sm:$0xff] %v241
  %258 = vst [vmem:[#allocation2 + $0x60] sm:$0xff] %v242
  %259 = vst [vmem:[#allocation2 + $0x68] sm:$0xff] %v243
  %260 = vst [vmem:[#allocation2 + $0x70] sm:$0xff] %v244
  %261 = vst [vmem:[#allocation2 + $0x78] sm:$0xff] %v245
  // Predicated region
  $region22: #{syn_model_forward.231} parent=0 // pred_check
    %p262 = pneg %p17
  $region23: #{syn_model_forward.231} parent=0 // pred_check_branch
    %264 = sbr.rel (%p262) target = $region25
  $region24: #{syn_model_forward.231} parent=0 // pred_region
    %v265 = vld [vmem:[#allocation2] sm:$0xff]
    %v266 = vld [vmem:[#allocation2 + $0x8] sm:$0xff]
    %v267 = vld [vmem:[#allocation2 + $0x10] sm:$0xff]
    %v268 = vld [vmem:[#allocation2 + $0x18] sm:$0xff]
    %v269 = vld [vmem:[#allocation2 + $0x20] sm:$0xff]
    %v270 = vld [vmem:[#allocation2 + $0x28] sm:$0xff]
    %v271 = vld [vmem:[#allocation2 + $0x30] sm:$0xff]
    %v272 = vld [vmem:[#allocation2 + $0x38] sm:$0xff]
    %v273 = vld [vmem:[#allocation2 + $0x40] sm:$0xff]
    %v274 = vld [vmem:[#allocation2 + $0x48] sm:$0xff]
    %v275 = vld [vmem:[#allocation2 + $0x50] sm:$0xff]
    %v276 = vld [vmem:[#allocation2 + $0x58] sm:$0xff]
    %v277 = vld [vmem:[#allocation2 + $0x60] sm:$0xff]
    %v278 = vld [vmem:[#allocation2 + $0x68] sm:$0xff]
    %v279 = vld [vmem:[#allocation2 + $0x70] sm:$0xff]
    %v280 = vld [vmem:[#allocation2 + $0x78] sm:$0xff]
    %v281 = vld [vmem:[%s2] sm:$0x1]
    %v283 = vperm.slane %v281, 0
    %v285 = vadd.f32 %v265, %v283
    %v286 = vadd.f32 %v266, %v283
    %v287 = vadd.f32 %v267, %v283
    %v288 = vadd.f32 %v268, %v283
    %v289 = vadd.f32 %v269, %v283
    %v290 = vadd.f32 %v270, %v283
    %v291 = vadd.f32 %v271, %v283
    %v292 = vadd.f32 %v272, %v283
    %v293 = vadd.f32 %v273, %v283
    %v294 = vadd.f32 %v274, %v283
    %v295 = vadd.f32 %v275, %v283
    %v296 = vadd.f32 %v276, %v283
    %v297 = vadd.f32 %v277, %v283
    %v298 = vadd.f32 %v278, %v283
    %v299 = vadd.f32 %v279, %v283
    %v300 = vadd.f32 %v280, %v283
    %v301 = vld [vmem:[%s3] sm:$0xff]
    %v302 = vld [vmem:[%s3 + $0x8] sm:$0xff]
    %v303 = vld [vmem:[%s3 + $0x10] sm:$0xff]
    %v304 = vld [vmem:[%s3 + $0x18] sm:$0xff]
    %v305 = vld [vmem:[%s3 + $0x20] sm:$0xff]
    %v306 = vld [vmem:[%s3 + $0x28] sm:$0xff]
    %v307 = vld [vmem:[%s3 + $0x30] sm:$0xff]
    %v308 = vld [vmem:[%s3 + $0x38] sm:$0xff]
    %v309 = vld [vmem:[%s3 + $0x40] sm:$0xff]
    %v310 = vld [vmem:[%s3 + $0x48] sm:$0xff]
    %v311 = vld [vmem:[%s3 + $0x50] sm:$0xff]
    %v312 = vld [vmem:[%s3 + $0x58] sm:$0xff]
    %v313 = vld [vmem:[%s3 + $0x60] sm:$0xff]
    %v314 = vld [vmem:[%s3 + $0x68] sm:$0xff]
    %v315 = vld [vmem:[%s3 + $0x70] sm:$0xff]
    %v316 = vld [vmem:[%s3 + $0x78] sm:$0xff]
    %v317 = vadd.f32 %v285, %v301
    %v318 = vadd.f32 %v286, %v302
    %v319 = vadd.f32 %v287, %v303
    %v320 = vadd.f32 %v288, %v304
    %v321 = vadd.f32 %v289, %v305
    %v322 = vadd.f32 %v290, %v306
    %v323 = vadd.f32 %v291, %v307
    %v324 = vadd.f32 %v292, %v308
    %v325 = vadd.f32 %v293, %v309
    %v326 = vadd.f32 %v294, %v310
    %v327 = vadd.f32 %v295, %v311
    %v328 = vadd.f32 %v296, %v312
    %v329 = vadd.f32 %v297, %v313
    %v330 = vadd.f32 %v298, %v314
    %v331 = vadd.f32 %v299, %v315
    %v332 = vadd.f32 %v300, %v316
    %v333 = vmax.f32 %v317, 0.0
    %v334 = vmax.f32 %v318, 0.0
    %v335 = vmax.f32 %v319, 0.0
    %v336 = vmax.f32 %v320, 0.0
    %v337 = vmax.f32 %v321, 0.0
    %v338 = vmax.f32 %v322, 0.0
    %v339 = vmax.f32 %v323, 0.0
    %v340 = vmax.f32 %v324, 0.0
    %v341 = vmax.f32 %v325, 0.0
    %v342 = vmax.f32 %v326, 0.0
    %v343 = vmax.f32 %v327, 0.0
    %v344 = vmax.f32 %v328, 0.0
    %v345 = vmax.f32 %v329, 0.0
    %v346 = vmax.f32 %v330, 0.0
    %v347 = vmax.f32 %v331, 0.0
    %v348 = vmax.f32 %v332, 0.0
    %349 = vst [vmem:[%s4] sm:$0xff] %v333
    %350 = vst [vmem:[%s4 + $0x8] sm:$0xff] %v334
    %351 = vst [vmem:[%s4 + $0x10] sm:$0xff] %v335
    %352 = vst [vmem:[%s4 + $0x18] sm:$0xff] %v336
    %353 = vst [vmem:[%s4 + $0x20] sm:$0xff] %v337
    %354 = vst [vmem:[%s4 + $0x28] sm:$0xff] %v338
    %355 = vst [vmem:[%s4 + $0x30] sm:$0xff] %v339
    %356 = vst [vmem:[%s4 + $0x38] sm:$0xff] %v340
    %357 = vst [vmem:[%s4 + $0x40] sm:$0xff] %v341
    %358 = vst [vmem:[%s4 + $0x48] sm:$0xff] %v342
    %359 = vst [vmem:[%s4 + $0x50] sm:$0xff] %v343
    %360 = vst [vmem:[%s4 + $0x58] sm:$0xff] %v344
    %361 = vst [vmem:[%s4 + $0x60] sm:$0xff] %v345
    %362 = vst [vmem:[%s4 + $0x68] sm:$0xff] %v346
    %363 = vst [vmem:[%s4 + $0x70] sm:$0xff] %v347
    %364 = vst [vmem:[%s4 + $0x78] sm:$0xff] %v348
  $region25: #{syn_model_forward.231} parent=0 // pred_fallthru
    _
  // Predicated region
  $region26: #{syn_model_forward.231} parent=0 // pred_check
    _
  $region27: #{syn_model_forward.231} parent=0 // pred_check_branch
    %366 = sbr.rel (0) target = $region29
  $region28: #{syn_model_forward.231} parent=0 // pred_region
    _
  $region29: #{syn_model_forward.231} parent=0 // pred_fallthru
    _
  // Predicated region
  $region30: #{syn_model_forward.231} parent=0 // pred_check
    _
  $region31: #{syn_model_forward.231} parent=0 // pred_check_branch
    %368 = sbr.rel (0) target = $region33
  $region32: #{syn_model_forward.231} parent=0 // pred_region
    _
  $region33: #{syn_model_forward.231} parent=0 // pred_fallthru
    _

// kernel: syn_model_forward.248
$region0: #{syn_model_forward.248}
  #allocation0 [shape = 'u32[]', space=smem, size = 0x4, offset = 0x4, fixed_abs, tag = 'smem constant byte address 0x4 - core index']
  #allocation1 [shape = 'u32[72,128]{1,0:T(1,128)}', space=vmem, size = 0x9000, scoped, tag = 'internal scratch']
  #allocation2 [shape = 'f32[32,128]{1,0:T(8,128)}', space=vmem, size = 0x4000, scoped, tag = 'scratch operand']
  %s0 = inlined_call_operand.vmem [shape: bf16[32,256], index: 0, kind: input, shape index: {}]
  %s1 = inlined_call_operand.vmem [shape: bf16[256,128], index: 1, kind: input, shape index: {}]
  %s2 = inlined_call_operand.vmem [shape: f32[1,128], index: 2, kind: input, shape index: {}]
  %s3 = inlined_call_operand.vmem [shape: f32[32,128], index: 3, kind: output, shape index: {}]
  %s4 = sld [smem:[#allocation0]]
  $region30: #{syn_model_forward.248} parent=0
    _
  %s6 = ssub.s32 1, %s4
  %s7 = scalar_select 0, %s6, %s4
  // Predicated region
  $region2: #{syn_model_forward.248} parent=0 // pred_check
    _
  $region3: #{syn_model_forward.248} parent=0 // pred_check_branch
    %9 = sbr.rel (0) target = $region5
  $region4: #{syn_model_forward.248} parent=0 // pred_region
    _
  $region5: #{syn_model_forward.248} parent=0 // pred_fallthru
    _
  // Predicated region
  $region6: #{syn_model_forward.248} parent=0 // pred_check
    _
  $region7: #{syn_model_forward.248} parent=0 // pred_check_branch
    %11 = sbr.rel (0) target = $region9
  $region8: #{syn_model_forward.248} parent=0 // pred_region
    _
  $region9: #{syn_model_forward.248} parent=0 // pred_fallthru
    _
  // Predicated region
  $region10: #{syn_model_forward.248} parent=0 // pred_check
    _
  $region11: #{syn_model_forward.248} parent=0 // pred_check_branch
    %13 = sbr.rel (0) target = $region13
  $region12: #{syn_model_forward.248} parent=0 // pred_region
    _
  $region13: #{syn_model_forward.248} parent=0 // pred_fallthru
    _
  %p14 = scmp.eq.s32.totalorder 0, 0
  // Predicated region
  $region14: #{syn_model_forward.248} parent=0 // pred_check
    %p15 = pneg %p14
  $region15: #{syn_model_forward.248} parent=0 // pred_check_branch
    %17 = sbr.rel (%p15) target = $region17
  $region16: #{syn_model_forward.248} parent=0 // pred_region
    %18 = vst [vmem:[#allocation2] sm:$0xff] 0.0
    %19 = vst [vmem:[#allocation2 + $0x8] sm:$0xff] 0.0
    %20 = vst [vmem:[#allocation2 + $0x10] sm:$0xff] 0.0
    %21 = vst [vmem:[#allocation2 + $0x18] sm:$0xff] 0.0
  $region17: #{syn_model_forward.248} parent=0 // pred_fallthru
    _
  %v22 = vld [vmem:[#allocation2] sm:$0xff]
  %v23 = vld [vmem:[#allocation2 + $0x8] sm:$0xff]
  %v24 = vld [vmem:[#allocation2 + $0x10] sm:$0xff]
  %v25 = vld [vmem:[#allocation2 + $0x18] sm:$0xff]
  %v26 = vld [vmem:[%s0] sm:$0xff]
  %v27 = vld [vmem:[%s0 + $0x8] sm:$0xff]
  %v28 = vld [vmem:[%s0 + $0x10] sm:$0xff]
  %v29 = vld [vmem:[%s0 + $0x18] sm:$0xff]
  %v30 = vld [vmem:[%s1] sm:$0xf]
  %v31 = vld [vmem:[%s1 + $0x4] sm:$0xf]
  %v32 = vld [vmem:[%s1 + $0x8] sm:$0xf]
  %v33 = vld [vmem:[%s1 + $0xc] sm:$0xf]
  %v34 = vld [vmem:[%s1 + $0x10] sm:$0xf]
  %v35 = vld [vmem:[%s1 + $0x14] sm:$0xf]
  %v36 = vld [vmem:[%s1 + $0x18] sm:$0xf]
  %v37 = vld [vmem:[%s1 + $0x1c] sm:$0xf]
  %v38 = vld [vmem:[%s1 + $0x20] sm:$0xf]
  %v39 = vld [vmem:[%s1 + $0x24] sm:$0xf]
  %v40 = vld [vmem:[%s1 + $0x28] sm:$0xf]
  %v41 = vld [vmem:[%s1 + $0x2c] sm:$0xf]
  %v42 = vld [vmem:[%s1 + $0x30] sm:$0xf]
  %v43 = vld [vmem:[%s1 + $0x34] sm:$0xf]
  %v44 = vld [vmem:[%s1 + $0x38] sm:$0xf]
  %v45 = vld [vmem:[%s1 + $0x3c] sm:$0xf]
  %v46 = vld [vmem:[%s1 + $0x40] sm:$0xf]
  %v47 = vld [vmem:[%s1 + $0x44] sm:$0xf]
  %v48 = vld [vmem:[%s1 + $0x48] sm:$0xf]
  %v49 = vld [vmem:[%s1 + $0x4c] sm:$0xf]
  %v50 = vld [vmem:[%s1 + $0x50] sm:$0xf]
  %v51 = vld [vmem:[%s1 + $0x54] sm:$0xf]
  %v52 = vld [vmem:[%s1 + $0x58] sm:$0xf]
  %v53 = vld [vmem:[%s1 + $0x5c] sm:$0xf]
  %v54 = vld [vmem:[%s1 + $0x60] sm:$0xf]
  %v55 = vld [vmem:[%s1 + $0x64] sm:$0xf]
  %v56 = vld [vmem:[%s1 + $0x68] sm:$0xf]
  %v57 = vld [vmem:[%s1 + $0x6c] sm:$0xf]
  %v58 = vld [vmem:[%s1 + $0x70] sm:$0xf]
  %v59 = vld [vmem:[%s1 + $0x74] sm:$0xf]
  %v60 = vld [vmem:[%s1 + $0x78] sm:$0xf]
  %v61 = vld [vmem:[%s1 + $0x7c] sm:$0xf]
  %v66 = vunpack.c.l.b16 %v26
  %v67 = vunpack.c.h.b16 %v26
  %v68 = vunpack.c.l.b16 %v27
  %v69 = vunpack.c.h.b16 %v27
  %v70 = vunpack.c.l.b16 %v28
  %v71 = vunpack.c.h.b16 %v28
  %v72 = vunpack.c.l.b16 %v29
  %v73 = vunpack.c.h.b16 %v29
  %v74 = vpack.c.b16 %v68, %v66
  %v75 = vpack.c.b16 %v69, %v67
  %v76 = vpack.c.b16 %v72, %v70
  %v77 = vpack.c.b16 %v73, %v71
  %v114 = vunpack.c.l.b16 %v30
  %v115 = vunpack.c.l.b16 %v31
  %v116 = vunpack.c.l.b16 %v32
  %v117 = vunpack.c.l.b16 %v33
  %v118 = vunpack.c.l.b16 %v34
  %v119 = vunpack.c.l.b16 %v35
  %v120 = vunpack.c.l.b16 %v36
  %v121 = vunpack.c.l.b16 %v37
  %v122 = vunpack.c.l.b16 %v38
  %v123 = vunpack.c.l.b16 %v39
  %v124 = vunpack.c.l.b16 %v40
  %v125 = vunpack.c.l.b16 %v41
  %v126 = vunpack.c.l.b16 %v42
  %v127 = vunpack.c.l.b16 %v43
  %v128 = vunpack.c.l.b16 %v44
  %v129 = vunpack.c.l.b16 %v45
  %v130 = vunpack.c.l.b16 %v46
  %v131 = vunpack.c.l.b16 %v47
  %v132 = vunpack.c.l.b16 %v48
  %v133 = vunpack.c.l.b16 %v49
  %v134 = vunpack.c.l.b16 %v50
  %v135 = vunpack.c.l.b16 %v51
  %v136 = vunpack.c.l.b16 %v52
  %v137 = vunpack.c.l.b16 %v53
  %v138 = vunpack.c.l.b16 %v54
  %v139 = vunpack.c.l.b16 %v55
  %v140 = vunpack.c.l.b16 %v56
  %v141 = vunpack.c.l.b16 %v57
  %v142 = vunpack.c.l.b16 %v58
  %v143 = vunpack.c.l.b16 %v59
  %v144 = vunpack.c.l.b16 %v60
  %v145 = vunpack.c.l.b16 %v61
  %v146 = vpack.c.b16 %v115, %v114
  %v147 = vpack.c.b16 %v117, %v116
  %v148 = vpack.c.b16 %v119, %v118
  %v149 = vpack.c.b16 %v121, %v120
  %v150 = vpack.c.b16 %v123, %v122
  %v151 = vpack.c.b16 %v125, %v124
  %v152 = vpack.c.b16 %v127, %v126
  %v153 = vpack.c.b16 %v129, %v128
  %v154 = vpack.c.b16 %v131, %v130
  %v155 = vpack.c.b16 %v133, %v132
  %v156 = vpack.c.b16 %v135, %v134
  %v157 = vpack.c.b16 %v137, %v136
  %v158 = vpack.c.b16 %v139, %v138
  %v159 = vpack.c.b16 %v141, %v140
  %v160 = vpack.c.b16 %v143, %v142
  %v161 = vpack.c.b16 %v145, %v144
  %178 = vmatpush.bf16.msra.mxu0 %v153
  %179 = vmatpush.bf16.msra.mxu0 %v152
  %180 = vmatpush.bf16.msra.mxu0 %v151
  %181 = vmatpush.bf16.msra.mxu0 %v150
  %182 = vmatpush.bf16.msra.mxu0 %v149
  %183 = vmatpush.bf16.msra.mxu0 %v148
  %184 = vmatpush.bf16.msra.mxu0 %v147
  %185 = vmatpush.bf16.msra.mxu0 %v146
  %186 = vmatmul.bf16.gmra.mxu0 %v74
  %v187 = vpop.f32.mrf.mxu0
  %v188 = vadd.f32 0.0, %v187
  %v189 = vpop.f32.mrf.mxu0
  %v190 = vadd.f32 0.0, %v189
  %191 = vmatmul.bf16.gmra.mxu0 %v76
  %v192 = vpop.f32.mrf.mxu0
  %v193 = vadd.f32 0.0, %v192
  %v194 = vpop.f32.mrf.mxu0
  %v195 = vadd.f32 0.0, %v194
  %196 = vdwg.mxu0
  %197 = vmatpush.bf16.msra.mxu0 %v161
  %198 = vmatpush.bf16.msra.mxu0 %v160
  %199 = vmatpush.bf16.msra.mxu0 %v159
  %200 = vmatpush.bf16.msra.mxu0 %v158
  %201 = vmatpush.bf16.msra.mxu0 %v157
  %202 = vmatpush.bf16.msra.mxu0 %v156
  %203 = vmatpush.bf16.msra.mxu0 %v155
  %204 = vmatpush.bf16.msra.mxu0 %v154
  %205 = vmatmul.bf16.gmra.mxu0 %v75
  %v206 = vpop.f32.mrf.mxu0
  %v207 = vadd.f32 %v188, %v206
  %v208 = vpop.f32.mrf.mxu0
  %v209 = vadd.f32 %v190, %v208
  %210 = vmatmul.bf16.gmra.mxu0 %v77
  %v211 = vpop.f32.mrf.mxu0
  %v212 = vadd.f32 %v193, %v211
  %v213 = vpop.f32.mrf.mxu0
  %v214 = vadd.f32 %v195, %v213
  %215 = vdwg.mxu0
  %v216 = vadd.f32 %v22, %v207
  %v217 = vadd.f32 %v23, %v209
  %v218 = vadd.f32 %v24, %v212
  %v219 = vadd.f32 %v25, %v214
  %220 = vst [vmem:[#allocation2] sm:$0xff] %v216
  %221 = vst [vmem:[#allocation2 + $0x8] sm:$0xff] %v217
  %222 = vst [vmem:[#allocation2 + $0x10] sm:$0xff] %v218
  %223 = vst [vmem:[#allocation2 + $0x18] sm:$0xff] %v219
  // Predicated region
  $region18: #{syn_model_forward.248} parent=0 // pred_check
    %p224 = pneg %p14
  $region19: #{syn_model_forward.248} parent=0 // pred_check_branch
    %226 = sbr.rel (%p224) target = $region21
  $region20: #{syn_model_forward.248} parent=0 // pred_region
    %v227 = vld [vmem:[#allocation2] sm:$0xff]
    %v228 = vld [vmem:[#allocation2 + $0x8] sm:$0xff]
    %v229 = vld [vmem:[#allocation2 + $0x10] sm:$0xff]
    %v230 = vld [vmem:[#allocation2 + $0x18] sm:$0xff]
    %v231 = vld [vmem:[%s2] sm:$0x1]
    %v233 = vperm.slane %v231, 0
    %v235 = vadd.f32 %v227, %v233
    %v236 = vadd.f32 %v228, %v233
    %v237 = vadd.f32 %v229, %v233
    %v238 = vadd.f32 %v230, %v233
    %v239 = vmax.f32 %v235, 0.0
    %v240 = vmax.f32 %v236, 0.0
    %v241 = vmax.f32 %v237, 0.0
    %v242 = vmax.f32 %v238, 0.0
    %243 = vst [vmem:[%s3] sm:$0xff] %v239
    %244 = vst [vmem:[%s3 + $0x8] sm:$0xff] %v240
    %245 = vst [vmem:[%s3 + $0x10] sm:$0xff] %v241
    %246 = vst [vmem:[%s3 + $0x18] sm:$0xff] %v242
  $region21: #{syn_model_forward.248} parent=0 // pred_fallthru
    _
  // Predicated region
  $region22: #{syn_model_forward.248} parent=0 // pred_check
    _
  $region23: #{syn_model_forward.248} parent=0 // pred_check_branch
    %248 = sbr.rel (0) target = $region25
  $region24: #{syn_model_forward.248} parent=0 // pred_region
    _
  $region25: #{syn_model_forward.248} parent=0 // pred_fallthru
    _
  // Predicated region
  $region26: #{syn_model_forward.248} parent=0 // pred_check
    _
  $region27: #{syn_model_forward.248} parent=0 // pred_check_branch
    %250 = sbr.rel (0) target = $region29
  $region28: #{syn_model_forward.248} parent=0 // pred_region
    _
  $region29: #{syn_model_forward.248} parent=0 // pred_fallthru
    _

// kernel: syn_model_forward.253
$region0: #{syn_model_forward.253}
  #allocation0 [shape = 'u32[]', space=smem, size = 0x4, offset = 0x4, fixed_abs, tag = 'smem constant byte address 0x4 - core index']
  #allocation1 [shape = 'u32[72,128]{1,0:T(1,128)}', space=vmem, size = 0x9000, scoped, tag = 'internal scratch']
  #allocation2 [shape = 'f32[32,128]{1,0:T(8,128)}', space=vmem, size = 0x4000, scoped, tag = 'scratch operand']
  %s0 = inlined_call_operand.vmem [shape: bf16[32,128], index: 0, kind: input, shape index: {}]
  %s1 = inlined_call_operand.vmem [shape: bf16[128,128], index: 1, kind: input, shape index: {}]
  %s2 = inlined_call_operand.vmem [shape: f32[1,128], index: 2, kind: input, shape index: {}]
  %s3 = inlined_call_operand.vmem [shape: f32[32,128], index: 3, kind: output, shape index: {}]
  %s4 = sld [smem:[#allocation0]]
  $region30: #{syn_model_forward.253} parent=0
    _
  %s6 = ssub.s32 1, %s4
  %s7 = scalar_select 0, %s6, %s4
  // Predicated region
  $region2: #{syn_model_forward.253} parent=0 // pred_check
    _
  $region3: #{syn_model_forward.253} parent=0 // pred_check_branch
    %9 = sbr.rel (0) target = $region5
  $region4: #{syn_model_forward.253} parent=0 // pred_region
    _
  $region5: #{syn_model_forward.253} parent=0 // pred_fallthru
    _
  // Predicated region
  $region6: #{syn_model_forward.253} parent=0 // pred_check
    _
  $region7: #{syn_model_forward.253} parent=0 // pred_check_branch
    %11 = sbr.rel (0) target = $region9
  $region8: #{syn_model_forward.253} parent=0 // pred_region
    _
  $region9: #{syn_model_forward.253} parent=0 // pred_fallthru
    _
  // Predicated region
  $region10: #{syn_model_forward.253} parent=0 // pred_check
    _
  $region11: #{syn_model_forward.253} parent=0 // pred_check_branch
    %13 = sbr.rel (0) target = $region13
  $region12: #{syn_model_forward.253} parent=0 // pred_region
    _
  $region13: #{syn_model_forward.253} parent=0 // pred_fallthru
    _
  %p14 = scmp.eq.s32.totalorder 0, 0
  // Predicated region
  $region14: #{syn_model_forward.253} parent=0 // pred_check
    %p15 = pneg %p14
  $region15: #{syn_model_forward.253} parent=0 // pred_check_branch
    %17 = sbr.rel (%p15) target = $region17
  $region16: #{syn_model_forward.253} parent=0 // pred_region
    %18 = vst [vmem:[#allocation2] sm:$0xff] 0.0
    %19 = vst [vmem:[#allocation2 + $0x8] sm:$0xff] 0.0
    %20 = vst [vmem:[#allocation2 + $0x10] sm:$0xff] 0.0
    %21 = vst [vmem:[#allocation2 + $0x18] sm:$0xff] 0.0
  $region17: #{syn_model_forward.253} parent=0 // pred_fallthru
    _
  %v22 = vld [vmem:[#allocation2] sm:$0xff]
  %v23 = vld [vmem:[#allocation2 + $0x8] sm:$0xff]
  %v24 = vld [vmem:[#allocation2 + $0x10] sm:$0xff]
  %v25 = vld [vmem:[#allocation2 + $0x18] sm:$0xff]
  %v26 = vld [vmem:[%s0] sm:$0xf]
  %v27 = vld [vmem:[%s0 + $0x4] sm:$0xf]
  %v28 = vld [vmem:[%s0 + $0x8] sm:$0xf]
  %v29 = vld [vmem:[%s0 + $0xc] sm:$0xf]
  %v30 = vld [vmem:[%s1] sm:$0xf]
  %v31 = vld [vmem:[%s1 + $0x4] sm:$0xf]
  %v32 = vld [vmem:[%s1 + $0x8] sm:$0xf]
  %v33 = vld [vmem:[%s1 + $0xc] sm:$0xf]
  %v34 = vld [vmem:[%s1 + $0x10] sm:$0xf]
  %v35 = vld [vmem:[%s1 + $0x14] sm:$0xf]
  %v36 = vld [vmem:[%s1 + $0x18] sm:$0xf]
  %v37 = vld [vmem:[%s1 + $0x1c] sm:$0xf]
  %v38 = vld [vmem:[%s1 + $0x20] sm:$0xf]
  %v39 = vld [vmem:[%s1 + $0x24] sm:$0xf]
  %v40 = vld [vmem:[%s1 + $0x28] sm:$0xf]
  %v41 = vld [vmem:[%s1 + $0x2c] sm:$0xf]
  %v42 = vld [vmem:[%s1 + $0x30] sm:$0xf]
  %v43 = vld [vmem:[%s1 + $0x34] sm:$0xf]
  %v44 = vld [vmem:[%s1 + $0x38] sm:$0xf]
  %v45 = vld [vmem:[%s1 + $0x3c] sm:$0xf]
  %v50 = vunpack.c.l.b16 %v26
  %v51 = vunpack.c.l.b16 %v27
  %v52 = vunpack.c.l.b16 %v28
  %v53 = vunpack.c.l.b16 %v29
  %v54 = vpack.c.b16 %v51, %v50
  %v55 = vpack.c.b16 %v53, %v52
  %v74 = vunpack.c.l.b16 %v30
  %v75 = vunpack.c.l.b16 %v31
  %v76 = vunpack.c.l.b16 %v32
  %v77 = vunpack.c.l.b16 %v33
  %v78 = vunpack.c.l.b16 %v34
  %v79 = vunpack.c.l.b16 %v35
  %v80 = vunpack.c.l.b16 %v36
  %v81 = vunpack.c.l.b16 %v37
  %v82 = vunpack.c.l.b16 %v38
  %v83 = vunpack.c.l.b16 %v39
  %v84 = vunpack.c.l.b16 %v40
  %v85 = vunpack.c.l.b16 %v41
  %v86 = vunpack.c.l.b16 %v42
  %v87 = vunpack.c.l.b16 %v43
  %v88 = vunpack.c.l.b16 %v44
  %v89 = vunpack.c.l.b16 %v45
  %v90 = vpack.c.b16 %v75, %v74
  %v91 = vpack.c.b16 %v77, %v76
  %v92 = vpack.c.b16 %v79, %v78
  %v93 = vpack.c.b16 %v81, %v80
  %v94 = vpack.c.b16 %v83, %v82
  %v95 = vpack.c.b16 %v85, %v84
  %v96 = vpack.c.b16 %v87, %v86
  %v97 = vpack.c.b16 %v89, %v88
  %106 = vmatpush.bf16.msra.mxu0 %v97
  %107 = vmatpush.bf16.msra.mxu0 %v96
  %108 = vmatpush.bf16.msra.mxu0 %v95
  %109 = vmatpush.bf16.msra.mxu0 %v94
  %110 = vmatpush.bf16.msra.mxu0 %v93
  %111 = vmatpush.bf16.msra.mxu0 %v92
  %112 = vmatpush.bf16.msra.mxu0 %v91
  %113 = vmatpush.bf16.msra.mxu0 %v90
  %114 = vmatmul.bf16.gmra.mxu0 %v54
  %v115 = vpop.f32.mrf.mxu0
  %v116 = vadd.f32 0.0, %v115
  %v117 = vpop.f32.mrf.mxu0
  %v118 = vadd.f32 0.0, %v117
  %119 = vmatmul.bf16.gmra.mxu0 %v55
  %v120 = vpop.f32.mrf.mxu0
  %v121 = vadd.f32 0.0, %v120
  %v122 = vpop.f32.mrf.mxu0
  %v123 = vadd.f32 0.0, %v122
  %124 = vdwg.mxu0
  %v125 = vadd.f32 %v22, %v116
  %v126 = vadd.f32 %v23, %v118
  %v127 = vadd.f32 %v24, %v121
  %v128 = vadd.f32 %v25, %v123
  %129 = vst [vmem:[#allocation2] sm:$0xff] %v125
  %130 = vst [vmem:[#allocation2 + $0x8] sm:$0xff] %v126
  %131 = vst [vmem:[#allocation2 + $0x10] sm:$0xff] %v127
  %132 = vst [vmem:[#allocation2 + $0x18] sm:$0xff] %v128
  // Predicated region
  $region18: #{syn_model_forward.253} parent=0 // pred_check
    %p133 = pneg %p14
  $region19: #{syn_model_forward.253} parent=0 // pred_check_branch
    %135 = sbr.rel (%p133) target = $region21
  $region20: #{syn_model_forward.253} parent=0 // pred_region
    %v136 = vld [vmem:[#allocation2] sm:$0xff]
    %v137 = vld [vmem:[#allocation2 + $0x8] sm:$0xff]
    %v138 = vld [vmem:[#allocation2 + $0x10] sm:$0xff]
    %v139 = vld [vmem:[#allocation2 + $0x18] sm:$0xff]
    %v140 = vld [vmem:[%s2] sm:$0x1]
    %v142 = vperm.slane %v140, 0
    %v144 = vadd.f32 %v136, %v142
    %v145 = vadd.f32 %v137, %v142
    %v146 = vadd.f32 %v138, %v142
    %v147 = vadd.f32 %v139, %v142
    %v148 = vmax.f32 %v144, 0.0
    %v149 = vmax.f32 %v145, 0.0
    %v150 = vmax.f32 %v146, 0.0
    %v151 = vmax.f32 %v147, 0.0
    %152 = vst [vmem:[%s3] sm:$0xff] %v148
    %153 = vst [vmem:[%s3 + $0x8] sm:$0xff] %v149
    %154 = vst [vmem:[%s3 + $0x10] sm:$0xff] %v150
    %155 = vst [vmem:[%s3 + $0x18] sm:$0xff] %v151
  $region21: #{syn_model_forward.253} parent=0 // pred_fallthru
    _
  // Predicated region
  $region22: #{syn_model_forward.253} parent=0 // pred_check
    _
  $region23: #{syn_model_forward.253} parent=0 // pred_check_branch
    %157 = sbr.rel (0) target = $region25
  $region24: #{syn_model_forward.253} parent=0 // pred_region
    _
  $region25: #{syn_model_forward.253} parent=0 // pred_fallthru
    _
  // Predicated region
  $region26: #{syn_model_forward.253} parent=0 // pred_check
    _
  $region27: #{syn_model_forward.253} parent=0 // pred_check_branch
    %159 = sbr.rel (0) target = $region29
  $region28: #{syn_model_forward.253} parent=0 // pred_region
    _
  $region29: #{syn_model_forward.253} parent=0 // pred_fallthru
    _

// kernel: syn_model_forward.252
$region0: #{syn_model_forward.252}
  #allocation0 [shape = 'u32[]', space=smem, size = 0x4, offset = 0x4, fixed_abs, tag = 'smem constant byte address 0x4 - core index']
  #allocation1 [shape = 'u32[72,128]{1,0:T(1,128)}', space=vmem, size = 0x9000, scoped, tag = 'internal scratch']
  #allocation2 [shape = 'f32[32,128]{1,0:T(8,128)}', space=vmem, size = 0x4000, scoped, tag = 'scratch operand']
  %s0 = inlined_call_operand.vmem [shape: bf16[32,128], index: 0, kind: input, shape index: {}]
  %s1 = inlined_call_operand.vmem [shape: bf16[128,128], index: 1, kind: input, shape index: {}]
  %s2 = inlined_call_operand.vmem [shape: f32[1,128], index: 2, kind: input, shape index: {}]
  %s3 = inlined_call_operand.vmem [shape: f32[32,128], index: 3, kind: input, shape index: {}]
  %s4 = inlined_call_operand.vmem [shape: f32[32,128], index: 4, kind: output, shape index: {}]
  %s5 = sld [smem:[#allocation0]]
  $region34: #{syn_model_forward.252} parent=0
    _
  %s7 = ssub.s32 1, %s5
  %s8 = scalar_select 0, %s7, %s5
  // Predicated region
  $region2: #{syn_model_forward.252} parent=0 // pred_check
    _
  $region3: #{syn_model_forward.252} parent=0 // pred_check_branch
    %10 = sbr.rel (0) target = $region5
  $region4: #{syn_model_forward.252} parent=0 // pred_region
    _
  $region5: #{syn_model_forward.252} parent=0 // pred_fallthru
    _
  // Predicated region
  $region6: #{syn_model_forward.252} parent=0 // pred_check
    _
  $region7: #{syn_model_forward.252} parent=0 // pred_check_branch
    %12 = sbr.rel (0) target = $region9
  $region8: #{syn_model_forward.252} parent=0 // pred_region
    _
  $region9: #{syn_model_forward.252} parent=0 // pred_fallthru
    _
  // Predicated region
  $region10: #{syn_model_forward.252} parent=0 // pred_check
    _
  $region11: #{syn_model_forward.252} parent=0 // pred_check_branch
    %14 = sbr.rel (0) target = $region13
  $region12: #{syn_model_forward.252} parent=0 // pred_region
    _
  $region13: #{syn_model_forward.252} parent=0 // pred_fallthru
    _
  // Predicated region
  $region14: #{syn_model_forward.252} parent=0 // pred_check
    _
  $region15: #{syn_model_forward.252} parent=0 // pred_check_branch
    %16 = sbr.rel (0) target = $region17
  $region16: #{syn_model_forward.252} parent=0 // pred_region
    _
  $region17: #{syn_model_forward.252} parent=0 // pred_fallthru
    _
  %p17 = scmp.eq.s32.totalorder 0, 0
  // Predicated region
  $region18: #{syn_model_forward.252} parent=0 // pred_check
    %p18 = pneg %p17
  $region19: #{syn_model_forward.252} parent=0 // pred_check_branch
    %20 = sbr.rel (%p18) target = $region21
  $region20: #{syn_model_forward.252} parent=0 // pred_region
    %21 = vst [vmem:[#allocation2] sm:$0xff] 0.0
    %22 = vst [vmem:[#allocation2 + $0x8] sm:$0xff] 0.0
    %23 = vst [vmem:[#allocation2 + $0x10] sm:$0xff] 0.0
    %24 = vst [vmem:[#allocation2 + $0x18] sm:$0xff] 0.0
  $region21: #{syn_model_forward.252} parent=0 // pred_fallthru
    _
  %v25 = vld [vmem:[#allocation2] sm:$0xff]
  %v26 = vld [vmem:[#allocation2 + $0x8] sm:$0xff]
  %v27 = vld [vmem:[#allocation2 + $0x10] sm:$0xff]
  %v28 = vld [vmem:[#allocation2 + $0x18] sm:$0xff]
  %v29 = vld [vmem:[%s0] sm:$0xf]
  %v30 = vld [vmem:[%s0 + $0x4] sm:$0xf]
  %v31 = vld [vmem:[%s0 + $0x8] sm:$0xf]
  %v32 = vld [vmem:[%s0 + $0xc] sm:$0xf]
  %v33 = vld [vmem:[%s1] sm:$0xf]
  %v34 = vld [vmem:[%s1 + $0x4] sm:$0xf]
  %v35 = vld [vmem:[%s1 + $0x8] sm:$0xf]
  %v36 = vld [vmem:[%s1 + $0xc] sm:$0xf]
  %v37 = vld [vmem:[%s1 + $0x10] sm:$0xf]
  %v38 = vld [vmem:[%s1 + $0x14] sm:$0xf]
  %v39 = vld [vmem:[%s1 + $0x18] sm:$0xf]
  %v40 = vld [vmem:[%s1 + $0x1c] sm:$0xf]
  %v41 = vld [vmem:[%s1 + $0x20] sm:$0xf]
  %v42 = vld [vmem:[%s1 + $0x24] sm:$0xf]
  %v43 = vld [vmem:[%s1 + $0x28] sm:$0xf]
  %v44 = vld [vmem:[%s1 + $0x2c] sm:$0xf]
  %v45 = vld [vmem:[%s1 + $0x30] sm:$0xf]
  %v46 = vld [vmem:[%s1 + $0x34] sm:$0xf]
  %v47 = vld [vmem:[%s1 + $0x38] sm:$0xf]
  %v48 = vld [vmem:[%s1 + $0x3c] sm:$0xf]
  %v53 = vunpack.c.l.b16 %v29
  %v54 = vunpack.c.l.b16 %v30
  %v55 = vunpack.c.l.b16 %v31
  %v56 = vunpack.c.l.b16 %v32
  %v57 = vpack.c.b16 %v54, %v53
  %v58 = vpack.c.b16 %v56, %v55
  %v77 = vunpack.c.l.b16 %v33
  %v78 = vunpack.c.l.b16 %v34
  %v79 = vunpack.c.l.b16 %v35
  %v80 = vunpack.c.l.b16 %v36
  %v81 = vunpack.c.l.b16 %v37
  %v82 = vunpack.c.l.b16 %v38
  %v83 = vunpack.c.l.b16 %v39
  %v84 = vunpack.c.l.b16 %v40
  %v85 = vunpack.c.l.b16 %v41
  %v86 = vunpack.c.l.b16 %v42
  %v87 = vunpack.c.l.b16 %v43
  %v88 = vunpack.c.l.b16 %v44
  %v89 = vunpack.c.l.b16 %v45
  %v90 = vunpack.c.l.b16 %v46
  %v91 = vunpack.c.l.b16 %v47
  %v92 = vunpack.c.l.b16 %v48
  %v93 = vpack.c.b16 %v78, %v77
  %v94 = vpack.c.b16 %v80, %v79
  %v95 = vpack.c.b16 %v82, %v81
  %v96 = vpack.c.b16 %v84, %v83
  %v97 = vpack.c.b16 %v86, %v85
  %v98 = vpack.c.b16 %v88, %v87
  %v99 = vpack.c.b16 %v90, %v89
  %v100 = vpack.c.b16 %v92, %v91
  %109 = vmatpush.bf16.msra.mxu0 %v100
  %110 = vmatpush.bf16.msra.mxu0 %v99
  %111 = vmatpush.bf16.msra.mxu0 %v98
  %112 = vmatpush.bf16.msra.mxu0 %v97
  %113 = vmatpush.bf16.msra.mxu0 %v96
  %114 = vmatpush.bf16.msra.mxu0 %v95
  %115 = vmatpush.bf16.msra.mxu0 %v94
  %116 = vmatpush.bf16.msra.mxu0 %v93
  %117 = vmatmul.bf16.gmra.mxu0 %v57
  %v118 = vpop.f32.mrf.mxu0
  %v119 = vadd.f32 0.0, %v118
  %v120 = vpop.f32.mrf.mxu0
  %v121 = vadd.f32 0.0, %v120
  %122 = vmatmul.bf16.gmra.mxu0 %v58
  %v123 = vpop.f32.mrf.mxu0
  %v124 = vadd.f32 0.0, %v123
  %v125 = vpop.f32.mrf.mxu0
  %v126 = vadd.f32 0.0, %v125
  %127 = vdwg.mxu0
  %v128 = vadd.f32 %v25, %v119
  %v129 = vadd.f32 %v26, %v121
  %v130 = vadd.f32 %v27, %v124
  %v131 = vadd.f32 %v28, %v126
  %132 = vst [vmem:[#allocation2] sm:$0xff] %v128
  %133 = vst [vmem:[#allocation2 + $0x8] sm:$0xff] %v129
  %134 = vst [vmem:[#allocation2 + $0x10] sm:$0xff] %v130
  %135 = vst [vmem:[#allocation2 + $0x18] sm:$0xff] %v131
  // Predicated region
  $region22: #{syn_model_forward.252} parent=0 // pred_check
    %p136 = pneg %p17
  $region23: #{syn_model_forward.252} parent=0 // pred_check_branch
    %138 = sbr.rel (%p136) target = $region25
  $region24: #{syn_model_forward.252} parent=0 // pred_region
    %v139 = vld [vmem:[#allocation2] sm:$0xff]
    %v140 = vld [vmem:[#allocation2 + $0x8] sm:$0xff]
    %v141 = vld [vmem:[#allocation2 + $0x10] sm:$0xff]
    %v142 = vld [vmem:[#allocation2 + $0x18] sm:$0xff]
    %v143 = vld [vmem:[%s2] sm:$0x1]
    %v145 = vperm.slane %v143, 0
    %v147 = vadd.f32 %v139, %v145
    %v148 = vadd.f32 %v140, %v145
    %v149 = vadd.f32 %v141, %v145
    %v150 = vadd.f32 %v142, %v145
    %v151 = vld [vmem:[%s3] sm:$0xff]
    %v152 = vld [vmem:[%s3 + $0x8] sm:$0xff]
    %v153 = vld [vmem:[%s3 + $0x10] sm:$0xff]
    %v154 = vld [vmem:[%s3 + $0x18] sm:$0xff]
    %v155 = vadd.f32 %v147, %v151
    %v156 = vadd.f32 %v148, %v152
    %v157 = vadd.f32 %v149, %v153
    %v158 = vadd.f32 %v150, %v154
    %v159 = vmax.f32 %v155, 0.0
    %v160 = vmax.f32 %v156, 0.0
    %v161 = vmax.f32 %v157, 0.0
    %v162 = vmax.f32 %v158, 0.0
    %163 = vst [vmem:[%s4] sm:$0xff] %v159
    %164 = vst [vmem:[%s4 + $0x8] sm:$0xff] %v160
    %165 = vst [vmem:[%s4 + $0x10] sm:$0xff] %v161
    %166 = vst [vmem:[%s4 + $0x18] sm:$0xff] %v162
  $region25: #{syn_model_forward.252} parent=0 // pred_fallthru
    _
  // Predicated region
  $region26: #{syn_model_forward.252} parent=0 // pred_check
    _
  $region27: #{syn_model_forward.252} parent=0 // pred_check_branch
    %168 = sbr.rel (0) target = $region29
  $region28: #{syn_model_forward.252} parent=0 // pred_region
    _
  $region29: #{syn_model_forward.252} parent=0 // pred_fallthru
    _
  // Predicated region
  $region30: #{syn_model_forward.252} parent=0 // pred_check
    _
  $region31: #{syn_model_forward.252} parent=0 // pred_check_branch
    %170 = sbr.rel (0) target = $region33
  $region32: #{syn_model_forward.252} parent=0 // pred_region
    _
  $region33: #{syn_model_forward.252} parent=0 // pred_fallthru
    _

// kernel: syn_model_forward.251
$region0: #{syn_model_forward.251}
  #allocation0 [shape = 'u32[]', space=smem, size = 0x4, offset = 0x4, fixed_abs, tag = 'smem constant byte address 0x4 - core index']
  #allocation1 [shape = 'u32[72,128]{1,0:T(1,128)}', space=vmem, size = 0x9000, scoped, tag = 'internal scratch']
  #allocation2 [shape = 'f32[32,128]{1,0:T(8,128)}', space=vmem, size = 0x4000, scoped, tag = 'scratch operand']
  %s0 = inlined_call_operand.vmem [shape: bf16[32,128], index: 0, kind: input, shape index: {}]
  %s1 = inlined_call_operand.vmem [shape: bf16[128,128], index: 1, kind: input, shape index: {}]
  %s2 = inlined_call_operand.vmem [shape: f32[1,128], index: 2, kind: input, shape index: {}]
  %s3 = inlined_call_operand.vmem [shape: f32[32,128], index: 3, kind: output, shape index: {}]
  %s4 = sld [smem:[#allocation0]]
  $region30: #{syn_model_forward.251} parent=0
    _
  %s6 = ssub.s32 1, %s4
  %s7 = scalar_select 0, %s6, %s4
  // Predicated region
  $region2: #{syn_model_forward.251} parent=0 // pred_check
    _
  $region3: #{syn_model_forward.251} parent=0 // pred_check_branch
    %9 = sbr.rel (0) target = $region5
  $region4: #{syn_model_forward.251} parent=0 // pred_region
    _
  $region5: #{syn_model_forward.251} parent=0 // pred_fallthru
    _
  // Predicated region
  $region6: #{syn_model_forward.251} parent=0 // pred_check
    _
  $region7: #{syn_model_forward.251} parent=0 // pred_check_branch
    %11 = sbr.rel (0) target = $region9
  $region8: #{syn_model_forward.251} parent=0 // pred_region
    _
  $region9: #{syn_model_forward.251} parent=0 // pred_fallthru
    _
  // Predicated region
  $region10: #{syn_model_forward.251} parent=0 // pred_check
    _
  $region11: #{syn_model_forward.251} parent=0 // pred_check_branch
    %13 = sbr.rel (0) target = $region13
  $region12: #{syn_model_forward.251} parent=0 // pred_region
    _
  $region13: #{syn_model_forward.251} parent=0 // pred_fallthru
    _
  %p14 = scmp.eq.s32.totalorder 0, 0
  // Predicated region
  $region14: #{syn_model_forward.251} parent=0 // pred_check
    %p15 = pneg %p14
  $region15: #{syn_model_forward.251} parent=0 // pred_check_branch
    %17 = sbr.rel (%p15) target = $region17
  $region16: #{syn_model_forward.251} parent=0 // pred_region
    %18 = vst [vmem:[#allocation2] sm:$0xff] 0.0
    %19 = vst [vmem:[#allocation2 + $0x8] sm:$0xff] 0.0
    %20 = vst [vmem:[#allocation2 + $0x10] sm:$0xff] 0.0
    %21 = vst [vmem:[#allocation2 + $0x18] sm:$0xff] 0.0
  $region17: #{syn_model_forward.251} parent=0 // pred_fallthru
    _
  %v22 = vld [vmem:[#allocation2] sm:$0xff]
  %v23 = vld [vmem:[#allocation2 + $0x8] sm:$0xff]
  %v24 = vld [vmem:[#allocation2 + $0x10] sm:$0xff]
  %v25 = vld [vmem:[#allocation2 + $0x18] sm:$0xff]
  %v26 = vld [vmem:[%s0] sm:$0xf]
  %v27 = vld [vmem:[%s0 + $0x4] sm:$0xf]
  %v28 = vld [vmem:[%s0 + $0x8] sm:$0xf]
  %v29 = vld [vmem:[%s0 + $0xc] sm:$0xf]
  %v30 = vld [vmem:[%s1] sm:$0xf]
  %v31 = vld [vmem:[%s1 + $0x4] sm:$0xf]
  %v32 = vld [vmem:[%s1 + $0x8] sm:$0xf]
  %v33 = vld [vmem:[%s1 + $0xc] sm:$0xf]
  %v34 = vld [vmem:[%s1 + $0x10] sm:$0xf]
  %v35 = vld [vmem:[%s1 + $0x14] sm:$0xf]
  %v36 = vld [vmem:[%s1 + $0x18] sm:$0xf]
  %v37 = vld [vmem:[%s1 + $0x1c] sm:$0xf]
  %v38 = vld [vmem:[%s1 + $0x20] sm:$0xf]
  %v39 = vld [vmem:[%s1 + $0x24] sm:$0xf]
  %v40 = vld [vmem:[%s1 + $0x28] sm:$0xf]
  %v41 = vld [vmem:[%s1 + $0x2c] sm:$0xf]
  %v42 = vld [vmem:[%s1 + $0x30] sm:$0xf]
  %v43 = vld [vmem:[%s1 + $0x34] sm:$0xf]
  %v44 = vld [vmem:[%s1 + $0x38] sm:$0xf]
  %v45 = vld [vmem:[%s1 + $0x3c] sm:$0xf]
  %v50 = vunpack.c.l.b16 %v26
  %v51 = vunpack.c.l.b16 %v27
  %v52 = vunpack.c.l.b16 %v28
  %v53 = vunpack.c.l.b16 %v29
  %v54 = vpack.c.b16 %v51, %v50
  %v55 = vpack.c.b16 %v53, %v52
  %v74 = vunpack.c.l.b16 %v30
  %v75 = vunpack.c.l.b16 %v31
  %v76 = vunpack.c.l.b16 %v32
  %v77 = vunpack.c.l.b16 %v33
  %v78 = vunpack.c.l.b16 %v34
  %v79 = vunpack.c.l.b16 %v35
  %v80 = vunpack.c.l.b16 %v36
  %v81 = vunpack.c.l.b16 %v37
  %v82 = vunpack.c.l.b16 %v38
  %v83 = vunpack.c.l.b16 %v39
  %v84 = vunpack.c.l.b16 %v40
  %v85 = vunpack.c.l.b16 %v41
  %v86 = vunpack.c.l.b16 %v42
  %v87 = vunpack.c.l.b16 %v43
  %v88 = vunpack.c.l.b16 %v44
  %v89 = vunpack.c.l.b16 %v45
  %v90 = vpack.c.b16 %v75, %v74
  %v91 = vpack.c.b16 %v77, %v76
  %v92 = vpack.c.b16 %v79, %v78
  %v93 = vpack.c.b16 %v81, %v80
  %v94 = vpack.c.b16 %v83, %v82
  %v95 = vpack.c.b16 %v85, %v84
  %v96 = vpack.c.b16 %v87, %v86
  %v97 = vpack.c.b16 %v89, %v88
  %106 = vmatpush.bf16.msra.mxu0 %v97
  %107 = vmatpush.bf16.msra.mxu0 %v96
  %108 = vmatpush.bf16.msra.mxu0 %v95
  %109 = vmatpush.bf16.msra.mxu0 %v94
  %110 = vmatpush.bf16.msra.mxu0 %v93
  %111 = vmatpush.bf16.msra.mxu0 %v92
  %112 = vmatpush.bf16.msra.mxu0 %v91
  %113 = vmatpush.bf16.msra.mxu0 %v90
  %114 = vmatmul.bf16.gmra.mxu0 %v54
  %v115 = vpop.f32.mrf.mxu0
  %v116 = vadd.f32 0.0, %v115
  %v117 = vpop.f32.mrf.mxu0
  %v118 = vadd.f32 0.0, %v117
  %119 = vmatmul.bf16.gmra.mxu0 %v55
  %v120 = vpop.f32.mrf.mxu0
  %v121 = vadd.f32 0.0, %v120
  %v122 = vpop.f32.mrf.mxu0
  %v123 = vadd.f32 0.0, %v122
  %124 = vdwg.mxu0
  %v125 = vadd.f32 %v22, %v116
  %v126 = vadd.f32 %v23, %v118
  %v127 = vadd.f32 %v24, %v121
  %v128 = vadd.f32 %v25, %v123
  %129 = vst [vmem:[#allocation2] sm:$0xff] %v125
  %130 = vst [vmem:[#allocation2 + $0x8] sm:$0xff] %v126
  %131 = vst [vmem:[#allocation2 + $0x10] sm:$0xff] %v127
  %132 = vst [vmem:[#allocation2 + $0x18] sm:$0xff] %v128
  // Predicated region
  $region18: #{syn_model_forward.251} parent=0 // pred_check
    %p133 = pneg %p14
  $region19: #{syn_model_forward.251} parent=0 // pred_check_branch
    %135 = sbr.rel (%p133) target = $region21
  $region20: #{syn_model_forward.251} parent=0 // pred_region
    %v136 = vld [vmem:[#allocation2] sm:$0xff]
    %v137 = vld [vmem:[#allocation2 + $0x8] sm:$0xff]
    %v138 = vld [vmem:[#allocation2 + $0x10] sm:$0xff]
    %v139 = vld [vmem:[#allocation2 + $0x18] sm:$0xff]
    %v140 = vld [vmem:[%s2] sm:$0x1]
    %v142 = vperm.slane %v140, 0
    %v144 = vadd.f32 %v136, %v142
    %v145 = vadd.f32 %v137, %v142
    %v146 = vadd.f32 %v138, %v142
    %v147 = vadd.f32 %v139, %v142
    %148 = vst [vmem:[%s3] sm:$0xff] %v144
    %149 = vst [vmem:[%s3 + $0x8] sm:$0xff] %v145
    %150 = vst [vmem:[%s3 + $0x10] sm:$0xff] %v146
    %151 = vst [vmem:[%s3 + $0x18] sm:$0xff] %v147
  $region21: #{syn_model_forward.251} parent=0 // pred_fallthru
    _
  // Predicated region
  $region22: #{syn_model_forward.251} parent=0 // pred_check
    _
  $region23: #{syn_model_forward.251} parent=0 // pred_check_branch
    %153 = sbr.rel (0) target = $region25
  $region24: #{syn_model_forward.251} parent=0 // pred_region
    _
  $region25: #{syn_model_forward.251} parent=0 // pred_fallthru
    _
  // Predicated region
  $region26: #{syn_model_forward.251} parent=0 // pred_check
    _
  $region27: #{syn_model_forward.251} parent=0 // pred_check_branch
    %155 = sbr.rel (0) target = $region29
  $region28: #{syn_model_forward.251} parent=0 // pred_region
    _
  $region29: #{syn_model_forward.251} parent=0 // pred_fallthru
    _

// kernel: syn_model_forward.364
$region0: #{syn_model_forward.364}
  #allocation0 [shape = 'u32[]', space=smem, size = 0x4, offset = 0x4, fixed_abs, tag = 'smem constant byte address 0x4 - core index']
  #allocation1 [shape = 'u32[72,128]{1,0:T(1,128)}', space=vmem, size = 0x9000, scoped, tag = 'internal scratch']
  #allocation2 [shape = 'f32[8,128]{1,0:T(8,128)}', space=vmem, size = 0x1000, scoped, tag = 'scratch operand']
  %s0 = inlined_call_operand.vmem [shape: bf16[8,256], index: 0, kind: input, shape index: {}]
  %s1 = inlined_call_operand.vmem [shape: bf16[256,128], index: 1, kind: input, shape index: {}]
  %s2 = inlined_call_operand.vmem [shape: f32[1,128], index: 2, kind: input, shape index: {}]
  %s3 = inlined_call_operand.vmem [shape: f32[8,128], index: 3, kind: output, shape index: {}]
  %s4 = sld [smem:[#allocation0]]
  $region30: #{syn_model_forward.364} parent=0
    _
  %s6 = ssub.s32 1, %s4
  %s7 = scalar_select 0, %s6, %s4
  // Predicated region
  $region2: #{syn_model_forward.364} parent=0 // pred_check
    _
  $region3: #{syn_model_forward.364} parent=0 // pred_check_branch
    %9 = sbr.rel (0) target = $region5
  $region4: #{syn_model_forward.364} parent=0 // pred_region
    _
  $region5: #{syn_model_forward.364} parent=0 // pred_fallthru
    _
  // Predicated region
  $region6: #{syn_model_forward.364} parent=0 // pred_check
    _
  $region7: #{syn_model_forward.364} parent=0 // pred_check_branch
    %11 = sbr.rel (0) target = $region9
  $region8: #{syn_model_forward.364} parent=0 // pred_region
    _
  $region9: #{syn_model_forward.364} parent=0 // pred_fallthru
    _
  // Predicated region
  $region10: #{syn_model_forward.364} parent=0 // pred_check
    _
  $region11: #{syn_model_forward.364} parent=0 // pred_check_branch
    %13 = sbr.rel (0) target = $region13
  $region12: #{syn_model_forward.364} parent=0 // pred_region
    _
  $region13: #{syn_model_forward.364} parent=0 // pred_fallthru
    _
  %p14 = scmp.eq.s32.totalorder 0, 0
  // Predicated region
  $region14: #{syn_model_forward.364} parent=0 // pred_check
    %p15 = pneg %p14
  $region15: #{syn_model_forward.364} parent=0 // pred_check_branch
    %17 = sbr.rel (%p15) target = $region17
  $region16: #{syn_model_forward.364} parent=0 // pred_region
    %18 = vst [vmem:[#allocation2] sm:$0xff] 0.0
  $region17: #{syn_model_forward.364} parent=0 // pred_fallthru
    _
  %v19 = vld [vmem:[#allocation2] sm:$0xff]
  %v20 = vld [vmem:[%s0] sm:$0xff]
  %v21 = vld [vmem:[%s1] sm:$0xf]
  %v22 = vld [vmem:[%s1 + $0x4] sm:$0xf]
  %v23 = vld [vmem:[%s1 + $0x8] sm:$0xf]
  %v24 = vld [vmem:[%s1 + $0xc] sm:$0xf]
  %v25 = vld [vmem:[%s1 + $0x10] sm:$0xf]
  %v26 = vld [vmem:[%s1 + $0x14] sm:$0xf]
  %v27 = vld [vmem:[%s1 + $0x18] sm:$0xf]
  %v28 = vld [vmem:[%s1 + $0x1c] sm:$0xf]
  %v29 = vld [vmem:[%s1 + $0x20] sm:$0xf]
  %v30 = vld [vmem:[%s1 + $0x24] sm:$0xf]
  %v31 = vld [vmem:[%s1 + $0x28] sm:$0xf]
  %v32 = vld [vmem:[%s1 + $0x2c] sm:$0xf]
  %v33 = vld [vmem:[%s1 + $0x30] sm:$0xf]
  %v34 = vld [vmem:[%s1 + $0x34] sm:$0xf]
  %v35 = vld [vmem:[%s1 + $0x38] sm:$0xf]
  %v36 = vld [vmem:[%s1 + $0x3c] sm:$0xf]
  %v37 = vld [vmem:[%s1 + $0x40] sm:$0xf]
  %v38 = vld [vmem:[%s1 + $0x44] sm:$0xf]
  %v39 = vld [vmem:[%s1 + $0x48] sm:$0xf]
  %v40 = vld [vmem:[%s1 + $0x4c] sm:$0xf]
  %v41 = vld [vmem:[%s1 + $0x50] sm:$0xf]
  %v42 = vld [vmem:[%s1 + $0x54] sm:$0xf]
  %v43 = vld [vmem:[%s1 + $0x58] sm:$0xf]
  %v44 = vld [vmem:[%s1 + $0x5c] sm:$0xf]
  %v45 = vld [vmem:[%s1 + $0x60] sm:$0xf]
  %v46 = vld [vmem:[%s1 + $0x64] sm:$0xf]
  %v47 = vld [vmem:[%s1 + $0x68] sm:$0xf]
  %v48 = vld [vmem:[%s1 + $0x6c] sm:$0xf]
  %v49 = vld [vmem:[%s1 + $0x70] sm:$0xf]
  %v50 = vld [vmem:[%s1 + $0x74] sm:$0xf]
  %v51 = vld [vmem:[%s1 + $0x78] sm:$0xf]
  %v52 = vld [vmem:[%s1 + $0x7c] sm:$0xf]
  %v54 = vunpack.c.l.b16 %v20
  %v55 = vunpack.c.h.b16 %v20
  %v56 = vpack.c.b16 %v54, %v54
  %v57 = vpack.c.b16 %v55, %v55
  %v92 = vunpack.c.l.b16 %v21
  %v93 = vunpack.c.l.b16 %v22
  %v94 = vunpack.c.l.b16 %v23
  %v95 = vunpack.c.l.b16 %v24
  %v96 = vunpack.c.l.b16 %v25
  %v97 = vunpack.c.l.b16 %v26
  %v98 = vunpack.c.l.b16 %v27
  %v99 = vunpack.c.l.b16 %v28
  %v100 = vunpack.c.l.b16 %v29
  %v101 = vunpack.c.l.b16 %v30
  %v102 = vunpack.c.l.b16 %v31
  %v103 = vunpack.c.l.b16 %v32
  %v104 = vunpack.c.l.b16 %v33
  %v105 = vunpack.c.l.b16 %v34
  %v106 = vunpack.c.l.b16 %v35
  %v107 = vunpack.c.l.b16 %v36
  %v108 = vunpack.c.l.b16 %v37
  %v109 = vunpack.c.l.b16 %v38
  %v110 = vunpack.c.l.b16 %v39
  %v111 = vunpack.c.l.b16 %v40
  %v112 = vunpack.c.l.b16 %v41
  %v113 = vunpack.c.l.b16 %v42
  %v114 = vunpack.c.l.b16 %v43
  %v115 = vunpack.c.l.b16 %v44
  %v116 = vunpack.c.l.b16 %v45
  %v117 = vunpack.c.l.b16 %v46
  %v118 = vunpack.c.l.b16 %v47
  %v119 = vunpack.c.l.b16 %v48
  %v120 = vunpack.c.l.b16 %v49
  %v121 = vunpack.c.l.b16 %v50
  %v122 = vunpack.c.l.b16 %v51
  %v123 = vunpack.c.l.b16 %v52
  %v124 = vpack.c.b16 %v93, %v92
  %v125 = vpack.c.b16 %v95, %v94
  %v126 = vpack.c.b16 %v97, %v96
  %v127 = vpack.c.b16 %v99, %v98
  %v128 = vpack.c.b16 %v101, %v100
  %v129 = vpack.c.b16 %v103, %v102
  %v130 = vpack.c.b16 %v105, %v104
  %v131 = vpack.c.b16 %v107, %v106
  %v132 = vpack.c.b16 %v109, %v108
  %v133 = vpack.c.b16 %v111, %v110
  %v134 = vpack.c.b16 %v113, %v112
  %v135 = vpack.c.b16 %v115, %v114
  %v136 = vpack.c.b16 %v117, %v116
  %v137 = vpack.c.b16 %v119, %v118
  %v138 = vpack.c.b16 %v121, %v120
  %v139 = vpack.c.b16 %v123, %v122
  %156 = vmatpush.bf16.msra.mxu0 %v131
  %157 = vmatpush.bf16.msra.mxu0 %v130
  %158 = vmatpush.bf16.msra.mxu0 %v129
  %159 = vmatpush.bf16.msra.mxu0 %v128
  %160 = vmatpush.bf16.msra.mxu0 %v127
  %161 = vmatpush.bf16.msra.mxu0 %v126
  %162 = vmatpush.bf16.msra.mxu0 %v125
  %163 = vmatpush.bf16.msra.mxu0 %v124
  %164 = vmatmul.bf16.gmra.mxu0 %v56
  %v165 = vpop.f32.mrf.mxu0
  %v166 = vadd.f32 0.0, %v165
  %v167 = vpop.f32.mrf.mxu0
  %168 = vdwg.mxu0
  %169 = vmatpush.bf16.msra.mxu0 %v139
  %170 = vmatpush.bf16.msra.mxu0 %v138
  %171 = vmatpush.bf16.msra.mxu0 %v137
  %172 = vmatpush.bf16.msra.mxu0 %v136
  %173 = vmatpush.bf16.msra.mxu0 %v135
  %174 = vmatpush.bf16.msra.mxu0 %v134
  %175 = vmatpush.bf16.msra.mxu0 %v133
  %176 = vmatpush.bf16.msra.mxu0 %v132
  %177 = vmatmul.bf16.gmra.mxu0 %v57
  %v178 = vpop.f32.mrf.mxu0
  %v179 = vadd.f32 %v166, %v178
  %v180 = vpop.f32.mrf.mxu0
  %181 = vdwg.mxu0
  %v182 = vadd.f32 %v19, %v179
  %183 = vst [vmem:[#allocation2] sm:$0xff] %v182
  // Predicated region
  $region18: #{syn_model_forward.364} parent=0 // pred_check
    %p184 = pneg %p14
  $region19: #{syn_model_forward.364} parent=0 // pred_check_branch
    %186 = sbr.rel (%p184) target = $region21
  $region20: #{syn_model_forward.364} parent=0 // pred_region
    %v187 = vld [vmem:[#allocation2] sm:$0xff]
    %v188 = vld [vmem:[%s2] sm:$0x1]
    %v190 = vperm.slane %v188, 0
    %v192 = vadd.f32 %v187, %v190
    %v193 = vmax.f32 %v192, 0.0
    %194 = vst [vmem:[%s3] sm:$0xff] %v193
  $region21: #{syn_model_forward.364} parent=0 // pred_fallthru
    _
  // Predicated region
  $region22: #{syn_model_forward.364} parent=0 // pred_check
    _
  $region23: #{syn_model_forward.364} parent=0 // pred_check_branch
    %196 = sbr.rel (0) target = $region25
  $region24: #{syn_model_forward.364} parent=0 // pred_region
    _
  $region25: #{syn_model_forward.364} parent=0 // pred_fallthru
    _
  // Predicated region
  $region26: #{syn_model_forward.364} parent=0 // pred_check
    _
  $region27: #{syn_model_forward.364} parent=0 // pred_check_branch
    %198 = sbr.rel (0) target = $region29
  $region28: #{syn_model_forward.364} parent=0 // pred_region
    _
  $region29: #{syn_model_forward.364} parent=0 // pred_fallthru
    _

// kernel: syn_model_forward.368
$region0: #{syn_model_forward.368}
  #allocation0 [shape = 'u32[]', space=smem, size = 0x4, offset = 0x4, fixed_abs, tag = 'smem constant byte address 0x4 - core index']
  #allocation1 [shape = 'u32[72,128]{1,0:T(1,128)}', space=vmem, size = 0x9000, scoped, tag = 'internal scratch']
  #allocation2 [shape = 'f32[8,128]{1,0:T(8,128)}', space=vmem, size = 0x1000, scoped, tag = 'scratch operand']
  %s0 = inlined_call_operand.vmem [shape: bf16[8,128], index: 0, kind: input, shape index: {}]
  %s1 = inlined_call_operand.vmem [shape: bf16[128,128], index: 1, kind: input, shape index: {}]
  %s2 = inlined_call_operand.vmem [shape: f32[1,128], index: 2, kind: input, shape index: {}]
  %s3 = inlined_call_operand.vmem [shape: f32[8,128], index: 3, kind: input, shape index: {}]
  %s4 = inlined_call_operand.vmem [shape: f32[8,128], index: 4, kind: output, shape index: {}]
  %s5 = sld [smem:[#allocation0]]
  $region34: #{syn_model_forward.368} parent=0
    _
  %s7 = ssub.s32 1, %s5
  %s8 = scalar_select 0, %s7, %s5
  // Predicated region
  $region2: #{syn_model_forward.368} parent=0 // pred_check
    _
  $region3: #{syn_model_forward.368} parent=0 // pred_check_branch
    %10 = sbr.rel (0) target = $region5
  $region4: #{syn_model_forward.368} parent=0 // pred_region
    _
  $region5: #{syn_model_forward.368} parent=0 // pred_fallthru
    _
  // Predicated region
  $region6: #{syn_model_forward.368} parent=0 // pred_check
    _
  $region7: #{syn_model_forward.368} parent=0 // pred_check_branch
    %12 = sbr.rel (0) target = $region9
  $region8: #{syn_model_forward.368} parent=0 // pred_region
    _
  $region9: #{syn_model_forward.368} parent=0 // pred_fallthru
    _
  // Predicated region
  $region10: #{syn_model_forward.368} parent=0 // pred_check
    _
  $region11: #{syn_model_forward.368} parent=0 // pred_check_branch
    %14 = sbr.rel (0) target = $region13
  $region12: #{syn_model_forward.368} parent=0 // pred_region
    _
  $region13: #{syn_model_forward.368} parent=0 // pred_fallthru
    _
  // Predicated region
  $region14: #{syn_model_forward.368} parent=0 // pred_check
    _
  $region15: #{syn_model_forward.368} parent=0 // pred_check_branch
    %16 = sbr.rel (0) target = $region17
  $region16: #{syn_model_forward.368} parent=0 // pred_region
    _
  $region17: #{syn_model_forward.368} parent=0 // pred_fallthru
    _
  %p17 = scmp.eq.s32.totalorder 0, 0
  // Predicated region
  $region18: #{syn_model_forward.368} parent=0 // pred_check
    %p18 = pneg %p17
  $region19: #{syn_model_forward.368} parent=0 // pred_check_branch
    %20 = sbr.rel (%p18) target = $region21
  $region20: #{syn_model_forward.368} parent=0 // pred_region
    %21 = vst [vmem:[#allocation2] sm:$0xff] 0.0
  $region21: #{syn_model_forward.368} parent=0 // pred_fallthru
    _
  %v22 = vld [vmem:[#allocation2] sm:$0xff]
  %v23 = vld [vmem:[%s0] sm:$0xf]
  %v24 = vld [vmem:[%s1] sm:$0xf]
  %v25 = vld [vmem:[%s1 + $0x4] sm:$0xf]
  %v26 = vld [vmem:[%s1 + $0x8] sm:$0xf]
  %v27 = vld [vmem:[%s1 + $0xc] sm:$0xf]
  %v28 = vld [vmem:[%s1 + $0x10] sm:$0xf]
  %v29 = vld [vmem:[%s1 + $0x14] sm:$0xf]
  %v30 = vld [vmem:[%s1 + $0x18] sm:$0xf]
  %v31 = vld [vmem:[%s1 + $0x1c] sm:$0xf]
  %v32 = vld [vmem:[%s1 + $0x20] sm:$0xf]
  %v33 = vld [vmem:[%s1 + $0x24] sm:$0xf]
  %v34 = vld [vmem:[%s1 + $0x28] sm:$0xf]
  %v35 = vld [vmem:[%s1 + $0x2c] sm:$0xf]
  %v36 = vld [vmem:[%s1 + $0x30] sm:$0xf]
  %v37 = vld [vmem:[%s1 + $0x34] sm:$0xf]
  %v38 = vld [vmem:[%s1 + $0x38] sm:$0xf]
  %v39 = vld [vmem:[%s1 + $0x3c] sm:$0xf]
  %v56 = vunpack.c.l.b16 %v24
  %v57 = vunpack.c.l.b16 %v25
  %v58 = vunpack.c.l.b16 %v26
  %v59 = vunpack.c.l.b16 %v27
  %v60 = vunpack.c.l.b16 %v28
  %v61 = vunpack.c.l.b16 %v29
  %v62 = vunpack.c.l.b16 %v30
  %v63 = vunpack.c.l.b16 %v31
  %v64 = vunpack.c.l.b16 %v32
  %v65 = vunpack.c.l.b16 %v33
  %v66 = vunpack.c.l.b16 %v34
  %v67 = vunpack.c.l.b16 %v35
  %v68 = vunpack.c.l.b16 %v36
  %v69 = vunpack.c.l.b16 %v37
  %v70 = vunpack.c.l.b16 %v38
  %v71 = vunpack.c.l.b16 %v39
  %v72 = vpack.c.b16 %v57, %v56
  %v73 = vpack.c.b16 %v59, %v58
  %v74 = vpack.c.b16 %v61, %v60
  %v75 = vpack.c.b16 %v63, %v62
  %v76 = vpack.c.b16 %v65, %v64
  %v77 = vpack.c.b16 %v67, %v66
  %v78 = vpack.c.b16 %v69, %v68
  %v79 = vpack.c.b16 %v71, %v70
  %88 = vmatpush.bf16.msra.mxu0 %v79
  %89 = vmatpush.bf16.msra.mxu0 %v78
  %90 = vmatpush.bf16.msra.mxu0 %v77
  %91 = vmatpush.bf16.msra.mxu0 %v76
  %92 = vmatpush.bf16.msra.mxu0 %v75
  %93 = vmatpush.bf16.msra.mxu0 %v74
  %94 = vmatpush.bf16.msra.mxu0 %v73
  %95 = vmatpush.bf16.msra.mxu0 %v72
  %96 = vmatmul.bf16.gmra.mxu0 %v23
  %v97 = vpop.f32.mrf.mxu0
  %v98 = vadd.f32 0.0, %v97
  %v99 = vpop.f32.mrf.mxu0
  %100 = vdwg.mxu0
  %v101 = vadd.f32 %v22, %v98
  %102 = vst [vmem:[#allocation2] sm:$0xff] %v101
  // Predicated region
  $region22: #{syn_model_forward.368} parent=0 // pred_check
    %p103 = pneg %p17
  $region23: #{syn_model_forward.368} parent=0 // pred_check_branch
    %105 = sbr.rel (%p103) target = $region25
  $region24: #{syn_model_forward.368} parent=0 // pred_region
    %v106 = vld [vmem:[#allocation2] sm:$0xff]
    %v107 = vld [vmem:[%s2] sm:$0x1]
    %v109 = vperm.slane %v107, 0
    %v111 = vadd.f32 %v106, %v109
    %v112 = vld [vmem:[%s3] sm:$0xff]
    %v113 = vadd.f32 %v111, %v112
    %v114 = vmax.f32 %v113, 0.0
    %115 = vst [vmem:[%s4] sm:$0xff] %v114
  $region25: #{syn_model_forward.368} parent=0 // pred_fallthru
    _
  // Predicated region
  $region26: #{syn_model_forward.368} parent=0 // pred_check
    _
  $region27: #{syn_model_forward.368} parent=0 // pred_check_branch
    %117 = sbr.rel (0) target = $region29
  $region28: #{syn_model_forward.368} parent=0 // pred_region
    _
  $region29: #{syn_model_forward.368} parent=0 // pred_fallthru
    _
  // Predicated region
  $region30: #{syn_model_forward.368} parent=0 // pred_check
    _
  $region31: #{syn_model_forward.368} parent=0 // pred_check_branch
    %119 = sbr.rel (0) target = $region33
  $region32: #{syn_model_forward.368} parent=0 // pred_region
    _
  $region33: #{syn_model_forward.368} parent=0 // pred_fallthru
    _

// kernel: syn_model_forward.367
$region0: #{syn_model_forward.367}
  #allocation0 [shape = 'u32[]', space=smem, size = 0x4, offset = 0x4, fixed_abs, tag = 'smem constant byte address 0x4 - core index']
  #allocation1 [shape = 'u32[72,128]{1,0:T(1,128)}', space=vmem, size = 0x9000, scoped, tag = 'internal scratch']
  #allocation2 [shape = 'f32[8,128]{1,0:T(8,128)}', space=vmem, size = 0x1000, scoped, tag = 'scratch operand']
  %s0 = inlined_call_operand.vmem [shape: bf16[8,128], index: 0, kind: input, shape index: {}]
  %s1 = inlined_call_operand.vmem [shape: bf16[128,128], index: 1, kind: input, shape index: {}]
  %s2 = inlined_call_operand.vmem [shape: f32[1,128], index: 2, kind: input, shape index: {}]
  %s3 = inlined_call_operand.vmem [shape: f32[8,128], index: 3, kind: output, shape index: {}]
  %s4 = sld [smem:[#allocation0]]
  $region30: #{syn_model_forward.367} parent=0
    _
  %s6 = ssub.s32 1, %s4
  %s7 = scalar_select 0, %s6, %s4
  // Predicated region
  $region2: #{syn_model_forward.367} parent=0 // pred_check
    _
  $region3: #{syn_model_forward.367} parent=0 // pred_check_branch
    %9 = sbr.rel (0) target = $region5
  $region4: #{syn_model_forward.367} parent=0 // pred_region
    _
  $region5: #{syn_model_forward.367} parent=0 // pred_fallthru
    _
  // Predicated region
  $region6: #{syn_model_forward.367} parent=0 // pred_check
    _
  $region7: #{syn_model_forward.367} parent=0 // pred_check_branch
    %11 = sbr.rel (0) target = $region9
  $region8: #{syn_model_forward.367} parent=0 // pred_region
    _
  $region9: #{syn_model_forward.367} parent=0 // pred_fallthru
    _
  // Predicated region
  $region10: #{syn_model_forward.367} parent=0 // pred_check
    _
  $region11: #{syn_model_forward.367} parent=0 // pred_check_branch
    %13 = sbr.rel (0) target = $region13
  $region12: #{syn_model_forward.367} parent=0 // pred_region
    _
  $region13: #{syn_model_forward.367} parent=0 // pred_fallthru
    _
  %p14 = scmp.eq.s32.totalorder 0, 0
  // Predicated region
  $region14: #{syn_model_forward.367} parent=0 // pred_check
    %p15 = pneg %p14
  $region15: #{syn_model_forward.367} parent=0 // pred_check_branch
    %17 = sbr.rel (%p15) target = $region17
  $region16: #{syn_model_forward.367} parent=0 // pred_region
    %18 = vst [vmem:[#allocation2] sm:$0xff] 0.0
  $region17: #{syn_model_forward.367} parent=0 // pred_fallthru
    _
  %v19 = vld [vmem:[#allocation2] sm:$0xff]
  %v20 = vld [vmem:[%s0] sm:$0xf]
  %v21 = vld [vmem:[%s1] sm:$0xf]
  %v22 = vld [vmem:[%s1 + $0x4] sm:$0xf]
  %v23 = vld [vmem:[%s1 + $0x8] sm:$0xf]
  %v24 = vld [vmem:[%s1 + $0xc] sm:$0xf]
  %v25 = vld [vmem:[%s1 + $0x10] sm:$0xf]
  %v26 = vld [vmem:[%s1 + $0x14] sm:$0xf]
  %v27 = vld [vmem:[%s1 + $0x18] sm:$0xf]
  %v28 = vld [vmem:[%s1 + $0x1c] sm:$0xf]
  %v29 = vld [vmem:[%s1 + $0x20] sm:$0xf]
  %v30 = vld [vmem:[%s1 + $0x24] sm:$0xf]
  %v31 = vld [vmem:[%s1 + $0x28] sm:$0xf]
  %v32 = vld [vmem:[%s1 + $0x2c] sm:$0xf]
  %v33 = vld [vmem:[%s1 + $0x30] sm:$0xf]
  %v34 = vld [vmem:[%s1 + $0x34] sm:$0xf]
  %v35 = vld [vmem:[%s1 + $0x38] sm:$0xf]
  %v36 = vld [vmem:[%s1 + $0x3c] sm:$0xf]
  %v53 = vunpack.c.l.b16 %v21
  %v54 = vunpack.c.l.b16 %v22
  %v55 = vunpack.c.l.b16 %v23
  %v56 = vunpack.c.l.b16 %v24
  %v57 = vunpack.c.l.b16 %v25
  %v58 = vunpack.c.l.b16 %v26
  %v59 = vunpack.c.l.b16 %v27
  %v60 = vunpack.c.l.b16 %v28
  %v61 = vunpack.c.l.b16 %v29
  %v62 = vunpack.c.l.b16 %v30
  %v63 = vunpack.c.l.b16 %v31
  %v64 = vunpack.c.l.b16 %v32
  %v65 = vunpack.c.l.b16 %v33
  %v66 = vunpack.c.l.b16 %v34
  %v67 = vunpack.c.l.b16 %v35
  %v68 = vunpack.c.l.b16 %v36
  %v69 = vpack.c.b16 %v54, %v53
  %v70 = vpack.c.b16 %v56, %v55
  %v71 = vpack.c.b16 %v58, %v57
  %v72 = vpack.c.b16 %v60, %v59
  %v73 = vpack.c.b16 %v62, %v61
  %v74 = vpack.c.b16 %v64, %v63
  %v75 = vpack.c.b16 %v66, %v65
  %v76 = vpack.c.b16 %v68, %v67
  %85 = vmatpush.bf16.msra.mxu0 %v76
  %86 = vmatpush.bf16.msra.mxu0 %v75
  %87 = vmatpush.bf16.msra.mxu0 %v74
  %88 = vmatpush.bf16.msra.mxu0 %v73
  %89 = vmatpush.bf16.msra.mxu0 %v72
  %90 = vmatpush.bf16.msra.mxu0 %v71
  %91 = vmatpush.bf16.msra.mxu0 %v70
  %92 = vmatpush.bf16.msra.mxu0 %v69
  %93 = vmatmul.bf16.gmra.mxu0 %v20
  %v94 = vpop.f32.mrf.mxu0
  %v95 = vadd.f32 0.0, %v94
  %v96 = vpop.f32.mrf.mxu0
  %97 = vdwg.mxu0
  %v98 = vadd.f32 %v19, %v95
  %99 = vst [vmem:[#allocation2] sm:$0xff] %v98
  // Predicated region
  $region18: #{syn_model_forward.367} parent=0 // pred_check
    %p100 = pneg %p14
  $region19: #{syn_model_forward.367} parent=0 // pred_check_branch
    %102 = sbr.rel (%p100) target = $region21
  $region20: #{syn_model_forward.367} parent=0 // pred_region
    %v103 = vld [vmem:[#allocation2] sm:$0xff]
    %v104 = vld [vmem:[%s2] sm:$0x1]
    %v106 = vperm.slane %v104, 0
    %v108 = vadd.f32 %v103, %v106
    %109 = vst [vmem:[%s3] sm:$0xff] %v108
  $region21: #{syn_model_forward.367} parent=0 // pred_fallthru
    _
  // Predicated region
  $region22: #{syn_model_forward.367} parent=0 // pred_check
    _
  $region23: #{syn_model_forward.367} parent=0 // pred_check_branch
    %111 = sbr.rel (0) target = $region25
  $region24: #{syn_model_forward.367} parent=0 // pred_region
    _
  $region25: #{syn_model_forward.367} parent=0 // pred_fallthru
    _
  // Predicated region
  $region26: #{syn_model_forward.367} parent=0 // pred_check
    _
  $region27: #{syn_model_forward.367} parent=0 // pred_check_branch
    %113 = sbr.rel (0) target = $region29
  $region28: #{syn_model_forward.367} parent=0 // pred_region
    _
  $region29: #{syn_model_forward.367} parent=0 // pred_fallthru
    _

// kernel: syn_model_forward.369
$region0: #{syn_model_forward.369}
  #allocation0 [shape = 'u32[]', space=smem, size = 0x4, offset = 0x4, fixed_abs, tag = 'smem constant byte address 0x4 - core index']
  #allocation1 [shape = 'u32[72,128]{1,0:T(1,128)}', space=vmem, size = 0x9000, scoped, tag = 'internal scratch']
  #allocation2 [shape = 'f32[8,128]{1,0:T(8,128)}', space=vmem, size = 0x1000, scoped, tag = 'scratch operand']
  %s0 = inlined_call_operand.vmem [shape: bf16[8,128], index: 0, kind: input, shape index: {}]
  %s1 = inlined_call_operand.vmem [shape: bf16[128,128], index: 1, kind: input, shape index: {}]
  %s2 = inlined_call_operand.vmem [shape: f32[1,128], index: 2, kind: input, shape index: {}]
  %s3 = inlined_call_operand.vmem [shape: f32[8,128], index: 3, kind: output, shape index: {}]
  %s4 = sld [smem:[#allocation0]]
  $region30: #{syn_model_forward.369} parent=0
    _
  %s6 = ssub.s32 1, %s4
  %s7 = scalar_select 0, %s6, %s4
  // Predicated region
  $region2: #{syn_model_forward.369} parent=0 // pred_check
    _
  $region3: #{syn_model_forward.369} parent=0 // pred_check_branch
    %9 = sbr.rel (0) target = $region5
  $region4: #{syn_model_forward.369} parent=0 // pred_region
    _
  $region5: #{syn_model_forward.369} parent=0 // pred_fallthru
    _
  // Predicated region
  $region6: #{syn_model_forward.369} parent=0 // pred_check
    _
  $region7: #{syn_model_forward.369} parent=0 // pred_check_branch
    %11 = sbr.rel (0) target = $region9
  $region8: #{syn_model_forward.369} parent=0 // pred_region
    _
  $region9: #{syn_model_forward.369} parent=0 // pred_fallthru
    _
  // Predicated region
  $region10: #{syn_model_forward.369} parent=0 // pred_check
    _
  $region11: #{syn_model_forward.369} parent=0 // pred_check_branch
    %13 = sbr.rel (0) target = $region13
  $region12: #{syn_model_forward.369} parent=0 // pred_region
    _
  $region13: #{syn_model_forward.369} parent=0 // pred_fallthru
    _
  %p14 = scmp.eq.s32.totalorder 0, 0
  // Predicated region
  $region14: #{syn_model_forward.369} parent=0 // pred_check
    %p15 = pneg %p14
  $region15: #{syn_model_forward.369} parent=0 // pred_check_branch
    %17 = sbr.rel (%p15) target = $region17
  $region16: #{syn_model_forward.369} parent=0 // pred_region
    %18 = vst [vmem:[#allocation2] sm:$0xff] 0.0
  $region17: #{syn_model_forward.369} parent=0 // pred_fallthru
    _
  %v19 = vld [vmem:[#allocation2] sm:$0xff]
  %v20 = vld [vmem:[%s0] sm:$0xf]
  %v21 = vld [vmem:[%s1] sm:$0xf]
  %v22 = vld [vmem:[%s1 + $0x4] sm:$0xf]
  %v23 = vld [vmem:[%s1 + $0x8] sm:$0xf]
  %v24 = vld [vmem:[%s1 + $0xc] sm:$0xf]
  %v25 = vld [vmem:[%s1 + $0x10] sm:$0xf]
  %v26 = vld [vmem:[%s1 + $0x14] sm:$0xf]
  %v27 = vld [vmem:[%s1 + $0x18] sm:$0xf]
  %v28 = vld [vmem:[%s1 + $0x1c] sm:$0xf]
  %v29 = vld [vmem:[%s1 + $0x20] sm:$0xf]
  %v30 = vld [vmem:[%s1 + $0x24] sm:$0xf]
  %v31 = vld [vmem:[%s1 + $0x28] sm:$0xf]
  %v32 = vld [vmem:[%s1 + $0x2c] sm:$0xf]
  %v33 = vld [vmem:[%s1 + $0x30] sm:$0xf]
  %v34 = vld [vmem:[%s1 + $0x34] sm:$0xf]
  %v35 = vld [vmem:[%s1 + $0x38] sm:$0xf]
  %v36 = vld [vmem:[%s1 + $0x3c] sm:$0xf]
  %v53 = vunpack.c.l.b16 %v21
  %v54 = vunpack.c.l.b16 %v22
  %v55 = vunpack.c.l.b16 %v23
  %v56 = vunpack.c.l.b16 %v24
  %v57 = vunpack.c.l.b16 %v25
  %v58 = vunpack.c.l.b16 %v26
  %v59 = vunpack.c.l.b16 %v27
  %v60 = vunpack.c.l.b16 %v28
  %v61 = vunpack.c.l.b16 %v29
  %v62 = vunpack.c.l.b16 %v30
  %v63 = vunpack.c.l.b16 %v31
  %v64 = vunpack.c.l.b16 %v32
  %v65 = vunpack.c.l.b16 %v33
  %v66 = vunpack.c.l.b16 %v34
  %v67 = vunpack.c.l.b16 %v35
  %v68 = vunpack.c.l.b16 %v36
  %v69 = vpack.c.b16 %v54, %v53
  %v70 = vpack.c.b16 %v56, %v55
  %v71 = vpack.c.b16 %v58, %v57
  %v72 = vpack.c.b16 %v60, %v59
  %v73 = vpack.c.b16 %v62, %v61
  %v74 = vpack.c.b16 %v64, %v63
  %v75 = vpack.c.b16 %v66, %v65
  %v76 = vpack.c.b16 %v68, %v67
  %85 = vmatpush.bf16.msra.mxu0 %v76
  %86 = vmatpush.bf16.msra.mxu0 %v75
  %87 = vmatpush.bf16.msra.mxu0 %v74
  %88 = vmatpush.bf16.msra.mxu0 %v73
  %89 = vmatpush.bf16.msra.mxu0 %v72
  %90 = vmatpush.bf16.msra.mxu0 %v71
  %91 = vmatpush.bf16.msra.mxu0 %v70
  %92 = vmatpush.bf16.msra.mxu0 %v69
  %93 = vmatmul.bf16.gmra.mxu0 %v20
  %v94 = vpop.f32.mrf.mxu0
  %v95 = vadd.f32 0.0, %v94
  %v96 = vpop.f32.mrf.mxu0
  %97 = vdwg.mxu0
  %v98 = vadd.f32 %v19, %v95
  %99 = vst [vmem:[#allocation2] sm:$0xff] %v98
  // Predicated region
  $region18: #{syn_model_forward.369} parent=0 // pred_check
    %p100 = pneg %p14
  $region19: #{syn_model_forward.369} parent=0 // pred_check_branch
    %102 = sbr.rel (%p100) target = $region21
  $region20: #{syn_model_forward.369} parent=0 // pred_region
    %v103 = vld [vmem:[#allocation2] sm:$0xff]
    %v104 = vld [vmem:[%s2] sm:$0x1]
    %v106 = vperm.slane %v104, 0
    %v108 = vadd.f32 %v103, %v106
    %v109 = vmax.f32 %v108, 0.0
    %110 = vst [vmem:[%s3] sm:$0xff] %v109
  $region21: #{syn_model_forward.369} parent=0 // pred_fallthru
    _
  // Predicated region
  $region22: #{syn_model_forward.369} parent=0 // pred_check
    _
  $region23: #{syn_model_forward.369} parent=0 // pred_check_branch
    %112 = sbr.rel (0) target = $region25
  $region24: #{syn_model_forward.369} parent=0 // pred_region
    _
  $region25: #{syn_model_forward.369} parent=0 // pred_fallthru
    _
  // Predicated region
  $region26: #{syn_model_forward.369} parent=0 // pred_check
    _
  $region27: #{syn_model_forward.369} parent=0 // pred_check_branch
    %114 = sbr.rel (0) target = $region29
  $region28: #{syn_model_forward.369} parent=0 // pred_region
    _
  $region29: #{syn_model_forward.369} parent=0 // pred_fallthru
    _

// kernel: syn_model_forward.381
$region0: #{syn_model_forward.381}
  #allocation0 [shape = 'u32[]', space=smem, size = 0x4, offset = 0x4, fixed_abs, tag = 'smem constant byte address 0x4 - core index']
  #allocation1 [shape = 'u32[72,128]{1,0:T(1,128)}', space=vmem, size = 0x9000, scoped, tag = 'internal scratch']
  #allocation2 [shape = 'f32[512,128]{1,0:T(8,128)}', space=vmem, size = 0x40000, scoped, tag = 'scratch operand']
  %s0 = inlined_call_operand.vmem [shape: bf16[512,384], index: 0, kind: input, shape index: {}]
  %s1 = inlined_call_operand.vmem [shape: bf16[384,128], index: 1, kind: input, shape index: {}]
  %s2 = inlined_call_operand.vmem [shape: f32[1,128], index: 2, kind: input, shape index: {}]
  %s3 = inlined_call_operand.vmem [shape: f32[512,128], index: 3, kind: output, shape index: {}]
  %s4 = sld [smem:[#allocation0]]
  $region30: #{syn_model_forward.381} parent=0
    _
  %s6 = ssub.s32 1, %s4
  %s7 = scalar_select 0, %s6, %s4
  // Predicated region
  $region2: #{syn_model_forward.381} parent=0 // pred_check
    _
  $region3: #{syn_model_forward.381} parent=0 // pred_check_branch
    %9 = sbr.rel (0) target = $region5
  $region4: #{syn_model_forward.381} parent=0 // pred_region
    _
  $region5: #{syn_model_forward.381} parent=0 // pred_fallthru
    _
  // Predicated region
  $region6: #{syn_model_forward.381} parent=0 // pred_check
    _
  $region7: #{syn_model_forward.381} parent=0 // pred_check_branch
    %11 = sbr.rel (0) target = $region9
  $region8: #{syn_model_forward.381} parent=0 // pred_region
    _
  $region9: #{syn_model_forward.381} parent=0 // pred_fallthru
    _
  // Predicated region
  $region10: #{syn_model_forward.381} parent=0 // pred_check
    _
  $region11: #{syn_model_forward.381} parent=0 // pred_check_branch
    %13 = sbr.rel (0) target = $region13
  $region12: #{syn_model_forward.381} parent=0 // pred_region
    _
  $region13: #{syn_model_forward.381} parent=0 // pred_fallthru
    _
  %p14 = scmp.eq.s32.totalorder 0, 0
  // Predicated region
  $region14: #{syn_model_forward.381} parent=0 // pred_check
    %p15 = pneg %p14
  $region15: #{syn_model_forward.381} parent=0 // pred_check_branch
    %17 = sbr.rel (%p15) target = $region17
  $region16: #{syn_model_forward.381} parent=0 // pred_region
    %18 = vst [vmem:[#allocation2] sm:$0xff] 0.0
    %19 = vst [vmem:[#allocation2 + $0x8] sm:$0xff] 0.0
    %20 = vst [vmem:[#allocation2 + $0x10] sm:$0xff] 0.0
    %21 = vst [vmem:[#allocation2 + $0x18] sm:$0xff] 0.0
    %22 = vst [vmem:[#allocation2 + $0x20] sm:$0xff] 0.0
    %23 = vst [vmem:[#allocation2 + $0x28] sm:$0xff] 0.0
    %24 = vst [vmem:[#allocation2 + $0x30] sm:$0xff] 0.0
    %25 = vst [vmem:[#allocation2 + $0x38] sm:$0xff] 0.0
    %26 = vst [vmem:[#allocation2 + $0x40] sm:$0xff] 0.0
    %27 = vst [vmem:[#allocation2 + $0x48] sm:$0xff] 0.0
    %28 = vst [vmem:[#allocation2 + $0x50] sm:$0xff] 0.0
    %29 = vst [vmem:[#allocation2 + $0x58] sm:$0xff] 0.0
    %30 = vst [vmem:[#allocation2 + $0x60] sm:$0xff] 0.0
    %31 = vst [vmem:[#allocation2 + $0x68] sm:$0xff] 0.0
    %32 = vst [vmem:[#allocation2 + $0x70] sm:$0xff] 0.0
    %33 = vst [vmem:[#allocation2 + $0x78] sm:$0xff] 0.0
    %34 = vst [vmem:[#allocation2 + $0x80] sm:$0xff] 0.0
    %35 = vst [vmem:[#allocation2 + $0x88] sm:$0xff] 0.0
    %36 = vst [vmem:[#allocation2 + $0x90] sm:$0xff] 0.0
    %37 = vst [vmem:[#allocation2 + $0x98] sm:$0xff] 0.0
    %38 = vst [vmem:[#allocation2 + $0xa0] sm:$0xff] 0.0
    %39 = vst [vmem:[#allocation2 + $0xa8] sm:$0xff] 0.0
    %40 = vst [vmem:[#allocation2 + $0xb0] sm:$0xff] 0.0
    %41 = vst [vmem:[#allocation2 + $0xb8] sm:$0xff] 0.0
    %42 = vst [vmem:[#allocation2 + $0xc0] sm:$0xff] 0.0
    %43 = vst [vmem:[#allocation2 + $0xc8] sm:$0xff] 0.0
    %44 = vst [vmem:[#allocation2 + $0xd0] sm:$0xff] 0.0
    %45 = vst [vmem:[#allocation2 + $0xd8] sm:$0xff] 0.0
    %46 = vst [vmem:[#allocation2 + $0xe0] sm:$0xff] 0.0
    %47 = vst [vmem:[#allocation2 + $0xe8] sm:$0xff] 0.0
    %48 = vst [vmem:[#allocation2 + $0xf0] sm:$0xff] 0.0
    %49 = vst [vmem:[#allocation2 + $0xf8] sm:$0xff] 0.0
    %50 = vst [vmem:[#allocation2 + $0x100] sm:$0xff] 0.0
    %51 = vst [vmem:[#allocation2 + $0x108] sm:$0xff] 0.0
    %52 = vst [vmem:[#allocation2 + $0x110] sm:$0xff] 0.0
    %53 = vst [vmem:[#allocation2 + $0x118] sm:$0xff] 0.0
    %54 = vst [vmem:[#allocation2 + $0x120] sm:$0xff] 0.0
    %55 = vst [vmem:[#allocation2 + $0x128] sm:$0xff] 0.0
    %56 = vst [vmem:[#allocation2 + $0x130] sm:$0xff] 0.0
    %57 = vst [vmem:[#allocation2 + $0x138] sm:$0xff] 0.0
    %58 = vst [vmem:[#allocation2 + $0x140] sm:$0xff] 0.0
    %59 = vst [vmem:[#allocation2 + $0x148] sm:$0xff] 0.0
    %60 = vst [vmem:[#allocation2 + $0x150] sm:$0xff] 0.0
    %61 = vst [vmem:[#allocation2 + $0x158] sm:$0xff] 0.0
    %62 = vst [vmem:[#allocation2 + $0x160] sm:$0xff] 0.0
    %63 = vst [vmem:[#allocation2 + $0x168] sm:$0xff] 0.0
    %64 = vst [vmem:[#allocation2 + $0x170] sm:$0xff] 0.0
    %65 = vst [vmem:[#allocation2 + $0x178] sm:$0xff] 0.0
    %66 = vst [vmem:[#allocation2 + $0x180] sm:$0xff] 0.0
    %67 = vst [vmem:[#allocation2 + $0x188] sm:$0xff] 0.0
    %68 = vst [vmem:[#allocation2 + $0x190] sm:$0xff] 0.0
    %69 = vst [vmem:[#allocation2 + $0x198] sm:$0xff] 0.0
    %70 = vst [vmem:[#allocation2 + $0x1a0] sm:$0xff] 0.0
    %71 = vst [vmem:[#allocation2 + $0x1a8] sm:$0xff] 0.0
    %72 = vst [vmem:[#allocation2 + $0x1b0] sm:$0xff] 0.0
    %73 = vst [vmem:[#allocation2 + $0x1b8] sm:$0xff] 0.0
    %74 = vst [vmem:[#allocation2 + $0x1c0] sm:$0xff] 0.0
    %75 = vst [vmem:[#allocation2 + $0x1c8] sm:$0xff] 0.0
    %76 = vst [vmem:[#allocation2 + $0x1d0] sm:$0xff] 0.0
    %77 = vst [vmem:[#allocation2 + $0x1d8] sm:$0xff] 0.0
    %78 = vst [vmem:[#allocation2 + $0x1e0] sm:$0xff] 0.0
    %79 = vst [vmem:[#allocation2 + $0x1e8] sm:$0xff] 0.0
    %80 = vst [vmem:[#allocation2 + $0x1f0] sm:$0xff] 0.0
    %81 = vst [vmem:[#allocation2 + $0x1f8] sm:$0xff] 0.0
  $region17: #{syn_model_forward.381} parent=0 // pred_fallthru
    _
  %v82 = vld [vmem:[#allocation2] sm:$0xff]
  %v83 = vld [vmem:[#allocation2 + $0x8] sm:$0xff]
  %v84 = vld [vmem:[#allocation2 + $0x10] sm:$0xff]
  %v85 = vld [vmem:[#allocation2 + $0x18] sm:$0xff]
  %v86 = vld [vmem:[#allocation2 + $0x20] sm:$0xff]
  %v87 = vld [vmem:[#allocation2 + $0x28] sm:$0xff]
  %v88 = vld [vmem:[#allocation2 + $0x30] sm:$0xff]
  %v89 = vld [vmem:[#allocation2 + $0x38] sm:$0xff]
  %v90 = vld [vmem:[#allocation2 + $0x40] sm:$0xff]
  %v91 = vld [vmem:[#allocation2 + $0x48] sm:$0xff]
  %v92 = vld [vmem:[#allocation2 + $0x50] sm:$0xff]
  %v93 = vld [vmem:[#allocation2 + $0x58] sm:$0xff]
  %v94 = vld [vmem:[#allocation2 + $0x60] sm:$0xff]
  %v95 = vld [vmem:[#allocation2 + $0x68] sm:$0xff]
  %v96 = vld [vmem:[#allocation2 + $0x70] sm:$0xff]
  %v97 = vld [vmem:[#allocation2 + $0x78] sm:$0xff]
  %v98 = vld [vmem:[#allocation2 + $0x80] sm:$0xff]
  %v99 = vld [vmem:[#allocation2 + $0x88] sm:$0xff]
  %v100 = vld [vmem:[#allocation2 + $0x90] sm:$0xff]
  %v101 = vld [vmem:[#allocation2 + $0x98] sm:$0xff]
  %v102 = vld [vmem:[#allocation2 + $0xa0] sm:$0xff]
  %v103 = vld [vmem:[#allocation2 + $0xa8] sm:$0xff]
  %v104 = vld [vmem:[#allocation2 + $0xb0] sm:$0xff]
  %v105 = vld [vmem:[#allocation2 + $0xb8] sm:$0xff]
  %v106 = vld [vmem:[#allocation2 + $0xc0] sm:$0xff]
  %v107 = vld [vmem:[#allocation2 + $0xc8] sm:$0xff]
  %v108 = vld [vmem:[#allocation2 + $0xd0] sm:$0xff]
  %v109 = vld [vmem:[#allocation2 + $0xd8] sm:$0xff]
  %v110 = vld [vmem:[#allocation2 + $0xe0] sm:$0xff]
  %v111 = vld [vmem:[#allocation2 + $0xe8] sm:$0xff]
  %v112 = vld [vmem:[#allocation2 + $0xf0] sm:$0xff]
  %v113 = vld [vmem:[#allocation2 + $0xf8] sm:$0xff]
  %v114 = vld [vmem:[#allocation2 + $0x100] sm:$0xff]
  %v115 = vld [vmem:[#allocation2 + $0x108] sm:$0xff]
  %v116 = vld [vmem:[#allocation2 + $0x110] sm:$0xff]
  %v117 = vld [vmem:[#allocation2 + $0x118] sm:$0xff]
  %v118 = vld [vmem:[#allocation2 + $0x120] sm:$0xff]
  %v119 = vld [vmem:[#allocation2 + $0x128] sm:$0xff]
  %v120 = vld [vmem:[#allocation2 + $0x130] sm:$0xff]
  %v121 = vld [vmem:[#allocation2 + $0x138] sm:$0xff]
  %v122 = vld [vmem:[#allocation2 + $0x140] sm:$0xff]
  %v123 = vld [vmem:[#allocation2 + $0x148] sm:$0xff]
  %v124 = vld [vmem:[#allocation2 + $0x150] sm:$0xff]
  %v125 = vld [vmem:[#allocation2 + $0x158] sm:$0xff]
  %v126 = vld [vmem:[#allocation2 + $0x160] sm:$0xff]
  %v127 = vld [vmem:[#allocation2 + $0x168] sm:$0xff]
  %v128 = vld [vmem:[#allocation2 + $0x170] sm:$0xff]
  %v129 = vld [vmem:[#allocation2 + $0x178] sm:$0xff]
  %v130 = vld [vmem:[#allocation2 + $0x180] sm:$0xff]
  %v131 = vld [vmem:[#allocation2 + $0x188] sm:$0xff]
  %v132 = vld [vmem:[#allocation2 + $0x190] sm:$0xff]
  %v133 = vld [vmem:[#allocation2 + $0x198] sm:$0xff]
  %v134 = vld [vmem:[#allocation2 + $0x1a0] sm:$0xff]
  %v135 = vld [vmem:[#allocation2 + $0x1a8] sm:$0xff]
  %v136 = vld [vmem:[#allocation2 + $0x1b0] sm:$0xff]
  %v137 = vld [vmem:[#allocation2 + $0x1b8] sm:$0xff]
  %v138 = vld [vmem:[#allocation2 + $0x1c0] sm:$0xff]
  %v139 = vld [vmem:[#allocation2 + $0x1c8] sm:$0xff]
  %v140 = vld [vmem:[#allocation2 + $0x1d0] sm:$0xff]
  %v141 = vld [vmem:[#allocation2 + $0x1d8] sm:$0xff]
  %v142 = vld [vmem:[#allocation2 + $0x1e0] sm:$0xff]
  %v143 = vld [vmem:[#allocation2 + $0x1e8] sm:$0xff]
  %v144 = vld [vmem:[#allocation2 + $0x1f0] sm:$0xff]
  %v145 = vld [vmem:[#allocation2 + $0x1f8] sm:$0xff]
  %v146 = vld [vmem:[%s0] sm:$0xff]
  %v147 = vld [vmem:[%s0 + $0x8] sm:$0xf]
  %v148 = vld [vmem:[%s0 + $0xc] sm:$0xff]
  %v149 = vld [vmem:[%s0 + $0x14] sm:$0xf]
  %v150 = vld [vmem:[%s0 + $0x18] sm:$0xff]
  %v151 = vld [vmem:[%s0 + $0x20] sm:$0xf]
  %v152 = vld [vmem:[%s0 + $0x24] sm:$0xff]
  %v153 = vld [vmem:[%s0 + $0x2c] sm:$0xf]
  %v154 = vld [vmem:[%s0 + $0x30] sm:$0xff]
  %v155 = vld [vmem:[%s0 + $0x38] sm:$0xf]
  %v156 = vld [vmem:[%s0 + $0x3c] sm:$0xff]
  %v157 = vld [vmem:[%s0 + $0x44] sm:$0xf]
  %v158 = vld [vmem:[%s0 + $0x48] sm:$0xff]
  %v159 = vld [vmem:[%s0 + $0x50] sm:$0xf]
  %v160 = vld [vmem:[%s0 + $0x54] sm:$0xff]
  %v161 = vld [vmem:[%s0 + $0x5c] sm:$0xf]
  %v162 = vld [vmem:[%s0 + $0x60] sm:$0xff]
  %v163 = vld [vmem:[%s0 + $0x68] sm:$0xf]
  %v164 = vld [vmem:[%s0 + $0x6c] sm:$0xff]
  %v165 = vld [vmem:[%s0 + $0x74] sm:$0xf]
  %v166 = vld [vmem:[%s0 + $0x78] sm:$0xff]
  %v167 = vld [vmem:[%s0 + $0x80] sm:$0xf]
  %v168 = vld [vmem:[%s0 + $0x84] sm:$0xff]
  %v169 = vld [vmem:[%s0 + $0x8c] sm:$0xf]
  %v170 = vld [vmem:[%s0 + $0x90] sm:$0xff]
  %v171 = vld [vmem:[%s0 + $0x98] sm:$0xf]
  %v172 = vld [vmem:[%s0 + $0x9c] sm:$0xff]
  %v173 = vld [vmem:[%s0 + $0xa4] sm:$0xf]
  %v174 = vld [vmem:[%s0 + $0xa8] sm:$0xff]
  %v175 = vld [vmem:[%s0 + $0xb0] sm:$0xf]
  %v176 = vld [vmem:[%s0 + $0xb4] sm:$0xff]
  %v177 = vld [vmem:[%s0 + $0xbc] sm:$0xf]
  %v178 = vld [vmem:[%s0 + $0xc0] sm:$0xff]
  %v179 = vld [vmem:[%s0 + $0xc8] sm:$0xf]
  %v180 = vld [vmem:[%s0 + $0xcc] sm:$0xff]
  %v181 = vld [vmem:[%s0 + $0xd4] sm:$0xf]
  %v182 = vld [vmem:[%s0 + $0xd8] sm:$0xff]
  %v183 = vld [vmem:[%s0 + $0xe0] sm:$0xf]
  %v184 = vld [vmem:[%s0 + $0xe4] sm:$0xff]
  %v185 = vld [vmem:[%s0 + $0xec] sm:$0xf]
  %v186 = vld [vmem:[%s0 + $0xf0] sm:$0xff]
  %v187 = vld [vmem:[%s0 + $0xf8] sm:$0xf]
  %v188 = vld [vmem:[%s0 + $0xfc] sm:$0xff]
  %v189 = vld [vmem:[%s0 + $0x104] sm:$0xf]
  %v190 = vld [vmem:[%s0 + $0x108] sm:$0xff]
  %v191 = vld [vmem:[%s0 + $0x110] sm:$0xf]
  %v192 = vld [vmem:[%s0 + $0x114] sm:$0xff]
  %v193 = vld [vmem:[%s0 + $0x11c] sm:$0xf]
  %v194 = vld [vmem:[%s0 + $0x120] sm:$0xff]
  %v195 = vld [vmem:[%s0 + $0x128] sm:$0xf]
  %v196 = vld [vmem:[%s0 + $0x12c] sm:$0xff]
  %v197 = vld [vmem:[%s0 + $0x134] sm:$0xf]
  %v198 = vld [vmem:[%s0 + $0x138] sm:$0xff]
  %v199 = vld [vmem:[%s0 + $0x140] sm:$0xf]
  %v200 = vld [vmem:[%s0 + $0x144] sm:$0xff]
  %v201 = vld [vmem:[%s0 + $0x14c] sm:$0xf]
  %v202 = vld [vmem:[%s0 + $0x150] sm:$0xff]
  %v203 = vld [vmem:[%s0 + $0x158] sm:$0xf]
  %v204 = vld [vmem:[%s0 + $0x15c] sm:$0xff]
  %v205 = vld [vmem:[%s0 + $0x164] sm:$0xf]
  %v206 = vld [vmem:[%s0 + $0x168] sm:$0xff]
  %v207 = vld [vmem:[%s0 + $0x170] sm:$0xf]
  %v208 = vld [vmem:[%s0 + $0x174] sm:$0xff]
  %v209 = vld [vmem:[%s0 + $0x17c] sm:$0xf]
  %v210 = vld [vmem:[%s0 + $0x180] sm:$0xff]
  %v211 = vld [vmem:[%s0 + $0x188] sm:$0xf]
  %v212 = vld [vmem:[%s0 + $0x18c] sm:$0xff]
  %v213 = vld [vmem:[%s0 + $0x194] sm:$0xf]
  %v214 = vld [vmem:[%s0 + $0x198] sm:$0xff]
  %v215 = vld [vmem:[%s0 + $0x1a0] sm:$0xf]
  %v216 = vld [vmem:[%s0 + $0x1a4] sm:$0xff]
  %v217 = vld [vmem:[%s0 + $0x1ac] sm:$0xf]
  %v218 = vld [vmem:[%s0 + $0x1b0] sm:$0xff]
  %v219 = vld [vmem:[%s0 + $0x1b8] sm:$0xf]
  %v220 = vld [vmem:[%s0 + $0x1bc] sm:$0xff]
  %v221 = vld [vmem:[%s0 + $0x1c4] sm:$0xf]
  %v222 = vld [vmem:[%s0 + $0x1c8] sm:$0xff]
  %v223 = vld [vmem:[%s0 + $0x1d0] sm:$0xf]
  %v224 = vld [vmem:[%s0 + $0x1d4] sm:$0xff]
  %v225 = vld [vmem:[%s0 + $0x1dc] sm:$0xf]
  %v226 = vld [vmem:[%s0 + $0x1e0] sm:$0xff]
  %v227 = vld [vmem:[%s0 + $0x1e8] sm:$0xf]
  %v228 = vld [vmem:[%s0 + $0x1ec] sm:$0xff]
  %v229 = vld [vmem:[%s0 + $0x1f4] sm:$0xf]
  %v230 = vld [vmem:[%s0 + $0x1f8] sm:$0xff]
  %v231 = vld [vmem:[%s0 + $0x200] sm:$0xf]
  %v232 = vld [vmem:[%s0 + $0x204] sm:$0xff]
  %v233 = vld [vmem:[%s0 + $0x20c] sm:$0xf]
  %v234 = vld [vmem:[%s0 + $0x210] sm:$0xff]
  %v235 = vld [vmem:[%s0 + $0x218] sm:$0xf]
  %v236 = vld [vmem:[%s0 + $0x21c] sm:$0xff]
  %v237 = vld [vmem:[%s0 + $0x224] sm:$0xf]
  %v238 = vld [vmem:[%s0 + $0x228] sm:$0xff]
  %v239 = vld [vmem:[%s0 + $0x230] sm:$0xf]
  %v240 = vld [vmem:[%s0 + $0x234] sm:$0xff]
  %v241 = vld [vmem:[%s0 + $0x23c] sm:$0xf]
  %v242 = vld [vmem:[%s0 + $0x240] sm:$0xff]
  %v243 = vld [vmem:[%s0 + $0x248] sm:$0xf]
  %v244 = vld [vmem:[%s0 + $0x24c] sm:$0xff]
  %v245 = vld [vmem:[%s0 + $0x254] sm:$0xf]
  %v246 = vld [vmem:[%s0 + $0x258] sm:$0xff]
  %v247 = vld [vmem:[%s0 + $0x260] sm:$0xf]
  %v248 = vld [vmem:[%s0 + $0x264] sm:$0xff]
  %v249 = vld [vmem:[%s0 + $0x26c] sm:$0xf]
  %v250 = vld [vmem:[%s0 + $0x270] sm:$0xff]
  %v251 = vld [vmem:[%s0 + $0x278] sm:$0xf]
  %v252 = vld [vmem:[%s0 + $0x27c] sm:$0xff]
  %v253 = vld [vmem:[%s0 + $0x284] sm:$0xf]
  %v254 = vld [vmem:[%s0 + $0x288] sm:$0xff]
  %v255 = vld [vmem:[%s0 + $0x290] sm:$0xf]
  %v256 = vld [vmem:[%s0 + $0x294] sm:$0xff]
  %v257 = vld [vmem:[%s0 + $0x29c] sm:$0xf]
  %v258 = vld [vmem:[%s0 + $0x2a0] sm:$0xff]
  %v259 = vld [vmem:[%s0 + $0x2a8] sm:$0xf]
  %v260 = vld [vmem:[%s0 + $0x2ac] sm:$0xff]
  %v261 = vld [vmem:[%s0 + $0x2b4] sm:$0xf]
  %v262 = vld [vmem:[%s0 + $0x2b8] sm:$0xff]
  %v263 = vld [vmem:[%s0 + $0x2c0] sm:$0xf]
  %v264 = vld [vmem:[%s0 + $0x2c4] sm:$0xff]
  %v265 = vld [vmem:[%s0 + $0x2cc] sm:$0xf]
  %v266 = vld [vmem:[%s0 + $0x2d0] sm:$0xff]
  %v267 = vld [vmem:[%s0 + $0x2d8] sm:$0xf]
  %v268 = vld [vmem:[%s0 + $0x2dc] sm:$0xff]
  %v269 = vld [vmem:[%s0 + $0x2e4] sm:$0xf]
  %v270 = vld [vmem:[%s0 + $0x2e8] sm:$0xff]
  %v271 = vld [vmem:[%s0 + $0x2f0] sm:$0xf]
  %v272 = vld [vmem:[%s0 + $0x2f4] sm:$0xff]
  %v273 = vld [vmem:[%s0 + $0x2fc] sm:$0xf]
  %v274 = vld [vmem:[%s1] sm:$0xf]
  %v275 = vld [vmem:[%s1 + $0x4] sm:$0xf]
  %v276 = vld [vmem:[%s1 + $0x8] sm:$0xf]
  %v277 = vld [vmem:[%s1 + $0xc] sm:$0xf]
  %v278 = vld [vmem:[%s1 + $0x10] sm:$0xf]
  %v279 = vld [vmem:[%s1 + $0x14] sm:$0xf]
  %v280 = vld [vmem:[%s1 + $0x18] sm:$0xf]
  %v281 = vld [vmem:[%s1 + $0x1c] sm:$0xf]
  %v282 = vld [vmem:[%s1 + $0x20] sm:$0xf]
  %v283 = vld [vmem:[%s1 + $0x24] sm:$0xf]
  %v284 = vld [vmem:[%s1 + $0x28] sm:$0xf]
  %v285 = vld [vmem:[%s1 + $0x2c] sm:$0xf]
  %v286 = vld [vmem:[%s1 + $0x30] sm:$0xf]
  %v287 = vld [vmem:[%s1 + $0x34] sm:$0xf]
  %v288 = vld [vmem:[%s1 + $0x38] sm:$0xf]
  %v289 = vld [vmem:[%s1 + $0x3c] sm:$0xf]
  %v290 = vld [vmem:[%s1 + $0x40] sm:$0xf]
  %v291 = vld [vmem:[%s1 + $0x44] sm:$0xf]
  %v292 = vld [vmem:[%s1 + $0x48] sm:$0xf]
  %v293 = vld [vmem:[%s1 + $0x4c] sm:$0xf]
  %v294 = vld [vmem:[%s1 + $0x50] sm:$0xf]
  %v295 = vld [vmem:[%s1 + $0x54] sm:$0xf]
  %v296 = vld [vmem:[%s1 + $0x58] sm:$0xf]
  %v297 = vld [vmem:[%s1 + $0x5c] sm:$0xf]
  %v298 = vld [vmem:[%s1 + $0x60] sm:$0xf]
  %v299 = vld [vmem:[%s1 + $0x64] sm:$0xf]
  %v300 = vld [vmem:[%s1 + $0x68] sm:$0xf]
  %v301 = vld [vmem:[%s1 + $0x6c] sm:$0xf]
  %v302 = vld [vmem:[%s1 + $0x70] sm:$0xf]
  %v303 = vld [vmem:[%s1 + $0x74] sm:$0xf]
  %v304 = vld [vmem:[%s1 + $0x78] sm:$0xf]
  %v305 = vld [vmem:[%s1 + $0x7c] sm:$0xf]
  %v306 = vld [vmem:[%s1 + $0x80] sm:$0xf]
  %v307 = vld [vmem:[%s1 + $0x84] sm:$0xf]
  %v308 = vld [vmem:[%s1 + $0x88] sm:$0xf]
  %v309 = vld [vmem:[%s1 + $0x8c] sm:$0xf]
  %v310 = vld [vmem:[%s1 + $0x90] sm:$0xf]
  %v311 = vld [vmem:[%s1 + $0x94] sm:$0xf]
  %v312 = vld [vmem:[%s1 + $0x98] sm:$0xf]
  %v313 = vld [vmem:[%s1 + $0x9c] sm:$0xf]
  %v314 = vld [vmem:[%s1 + $0xa0] sm:$0xf]
  %v315 = vld [vmem:[%s1 + $0xa4] sm:$0xf]
  %v316 = vld [vmem:[%s1 + $0xa8] sm:$0xf]
  %v317 = vld [vmem:[%s1 + $0xac] sm:$0xf]
  %v318 = vld [vmem:[%s1 + $0xb0] sm:$0xf]
  %v319 = vld [vmem:[%s1 + $0xb4] sm:$0xf]
  %v320 = vld [vmem:[%s1 + $0xb8] sm:$0xf]
  %v321 = vld [vmem:[%s1 + $0xbc] sm:$0xf]
  %v450 = vunpack.c.l.b16 %v146
  %v451 = vunpack.c.h.b16 %v146
  %v452 = vunpack.c.l.b16 %v147
  %v453 = vunpack.c.l.b16 %v148
  %v454 = vunpack.c.h.b16 %v148
  %v455 = vunpack.c.l.b16 %v149
  %v456 = vunpack.c.l.b16 %v150
  %v457 = vunpack.c.h.b16 %v150
  %v458 = vunpack.c.l.b16 %v151
  %v459 = vunpack.c.l.b16 %v152
  %v460 = vunpack.c.h.b16 %v152
  %v461 = vunpack.c.l.b16 %v153
  %v462 = vunpack.c.l.b16 %v154
  %v463 = vunpack.c.h.b16 %v154
  %v464 = vunpack.c.l.b16 %v155
  %v465 = vunpack.c.l.b16 %v156
  %v466 = vunpack.c.h.b16 %v156
  %v467 = vunpack.c.l.b16 %v157
  %v468 = vunpack.c.l.b16 %v158
  %v469 = vunpack.c.h.b16 %v158
  %v470 = vunpack.c.l.b16 %v159
  %v471 = vunpack.c.l.b16 %v160
  %v472 = vunpack.c.h.b16 %v160
  %v473 = vunpack.c.l.b16 %v161
  %v474 = vunpack.c.l.b16 %v162
  %v475 = vunpack.c.h.b16 %v162
  %v476 = vunpack.c.l.b16 %v163
  %v477 = vunpack.c.l.b16 %v164
  %v478 = vunpack.c.h.b16 %v164
  %v479 = vunpack.c.l.b16 %v165
  %v480 = vunpack.c.l.b16 %v166
  %v481 = vunpack.c.h.b16 %v166
  %v482 = vunpack.c.l.b16 %v167
  %v483 = vunpack.c.l.b16 %v168
  %v484 = vunpack.c.h.b16 %v168
  %v485 = vunpack.c.l.b16 %v169
  %v486 = vunpack.c.l.b16 %v170
  %v487 = vunpack.c.h.b16 %v170
  %v488 = vunpack.c.l.b16 %v171
  %v489 = vunpack.c.l.b16 %v172
  %v490 = vunpack.c.h.b16 %v172
  %v491 = vunpack.c.l.b16 %v173
  %v492 = vunpack.c.l.b16 %v174
  %v493 = vunpack.c.h.b16 %v174
  %v494 = vunpack.c.l.b16 %v175
  %v495 = vunpack.c.l.b16 %v176
  %v496 = vunpack.c.h.b16 %v176
  %v497 = vunpack.c.l.b16 %v177
  %v498 = vunpack.c.l.b16 %v178
  %v499 = vunpack.c.h.b16 %v178
  %v500 = vunpack.c.l.b16 %v179
  %v501 = vunpack.c.l.b16 %v180
  %v502 = vunpack.c.h.b16 %v180
  %v503 = vunpack.c.l.b16 %v181
  %v504 = vunpack.c.l.b16 %v182
  %v505 = vunpack.c.h.b16 %v182
  %v506 = vunpack.c.l.b16 %v183
  %v507 = vunpack.c.l.b16 %v184
  %v508 = vunpack.c.h.b16 %v184
  %v509 = vunpack.c.l.b16 %v185
  %v510 = vunpack.c.l.b16 %v186
  %v511 = vunpack.c.h.b16 %v186
  %v512 = vunpack.c.l.b16 %v187
  %v513 = vunpack.c.l.b16 %v188
  %v514 = vunpack.c.h.b16 %v188
  %v515 = vunpack.c.l.b16 %v189
  %v516 = vunpack.c.l.b16 %v190
  %v517 = vunpack.c.h.b16 %v190
  %v518 = vunpack.c.l.b16 %v191
  %v519 = vunpack.c.l.b16 %v192
  %v520 = vunpack.c.h.b16 %v192
  %v521 = vunpack.c.l.b16 %v193
  %v522 = vunpack.c.l.b16 %v194
  %v523 = vunpack.c.h.b16 %v194
  %v524 = vunpack.c.l.b16 %v195
  %v525 = vunpack.c.l.b16 %v196
  %v526 = vunpack.c.h.b16 %v196
  %v527 = vunpack.c.l.b16 %v197
  %v528 = vunpack.c.l.b16 %v198
  %v529 = vunpack.c.h.b16 %v198
  %v530 = vunpack.c.l.b16 %v199
  %v531 = vunpack.c.l.b16 %v200
  %v532 = vunpack.c.h.b16 %v200
  %v533 = vunpack.c.l.b16 %v201
  %v534 = vunpack.c.l.b16 %v202
  %v535 = vunpack.c.h.b16 %v202
  %v536 = vunpack.c.l.b16 %v203
  %v537 = vunpack.c.l.b16 %v204
  %v538 = vunpack.c.h.b16 %v204
  %v539 = vunpack.c.l.b16 %v205
  %v540 = vunpack.c.l.b16 %v206
  %v541 = vunpack.c.h.b16 %v206
  %v542 = vunpack.c.l.b16 %v207
  %v543 = vunpack.c.l.b16 %v208
  %v544 = vunpack.c.h.b16 %v208
  %v545 = vunpack.c.l.b16 %v209
  %v546 = vunpack.c.l.b16 %v210
  %v547 = vunpack.c.h.b16 %v210
  %v548 = vunpack.c.l.b16 %v211
  %v549 = vunpack.c.l.b16 %v212
  %v550 = vunpack.c.h.b16 %v212
  %v551 = vunpack.c.l.b16 %v213
  %v552 = vunpack.c.l.b16 %v214
  %v553 = vunpack.c.h.b16 %v214
  %v554 = vunpack.c.l.b16 %v215
  %v555 = vunpack.c.l.b16 %v216
  %v556 = vunpack.c.h.b16 %v216
  %v557 = vunpack.c.l.b16 %v217
  %v558 = vunpack.c.l.b16 %v218
  %v559 = vunpack.c.h.b16 %v218
  %v560 = vunpack.c.l.b16 %v219
  %v561 = vunpack.c.l.b16 %v220
  %v562 = vunpack.c.h.b16 %v220
  %v563 = vunpack.c.l.b16 %v221
  %v564 = vunpack.c.l.b16 %v222
  %v565 = vunpack.c.h.b16 %v222
  %v566 = vunpack.c.l.b16 %v223
  %v567 = vunpack.c.l.b16 %v224
  %v568 = vunpack.c.h.b16 %v224
  %v569 = vunpack.c.l.b16 %v225
  %v570 = vunpack.c.l.b16 %v226
  %v571 = vunpack.c.h.b16 %v226
  %v572 = vunpack.c.l.b16 %v227
  %v573 = vunpack.c.l.b16 %v228
  %v574 = vunpack.c.h.b16 %v228
  %v575 = vunpack.c.l.b16 %v229
  %v576 = vunpack.c.l.b16 %v230
  %v577 = vunpack.c.h.b16 %v230
  %v578 = vunpack.c.l.b16 %v231
  %v579 = vunpack.c.l.b16 %v232
  %v580 = vunpack.c.h.b16 %v232
  %v581 = vunpack.c.l.b16 %v233
  %v582 = vunpack.c.l.b16 %v234
  %v583 = vunpack.c.h.b16 %v234
  %v584 = vunpack.c.l.b16 %v235
  %v585 = vunpack.c.l.b16 %v236
  %v586 = vunpack.c.h.b16 %v236
  %v587 = vunpack.c.l.b16 %v237
  %v588 = vunpack.c.l.b16 %v238
  %v589 = vunpack.c.h.b16 %v238
  %v590 = vunpack.c.l.b16 %v239
  %v591 = vunpack.c.l.b16 %v240
  %v592 = vunpack.c.h.b16 %v240
  %v593 = vunpack.c.l.b16 %v241
  %v594 = vunpack.c.l.b16 %v242
  %v595 = vunpack.c.h.b16 %v242
  %v596 = vunpack.c.l.b16 %v243
  %v597 = vunpack.c.l.b16 %v244
  %v598 = vunpack.c.h.b16 %v244
  %v599 = vunpack.c.l.b16 %v245
  %v600 = vunpack.c.l.b16 %v246
  %v601 = vunpack.c.h.b16 %v246
  %v602 = vunpack.c.l.b16 %v247
  %v603 = vunpack.c.l.b16 %v248
  %v604 = vunpack.c.h.b16 %v248
  %v605 = vunpack.c.l.b16 %v249
  %v606 = vunpack.c.l.b16 %v250
  %v607 = vunpack.c.h.b16 %v250
  %v608 = vunpack.c.l.b16 %v251
  %v609 = vunpack.c.l.b16 %v252
  %v610 = vunpack.c.h.b16 %v252
  %v611 = vunpack.c.l.b16 %v253
  %v612 = vunpack.c.l.b16 %v254
  %v613 = vunpack.c.h.b16 %v254
  %v614 = vunpack.c.l.b16 %v255
  %v615 = vunpack.c.l.b16 %v256
  %v616 = vunpack.c.h.b16 %v256
  %v617 = vunpack.c.l.b16 %v257
  %v618 = vunpack.c.l.b16 %v258
  %v619 = vunpack.c.h.b16 %v258
  %v620 = vunpack.c.l.b16 %v259
  %v621 = vunpack.c.l.b16 %v260
  %v622 = vunpack.c.h.b16 %v260
  %v623 = vunpack.c.l.b16 %v261
  %v624 = vunpack.c.l.b16 %v262
  %v625 = vunpack.c.h.b16 %v262
  %v626 = vunpack.c.l.b16 %v263
  %v627 = vunpack.c.l.b16 %v264
  %v628 = vunpack.c.h.b16 %v264
  %v629 = vunpack.c.l.b16 %v265
  %v630 = vunpack.c.l.b16 %v266
  %v631 = vunpack.c.h.b16 %v266
  %v632 = vunpack.c.l.b16 %v267
  %v633 = vunpack.c.l.b16 %v268
  %v634 = vunpack.c.h.b16 %v268
  %v635 = vunpack.c.l.b16 %v269
  %v636 = vunpack.c.l.b16 %v270
  %v637 = vunpack.c.h.b16 %v270
  %v638 = vunpack.c.l.b16 %v271
  %v639 = vunpack.c.l.b16 %v272
  %v640 = vunpack.c.h.b16 %v272
  %v641 = vunpack.c.l.b16 %v273
  %v642 = vpack.c.b16 %v453, %v450
  %v643 = vpack.c.b16 %v454, %v451
  %v644 = vpack.c.b16 %v455, %v452
  %v645 = vpack.c.b16 %v459, %v456
  %v646 = vpack.c.b16 %v460, %v457
  %v647 = vpack.c.b16 %v461, %v458
  %v648 = vpack.c.b16 %v465, %v462
  %v649 = vpack.c.b16 %v466, %v463
  %v650 = vpack.c.b16 %v467, %v464
  %v651 = vpack.c.b16 %v471, %v468
  %v652 = vpack.c.b16 %v472, %v469
  %v653 = vpack.c.b16 %v473, %v470
  %v654 = vpack.c.b16 %v477, %v474
  %v655 = vpack.c.b16 %v478, %v475
  %v656 = vpack.c.b16 %v479, %v476
  %v657 = vpack.c.b16 %v483, %v480
  %v658 = vpack.c.b16 %v484, %v481
  %v659 = vpack.c.b16 %v485, %v482
  %v660 = vpack.c.b16 %v489, %v486
  %v661 = vpack.c.b16 %v490, %v487
  %v662 = vpack.c.b16 %v491, %v488
  %v663 = vpack.c.b16 %v495, %v492
  %v664 = vpack.c.b16 %v496, %v493
  %v665 = vpack.c.b16 %v497, %v494
  %v666 = vpack.c.b16 %v501, %v498
  %v667 = vpack.c.b16 %v502, %v499
  %v668 = vpack.c.b16 %v503, %v500
  %v669 = vpack.c.b16 %v507, %v504
  %v670 = vpack.c.b16 %v508, %v505
  %v671 = vpack.c.b16 %v509, %v506
  %v672 = vpack.c.b16 %v513, %v510
  %v673 = vpack.c.b16 %v514, %v511
  %v674 = vpack.c.b16 %v515, %v512
  %v675 = vpack.c.b16 %v519, %v516
  %v676 = vpack.c.b16 %v520, %v517
  %v677 = vpack.c.b16 %v521, %v518
  %v678 = vpack.c.b16 %v525, %v522
  %v679 = vpack.c.b16 %v526, %v523
  %v680 = vpack.c.b16 %v527, %v524
  %v681 = vpack.c.b16 %v531, %v528
  %v682 = vpack.c.b16 %v532, %v529
  %v683 = vpack.c.b16 %v533, %v530
  %v684 = vpack.c.b16 %v537, %v534
  %v685 = vpack.c.b16 %v538, %v535
  %v686 = vpack.c.b16 %v539, %v536
  %v687 = vpack.c.b16 %v543, %v540
  %v688 = vpack.c.b16 %v544, %v541
  %v689 = vpack.c.b16 %v545, %v542
  %v690 = vpack.c.b16 %v549, %v546
  %v691 = vpack.c.b16 %v550, %v547
  %v692 = vpack.c.b16 %v551, %v548
  %v693 = vpack.c.b16 %v555, %v552
  %v694 = vpack.c.b16 %v556, %v553
  %v695 = vpack.c.b16 %v557, %v554
  %v696 = vpack.c.b16 %v561, %v558
  %v697 = vpack.c.b16 %v562, %v559
  %v698 = vpack.c.b16 %v563, %v560
  %v699 = vpack.c.b16 %v567, %v564
  %v700 = vpack.c.b16 %v568, %v565
  %v701 = vpack.c.b16 %v569, %v566
  %v702 = vpack.c.b16 %v573, %v570
  %v703 = vpack.c.b16 %v574, %v571
  %v704 = vpack.c.b16 %v575, %v572
  %v705 = vpack.c.b16 %v579, %v576
  %v706 = vpack.c.b16 %v580, %v577
  %v707 = vpack.c.b16 %v581, %v578
  %v708 = vpack.c.b16 %v585, %v582
  %v709 = vpack.c.b16 %v586, %v583
  %v710 = vpack.c.b16 %v587, %v584
  %v711 = vpack.c.b16 %v591, %v588
  %v712 = vpack.c.b16 %v592, %v589
  %v713 = vpack.c.b16 %v593, %v590
  %v714 = vpack.c.b16 %v597, %v594
  %v715 = vpack.c.b16 %v598, %v595
  %v716 = vpack.c.b16 %v599, %v596
  %v717 = vpack.c.b16 %v603, %v600
  %v718 = vpack.c.b16 %v604, %v601
  %v719 = vpack.c.b16 %v605, %v602
  %v720 = vpack.c.b16 %v609, %v606
  %v721 = vpack.c.b16 %v610, %v607
  %v722 = vpack.c.b16 %v611, %v608
  %v723 = vpack.c.b16 %v615, %v612
  %v724 = vpack.c.b16 %v616, %v613
  %v725 = vpack.c.b16 %v617, %v614
  %v726 = vpack.c.b16 %v621, %v618
  %v727 = vpack.c.b16 %v622, %v619
  %v728 = vpack.c.b16 %v623, %v620
  %v729 = vpack.c.b16 %v627, %v624
  %v730 = vpack.c.b16 %v628, %v625
  %v731 = vpack.c.b16 %v629, %v626
  %v732 = vpack.c.b16 %v633, %v630
  %v733 = vpack.c.b16 %v634, %v631
  %v734 = vpack.c.b16 %v635, %v632
  %v735 = vpack.c.b16 %v639, %v636
  %v736 = vpack.c.b16 %v640, %v637
  %v737 = vpack.c.b16 %v641, %v638
  %v882 = vunpack.c.l.b16 %v274
  %v883 = vunpack.c.l.b16 %v275
  %v884 = vunpack.c.l.b16 %v276
  %v885 = vunpack.c.l.b16 %v277
  %v886 = vunpack.c.l.b16 %v278
  %v887 = vunpack.c.l.b16 %v279
  %v888 = vunpack.c.l.b16 %v280
  %v889 = vunpack.c.l.b16 %v281
  %v890 = vunpack.c.l.b16 %v282
  %v891 = vunpack.c.l.b16 %v283
  %v892 = vunpack.c.l.b16 %v284
  %v893 = vunpack.c.l.b16 %v285
  %v894 = vunpack.c.l.b16 %v286
  %v895 = vunpack.c.l.b16 %v287
  %v896 = vunpack.c.l.b16 %v288
  %v897 = vunpack.c.l.b16 %v289
  %v898 = vunpack.c.l.b16 %v290
  %v899 = vunpack.c.l.b16 %v291
  %v900 = vunpack.c.l.b16 %v292
  %v901 = vunpack.c.l.b16 %v293
  %v902 = vunpack.c.l.b16 %v294
  %v903 = vunpack.c.l.b16 %v295
  %v904 = vunpack.c.l.b16 %v296
  %v905 = vunpack.c.l.b16 %v297
  %v906 = vunpack.c.l.b16 %v298
  %v907 = vunpack.c.l.b16 %v299
  %v908 = vunpack.c.l.b16 %v300
  %v909 = vunpack.c.l.b16 %v301
  %v910 = vunpack.c.l.b16 %v302
  %v911 = vunpack.c.l.b16 %v303
  %v912 = vunpack.c.l.b16 %v304
  %v913 = vunpack.c.l.b16 %v305
  %v914 = vunpack.c.l.b16 %v306
  %v915 = vunpack.c.l.b16 %v307
  %v916 = vunpack.c.l.b16 %v308
  %v917 = vunpack.c.l.b16 %v309
  %v918 = vunpack.c.l.b16 %v310
  %v919 = vunpack.c.l.b16 %v311
  %v920 = vunpack.c.l.b16 %v312
  %v921 = vunpack.c.l.b16 %v313
  %v922 = vunpack.c.l.b16 %v314
  %v923 = vunpack.c.l.b16 %v315
  %v924 = vunpack.c.l.b16 %v316
  %v925 = vunpack.c.l.b16 %v317
  %v926 = vunpack.c.l.b16 %v318
  %v927 = vunpack.c.l.b16 %v319
  %v928 = vunpack.c.l.b16 %v320
  %v929 = vunpack.c.l.b16 %v321
  %v930 = vpack.c.b16 %v883, %v882
  %v931 = vpack.c.b16 %v885, %v884
  %v932 = vpack.c.b16 %v887, %v886
  %v933 = vpack.c.b16 %v889, %v888
  %v934 = vpack.c.b16 %v891, %v890
  %v935 = vpack.c.b16 %v893, %v892
  %v936 = vpack.c.b16 %v895, %v894
  %v937 = vpack.c.b16 %v897, %v896
  %v938 = vpack.c.b16 %v899, %v898
  %v939 = vpack.c.b16 %v901, %v900
  %v940 = vpack.c.b16 %v903, %v902
  %v941 = vpack.c.b16 %v905, %v904
  %v942 = vpack.c.b16 %v907, %v906
  %v943 = vpack.c.b16 %v909, %v908
  %v944 = vpack.c.b16 %v911, %v910
  %v945 = vpack.c.b16 %v913, %v912
  %v946 = vpack.c.b16 %v915, %v914
  %v947 = vpack.c.b16 %v917, %v916
  %v948 = vpack.c.b16 %v919, %v918
  %v949 = vpack.c.b16 %v921, %v920
  %v950 = vpack.c.b16 %v923, %v922
  %v951 = vpack.c.b16 %v925, %v924
  %v952 = vpack.c.b16 %v927, %v926
  %v953 = vpack.c.b16 %v929, %v928
  %978 = vmatpush.bf16.msra.mxu0 %v937
  %979 = vmatpush.bf16.msra.mxu0 %v936
  %980 = vmatpush.bf16.msra.mxu0 %v935
  %981 = vmatpush.bf16.msra.mxu0 %v934
  %982 = vmatpush.bf16.msra.mxu0 %v933
  %983 = vmatpush.bf16.msra.mxu0 %v932
  %984 = vmatpush.bf16.msra.mxu0 %v931
  %985 = vmatpush.bf16.msra.mxu0 %v930
  %986 = vmatmul.bf16.gmra.mxu0 %v642
  %v987 = vpop.f32.mrf.mxu0
  %v988 = vadd.f32 0.0, %v987
  %v989 = vpop.f32.mrf.mxu0
  %v990 = vadd.f32 0.0, %v989
  %991 = vmatmul.bf16.gmra.mxu0 %v645
  %v992 = vpop.f32.mrf.mxu0
  %v993 = vadd.f32 0.0, %v992
  %v994 = vpop.f32.mrf.mxu0
  %v995 = vadd.f32 0.0, %v994
  %996 = vmatmul.bf16.gmra.mxu0 %v648
  %v997 = vpop.f32.mrf.mxu0
  %v998 = vadd.f32 0.0, %v997
  %v999 = vpop.f32.mrf.mxu0
  %v1000 = vadd.f32 0.0, %v999
  %1001 = vmatmul.bf16.gmra.mxu0 %v651
  %v1002 = vpop.f32.mrf.mxu0
  %v1003 = vadd.f32 0.0, %v1002
  %v1004 = vpop.f32.mrf.mxu0
  %v1005 = vadd.f32 0.0, %v1004
  %1006 = vmatmul.bf16.gmra.mxu0 %v654
  %v1007 = vpop.f32.mrf.mxu0
  %v1008 = vadd.f32 0.0, %v1007
  %v1009 = vpop.f32.mrf.mxu0
  %v1010 = vadd.f32 0.0, %v1009
  %1011 = vmatmul.bf16.gmra.mxu0 %v657
  %v1012 = vpop.f32.mrf.mxu0
  %v1013 = vadd.f32 0.0, %v1012
  %v1014 = vpop.f32.mrf.mxu0
  %v1015 = vadd.f32 0.0, %v1014
  %1016 = vmatmul.bf16.gmra.mxu0 %v660
  %v1017 = vpop.f32.mrf.mxu0
  %v1018 = vadd.f32 0.0, %v1017
  %v1019 = vpop.f32.mrf.mxu0
  %v1020 = vadd.f32 0.0, %v1019
  %1021 = vmatmul.bf16.gmra.mxu0 %v663
  %v1022 = vpop.f32.mrf.mxu0
  %v1023 = vadd.f32 0.0, %v1022
  %v1024 = vpop.f32.mrf.mxu0
  %v1025 = vadd.f32 0.0, %v1024
  %1026 = vmatmul.bf16.gmra.mxu0 %v666
  %v1027 = vpop.f32.mrf.mxu0
  %v1028 = vadd.f32 0.0, %v1027
  %v1029 = vpop.f32.mrf.mxu0
  %v1030 = vadd.f32 0.0, %v1029
  %1031 = vmatmul.bf16.gmra.mxu0 %v669
  %v1032 = vpop.f32.mrf.mxu0
  %v1033 = vadd.f32 0.0, %v1032
  %v1034 = vpop.f32.mrf.mxu0
  %v1035 = vadd.f32 0.0, %v1034
  %1036 = vmatmul.bf16.gmra.mxu0 %v672
  %v1037 = vpop.f32.mrf.mxu0
  %v1038 = vadd.f32 0.0, %v1037
  %v1039 = vpop.f32.mrf.mxu0
  %v1040 = vadd.f32 0.0, %v1039
  %1041 = vmatmul.bf16.gmra.mxu0 %v675
  %v1042 = vpop.f32.mrf.mxu0
  %v1043 = vadd.f32 0.0, %v1042
  %v1044 = vpop.f32.mrf.mxu0
  %v1045 = vadd.f32 0.0, %v1044
  %1046 = vmatmul.bf16.gmra.mxu0 %v678
  %v1047 = vpop.f32.mrf.mxu0
  %v1048 = vadd.f32 0.0, %v1047
  %v1049 = vpop.f32.mrf.mxu0
  %v1050 = vadd.f32 0.0, %v1049
  %1051 = vmatmul.bf16.gmra.mxu0 %v681
  %v1052 = vpop.f32.mrf.mxu0
  %v1053 = vadd.f32 0.0, %v1052
  %v1054 = vpop.f32.mrf.mxu0
  %v1055 = vadd.f32 0.0, %v1054
  %1056 = vmatmul.bf16.gmra.mxu0 %v684
  %v1057 = vpop.f32.mrf.mxu0
  %v1058 = vadd.f32 0.0, %v1057
  %v1059 = vpop.f32.mrf.mxu0
  %v1060 = vadd.f32 0.0, %v1059
  %1061 = vmatmul.bf16.gmra.mxu0 %v687
  %v1062 = vpop.f32.mrf.mxu0
  %v1063 = vadd.f32 0.0, %v1062
  %v1064 = vpop.f32.mrf.mxu0
  %v1065 = vadd.f32 0.0, %v1064
  %1066 = vmatmul.bf16.gmra.mxu0 %v690
  %v1067 = vpop.f32.mrf.mxu0
  %v1068 = vadd.f32 0.0, %v1067
  %v1069 = vpop.f32.mrf.mxu0
  %v1070 = vadd.f32 0.0, %v1069
  %1071 = vmatmul.bf16.gmra.mxu0 %v693
  %v1072 = vpop.f32.mrf.mxu0
  %v1073 = vadd.f32 0.0, %v1072
  %v1074 = vpop.f32.mrf.mxu0
  %v1075 = vadd.f32 0.0, %v1074
  %1076 = vmatmul.bf16.gmra.mxu0 %v696
  %v1077 = vpop.f32.mrf.mxu0
  %v1078 = vadd.f32 0.0, %v1077
  %v1079 = vpop.f32.mrf.mxu0
  %v1080 = vadd.f32 0.0, %v1079
  %1081 = vmatmul.bf16.gmra.mxu0 %v699
  %v1082 = vpop.f32.mrf.mxu0
  %v1083 = vadd.f32 0.0, %v1082
  %v1084 = vpop.f32.mrf.mxu0
  %v1085 = vadd.f32 0.0, %v1084
  %1086 = vmatmul.bf16.gmra.mxu0 %v702
  %v1087 = vpop.f32.mrf.mxu0
  %v1088 = vadd.f32 0.0, %v1087
  %v1089 = vpop.f32.mrf.mxu0
  %v1090 = vadd.f32 0.0, %v1089
  %1091 = vmatmul.bf16.gmra.mxu0 %v705
  %v1092 = vpop.f32.mrf.mxu0
  %v1093 = vadd.f32 0.0, %v1092
  %v1094 = vpop.f32.mrf.mxu0
  %v1095 = vadd.f32 0.0, %v1094
  %1096 = vmatmul.bf16.gmra.mxu0 %v708
  %v1097 = vpop.f32.mrf.mxu0
  %v1098 = vadd.f32 0.0, %v1097
  %v1099 = vpop.f32.mrf.mxu0
  %v1100 = vadd.f32 0.0, %v1099
  %1101 = vmatmul.bf16.gmra.mxu0 %v711
  %v1102 = vpop.f32.mrf.mxu0
  %v1103 = vadd.f32 0.0, %v1102
  %v1104 = vpop.f32.mrf.mxu0
  %v1105 = vadd.f32 0.0, %v1104
  %1106 = vmatmul.bf16.gmra.mxu0 %v714
  %v1107 = vpop.f32.mrf.mxu0
  %v1108 = vadd.f32 0.0, %v1107
  %v1109 = vpop.f32.mrf.mxu0
  %v1110 = vadd.f32 0.0, %v1109
  %1111 = vmatmul.bf16.gmra.mxu0 %v717
  %v1112 = vpop.f32.mrf.mxu0
  %v1113 = vadd.f32 0.0, %v1112
  %v1114 = vpop.f32.mrf.mxu0
  %v1115 = vadd.f32 0.0, %v1114
  %1116 = vmatmul.bf16.gmra.mxu0 %v720
  %v1117 = vpop.f32.mrf.mxu0
  %v1118 = vadd.f32 0.0, %v1117
  %v1119 = vpop.f32.mrf.mxu0
  %v1120 = vadd.f32 0.0, %v1119
  %1121 = vmatmul.bf16.gmra.mxu0 %v723
  %v1122 = vpop.f32.mrf.mxu0
  %v1123 = vadd.f32 0.0, %v1122
  %v1124 = vpop.f32.mrf.mxu0
  %v1125 = vadd.f32 0.0, %v1124
  %1126 = vmatmul.bf16.gmra.mxu0 %v726
  %v1127 = vpop.f32.mrf.mxu0
  %v1128 = vadd.f32 0.0, %v1127
  %v1129 = vpop.f32.mrf.mxu0
  %v1130 = vadd.f32 0.0, %v1129
  %1131 = vmatmul.bf16.gmra.mxu0 %v729
  %v1132 = vpop.f32.mrf.mxu0
  %v1133 = vadd.f32 0.0, %v1132
  %v1134 = vpop.f32.mrf.mxu0
  %v1135 = vadd.f32 0.0, %v1134
  %1136 = vmatmul.bf16.gmra.mxu0 %v732
  %v1137 = vpop.f32.mrf.mxu0
  %v1138 = vadd.f32 0.0, %v1137
  %v1139 = vpop.f32.mrf.mxu0
  %v1140 = vadd.f32 0.0, %v1139
  %1141 = vmatmul.bf16.gmra.mxu0 %v735
  %v1142 = vpop.f32.mrf.mxu0
  %v1143 = vadd.f32 0.0, %v1142
  %v1144 = vpop.f32.mrf.mxu0
  %v1145 = vadd.f32 0.0, %v1144
  %1146 = vdwg.mxu0
  %1147 = vmatpush.bf16.msra.mxu0 %v945
  %1148 = vmatpush.bf16.msra.mxu0 %v944
  %1149 = vmatpush.bf16.msra.mxu0 %v943
  %1150 = vmatpush.bf16.msra.mxu0 %v942
  %1151 = vmatpush.bf16.msra.mxu0 %v941
  %1152 = vmatpush.bf16.msra.mxu0 %v940
  %1153 = vmatpush.bf16.msra.mxu0 %v939
  %1154 = vmatpush.bf16.msra.mxu0 %v938
  %1155 = vmatmul.bf16.gmra.mxu0 %v643
  %v1156 = vpop.f32.mrf.mxu0
  %v1157 = vadd.f32 %v988, %v1156
  %v1158 = vpop.f32.mrf.mxu0
  %v1159 = vadd.f32 %v990, %v1158
  %1160 = vmatmul.bf16.gmra.mxu0 %v646
  %v1161 = vpop.f32.mrf.mxu0
  %v1162 = vadd.f32 %v993, %v1161
  %v1163 = vpop.f32.mrf.mxu0
  %v1164 = vadd.f32 %v995, %v1163
  %1165 = vmatmul.bf16.gmra.mxu0 %v649
  %v1166 = vpop.f32.mrf.mxu0
  %v1167 = vadd.f32 %v998, %v1166
  %v1168 = vpop.f32.mrf.mxu0
  %v1169 = vadd.f32 %v1000, %v1168
  %1170 = vmatmul.bf16.gmra.mxu0 %v652
  %v1171 = vpop.f32.mrf.mxu0
  %v1172 = vadd.f32 %v1003, %v1171
  %v1173 = vpop.f32.mrf.mxu0
  %v1174 = vadd.f32 %v1005, %v1173
  %1175 = vmatmul.bf16.gmra.mxu0 %v655
  %v1176 = vpop.f32.mrf.mxu0
  %v1177 = vadd.f32 %v1008, %v1176
  %v1178 = vpop.f32.mrf.mxu0
  %v1179 = vadd.f32 %v1010, %v1178
  %1180 = vmatmul.bf16.gmra.mxu0 %v658
  %v1181 = vpop.f32.mrf.mxu0
  %v1182 = vadd.f32 %v1013, %v1181
  %v1183 = vpop.f32.mrf.mxu0
  %v1184 = vadd.f32 %v1015, %v1183
  %1185 = vmatmul.bf16.gmra.mxu0 %v661
  %v1186 = vpop.f32.mrf.mxu0
  %v1187 = vadd.f32 %v1018, %v1186
  %v1188 = vpop.f32.mrf.mxu0
  %v1189 = vadd.f32 %v1020, %v1188
  %1190 = vmatmul.bf16.gmra.mxu0 %v664
  %v1191 = vpop.f32.mrf.mxu0
  %v1192 = vadd.f32 %v1023, %v1191
  %v1193 = vpop.f32.mrf.mxu0
  %v1194 = vadd.f32 %v1025, %v1193
  %1195 = vmatmul.bf16.gmra.mxu0 %v667
  %v1196 = vpop.f32.mrf.mxu0
  %v1197 = vadd.f32 %v1028, %v1196
  %v1198 = vpop.f32.mrf.mxu0
  %v1199 = vadd.f32 %v1030, %v1198
  %1200 = vmatmul.bf16.gmra.mxu0 %v670
  %v1201 = vpop.f32.mrf.mxu0
  %v1202 = vadd.f32 %v1033, %v1201
  %v1203 = vpop.f32.mrf.mxu0
  %v1204 = vadd.f32 %v1035, %v1203
  %1205 = vmatmul.bf16.gmra.mxu0 %v673
  %v1206 = vpop.f32.mrf.mxu0
  %v1207 = vadd.f32 %v1038, %v1206
  %v1208 = vpop.f32.mrf.mxu0
  %v1209 = vadd.f32 %v1040, %v1208
  %1210 = vmatmul.bf16.gmra.mxu0 %v676
  %v1211 = vpop.f32.mrf.mxu0
  %v1212 = vadd.f32 %v1043, %v1211
  %v1213 = vpop.f32.mrf.mxu0
  %v1214 = vadd.f32 %v1045, %v1213
  %1215 = vmatmul.bf16.gmra.mxu0 %v679
  %v1216 = vpop.f32.mrf.mxu0
  %v1217 = vadd.f32 %v1048, %v1216
  %v1218 = vpop.f32.mrf.mxu0
  %v1219 = vadd.f32 %v1050, %v1218
  %1220 = vmatmul.bf16.gmra.mxu0 %v682
  %v1221 = vpop.f32.mrf.mxu0
  %v1222 = vadd.f32 %v1053, %v1221
  %v1223 = vpop.f32.mrf.mxu0
  %v1224 = vadd.f32 %v1055, %v1223
  %1225 = vmatmul.bf16.gmra.mxu0 %v685
  %v1226 = vpop.f32.mrf.mxu0
  %v1227 = vadd.f32 %v1058, %v1226
  %v1228 = vpop.f32.mrf.mxu0
  %v1229 = vadd.f32 %v1060, %v1228
  %1230 = vmatmul.bf16.gmra.mxu0 %v688
  %v1231 = vpop.f32.mrf.mxu0
  %v1232 = vadd.f32 %v1063, %v1231
  %v1233 = vpop.f32.mrf.mxu0
  %v1234 = vadd.f32 %v1065, %v1233
  %1235 = vmatmul.bf16.gmra.mxu0 %v691
  %v1236 = vpop.f32.mrf.mxu0
  %v1237 = vadd.f32 %v1068, %v1236
  %v1238 = vpop.f32.mrf.mxu0
  %v1239 = vadd.f32 %v1070, %v1238
  %1240 = vmatmul.bf16.gmra.mxu0 %v694
  %v1241 = vpop.f32.mrf.mxu0
  %v1242 = vadd.f32 %v1073, %v1241
  %v1243 = vpop.f32.mrf.mxu0
  %v1244 = vadd.f32 %v1075, %v1243
  %1245 = vmatmul.bf16.gmra.mxu0 %v697
  %v1246 = vpop.f32.mrf.mxu0
  %v1247 = vadd.f32 %v1078, %v1246
  %v1248 = vpop.f32.mrf.mxu0
  %v1249 = vadd.f32 %v1080, %v1248
  %1250 = vmatmul.bf16.gmra.mxu0 %v700
  %v1251 = vpop.f32.mrf.mxu0
  %v1252 = vadd.f32 %v1083, %v1251
  %v1253 = vpop.f32.mrf.mxu0
  %v1254 = vadd.f32 %v1085, %v1253
  %1255 = vmatmul.bf16.gmra.mxu0 %v703
  %v1256 = vpop.f32.mrf.mxu0
  %v1257 = vadd.f32 %v1088, %v1256
  %v1258 = vpop.f32.mrf.mxu0
  %v1259 = vadd.f32 %v1090, %v1258
  %1260 = vmatmul.bf16.gmra.mxu0 %v706
  %v1261 = vpop.f32.mrf.mxu0
  %v1262 = vadd.f32 %v1093, %v1261
  %v1263 = vpop.f32.mrf.mxu0
  %v1264 = vadd.f32 %v1095, %v1263
  %1265 = vmatmul.bf16.gmra.mxu0 %v709
  %v1266 = vpop.f32.mrf.mxu0
  %v1267 = vadd.f32 %v1098, %v1266
  %v1268 = vpop.f32.mrf.mxu0
  %v1269 = vadd.f32 %v1100, %v1268
  %1270 = vmatmul.bf16.gmra.mxu0 %v712
  %v1271 = vpop.f32.mrf.mxu0
  %v1272 = vadd.f32 %v1103, %v1271
  %v1273 = vpop.f32.mrf.mxu0
  %v1274 = vadd.f32 %v1105, %v1273
  %1275 = vmatmul.bf16.gmra.mxu0 %v715
  %v1276 = vpop.f32.mrf.mxu0
  %v1277 = vadd.f32 %v1108, %v1276
  %v1278 = vpop.f32.mrf.mxu0
  %v1279 = vadd.f32 %v1110, %v1278
  %1280 = vmatmul.bf16.gmra.mxu0 %v718
  %v1281 = vpop.f32.mrf.mxu0
  %v1282 = vadd.f32 %v1113, %v1281
  %v1283 = vpop.f32.mrf.mxu0
  %v1284 = vadd.f32 %v1115, %v1283
  %1285 = vmatmul.bf16.gmra.mxu0 %v721
  %v1286 = vpop.f32.mrf.mxu0
  %v1287 = vadd.f32 %v1118, %v1286
  %v1288 = vpop.f32.mrf.mxu0
  %v1289 = vadd.f32 %v1120, %v1288
  %1290 = vmatmul.bf16.gmra.mxu0 %v724
  %v1291 = vpop.f32.mrf.mxu0
  %v1292 = vadd.f32 %v1123, %v1291
  %v1293 = vpop.f32.mrf.mxu0
  %v1294 = vadd.f32 %v1125, %v1293
  %1295 = vmatmul.bf16.gmra.mxu0 %v727
  %v1296 = vpop.f32.mrf.mxu0
  %v1297 = vadd.f32 %v1128, %v1296
  %v1298 = vpop.f32.mrf.mxu0
  %v1299 = vadd.f32 %v1130, %v1298
  %1300 = vmatmul.bf16.gmra.mxu0 %v730
  %v1301 = vpop.f32.mrf.mxu0
  %v1302 = vadd.f32 %v1133, %v1301
  %v1303 = vpop.f32.mrf.mxu0
  %v1304 = vadd.f32 %v1135, %v1303
  %1305 = vmatmul.bf16.gmra.mxu0 %v733
  %v1306 = vpop.f32.mrf.mxu0
  %v1307 = vadd.f32 %v1138, %v1306
  %v1308 = vpop.f32.mrf.mxu0
  %v1309 = vadd.f32 %v1140, %v1308
  %1310 = vmatmul.bf16.gmra.mxu0 %v736
  %v1311 = vpop.f32.mrf.mxu0
  %v1312 = vadd.f32 %v1143, %v1311
  %v1313 = vpop.f32.mrf.mxu0
  %v1314 = vadd.f32 %v1145, %v1313
  %1315 = vdwg.mxu0
  %1316 = vmatpush.bf16.msra.mxu0 %v953
  %1317 = vmatpush.bf16.msra.mxu0 %v952
  %1318 = vmatpush.bf16.msra.mxu0 %v951
  %1319 = vmatpush.bf16.msra.mxu0 %v950
  %1320 = vmatpush.bf16.msra.mxu0 %v949
  %1321 = vmatpush.bf16.msra.mxu0 %v948
  %1322 = vmatpush.bf16.msra.mxu0 %v947
  %1323 = vmatpush.bf16.msra.mxu0 %v946
  %1324 = vmatmul.bf16.gmra.mxu0 %v644
  %v1325 = vpop.f32.mrf.mxu0
  %v1326 = vadd.f32 %v1157, %v1325
  %v1327 = vpop.f32.mrf.mxu0
  %v1328 = vadd.f32 %v1159, %v1327
  %1329 = vmatmul.bf16.gmra.mxu0 %v647
  %v1330 = vpop.f32.mrf.mxu0
  %v1331 = vadd.f32 %v1162, %v1330
  %v1332 = vpop.f32.mrf.mxu0
  %v1333 = vadd.f32 %v1164, %v1332
  %1334 = vmatmul.bf16.gmra.mxu0 %v650
  %v1335 = vpop.f32.mrf.mxu0
  %v1336 = vadd.f32 %v1167, %v1335
  %v1337 = vpop.f32.mrf.mxu0
  %v1338 = vadd.f32 %v1169, %v1337
  %1339 = vmatmul.bf16.gmra.mxu0 %v653
  %v1340 = vpop.f32.mrf.mxu0
  %v1341 = vadd.f32 %v1172, %v1340
  %v1342 = vpop.f32.mrf.mxu0
  %v1343 = vadd.f32 %v1174, %v1342
  %1344 = vmatmul.bf16.gmra.mxu0 %v656
  %v1345 = vpop.f32.mrf.mxu0
  %v1346 = vadd.f32 %v1177, %v1345
  %v1347 = vpop.f32.mrf.mxu0
  %v1348 = vadd.f32 %v1179, %v1347
  %1349 = vmatmul.bf16.gmra.mxu0 %v659
  %v1350 = vpop.f32.mrf.mxu0
  %v1351 = vadd.f32 %v1182, %v1350
  %v1352 = vpop.f32.mrf.mxu0
  %v1353 = vadd.f32 %v1184, %v1352
  %1354 = vmatmul.bf16.gmra.mxu0 %v662
  %v1355 = vpop.f32.mrf.mxu0
  %v1356 = vadd.f32 %v1187, %v1355
  %v1357 = vpop.f32.mrf.mxu0
  %v1358 = vadd.f32 %v1189, %v1357
  %1359 = vmatmul.bf16.gmra.mxu0 %v665
  %v1360 = vpop.f32.mrf.mxu0
  %v1361 = vadd.f32 %v1192, %v1360
  %v1362 = vpop.f32.mrf.mxu0
  %v1363 = vadd.f32 %v1194, %v1362
  %1364 = vmatmul.bf16.gmra.mxu0 %v668
  %v1365 = vpop.f32.mrf.mxu0
  %v1366 = vadd.f32 %v1197, %v1365
  %v1367 = vpop.f32.mrf.mxu0
  %v1368 = vadd.f32 %v1199, %v1367
  %1369 = vmatmul.bf16.gmra.mxu0 %v671
  %v1370 = vpop.f32.mrf.mxu0
  %v1371 = vadd.f32 %v1202, %v1370
  %v1372 = vpop.f32.mrf.mxu0
  %v1373 = vadd.f32 %v1204, %v1372
  %1374 = vmatmul.bf16.gmra.mxu0 %v674
  %v1375 = vpop.f32.mrf.mxu0
  %v1376 = vadd.f32 %v1207, %v1375
  %v1377 = vpop.f32.mrf.mxu0
  %v1378 = vadd.f32 %v1209, %v1377
  %1379 = vmatmul.bf16.gmra.mxu0 %v677
  %v1380 = vpop.f32.mrf.mxu0
  %v1381 = vadd.f32 %v1212, %v1380
  %v1382 = vpop.f32.mrf.mxu0
  %v1383 = vadd.f32 %v1214, %v1382
  %1384 = vmatmul.bf16.gmra.mxu0 %v680
  %v1385 = vpop.f32.mrf.mxu0
  %v1386 = vadd.f32 %v1217, %v1385
  %v1387 = vpop.f32.mrf.mxu0
  %v1388 = vadd.f32 %v1219, %v1387
  %1389 = vmatmul.bf16.gmra.mxu0 %v683
  %v1390 = vpop.f32.mrf.mxu0
  %v1391 = vadd.f32 %v1222, %v1390
  %v1392 = vpop.f32.mrf.mxu0
  %v1393 = vadd.f32 %v1224, %v1392
  %1394 = vmatmul.bf16.gmra.mxu0 %v686
  %v1395 = vpop.f32.mrf.mxu0
  %v1396 = vadd.f32 %v1227, %v1395
  %v1397 = vpop.f32.mrf.mxu0
  %v1398 = vadd.f32 %v1229, %v1397
  %1399 = vmatmul.bf16.gmra.mxu0 %v689
  %v1400 = vpop.f32.mrf.mxu0
  %v1401 = vadd.f32 %v1232, %v1400
  %v1402 = vpop.f32.mrf.mxu0
  %v1403 = vadd.f32 %v1234, %v1402
  %1404 = vmatmul.bf16.gmra.mxu0 %v692
  %v1405 = vpop.f32.mrf.mxu0
  %v1406 = vadd.f32 %v1237, %v1405
  %v1407 = vpop.f32.mrf.mxu0
  %v1408 = vadd.f32 %v1239, %v1407
  %1409 = vmatmul.bf16.gmra.mxu0 %v695
  %v1410 = vpop.f32.mrf.mxu0
  %v1411 = vadd.f32 %v1242, %v1410
  %v1412 = vpop.f32.mrf.mxu0
  %v1413 = vadd.f32 %v1244, %v1412
  %1414 = vmatmul.bf16.gmra.mxu0 %v698
  %v1415 = vpop.f32.mrf.mxu0
  %v1416 = vadd.f32 %v1247, %v1415
  %v1417 = vpop.f32.mrf.mxu0
  %v1418 = vadd.f32 %v1249, %v1417
  %1419 = vmatmul.bf16.gmra.mxu0 %v701
  %v1420 = vpop.f32.mrf.mxu0
  %v1421 = vadd.f32 %v1252, %v1420
  %v1422 = vpop.f32.mrf.mxu0
  %v1423 = vadd.f32 %v1254, %v1422
  %1424 = vmatmul.bf16.gmra.mxu0 %v704
  %v1425 = vpop.f32.mrf.mxu0
  %v1426 = vadd.f32 %v1257, %v1425
  %v1427 = vpop.f32.mrf.mxu0
  %v1428 = vadd.f32 %v1259, %v1427
  %1429 = vmatmul.bf16.gmra.mxu0 %v707
  %v1430 = vpop.f32.mrf.mxu0
  %v1431 = vadd.f32 %v1262, %v1430
  %v1432 = vpop.f32.mrf.mxu0
  %v1433 = vadd.f32 %v1264, %v1432
  %1434 = vmatmul.bf16.gmra.mxu0 %v710
  %v1435 = vpop.f32.mrf.mxu0
  %v1436 = vadd.f32 %v1267, %v1435
  %v1437 = vpop.f32.mrf.mxu0
  %v1438 = vadd.f32 %v1269, %v1437
  %1439 = vmatmul.bf16.gmra.mxu0 %v713
  %v1440 = vpop.f32.mrf.mxu0
  %v1441 = vadd.f32 %v1272, %v1440
  %v1442 = vpop.f32.mrf.mxu0
  %v1443 = vadd.f32 %v1274, %v1442
  %1444 = vmatmul.bf16.gmra.mxu0 %v716
  %v1445 = vpop.f32.mrf.mxu0
  %v1446 = vadd.f32 %v1277, %v1445
  %v1447 = vpop.f32.mrf.mxu0
  %v1448 = vadd.f32 %v1279, %v1447
  %1449 = vmatmul.bf16.gmra.mxu0 %v719
  %v1450 = vpop.f32.mrf.mxu0
  %v1451 = vadd.f32 %v1282, %v1450
  %v1452 = vpop.f32.mrf.mxu0
  %v1453 = vadd.f32 %v1284, %v1452
  %1454 = vmatmul.bf16.gmra.mxu0 %v722
  %v1455 = vpop.f32.mrf.mxu0
  %v1456 = vadd.f32 %v1287, %v1455
  %v1457 = vpop.f32.mrf.mxu0
  %v1458 = vadd.f32 %v1289, %v1457
  %1459 = vmatmul.bf16.gmra.mxu0 %v725
  %v1460 = vpop.f32.mrf.mxu0
  %v1461 = vadd.f32 %v1292, %v1460
  %v1462 = vpop.f32.mrf.mxu0
  %v1463 = vadd.f32 %v1294, %v1462
  %1464 = vmatmul.bf16.gmra.mxu0 %v728
  %v1465 = vpop.f32.mrf.mxu0
  %v1466 = vadd.f32 %v1297, %v1465
  %v1467 = vpop.f32.mrf.mxu0
  %v1468 = vadd.f32 %v1299, %v1467
  %1469 = vmatmul.bf16.gmra.mxu0 %v731
  %v1470 = vpop.f32.mrf.mxu0
  %v1471 = vadd.f32 %v1302, %v1470
  %v1472 = vpop.f32.mrf.mxu0
  %v1473 = vadd.f32 %v1304, %v1472
  %1474 = vmatmul.bf16.gmra.mxu0 %v734
  %v1475 = vpop.f32.mrf.mxu0
  %v1476 = vadd.f32 %v1307, %v1475
  %v1477 = vpop.f32.mrf.mxu0
  %v1478 = vadd.f32 %v1309, %v1477
  %1479 = vmatmul.bf16.gmra.mxu0 %v737
  %v1480 = vpop.f32.mrf.mxu0
  %v1481 = vadd.f32 %v1312, %v1480
  %v1482 = vpop.f32.mrf.mxu0
  %v1483 = vadd.f32 %v1314, %v1482
  %1484 = vdwg.mxu0
  %v1485 = vadd.f32 %v82, %v1326
  %v1486 = vadd.f32 %v83, %v1328
  %v1487 = vadd.f32 %v84, %v1331
  %v1488 = vadd.f32 %v85, %v1333
  %v1489 = vadd.f32 %v86, %v1336
  %v1490 = vadd.f32 %v87, %v1338
  %v1491 = vadd.f32 %v88, %v1341
  %v1492 = vadd.f32 %v89, %v1343
  %v1493 = vadd.f32 %v90, %v1346
  %v1494 = vadd.f32 %v91, %v1348
  %v1495 = vadd.f32 %v92, %v1351
  %v1496 = vadd.f32 %v93, %v1353
  %v1497 = vadd.f32 %v94, %v1356
  %v1498 = vadd.f32 %v95, %v1358
  %v1499 = vadd.f32 %v96, %v1361
  %v1500 = vadd.f32 %v97, %v1363
  %v1501 = vadd.f32 %v98, %v1366
  %v1502 = vadd.f32 %v99, %v1368
  %v1503 = vadd.f32 %v100, %v1371
  %v1504 = vadd.f32 %v101, %v1373
  %v1505 = vadd.f32 %v102, %v1376
  %v1506 = vadd.f32 %v103, %v1378
  %v1507 = vadd.f32 %v104, %v1381
  %v1508 = vadd.f32 %v105, %v1383
  %v1509 = vadd.f32 %v106, %v1386
  %v1510 = vadd.f32 %v107, %v1388
  %v1511 = vadd.f32 %v108, %v1391
  %v1512 = vadd.f32 %v109, %v1393
  %v1513 = vadd.f32 %v110, %v1396
  %v1514 = vadd.f32 %v111, %v1398
  %v1515 = vadd.f32 %v112, %v1401
  %v1516 = vadd.f32 %v113, %v1403
  %v1517 = vadd.f32 %v114, %v1406
  %v1518 = vadd.f32 %v115, %v1408
  %v1519 = vadd.f32 %v116, %v1411
  %v1520 = vadd.f32 %v117, %v1413
  %v1521 = vadd.f32 %v118, %v1416
  %v1522 = vadd.f32 %v119, %v1418
  %v1523 = vadd.f32 %v120, %v1421
  %v1524 = vadd.f32 %v121, %v1423
  %v1525 = vadd.f32 %v122, %v1426
  %v1526 = vadd.f32 %v123, %v1428
  %v1527 = vadd.f32 %v124, %v1431
  %v1528 = vadd.f32 %v125, %v1433
  %v1529 = vadd.f32 %v126, %v1436
  %v1530 = vadd.f32 %v127, %v1438
  %v1531 = vadd.f32 %v128, %v1441
  %v1532 = vadd.f32 %v129, %v1443
  %v1533 = vadd.f32 %v130, %v1446
  %v1534 = vadd.f32 %v131, %v1448
  %v1535 = vadd.f32 %v132, %v1451
  %v1536 = vadd.f32 %v133, %v1453
  %v1537 = vadd.f32 %v134, %v1456
  %v1538 = vadd.f32 %v135, %v1458
  %v1539 = vadd.f32 %v136, %v1461
  %v1540 = vadd.f32 %v137, %v1463
  %v1541 = vadd.f32 %v138, %v1466
  %v1542 = vadd.f32 %v139, %v1468
  %v1543 = vadd.f32 %v140, %v1471
  %v1544 = vadd.f32 %v141, %v1473
  %v1545 = vadd.f32 %v142, %v1476
  %v1546 = vadd.f32 %v143, %v1478
  %v1547 = vadd.f32 %v144, %v1481
  %v1548 = vadd.f32 %v145, %v1483
  %1549 = vst [vmem:[#allocation2] sm:$0xff] %v1485
  %1550 = vst [vmem:[#allocation2 + $0x8] sm:$0xff] %v1486
  %1551 = vst [vmem:[#allocation2 + $0x10] sm:$0xff] %v1487
  %1552 = vst [vmem:[#allocation2 + $0x18] sm:$0xff] %v1488
  %1553 = vst [vmem:[#allocation2 + $0x20] sm:$0xff] %v1489
  %1554 = vst [vmem:[#allocation2 + $0x28] sm:$0xff] %v1490
  %1555 = vst [vmem:[#allocation2 + $0x30] sm:$0xff] %v1491
  %1556 = vst [vmem:[#allocation2 + $0x38] sm:$0xff] %v1492
  %1557 = vst [vmem:[#allocation2 + $0x40] sm:$0xff] %v1493
  %1558 = vst [vmem:[#allocation2 + $0x48] sm:$0xff] %v1494
  %1559 = vst [vmem:[#allocation2 + $0x50] sm:$0xff] %v1495
  %1560 = vst [vmem:[#allocation2 + $0x58] sm:$0xff] %v1496
  %1561 = vst [vmem:[#allocation2 + $0x60] sm:$0xff] %v1497
  %1562 = vst [vmem:[#allocation2 + $0x68] sm:$0xff] %v1498
  %1563 = vst [vmem:[#allocation2 + $0x70] sm:$0xff] %v1499
  %1564 = vst [vmem:[#allocation2 + $0x78] sm:$0xff] %v1500
  %1565 = vst [vmem:[#allocation2 + $0x80] sm:$0xff] %v1501
  %1566 = vst [vmem:[#allocation2 + $0x88] sm:$0xff] %v1502
  %1567 = vst [vmem:[#allocation2 + $0x90] sm:$0xff] %v1503
  %1568 = vst [vmem:[#allocation2 + $0x98] sm:$0xff] %v1504
  %1569 = vst [vmem:[#allocation2 + $0xa0] sm:$0xff] %v1505
  %1570 = vst [vmem:[#allocation2 + $0xa8] sm:$0xff] %v1506
  %1571 = vst [vmem:[#allocation2 + $0xb0] sm:$0xff] %v1507
  %1572 = vst [vmem:[#allocation2 + $0xb8] sm:$0xff] %v1508
  %1573 = vst [vmem:[#allocation2 + $0xc0] sm:$0xff] %v1509
  %1574 = vst [vmem:[#allocation2 + $0xc8] sm:$0xff] %v1510
  %1575 = vst [vmem:[#allocation2 + $0xd0] sm:$0xff] %v1511
  %1576 = vst [vmem:[#allocation2 + $0xd8] sm:$0xff] %v1512
  %1577 = vst [vmem:[#allocation2 + $0xe0] sm:$0xff] %v1513
  %1578 = vst [vmem:[#allocation2 + $0xe8] sm:$0xff] %v1514
  %1579 = vst [vmem:[#allocation2 + $0xf0] sm:$0xff] %v1515
  %1580 = vst [vmem:[#allocation2 + $0xf8] sm:$0xff] %v1516
  %1581 = vst [vmem:[#allocation2 + $0x100] sm:$0xff] %v1517
  %1582 = vst [vmem:[#allocation2 + $0x108] sm:$0xff] %v1518
  %1583 = vst [vmem:[#allocation2 + $0x110] sm:$0xff] %v1519
  %1584 = vst [vmem:[#allocation2 + $0x118] sm:$0xff] %v1520
  %1585 = vst [vmem:[#allocation2 + $0x120] sm:$0xff] %v1521
  %1586 = vst [vmem:[#allocation2 + $0x128] sm:$0xff] %v1522
  %1587 = vst [vmem:[#allocation2 + $0x130] sm:$0xff] %v1523
  %1588 = vst [vmem:[#allocation2 + $0x138] sm:$0xff] %v1524
  %1589 = vst [vmem:[#allocation2 + $0x140] sm:$0xff] %v1525
  %1590 = vst [vmem:[#allocation2 + $0x148] sm:$0xff] %v1526
  %1591 = vst [vmem:[#allocation2 + $0x150] sm:$0xff] %v1527
  %1592 = vst [vmem:[#allocation2 + $0x158] sm:$0xff] %v1528
  %1593 = vst [vmem:[#allocation2 + $0x160] sm:$0xff] %v1529
  %1594 = vst [vmem:[#allocation2 + $0x168] sm:$0xff] %v1530
  %1595 = vst [vmem:[#allocation2 + $0x170] sm:$0xff] %v1531
  %1596 = vst [vmem:[#allocation2 + $0x178] sm:$0xff] %v1532
  %1597 = vst [vmem:[#allocation2 + $0x180] sm:$0xff] %v1533
  %1598 = vst [vmem:[#allocation2 + $0x188] sm:$0xff] %v1534
  %1599 = vst [vmem:[#allocation2 + $0x190] sm:$0xff] %v1535
  %1600 = vst [vmem:[#allocation2 + $0x198] sm:$0xff] %v1536
  %1601 = vst [vmem:[#allocation2 + $0x1a0] sm:$0xff] %v1537
  %1602 = vst [vmem:[#allocation2 + $0x1a8] sm:$0xff] %v1538
  %1603 = vst [vmem:[#allocation2 + $0x1b0] sm:$0xff] %v1539
  %1604 = vst [vmem:[#allocation2 + $0x1b8] sm:$0xff] %v1540
  %1605 = vst [vmem:[#allocation2 + $0x1c0] sm:$0xff] %v1541
  %1606 = vst [vmem:[#allocation2 + $0x1c8] sm:$0xff] %v1542
  %1607 = vst [vmem:[#allocation2 + $0x1d0] sm:$0xff] %v1543
  %1608 = vst [vmem:[#allocation2 + $0x1d8] sm:$0xff] %v1544
  %1609 = vst [vmem:[#allocation2 + $0x1e0] sm:$0xff] %v1545
  %1610 = vst [vmem:[#allocation2 + $0x1e8] sm:$0xff] %v1546
  %1611 = vst [vmem:[#allocation2 + $0x1f0] sm:$0xff] %v1547
  %1612 = vst [vmem:[#allocation2 + $0x1f8] sm:$0xff] %v1548
  // Predicated region
  $region18: #{syn_model_forward.381} parent=0 // pred_check
    %p1613 = pneg %p14
  $region19: #{syn_model_forward.381} parent=0 // pred_check_branch
    %1615 = sbr.rel (%p1613) target = $region21
  $region20: #{syn_model_forward.381} parent=0 // pred_region
    %v1616 = vld [vmem:[#allocation2] sm:$0xff]
    %v1617 = vld [vmem:[#allocation2 + $0x8] sm:$0xff]
    %v1618 = vld [vmem:[#allocation2 + $0x10] sm:$0xff]
    %v1619 = vld [vmem:[#allocation2 + $0x18] sm:$0xff]
    %v1620 = vld [vmem:[#allocation2 + $0x20] sm:$0xff]
    %v1621 = vld [vmem:[#allocation2 + $0x28] sm:$0xff]
    %v1622 = vld [vmem:[#allocation2 + $0x30] sm:$0xff]
    %v1623 = vld [vmem:[#allocation2 + $0x38] sm:$0xff]
    %v1624 = vld [vmem:[#allocation2 + $0x40] sm:$0xff]
    %v1625 = vld [vmem:[#allocation2 + $0x48] sm:$0xff]
    %v1626 = vld [vmem:[#allocation2 + $0x50] sm:$0xff]
    %v1627 = vld [vmem:[#allocation2 + $0x58] sm:$0xff]
    %v1628 = vld [vmem:[#allocation2 + $0x60] sm:$0xff]
    %v1629 = vld [vmem:[#allocation2 + $0x68] sm:$0xff]
    %v1630 = vld [vmem:[#allocation2 + $0x70] sm:$0xff]
    %v1631 = vld [vmem:[#allocation2 + $0x78] sm:$0xff]
    %v1632 = vld [vmem:[#allocation2 + $0x80] sm:$0xff]
    %v1633 = vld [vmem:[#allocation2 + $0x88] sm:$0xff]
    %v1634 = vld [vmem:[#allocation2 + $0x90] sm:$0xff]
    %v1635 = vld [vmem:[#allocation2 + $0x98] sm:$0xff]
    %v1636 = vld [vmem:[#allocation2 + $0xa0] sm:$0xff]
    %v1637 = vld [vmem:[#allocation2 + $0xa8] sm:$0xff]
    %v1638 = vld [vmem:[#allocation2 + $0xb0] sm:$0xff]
    %v1639 = vld [vmem:[#allocation2 + $0xb8] sm:$0xff]
    %v1640 = vld [vmem:[#allocation2 + $0xc0] sm:$0xff]
    %v1641 = vld [vmem:[#allocation2 + $0xc8] sm:$0xff]
    %v1642 = vld [vmem:[#allocation2 + $0xd0] sm:$0xff]
    %v1643 = vld [vmem:[#allocation2 + $0xd8] sm:$0xff]
    %v1644 = vld [vmem:[#allocation2 + $0xe0] sm:$0xff]
    %v1645 = vld [vmem:[#allocation2 + $0xe8] sm:$0xff]
    %v1646 = vld [vmem:[#allocation2 + $0xf0] sm:$0xff]
    %v1647 = vld [vmem:[#allocation2 + $0xf8] sm:$0xff]
    %v1648 = vld [vmem:[#allocation2 + $0x100] sm:$0xff]
    %v1649 = vld [vmem:[#allocation2 + $0x108] sm:$0xff]
    %v1650 = vld [vmem:[#allocation2 + $0x110] sm:$0xff]
    %v1651 = vld [vmem:[#allocation2 + $0x118] sm:$0xff]
    %v1652 = vld [vmem:[#allocation2 + $0x120] sm:$0xff]
    %v1653 = vld [vmem:[#allocation2 + $0x128] sm:$0xff]
    %v1654 = vld [vmem:[#allocation2 + $0x130] sm:$0xff]
    %v1655 = vld [vmem:[#allocation2 + $0x138] sm:$0xff]
    %v1656 = vld [vmem:[#allocation2 + $0x140] sm:$0xff]
    %v1657 = vld [vmem:[#allocation2 + $0x148] sm:$0xff]
    %v1658 = vld [vmem:[#allocation2 + $0x150] sm:$0xff]
    %v1659 = vld [vmem:[#allocation2 + $0x158] sm:$0xff]
    %v1660 = vld [vmem:[#allocation2 + $0x160] sm:$0xff]
    %v1661 = vld [vmem:[#allocation2 + $0x168] sm:$0xff]
    %v1662 = vld [vmem:[#allocation2 + $0x170] sm:$0xff]
    %v1663 = vld [vmem:[#allocation2 + $0x178] sm:$0xff]
    %v1664 = vld [vmem:[#allocation2 + $0x180] sm:$0xff]
    %v1665 = vld [vmem:[#allocation2 + $0x188] sm:$0xff]
    %v1666 = vld [vmem:[#allocation2 + $0x190] sm:$0xff]
    %v1667 = vld [vmem:[#allocation2 + $0x198] sm:$0xff]
    %v1668 = vld [vmem:[#allocation2 + $0x1a0] sm:$0xff]
    %v1669 = vld [vmem:[#allocation2 + $0x1a8] sm:$0xff]
    %v1670 = vld [vmem:[#allocation2 + $0x1b0] sm:$0xff]
    %v1671 = vld [vmem:[#allocation2 + $0x1b8] sm:$0xff]
    %v1672 = vld [vmem:[#allocation2 + $0x1c0] sm:$0xff]
    %v1673 = vld [vmem:[#allocation2 + $0x1c8] sm:$0xff]
    %v1674 = vld [vmem:[#allocation2 + $0x1d0] sm:$0xff]
    %v1675 = vld [vmem:[#allocation2 + $0x1d8] sm:$0xff]
    %v1676 = vld [vmem:[#allocation2 + $0x1e0] sm:$0xff]
    %v1677 = vld [vmem:[#allocation2 + $0x1e8] sm:$0xff]
    %v1678 = vld [vmem:[#allocation2 + $0x1f0] sm:$0xff]
    %v1679 = vld [vmem:[#allocation2 + $0x1f8] sm:$0xff]
    %v1680 = vld [vmem:[%s2] sm:$0x1]
    %v1682 = vperm.slane %v1680, 0
    %v1684 = vadd.f32 %v1616, %v1682
    %v1685 = vadd.f32 %v1617, %v1682
    %v1686 = vadd.f32 %v1618, %v1682
    %v1687 = vadd.f32 %v1619, %v1682
    %v1688 = vadd.f32 %v1620, %v1682
    %v1689 = vadd.f32 %v1621, %v1682
    %v1690 = vadd.f32 %v1622, %v1682
    %v1691 = vadd.f32 %v1623, %v1682
    %v1692 = vadd.f32 %v1624, %v1682
    %v1693 = vadd.f32 %v1625, %v1682
    %v1694 = vadd.f32 %v1626, %v1682
    %v1695 = vadd.f32 %v1627, %v1682
    %v1696 = vadd.f32 %v1628, %v1682
    %v1697 = vadd.f32 %v1629, %v1682
    %v1698 = vadd.f32 %v1630, %v1682
    %v1699 = vadd.f32 %v1631, %v1682
    %v1700 = vadd.f32 %v1632, %v1682
    %v1701 = vadd.f32 %v1633, %v1682
    %v1702 = vadd.f32 %v1634, %v1682
    %v1703 = vadd.f32 %v1635, %v1682
    %v1704 = vadd.f32 %v1636, %v1682
    %v1705 = vadd.f32 %v1637, %v1682
    %v1706 = vadd.f32 %v1638, %v1682
    %v1707 = vadd.f32 %v1639, %v1682
    %v1708 = vadd.f32 %v1640, %v1682
    %v1709 = vadd.f32 %v1641, %v1682
    %v1710 = vadd.f32 %v1642, %v1682
    %v1711 = vadd.f32 %v1643, %v1682
    %v1712 = vadd.f32 %v1644, %v1682
    %v1713 = vadd.f32 %v1645, %v1682
    %v1714 = vadd.f32 %v1646, %v1682
    %v1715 = vadd.f32 %v1647, %v1682
    %v1716 = vadd.f32 %v1648, %v1682
    %v1717 = vadd.f32 %v1649, %v1682
    %v1718 = vadd.f32 %v1650, %v1682
    %v1719 = vadd.f32 %v1651, %v1682
    %v1720 = vadd.f32 %v1652, %v1682
    %v1721 = vadd.f32 %v1653, %v1682
    %v1722 = vadd.f32 %v1654, %v1682
    %v1723 = vadd.f32 %v1655, %v1682
    %v1724 = vadd.f32 %v1656, %v1682
    %v1725 = vadd.f32 %v1657, %v1682
    %v1726 = vadd.f32 %v1658, %v1682
    %v1727 = vadd.f32 %v1659, %v1682
    %v1728 = vadd.f32 %v1660, %v1682
    %v1729 = vadd.f32 %v1661, %v1682
    %v1730 = vadd.f32 %v1662, %v1682
    %v1731 = vadd.f32 %v1663, %v1682
    %v1732 = vadd.f32 %v1664, %v1682
    %v1733 = vadd.f32 %v1665, %v1682
    %v1734 = vadd.f32 %v1666, %v1682
    %v1735 = vadd.f32 %v1667, %v1682
    %v1736 = vadd.f32 %v1668, %v1682
    %v1737 = vadd.f32 %v1669, %v1682
    %v1738 = vadd.f32 %v1670, %v1682
    %v1739 = vadd.f32 %v1671, %v1682
    %v1740 = vadd.f32 %v1672, %v1682
    %v1741 = vadd.f32 %v1673, %v1682
    %v1742 = vadd.f32 %v1674, %v1682
    %v1743 = vadd.f32 %v1675, %v1682
    %v1744 = vadd.f32 %v1676, %v1682
    %v1745 = vadd.f32 %v1677, %v1682
    %v1746 = vadd.f32 %v1678, %v1682
    %v1747 = vadd.f32 %v1679, %v1682
    %v1748 = vmax.f32 %v1684, 0.0
    %v1749 = vmax.f32 %v1685, 0.0
    %v1750 = vmax.f32 %v1686, 0.0
    %v1751 = vmax.f32 %v1687, 0.0
    %v1752 = vmax.f32 %v1688, 0.0
    %v1753 = vmax.f32 %v1689, 0.0
    %v1754 = vmax.f32 %v1690, 0.0
    %v1755 = vmax.f32 %v1691, 0.0
    %v1756 = vmax.f32 %v1692, 0.0
    %v1757 = vmax.f32 %v1693, 0.0
    %v1758 = vmax.f32 %v1694, 0.0
    %v1759 = vmax.f32 %v1695, 0.0
    %v1760 = vmax.f32 %v1696, 0.0
    %v1761 = vmax.f32 %v1697, 0.0
    %v1762 = vmax.f32 %v1698, 0.0
    %v1763 = vmax.f32 %v1699, 0.0
    %v1764 = vmax.f32 %v1700, 0.0
    %v1765 = vmax.f32 %v1701, 0.0
    %v1766 = vmax.f32 %v1702, 0.0
    %v1767 = vmax.f32 %v1703, 0.0
    %v1768 = vmax.f32 %v1704, 0.0
    %v1769 = vmax.f32 %v1705, 0.0
    %v1770 = vmax.f32 %v1706, 0.0
    %v1771 = vmax.f32 %v1707, 0.0
    %v1772 = vmax.f32 %v1708, 0.0
    %v1773 = vmax.f32 %v1709, 0.0
    %v1774 = vmax.f32 %v1710, 0.0
    %v1775 = vmax.f32 %v1711, 0.0
    %v1776 = vmax.f32 %v1712, 0.0
    %v1777 = vmax.f32 %v1713, 0.0
    %v1778 = vmax.f32 %v1714, 0.0
    %v1779 = vmax.f32 %v1715, 0.0
    %v1780 = vmax.f32 %v1716, 0.0
    %v1781 = vmax.f32 %v1717, 0.0
    %v1782 = vmax.f32 %v1718, 0.0
    %v1783 = vmax.f32 %v1719, 0.0
    %v1784 = vmax.f32 %v1720, 0.0
    %v1785 = vmax.f32 %v1721, 0.0
    %v1786 = vmax.f32 %v1722, 0.0
    %v1787 = vmax.f32 %v1723, 0.0
    %v1788 = vmax.f32 %v1724, 0.0
    %v1789 = vmax.f32 %v1725, 0.0
    %v1790 = vmax.f32 %v1726, 0.0
    %v1791 = vmax.f32 %v1727, 0.0
    %v1792 = vmax.f32 %v1728, 0.0
    %v1793 = vmax.f32 %v1729, 0.0
    %v1794 = vmax.f32 %v1730, 0.0
    %v1795 = vmax.f32 %v1731, 0.0
    %v1796 = vmax.f32 %v1732, 0.0
    %v1797 = vmax.f32 %v1733, 0.0
    %v1798 = vmax.f32 %v1734, 0.0
    %v1799 = vmax.f32 %v1735, 0.0
    %v1800 = vmax.f32 %v1736, 0.0
    %v1801 = vmax.f32 %v1737, 0.0
    %v1802 = vmax.f32 %v1738, 0.0
    %v1803 = vmax.f32 %v1739, 0.0
    %v1804 = vmax.f32 %v1740, 0.0
    %v1805 = vmax.f32 %v1741, 0.0
    %v1806 = vmax.f32 %v1742, 0.0
    %v1807 = vmax.f32 %v1743, 0.0
    %v1808 = vmax.f32 %v1744, 0.0
    %v1809 = vmax.f32 %v1745, 0.0
    %v1810 = vmax.f32 %v1746, 0.0
    %v1811 = vmax.f32 %v1747, 0.0
    %1812 = vst [vmem:[%s3] sm:$0xff] %v1748
    %1813 = vst [vmem:[%s3 + $0x8] sm:$0xff] %v1749
    %1814 = vst [vmem:[%s3 + $0x10] sm:$0xff] %v1750
    %1815 = vst [vmem:[%s3 + $0x18] sm:$0xff] %v1751
    %1816 = vst [vmem:[%s3 + $0x20] sm:$0xff] %v1752
    %1817 = vst [vmem:[%s3 + $0x28] sm:$0xff] %v1753
    %1818 = vst [vmem:[%s3 + $0x30] sm:$0xff] %v1754
    %1819 = vst [vmem:[%s3 + $0x38] sm:$0xff] %v1755
    %1820 = vst [vmem:[%s3 + $0x40] sm:$0xff] %v1756
    %1821 = vst [vmem:[%s3 + $0x48] sm:$0xff] %v1757
    %1822 = vst [vmem:[%s3 + $0x50] sm:$0xff] %v1758
    %1823 = vst [vmem:[%s3 + $0x58] sm:$0xff] %v1759
    %1824 = vst [vmem:[%s3 + $0x60] sm:$0xff] %v1760
    %1825 = vst [vmem:[%s3 + $0x68] sm:$0xff] %v1761
    %1826 = vst [vmem:[%s3 + $0x70] sm:$0xff] %v1762
    %1827 = vst [vmem:[%s3 + $0x78] sm:$0xff] %v1763
    %1828 = vst [vmem:[%s3 + $0x80] sm:$0xff] %v1764
    %1829 = vst [vmem:[%s3 + $0x88] sm:$0xff] %v1765
    %1830 = vst [vmem:[%s3 + $0x90] sm:$0xff] %v1766
    %1831 = vst [vmem:[%s3 + $0x98] sm:$0xff] %v1767
    %1832 = vst [vmem:[%s3 + $0xa0] sm:$0xff] %v1768
    %1833 = vst [vmem:[%s3 + $0xa8] sm:$0xff] %v1769
    %1834 = vst [vmem:[%s3 + $0xb0] sm:$0xff] %v1770
    %1835 = vst [vmem:[%s3 + $0xb8] sm:$0xff] %v1771
    %1836 = vst [vmem:[%s3 + $0xc0] sm:$0xff] %v1772
    %1837 = vst [vmem:[%s3 + $0xc8] sm:$0xff] %v1773
    %1838 = vst [vmem:[%s3 + $0xd0] sm:$0xff] %v1774
    %1839 = vst [vmem:[%s3 + $0xd8] sm:$0xff] %v1775
    %1840 = vst [vmem:[%s3 + $0xe0] sm:$0xff] %v1776
    %1841 = vst [vmem:[%s3 + $0xe8] sm:$0xff] %v1777
    %1842 = vst [vmem:[%s3 + $0xf0] sm:$0xff] %v1778
    %1843 = vst [vmem:[%s3 + $0xf8] sm:$0xff] %v1779
    %1844 = vst [vmem:[%s3 + $0x100] sm:$0xff] %v1780
    %1845 = vst [vmem:[%s3 + $0x108] sm:$0xff] %v1781
    %1846 = vst [vmem:[%s3 + $0x110] sm:$0xff] %v1782
    %1847 = vst [vmem:[%s3 + $0x118] sm:$0xff] %v1783
    %1848 = vst [vmem:[%s3 + $0x120] sm:$0xff] %v1784
    %1849 = vst [vmem:[%s3 + $0x128] sm:$0xff] %v1785
    %1850 = vst [vmem:[%s3 + $0x130] sm:$0xff] %v1786
    %1851 = vst [vmem:[%s3 + $0x138] sm:$0xff] %v1787
    %1852 = vst [vmem:[%s3 + $0x140] sm:$0xff] %v1788
    %1853 = vst [vmem:[%s3 + $0x148] sm:$0xff] %v1789
    %1854 = vst [vmem:[%s3 + $0x150] sm:$0xff] %v1790
    %1855 = vst [vmem:[%s3 + $0x158] sm:$0xff] %v1791
    %1856 = vst [vmem:[%s3 + $0x160] sm:$0xff] %v1792
    %1857 = vst [vmem:[%s3 + $0x168] sm:$0xff] %v1793
    %1858 = vst [vmem:[%s3 + $0x170] sm:$0xff] %v1794
    %1859 = vst [vmem:[%s3 + $0x178] sm:$0xff] %v1795
    %1860 = vst [vmem:[%s3 + $0x180] sm:$0xff] %v1796
    %1861 = vst [vmem:[%s3 + $0x188] sm:$0xff] %v1797
    %1862 = vst [vmem:[%s3 + $0x190] sm:$0xff] %v1798
    %1863 = vst [vmem:[%s3 + $0x198] sm:$0xff] %v1799
    %1864 = vst [vmem:[%s3 + $0x1a0] sm:$0xff] %v1800
    %1865 = vst [vmem:[%s3 + $0x1a8] sm:$0xff] %v1801
    %1866 = vst [vmem:[%s3 + $0x1b0] sm:$0xff] %v1802
    %1867 = vst [vmem:[%s3 + $0x1b8] sm:$0xff] %v1803
    %1868 = vst [vmem:[%s3 + $0x1c0] sm:$0xff] %v1804
    %1869 = vst [vmem:[%s3 + $0x1c8] sm:$0xff] %v1805
    %1870 = vst [vmem:[%s3 + $0x1d0] sm:$0xff] %v1806
    %1871 = vst [vmem:[%s3 + $0x1d8] sm:$0xff] %v1807
    %1872 = vst [vmem:[%s3 + $0x1e0] sm:$0xff] %v1808
    %1873 = vst [vmem:[%s3 + $0x1e8] sm:$0xff] %v1809
    %1874 = vst [vmem:[%s3 + $0x1f0] sm:$0xff] %v1810
    %1875 = vst [vmem:[%s3 + $0x1f8] sm:$0xff] %v1811
  $region21: #{syn_model_forward.381} parent=0 // pred_fallthru
    _
  // Predicated region
  $region22: #{syn_model_forward.381} parent=0 // pred_check
    _
  $region23: #{syn_model_forward.381} parent=0 // pred_check_branch
    %1877 = sbr.rel (0) target = $region25
  $region24: #{syn_model_forward.381} parent=0 // pred_region
    _
  $region25: #{syn_model_forward.381} parent=0 // pred_fallthru
    _
  // Predicated region
  $region26: #{syn_model_forward.381} parent=0 // pred_check
    _
  $region27: #{syn_model_forward.381} parent=0 // pred_check_branch
    %1879 = sbr.rel (0) target = $region29
  $region28: #{syn_model_forward.381} parent=0 // pred_region
    _
  $region29: #{syn_model_forward.381} parent=0 // pred_fallthru
    _

// kernel: syn_model_forward.382
$region0: #{syn_model_forward.382}
  #allocation0 [shape = 'u32[]', space=smem, size = 0x4, offset = 0x4, fixed_abs, tag = 'smem constant byte address 0x4 - core index']
  #allocation1 [shape = 'u32[72,128]{1,0:T(1,128)}', space=vmem, size = 0x9000, scoped, tag = 'internal scratch']
  #allocation2 [shape = 'f32[512,128]{1,0:T(8,128)}', space=vmem, size = 0x40000, scoped, tag = 'scratch operand']
  %s0 = inlined_call_operand.vmem [shape: bf16[512,384], index: 0, kind: input, shape index: {}]
  %s1 = inlined_call_operand.vmem [shape: bf16[384,128], index: 1, kind: input, shape index: {}]
  %s2 = inlined_call_operand.vmem [shape: f32[1,128], index: 2, kind: input, shape index: {}]
  %s3 = inlined_call_operand.vmem [shape: f32[512,128], index: 3, kind: input, shape index: {}]
  %s4 = inlined_call_operand.vmem [shape: f32[512,128], index: 4, kind: output, shape index: {}]
  %s5 = sld [smem:[#allocation0]]
  $region34: #{syn_model_forward.382} parent=0
    _
  %s7 = ssub.s32 1, %s5
  %s8 = scalar_select 0, %s7, %s5
  // Predicated region
  $region2: #{syn_model_forward.382} parent=0 // pred_check
    _
  $region3: #{syn_model_forward.382} parent=0 // pred_check_branch
    %10 = sbr.rel (0) target = $region5
  $region4: #{syn_model_forward.382} parent=0 // pred_region
    _
  $region5: #{syn_model_forward.382} parent=0 // pred_fallthru
    _
  // Predicated region
  $region6: #{syn_model_forward.382} parent=0 // pred_check
    _
  $region7: #{syn_model_forward.382} parent=0 // pred_check_branch
    %12 = sbr.rel (0) target = $region9
  $region8: #{syn_model_forward.382} parent=0 // pred_region
    _
  $region9: #{syn_model_forward.382} parent=0 // pred_fallthru
    _
  // Predicated region
  $region10: #{syn_model_forward.382} parent=0 // pred_check
    _
  $region11: #{syn_model_forward.382} parent=0 // pred_check_branch
    %14 = sbr.rel (0) target = $region13
  $region12: #{syn_model_forward.382} parent=0 // pred_region
    _
  $region13: #{syn_model_forward.382} parent=0 // pred_fallthru
    _
  // Predicated region
  $region14: #{syn_model_forward.382} parent=0 // pred_check
    _
  $region15: #{syn_model_forward.382} parent=0 // pred_check_branch
    %16 = sbr.rel (0) target = $region17
  $region16: #{syn_model_forward.382} parent=0 // pred_region
    _
  $region17: #{syn_model_forward.382} parent=0 // pred_fallthru
    _
  %p17 = scmp.eq.s32.totalorder 0, 0
  // Predicated region
  $region18: #{syn_model_forward.382} parent=0 // pred_check
    %p18 = pneg %p17
  $region19: #{syn_model_forward.382} parent=0 // pred_check_branch
    %20 = sbr.rel (%p18) target = $region21
  $region20: #{syn_model_forward.382} parent=0 // pred_region
    %21 = vst [vmem:[#allocation2] sm:$0xff] 0.0
    %22 = vst [vmem:[#allocation2 + $0x8] sm:$0xff] 0.0
    %23 = vst [vmem:[#allocation2 + $0x10] sm:$0xff] 0.0
    %24 = vst [vmem:[#allocation2 + $0x18] sm:$0xff] 0.0
    %25 = vst [vmem:[#allocation2 + $0x20] sm:$0xff] 0.0
    %26 = vst [vmem:[#allocation2 + $0x28] sm:$0xff] 0.0
    %27 = vst [vmem:[#allocation2 + $0x30] sm:$0xff] 0.0
    %28 = vst [vmem:[#allocation2 + $0x38] sm:$0xff] 0.0
    %29 = vst [vmem:[#allocation2 + $0x40] sm:$0xff] 0.0
    %30 = vst [vmem:[#allocation2 + $0x48] sm:$0xff] 0.0
    %31 = vst [vmem:[#allocation2 + $0x50] sm:$0xff] 0.0
    %32 = vst [vmem:[#allocation2 + $0x58] sm:$0xff] 0.0
    %33 = vst [vmem:[#allocation2 + $0x60] sm:$0xff] 0.0
    %34 = vst [vmem:[#allocation2 + $0x68] sm:$0xff] 0.0
    %35 = vst [vmem:[#allocation2 + $0x70] sm:$0xff] 0.0
    %36 = vst [vmem:[#allocation2 + $0x78] sm:$0xff] 0.0
    %37 = vst [vmem:[#allocation2 + $0x80] sm:$0xff] 0.0
    %38 = vst [vmem:[#allocation2 + $0x88] sm:$0xff] 0.0
    %39 = vst [vmem:[#allocation2 + $0x90] sm:$0xff] 0.0
    %40 = vst [vmem:[#allocation2 + $0x98] sm:$0xff] 0.0
    %41 = vst [vmem:[#allocation2 + $0xa0] sm:$0xff] 0.0
    %42 = vst [vmem:[#allocation2 + $0xa8] sm:$0xff] 0.0
    %43 = vst [vmem:[#allocation2 + $0xb0] sm:$0xff] 0.0
    %44 = vst [vmem:[#allocation2 + $0xb8] sm:$0xff] 0.0
    %45 = vst [vmem:[#allocation2 + $0xc0] sm:$0xff] 0.0
    %46 = vst [vmem:[#allocation2 + $0xc8] sm:$0xff] 0.0
    %47 = vst [vmem:[#allocation2 + $0xd0] sm:$0xff] 0.0
    %48 = vst [vmem:[#allocation2 + $0xd8] sm:$0xff] 0.0
    %49 = vst [vmem:[#allocation2 + $0xe0] sm:$0xff] 0.0
    %50 = vst [vmem:[#allocation2 + $0xe8] sm:$0xff] 0.0
    %51 = vst [vmem:[#allocation2 + $0xf0] sm:$0xff] 0.0
    %52 = vst [vmem:[#allocation2 + $0xf8] sm:$0xff] 0.0
    %53 = vst [vmem:[#allocation2 + $0x100] sm:$0xff] 0.0
    %54 = vst [vmem:[#allocation2 + $0x108] sm:$0xff] 0.0
    %55 = vst [vmem:[#allocation2 + $0x110] sm:$0xff] 0.0
    %56 = vst [vmem:[#allocation2 + $0x118] sm:$0xff] 0.0
    %57 = vst [vmem:[#allocation2 + $0x120] sm:$0xff] 0.0
    %58 = vst [vmem:[#allocation2 + $0x128] sm:$0xff] 0.0
    %59 = vst [vmem:[#allocation2 + $0x130] sm:$0xff] 0.0
    %60 = vst [vmem:[#allocation2 + $0x138] sm:$0xff] 0.0
    %61 = vst [vmem:[#allocation2 + $0x140] sm:$0xff] 0.0
    %62 = vst [vmem:[#allocation2 + $0x148] sm:$0xff] 0.0
    %63 = vst [vmem:[#allocation2 + $0x150] sm:$0xff] 0.0
    %64 = vst [vmem:[#allocation2 + $0x158] sm:$0xff] 0.0
    %65 = vst [vmem:[#allocation2 + $0x160] sm:$0xff] 0.0
    %66 = vst [vmem:[#allocation2 + $0x168] sm:$0xff] 0.0
    %67 = vst [vmem:[#allocation2 + $0x170] sm:$0xff] 0.0
    %68 = vst [vmem:[#allocation2 + $0x178] sm:$0xff] 0.0
    %69 = vst [vmem:[#allocation2 + $0x180] sm:$0xff] 0.0
    %70 = vst [vmem:[#allocation2 + $0x188] sm:$0xff] 0.0
    %71 = vst [vmem:[#allocation2 + $0x190] sm:$0xff] 0.0
    %72 = vst [vmem:[#allocation2 + $0x198] sm:$0xff] 0.0
    %73 = vst [vmem:[#allocation2 + $0x1a0] sm:$0xff] 0.0
    %74 = vst [vmem:[#allocation2 + $0x1a8] sm:$0xff] 0.0
    %75 = vst [vmem:[#allocation2 + $0x1b0] sm:$0xff] 0.0
    %76 = vst [vmem:[#allocation2 + $0x1b8] sm:$0xff] 0.0
    %77 = vst [vmem:[#allocation2 + $0x1c0] sm:$0xff] 0.0
    %78 = vst [vmem:[#allocation2 + $0x1c8] sm:$0xff] 0.0
    %79 = vst [vmem:[#allocation2 + $0x1d0] sm:$0xff] 0.0
    %80 = vst [vmem:[#allocation2 + $0x1d8] sm:$0xff] 0.0
    %81 = vst [vmem:[#allocation2 + $0x1e0] sm:$0xff] 0.0
    %82 = vst [vmem:[#allocation2 + $0x1e8] sm:$0xff] 0.0
    %83 = vst [vmem:[#allocation2 + $0x1f0] sm:$0xff] 0.0
    %84 = vst [vmem:[#allocation2 + $0x1f8] sm:$0xff] 0.0
  $region21: #{syn_model_forward.382} parent=0 // pred_fallthru
    _
  %v85 = vld [vmem:[#allocation2] sm:$0xff]
  %v86 = vld [vmem:[#allocation2 + $0x8] sm:$0xff]
  %v87 = vld [vmem:[#allocation2 + $0x10] sm:$0xff]
  %v88 = vld [vmem:[#allocation2 + $0x18] sm:$0xff]
  %v89 = vld [vmem:[#allocation2 + $0x20] sm:$0xff]
  %v90 = vld [vmem:[#allocation2 + $0x28] sm:$0xff]
  %v91 = vld [vmem:[#allocation2 + $0x30] sm:$0xff]
  %v92 = vld [vmem:[#allocation2 + $0x38] sm:$0xff]
  %v93 = vld [vmem:[#allocation2 + $0x40] sm:$0xff]
  %v94 = vld [vmem:[#allocation2 + $0x48] sm:$0xff]
  %v95 = vld [vmem:[#allocation2 + $0x50] sm:$0xff]
  %v96 = vld [vmem:[#allocation2 + $0x58] sm:$0xff]
  %v97 = vld [vmem:[#allocation2 + $0x60] sm:$0xff]
  %v98 = vld [vmem:[#allocation2 + $0x68] sm:$0xff]
  %v99 = vld [vmem:[#allocation2 + $0x70] sm:$0xff]
  %v100 = vld [vmem:[#allocation2 + $0x78] sm:$0xff]
  %v101 = vld [vmem:[#allocation2 + $0x80] sm:$0xff]
  %v102 = vld [vmem:[#allocation2 + $0x88] sm:$0xff]
  %v103 = vld [vmem:[#allocation2 + $0x90] sm:$0xff]
  %v104 = vld [vmem:[#allocation2 + $0x98] sm:$0xff]
  %v105 = vld [vmem:[#allocation2 + $0xa0] sm:$0xff]
  %v106 = vld [vmem:[#allocation2 + $0xa8] sm:$0xff]
  %v107 = vld [vmem:[#allocation2 + $0xb0] sm:$0xff]
  %v108 = vld [vmem:[#allocation2 + $0xb8] sm:$0xff]
  %v109 = vld [vmem:[#allocation2 + $0xc0] sm:$0xff]
  %v110 = vld [vmem:[#allocation2 + $0xc8] sm:$0xff]
  %v111 = vld [vmem:[#allocation2 + $0xd0] sm:$0xff]
  %v112 = vld [vmem:[#allocation2 + $0xd8] sm:$0xff]
  %v113 = vld [vmem:[#allocation2 + $0xe0] sm:$0xff]
  %v114 = vld [vmem:[#allocation2 + $0xe8] sm:$0xff]
  %v115 = vld [vmem:[#allocation2 + $0xf0] sm:$0xff]
  %v116 = vld [vmem:[#allocation2 + $0xf8] sm:$0xff]
  %v117 = vld [vmem:[#allocation2 + $0x100] sm:$0xff]
  %v118 = vld [vmem:[#allocation2 + $0x108] sm:$0xff]
  %v119 = vld [vmem:[#allocation2 + $0x110] sm:$0xff]
  %v120 = vld [vmem:[#allocation2 + $0x118] sm:$0xff]
  %v121 = vld [vmem:[#allocation2 + $0x120] sm:$0xff]
  %v122 = vld [vmem:[#allocation2 + $0x128] sm:$0xff]
  %v123 = vld [vmem:[#allocation2 + $0x130] sm:$0xff]
  %v124 = vld [vmem:[#allocation2 + $0x138] sm:$0xff]
  %v125 = vld [vmem:[#allocation2 + $0x140] sm:$0xff]
  %v126 = vld [vmem:[#allocation2 + $0x148] sm:$0xff]
  %v127 = vld [vmem:[#allocation2 + $0x150] sm:$0xff]
  %v128 = vld [vmem:[#allocation2 + $0x158] sm:$0xff]
  %v129 = vld [vmem:[#allocation2 + $0x160] sm:$0xff]
  %v130 = vld [vmem:[#allocation2 + $0x168] sm:$0xff]
  %v131 = vld [vmem:[#allocation2 + $0x170] sm:$0xff]
  %v132 = vld [vmem:[#allocation2 + $0x178] sm:$0xff]
  %v133 = vld [vmem:[#allocation2 + $0x180] sm:$0xff]
  %v134 = vld [vmem:[#allocation2 + $0x188] sm:$0xff]
  %v135 = vld [vmem:[#allocation2 + $0x190] sm:$0xff]
  %v136 = vld [vmem:[#allocation2 + $0x198] sm:$0xff]
  %v137 = vld [vmem:[#allocation2 + $0x1a0] sm:$0xff]
  %v138 = vld [vmem:[#allocation2 + $0x1a8] sm:$0xff]
  %v139 = vld [vmem:[#allocation2 + $0x1b0] sm:$0xff]
  %v140 = vld [vmem:[#allocation2 + $0x1b8] sm:$0xff]
  %v141 = vld [vmem:[#allocation2 + $0x1c0] sm:$0xff]
  %v142 = vld [vmem:[#allocation2 + $0x1c8] sm:$0xff]
  %v143 = vld [vmem:[#allocation2 + $0x1d0] sm:$0xff]
  %v144 = vld [vmem:[#allocation2 + $0x1d8] sm:$0xff]
  %v145 = vld [vmem:[#allocation2 + $0x1e0] sm:$0xff]
  %v146 = vld [vmem:[#allocation2 + $0x1e8] sm:$0xff]
  %v147 = vld [vmem:[#allocation2 + $0x1f0] sm:$0xff]
  %v148 = vld [vmem:[#allocation2 + $0x1f8] sm:$0xff]
  %v149 = vld [vmem:[%s0] sm:$0xff]
  %v150 = vld [vmem:[%s0 + $0x8] sm:$0xf]
  %v151 = vld [vmem:[%s0 + $0xc] sm:$0xff]
  %v152 = vld [vmem:[%s0 + $0x14] sm:$0xf]
  %v153 = vld [vmem:[%s0 + $0x18] sm:$0xff]
  %v154 = vld [vmem:[%s0 + $0x20] sm:$0xf]
  %v155 = vld [vmem:[%s0 + $0x24] sm:$0xff]
  %v156 = vld [vmem:[%s0 + $0x2c] sm:$0xf]
  %v157 = vld [vmem:[%s0 + $0x30] sm:$0xff]
  %v158 = vld [vmem:[%s0 + $0x38] sm:$0xf]
  %v159 = vld [vmem:[%s0 + $0x3c] sm:$0xff]
  %v160 = vld [vmem:[%s0 + $0x44] sm:$0xf]
  %v161 = vld [vmem:[%s0 + $0x48] sm:$0xff]
  %v162 = vld [vmem:[%s0 + $0x50] sm:$0xf]
  %v163 = vld [vmem:[%s0 + $0x54] sm:$0xff]
  %v164 = vld [vmem:[%s0 + $0x5c] sm:$0xf]
  %v165 = vld [vmem:[%s0 + $0x60] sm:$0xff]
  %v166 = vld [vmem:[%s0 + $0x68] sm:$0xf]
  %v167 = vld [vmem:[%s0 + $0x6c] sm:$0xff]
  %v168 = vld [vmem:[%s0 + $0x74] sm:$0xf]
  %v169 = vld [vmem:[%s0 + $0x78] sm:$0xff]
  %v170 = vld [vmem:[%s0 + $0x80] sm:$0xf]
  %v171 = vld [vmem:[%s0 + $0x84] sm:$0xff]
  %v172 = vld [vmem:[%s0 + $0x8c] sm:$0xf]
  %v173 = vld [vmem:[%s0 + $0x90] sm:$0xff]
  %v174 = vld [vmem:[%s0 + $0x98] sm:$0xf]
  %v175 = vld [vmem:[%s0 + $0x9c] sm:$0xff]
  %v176 = vld [vmem:[%s0 + $0xa4] sm:$0xf]
  %v177 = vld [vmem:[%s0 + $0xa8] sm:$0xff]
  %v178 = vld [vmem:[%s0 + $0xb0] sm:$0xf]
  %v179 = vld [vmem:[%s0 + $0xb4] sm:$0xff]
  %v180 = vld [vmem:[%s0 + $0xbc] sm:$0xf]
  %v181 = vld [vmem:[%s0 + $0xc0] sm:$0xff]
  %v182 = vld [vmem:[%s0 + $0xc8] sm:$0xf]
  %v183 = vld [vmem:[%s0 + $0xcc] sm:$0xff]
  %v184 = vld [vmem:[%s0 + $0xd4] sm:$0xf]
  %v185 = vld [vmem:[%s0 + $0xd8] sm:$0xff]
  %v186 = vld [vmem:[%s0 + $0xe0] sm:$0xf]
  %v187 = vld [vmem:[%s0 + $0xe4] sm:$0xff]
  %v188 = vld [vmem:[%s0 + $0xec] sm:$0xf]
  %v189 = vld [vmem:[%s0 + $0xf0] sm:$0xff]
  %v190 = vld [vmem:[%s0 + $0xf8] sm:$0xf]
  %v191 = vld [vmem:[%s0 + $0xfc] sm:$0xff]
  %v192 = vld [vmem:[%s0 + $0x104] sm:$0xf]
  %v193 = vld [vmem:[%s0 + $0x108] sm:$0xff]
  %v194 = vld [vmem:[%s0 + $0x110] sm:$0xf]
  %v195 = vld [vmem:[%s0 + $0x114] sm:$0xff]
  %v196 = vld [vmem:[%s0 + $0x11c] sm:$0xf]
  %v197 = vld [vmem:[%s0 + $0x120] sm:$0xff]
  %v198 = vld [vmem:[%s0 + $0x128] sm:$0xf]
  %v199 = vld [vmem:[%s0 + $0x12c] sm:$0xff]
  %v200 = vld [vmem:[%s0 + $0x134] sm:$0xf]
  %v201 = vld [vmem:[%s0 + $0x138] sm:$0xff]
  %v202 = vld [vmem:[%s0 + $0x140] sm:$0xf]
  %v203 = vld [vmem:[%s0 + $0x144] sm:$0xff]
  %v204 = vld [vmem:[%s0 + $0x14c] sm:$0xf]
  %v205 = vld [vmem:[%s0 + $0x150] sm:$0xff]
  %v206 = vld [vmem:[%s0 + $0x158] sm:$0xf]
  %v207 = vld [vmem:[%s0 + $0x15c] sm:$0xff]
  %v208 = vld [vmem:[%s0 + $0x164] sm:$0xf]
  %v209 = vld [vmem:[%s0 + $0x168] sm:$0xff]
  %v210 = vld [vmem:[%s0 + $0x170] sm:$0xf]
  %v211 = vld [vmem:[%s0 + $0x174] sm:$0xff]
  %v212 = vld [vmem:[%s0 + $0x17c] sm:$0xf]
  %v213 = vld [vmem:[%s0 + $0x180] sm:$0xff]
  %v214 = vld [vmem:[%s0 + $0x188] sm:$0xf]
  %v215 = vld [vmem:[%s0 + $0x18c] sm:$0xff]
  %v216 = vld [vmem:[%s0 + $0x194] sm:$0xf]
  %v217 = vld [vmem:[%s0 + $0x198] sm:$0xff]
  %v218 = vld [vmem:[%s0 + $0x1a0] sm:$0xf]
  %v219 = vld [vmem:[%s0 + $0x1a4] sm:$0xff]
  %v220 = vld [vmem:[%s0 + $0x1ac] sm:$0xf]
  %v221 = vld [vmem:[%s0 + $0x1b0] sm:$0xff]
  %v222 = vld [vmem:[%s0 + $0x1b8] sm:$0xf]
  %v223 = vld [vmem:[%s0 + $0x1bc] sm:$0xff]
  %v224 = vld [vmem:[%s0 + $0x1c4] sm:$0xf]
  %v225 = vld [vmem:[%s0 + $0x1c8] sm:$0xff]
  %v226 = vld [vmem:[%s0 + $0x1d0] sm:$0xf]
  %v227 = vld [vmem:[%s0 + $0x1d4] sm:$0xff]
  %v228 = vld [vmem:[%s0 + $0x1dc] sm:$0xf]
  %v229 = vld [vmem:[%s0 + $0x1e0] sm:$0xff]
  %v230 = vld [vmem:[%s0 + $0x1e8] sm:$0xf]
  %v231 = vld [vmem:[%s0 + $0x1ec] sm:$0xff]
  %v232 = vld [vmem:[%s0 + $0x1f4] sm:$0xf]
  %v233 = vld [vmem:[%s0 + $0x1f8] sm:$0xff]
  %v234 = vld [vmem:[%s0 + $0x200] sm:$0xf]
  %v235 = vld [vmem:[%s0 + $0x204] sm:$0xff]
  %v236 = vld [vmem:[%s0 + $0x20c] sm:$0xf]
  %v237 = vld [vmem:[%s0 + $0x210] sm:$0xff]
  %v238 = vld [vmem:[%s0 + $0x218] sm:$0xf]
  %v239 = vld [vmem:[%s0 + $0x21c] sm:$0xff]
  %v240 = vld [vmem:[%s0 + $0x224] sm:$0xf]
  %v241 = vld [vmem:[%s0 + $0x228] sm:$0xff]
  %v242 = vld [vmem:[%s0 + $0x230] sm:$0xf]
  %v243 = vld [vmem:[%s0 + $0x234] sm:$0xff]
  %v244 = vld [vmem:[%s0 + $0x23c] sm:$0xf]
  %v245 = vld [vmem:[%s0 + $0x240] sm:$0xff]
  %v246 = vld [vmem:[%s0 + $0x248] sm:$0xf]
  %v247 = vld [vmem:[%s0 + $0x24c] sm:$0xff]
  %v248 = vld [vmem:[%s0 + $0x254] sm:$0xf]
  %v249 = vld [vmem:[%s0 + $0x258] sm:$0xff]
  %v250 = vld [vmem:[%s0 + $0x260] sm:$0xf]
  %v251 = vld [vmem:[%s0 + $0x264] sm:$0xff]
  %v252 = vld [vmem:[%s0 + $0x26c] sm:$0xf]
  %v253 = vld [vmem:[%s0 + $0x270] sm:$0xff]
  %v254 = vld [vmem:[%s0 + $0x278] sm:$0xf]
  %v255 = vld [vmem:[%s0 + $0x27c] sm:$0xff]
  %v256 = vld [vmem:[%s0 + $0x284] sm:$0xf]
  %v257 = vld [vmem:[%s0 + $0x288] sm:$0xff]
  %v258 = vld [vmem:[%s0 + $0x290] sm:$0xf]
  %v259 = vld [vmem:[%s0 + $0x294] sm:$0xff]
  %v260 = vld [vmem:[%s0 + $0x29c] sm:$0xf]
  %v261 = vld [vmem:[%s0 + $0x2a0] sm:$0xff]
  %v262 = vld [vmem:[%s0 + $0x2a8] sm:$0xf]
  %v263 = vld [vmem:[%s0 + $0x2ac] sm:$0xff]
  %v264 = vld [vmem:[%s0 + $0x2b4] sm:$0xf]
  %v265 = vld [vmem:[%s0 + $0x2b8] sm:$0xff]
  %v266 = vld [vmem:[%s0 + $0x2c0] sm:$0xf]
  %v267 = vld [vmem:[%s0 + $0x2c4] sm:$0xff]
  %v268 = vld [vmem:[%s0 + $0x2cc] sm:$0xf]
  %v269 = vld [vmem:[%s0 + $0x2d0] sm:$0xff]
  %v270 = vld [vmem:[%s0 + $0x2d8] sm:$0xf]
  %v271 = vld [vmem:[%s0 + $0x2dc] sm:$0xff]
  %v272 = vld [vmem:[%s0 + $0x2e4] sm:$0xf]
  %v273 = vld [vmem:[%s0 + $0x2e8] sm:$0xff]
  %v274 = vld [vmem:[%s0 + $0x2f0] sm:$0xf]
  %v275 = vld [vmem:[%s0 + $0x2f4] sm:$0xff]
  %v276 = vld [vmem:[%s0 + $0x2fc] sm:$0xf]
  %v277 = vld [vmem:[%s1] sm:$0xf]
  %v278 = vld [vmem:[%s1 + $0x4] sm:$0xf]
  %v279 = vld [vmem:[%s1 + $0x8] sm:$0xf]
  %v280 = vld [vmem:[%s1 + $0xc] sm:$0xf]
  %v281 = vld [vmem:[%s1 + $0x10] sm:$0xf]
  %v282 = vld [vmem:[%s1 + $0x14] sm:$0xf]
  %v283 = vld [vmem:[%s1 + $0x18] sm:$0xf]
  %v284 = vld [vmem:[%s1 + $0x1c] sm:$0xf]
  %v285 = vld [vmem:[%s1 + $0x20] sm:$0xf]
  %v286 = vld [vmem:[%s1 + $0x24] sm:$0xf]
  %v287 = vld [vmem:[%s1 + $0x28] sm:$0xf]
  %v288 = vld [vmem:[%s1 + $0x2c] sm:$0xf]
  %v289 = vld [vmem:[%s1 + $0x30] sm:$0xf]
  %v290 = vld [vmem:[%s1 + $0x34] sm:$0xf]
  %v291 = vld [vmem:[%s1 + $0x38] sm:$0xf]
  %v292 = vld [vmem:[%s1 + $0x3c] sm:$0xf]
  %v293 = vld [vmem:[%s1 + $0x40] sm:$0xf]
  %v294 = vld [vmem:[%s1 + $0x44] sm:$0xf]
  %v295 = vld [vmem:[%s1 + $0x48] sm:$0xf]
  %v296 = vld [vmem:[%s1 + $0x4c] sm:$0xf]
  %v297 = vld [vmem:[%s1 + $0x50] sm:$0xf]
  %v298 = vld [vmem:[%s1 + $0x54] sm:$0xf]
  %v299 = vld [vmem:[%s1 + $0x58] sm:$0xf]
  %v300 = vld [vmem:[%s1 + $0x5c] sm:$0xf]
  %v301 = vld [vmem:[%s1 + $0x60] sm:$0xf]
  %v302 = vld [vmem:[%s1 + $0x64] sm:$0xf]
  %v303 = vld [vmem:[%s1 + $0x68] sm:$0xf]
  %v304 = vld [vmem:[%s1 + $0x6c] sm:$0xf]
  %v305 = vld [vmem:[%s1 + $0x70] sm:$0xf]
  %v306 = vld [vmem:[%s1 + $0x74] sm:$0xf]
  %v307 = vld [vmem:[%s1 + $0x78] sm:$0xf]
  %v308 = vld [vmem:[%s1 + $0x7c] sm:$0xf]
  %v309 = vld [vmem:[%s1 + $0x80] sm:$0xf]
  %v310 = vld [vmem:[%s1 + $0x84] sm:$0xf]
  %v311 = vld [vmem:[%s1 + $0x88] sm:$0xf]
  %v312 = vld [vmem:[%s1 + $0x8c] sm:$0xf]
  %v313 = vld [vmem:[%s1 + $0x90] sm:$0xf]
  %v314 = vld [vmem:[%s1 + $0x94] sm:$0xf]
  %v315 = vld [vmem:[%s1 + $0x98] sm:$0xf]
  %v316 = vld [vmem:[%s1 + $0x9c] sm:$0xf]
  %v317 = vld [vmem:[%s1 + $0xa0] sm:$0xf]
  %v318 = vld [vmem:[%s1 + $0xa4] sm:$0xf]
  %v319 = vld [vmem:[%s1 + $0xa8] sm:$0xf]
  %v320 = vld [vmem:[%s1 + $0xac] sm:$0xf]
  %v321 = vld [vmem:[%s1 + $0xb0] sm:$0xf]
  %v322 = vld [vmem:[%s1 + $0xb4] sm:$0xf]
  %v323 = vld [vmem:[%s1 + $0xb8] sm:$0xf]
  %v324 = vld [vmem:[%s1 + $0xbc] sm:$0xf]
  %v453 = vunpack.c.l.b16 %v149
  %v454 = vunpack.c.h.b16 %v149
  %v455 = vunpack.c.l.b16 %v150
  %v456 = vunpack.c.l.b16 %v151
  %v457 = vunpack.c.h.b16 %v151
  %v458 = vunpack.c.l.b16 %v152
  %v459 = vunpack.c.l.b16 %v153
  %v460 = vunpack.c.h.b16 %v153
  %v461 = vunpack.c.l.b16 %v154
  %v462 = vunpack.c.l.b16 %v155
  %v463 = vunpack.c.h.b16 %v155
  %v464 = vunpack.c.l.b16 %v156
  %v465 = vunpack.c.l.b16 %v157
  %v466 = vunpack.c.h.b16 %v157
  %v467 = vunpack.c.l.b16 %v158
  %v468 = vunpack.c.l.b16 %v159
  %v469 = vunpack.c.h.b16 %v159
  %v470 = vunpack.c.l.b16 %v160
  %v471 = vunpack.c.l.b16 %v161
  %v472 = vunpack.c.h.b16 %v161
  %v473 = vunpack.c.l.b16 %v162
  %v474 = vunpack.c.l.b16 %v163
  %v475 = vunpack.c.h.b16 %v163
  %v476 = vunpack.c.l.b16 %v164
  %v477 = vunpack.c.l.b16 %v165
  %v478 = vunpack.c.h.b16 %v165
  %v479 = vunpack.c.l.b16 %v166
  %v480 = vunpack.c.l.b16 %v167
  %v481 = vunpack.c.h.b16 %v167
  %v482 = vunpack.c.l.b16 %v168
  %v483 = vunpack.c.l.b16 %v169
  %v484 = vunpack.c.h.b16 %v169
  %v485 = vunpack.c.l.b16 %v170
  %v486 = vunpack.c.l.b16 %v171
  %v487 = vunpack.c.h.b16 %v171
  %v488 = vunpack.c.l.b16 %v172
  %v489 = vunpack.c.l.b16 %v173
  %v490 = vunpack.c.h.b16 %v173
  %v491 = vunpack.c.l.b16 %v174
  %v492 = vunpack.c.l.b16 %v175
  %v493 = vunpack.c.h.b16 %v175
  %v494 = vunpack.c.l.b16 %v176
  %v495 = vunpack.c.l.b16 %v177
  %v496 = vunpack.c.h.b16 %v177
  %v497 = vunpack.c.l.b16 %v178
  %v498 = vunpack.c.l.b16 %v179
  %v499 = vunpack.c.h.b16 %v179
  %v500 = vunpack.c.l.b16 %v180
  %v501 = vunpack.c.l.b16 %v181
  %v502 = vunpack.c.h.b16 %v181
  %v503 = vunpack.c.l.b16 %v182
  %v504 = vunpack.c.l.b16 %v183
  %v505 = vunpack.c.h.b16 %v183
  %v506 = vunpack.c.l.b16 %v184
  %v507 = vunpack.c.l.b16 %v185
  %v508 = vunpack.c.h.b16 %v185
  %v509 = vunpack.c.l.b16 %v186
  %v510 = vunpack.c.l.b16 %v187
  %v511 = vunpack.c.h.b16 %v187
  %v512 = vunpack.c.l.b16 %v188
  %v513 = vunpack.c.l.b16 %v189
  %v514 = vunpack.c.h.b16 %v189
  %v515 = vunpack.c.l.b16 %v190
  %v516 = vunpack.c.l.b16 %v191
  %v517 = vunpack.c.h.b16 %v191
  %v518 = vunpack.c.l.b16 %v192
  %v519 = vunpack.c.l.b16 %v193
  %v520 = vunpack.c.h.b16 %v193
  %v521 = vunpack.c.l.b16 %v194
  %v522 = vunpack.c.l.b16 %v195
  %v523 = vunpack.c.h.b16 %v195
  %v524 = vunpack.c.l.b16 %v196
  %v525 = vunpack.c.l.b16 %v197
  %v526 = vunpack.c.h.b16 %v197
  %v527 = vunpack.c.l.b16 %v198
  %v528 = vunpack.c.l.b16 %v199
  %v529 = vunpack.c.h.b16 %v199
  %v530 = vunpack.c.l.b16 %v200
  %v531 = vunpack.c.l.b16 %v201
  %v532 = vunpack.c.h.b16 %v201
  %v533 = vunpack.c.l.b16 %v202
  %v534 = vunpack.c.l.b16 %v203
  %v535 = vunpack.c.h.b16 %v203
  %v536 = vunpack.c.l.b16 %v204
  %v537 = vunpack.c.l.b16 %v205
  %v538 = vunpack.c.h.b16 %v205
  %v539 = vunpack.c.l.b16 %v206
  %v540 = vunpack.c.l.b16 %v207
  %v541 = vunpack.c.h.b16 %v207
  %v542 = vunpack.c.l.b16 %v208
  %v543 = vunpack.c.l.b16 %v209
  %v544 = vunpack.c.h.b16 %v209
  %v545 = vunpack.c.l.b16 %v210
  %v546 = vunpack.c.l.b16 %v211
  %v547 = vunpack.c.h.b16 %v211
  %v548 = vunpack.c.l.b16 %v212
  %v549 = vunpack.c.l.b16 %v213
  %v550 = vunpack.c.h.b16 %v213
  %v551 = vunpack.c.l.b16 %v214
  %v552 = vunpack.c.l.b16 %v215
  %v553 = vunpack.c.h.b16 %v215
  %v554 = vunpack.c.l.b16 %v216
  %v555 = vunpack.c.l.b16 %v217
  %v556 = vunpack.c.h.b16 %v217
  %v557 = vunpack.c.l.b16 %v218
  %v558 = vunpack.c.l.b16 %v219
  %v559 = vunpack.c.h.b16 %v219
  %v560 = vunpack.c.l.b16 %v220
  %v561 = vunpack.c.l.b16 %v221
  %v562 = vunpack.c.h.b16 %v221
  %v563 = vunpack.c.l.b16 %v222
  %v564 = vunpack.c.l.b16 %v223
  %v565 = vunpack.c.h.b16 %v223
  %v566 = vunpack.c.l.b16 %v224
  %v567 = vunpack.c.l.b16 %v225
  %v568 = vunpack.c.h.b16 %v225
  %v569 = vunpack.c.l.b16 %v226
  %v570 = vunpack.c.l.b16 %v227
  %v571 = vunpack.c.h.b16 %v227
  %v572 = vunpack.c.l.b16 %v228
  %v573 = vunpack.c.l.b16 %v229
  %v574 = vunpack.c.h.b16 %v229
  %v575 = vunpack.c.l.b16 %v230
  %v576 = vunpack.c.l.b16 %v231
  %v577 = vunpack.c.h.b16 %v231
  %v578 = vunpack.c.l.b16 %v232
  %v579 = vunpack.c.l.b16 %v233
  %v580 = vunpack.c.h.b16 %v233
  %v581 = vunpack.c.l.b16 %v234
  %v582 = vunpack.c.l.b16 %v235
  %v583 = vunpack.c.h.b16 %v235
  %v584 = vunpack.c.l.b16 %v236
  %v585 = vunpack.c.l.b16 %v237
  %v586 = vunpack.c.h.b16 %v237
  %v587 = vunpack.c.l.b16 %v238
  %v588 = vunpack.c.l.b16 %v239
  %v589 = vunpack.c.h.b16 %v239
  %v590 = vunpack.c.l.b16 %v240
  %v591 = vunpack.c.l.b16 %v241
  %v592 = vunpack.c.h.b16 %v241
  %v593 = vunpack.c.l.b16 %v242
  %v594 = vunpack.c.l.b16 %v243
  %v595 = vunpack.c.h.b16 %v243
  %v596 = vunpack.c.l.b16 %v244
  %v597 = vunpack.c.l.b16 %v245
  %v598 = vunpack.c.h.b16 %v245
  %v599 = vunpack.c.l.b16 %v246
  %v600 = vunpack.c.l.b16 %v247
  %v601 = vunpack.c.h.b16 %v247
  %v602 = vunpack.c.l.b16 %v248
  %v603 = vunpack.c.l.b16 %v249
  %v604 = vunpack.c.h.b16 %v249
  %v605 = vunpack.c.l.b16 %v250
  %v606 = vunpack.c.l.b16 %v251
  %v607 = vunpack.c.h.b16 %v251
  %v608 = vunpack.c.l.b16 %v252
  %v609 = vunpack.c.l.b16 %v253
  %v610 = vunpack.c.h.b16 %v253
  %v611 = vunpack.c.l.b16 %v254
  %v612 = vunpack.c.l.b16 %v255
  %v613 = vunpack.c.h.b16 %v255
  %v614 = vunpack.c.l.b16 %v256
  %v615 = vunpack.c.l.b16 %v257
  %v616 = vunpack.c.h.b16 %v257
  %v617 = vunpack.c.l.b16 %v258
  %v618 = vunpack.c.l.b16 %v259
  %v619 = vunpack.c.h.b16 %v259
  %v620 = vunpack.c.l.b16 %v260
  %v621 = vunpack.c.l.b16 %v261
  %v622 = vunpack.c.h.b16 %v261
  %v623 = vunpack.c.l.b16 %v262
  %v624 = vunpack.c.l.b16 %v263
  %v625 = vunpack.c.h.b16 %v263
  %v626 = vunpack.c.l.b16 %v264
  %v627 = vunpack.c.l.b16 %v265
  %v628 = vunpack.c.h.b16 %v265
  %v629 = vunpack.c.l.b16 %v266
  %v630 = vunpack.c.l.b16 %v267
  %v631 = vunpack.c.h.b16 %v267
  %v632 = vunpack.c.l.b16 %v268
  %v633 = vunpack.c.l.b16 %v269
  %v634 = vunpack.c.h.b16 %v269
  %v635 = vunpack.c.l.b16 %v270
  %v636 = vunpack.c.l.b16 %v271
  %v637 = vunpack.c.h.b16 %v271
  %v638 = vunpack.c.l.b16 %v272
  %v639 = vunpack.c.l.b16 %v273
  %v640 = vunpack.c.h.b16 %v273
  %v641 = vunpack.c.l.b16 %v274
  %v642 = vunpack.c.l.b16 %v275
  %v643 = vunpack.c.h.b16 %v275
  %v644 = vunpack.c.l.b16 %v276
  %v645 = vpack.c.b16 %v456, %v453
  %v646 = vpack.c.b16 %v457, %v454
  %v647 = vpack.c.b16 %v458, %v455
  %v648 = vpack.c.b16 %v462, %v459
  %v649 = vpack.c.b16 %v463, %v460
  %v650 = vpack.c.b16 %v464, %v461
  %v651 = vpack.c.b16 %v468, %v465
  %v652 = vpack.c.b16 %v469, %v466
  %v653 = vpack.c.b16 %v470, %v467
  %v654 = vpack.c.b16 %v474, %v471
  %v655 = vpack.c.b16 %v475, %v472
  %v656 = vpack.c.b16 %v476, %v473
  %v657 = vpack.c.b16 %v480, %v477
  %v658 = vpack.c.b16 %v481, %v478
  %v659 = vpack.c.b16 %v482, %v479
  %v660 = vpack.c.b16 %v486, %v483
  %v661 = vpack.c.b16 %v487, %v484
  %v662 = vpack.c.b16 %v488, %v485
  %v663 = vpack.c.b16 %v492, %v489
  %v664 = vpack.c.b16 %v493, %v490
  %v665 = vpack.c.b16 %v494, %v491
  %v666 = vpack.c.b16 %v498, %v495
  %v667 = vpack.c.b16 %v499, %v496
  %v668 = vpack.c.b16 %v500, %v497
  %v669 = vpack.c.b16 %v504, %v501
  %v670 = vpack.c.b16 %v505, %v502
  %v671 = vpack.c.b16 %v506, %v503
  %v672 = vpack.c.b16 %v510, %v507
  %v673 = vpack.c.b16 %v511, %v508
  %v674 = vpack.c.b16 %v512, %v509
  %v675 = vpack.c.b16 %v516, %v513
  %v676 = vpack.c.b16 %v517, %v514
  %v677 = vpack.c.b16 %v518, %v515
  %v678 = vpack.c.b16 %v522, %v519
  %v679 = vpack.c.b16 %v523, %v520
  %v680 = vpack.c.b16 %v524, %v521
  %v681 = vpack.c.b16 %v528, %v525
  %v682 = vpack.c.b16 %v529, %v526
  %v683 = vpack.c.b16 %v530, %v527
  %v684 = vpack.c.b16 %v534, %v531
  %v685 = vpack.c.b16 %v535, %v532
  %v686 = vpack.c.b16 %v536, %v533
  %v687 = vpack.c.b16 %v540, %v537
  %v688 = vpack.c.b16 %v541, %v538
  %v689 = vpack.c.b16 %v542, %v539
  %v690 = vpack.c.b16 %v546, %v543
  %v691 = vpack.c.b16 %v547, %v544
  %v692 = vpack.c.b16 %v548, %v545
  %v693 = vpack.c.b16 %v552, %v549
  %v694 = vpack.c.b16 %v553, %v550
  %v695 = vpack.c.b16 %v554, %v551
  %v696 = vpack.c.b16 %v558, %v555
  %v697 = vpack.c.b16 %v559, %v556
  %v698 = vpack.c.b16 %v560, %v557
  %v699 = vpack.c.b16 %v564, %v561
  %v700 = vpack.c.b16 %v565, %v562
  %v701 = vpack.c.b16 %v566, %v563
  %v702 = vpack.c.b16 %v570, %v567
  %v703 = vpack.c.b16 %v571, %v568
  %v704 = vpack.c.b16 %v572, %v569
  %v705 = vpack.c.b16 %v576, %v573
  %v706 = vpack.c.b16 %v577, %v574
  %v707 = vpack.c.b16 %v578, %v575
  %v708 = vpack.c.b16 %v582, %v579
  %v709 = vpack.c.b16 %v583, %v580
  %v710 = vpack.c.b16 %v584, %v581
  %v711 = vpack.c.b16 %v588, %v585
  %v712 = vpack.c.b16 %v589, %v586
  %v713 = vpack.c.b16 %v590, %v587
  %v714 = vpack.c.b16 %v594, %v591
  %v715 = vpack.c.b16 %v595, %v592
  %v716 = vpack.c.b16 %v596, %v593
  %v717 = vpack.c.b16 %v600, %v597
  %v718 = vpack.c.b16 %v601, %v598
  %v719 = vpack.c.b16 %v602, %v599
  %v720 = vpack.c.b16 %v606, %v603
  %v721 = vpack.c.b16 %v607, %v604
  %v722 = vpack.c.b16 %v608, %v605
  %v723 = vpack.c.b16 %v612, %v609
  %v724 = vpack.c.b16 %v613, %v610
  %v725 = vpack.c.b16 %v614, %v611
  %v726 = vpack.c.b16 %v618, %v615
  %v727 = vpack.c.b16 %v619, %v616
  %v728 = vpack.c.b16 %v620, %v617
  %v729 = vpack.c.b16 %v624, %v621
  %v730 = vpack.c.b16 %v625, %v622
  %v731 = vpack.c.b16 %v626, %v623
  %v732 = vpack.c.b16 %v630, %v627
  %v733 = vpack.c.b16 %v631, %v628
  %v734 = vpack.c.b16 %v632, %v629
  %v735 = vpack.c.b16 %v636, %v633
  %v736 = vpack.c.b16 %v637, %v634
  %v737 = vpack.c.b16 %v638, %v635
  %v738 = vpack.c.b16 %v642, %v639
  %v739 = vpack.c.b16 %v643, %v640
  %v740 = vpack.c.b16 %v644, %v641
  %v885 = vunpack.c.l.b16 %v277
  %v886 = vunpack.c.l.b16 %v278
  %v887 = vunpack.c.l.b16 %v279
  %v888 = vunpack.c.l.b16 %v280
  %v889 = vunpack.c.l.b16 %v281
  %v890 = vunpack.c.l.b16 %v282
  %v891 = vunpack.c.l.b16 %v283
  %v892 = vunpack.c.l.b16 %v284
  %v893 = vunpack.c.l.b16 %v285
  %v894 = vunpack.c.l.b16 %v286
  %v895 = vunpack.c.l.b16 %v287
  %v896 = vunpack.c.l.b16 %v288
  %v897 = vunpack.c.l.b16 %v289
  %v898 = vunpack.c.l.b16 %v290
  %v899 = vunpack.c.l.b16 %v291
  %v900 = vunpack.c.l.b16 %v292
  %v901 = vunpack.c.l.b16 %v293
  %v902 = vunpack.c.l.b16 %v294
  %v903 = vunpack.c.l.b16 %v295
  %v904 = vunpack.c.l.b16 %v296
  %v905 = vunpack.c.l.b16 %v297
  %v906 = vunpack.c.l.b16 %v298
  %v907 = vunpack.c.l.b16 %v299
  %v908 = vunpack.c.l.b16 %v300
  %v909 = vunpack.c.l.b16 %v301
  %v910 = vunpack.c.l.b16 %v302
  %v911 = vunpack.c.l.b16 %v303
  %v912 = vunpack.c.l.b16 %v304
  %v913 = vunpack.c.l.b16 %v305
  %v914 = vunpack.c.l.b16 %v306
  %v915 = vunpack.c.l.b16 %v307
  %v916 = vunpack.c.l.b16 %v308
  %v917 = vunpack.c.l.b16 %v309
  %v918 = vunpack.c.l.b16 %v310
  %v919 = vunpack.c.l.b16 %v311
  %v920 = vunpack.c.l.b16 %v312
  %v921 = vunpack.c.l.b16 %v313
  %v922 = vunpack.c.l.b16 %v314
  %v923 = vunpack.c.l.b16 %v315
  %v924 = vunpack.c.l.b16 %v316
  %v925 = vunpack.c.l.b16 %v317
  %v926 = vunpack.c.l.b16 %v318
  %v927 = vunpack.c.l.b16 %v319
  %v928 = vunpack.c.l.b16 %v320
  %v929 = vunpack.c.l.b16 %v321
  %v930 = vunpack.c.l.b16 %v322
  %v931 = vunpack.c.l.b16 %v323
  %v932 = vunpack.c.l.b16 %v324
  %v933 = vpack.c.b16 %v886, %v885
  %v934 = vpack.c.b16 %v888, %v887
  %v935 = vpack.c.b16 %v890, %v889
  %v936 = vpack.c.b16 %v892, %v891
  %v937 = vpack.c.b16 %v894, %v893
  %v938 = vpack.c.b16 %v896, %v895
  %v939 = vpack.c.b16 %v898, %v897
  %v940 = vpack.c.b16 %v900, %v899
  %v941 = vpack.c.b16 %v902, %v901
  %v942 = vpack.c.b16 %v904, %v903
  %v943 = vpack.c.b16 %v906, %v905
  %v944 = vpack.c.b16 %v908, %v907
  %v945 = vpack.c.b16 %v910, %v909
  %v946 = vpack.c.b16 %v912, %v911
  %v947 = vpack.c.b16 %v914, %v913
  %v948 = vpack.c.b16 %v916, %v915
  %v949 = vpack.c.b16 %v918, %v917
  %v950 = vpack.c.b16 %v920, %v919
  %v951 = vpack.c.b16 %v922, %v921
  %v952 = vpack.c.b16 %v924, %v923
  %v953 = vpack.c.b16 %v926, %v925
  %v954 = vpack.c.b16 %v928, %v927
  %v955 = vpack.c.b16 %v930, %v929
  %v956 = vpack.c.b16 %v932, %v931
  %981 = vmatpush.bf16.msra.mxu0 %v940
  %982 = vmatpush.bf16.msra.mxu0 %v939
  %983 = vmatpush.bf16.msra.mxu0 %v938
  %984 = vmatpush.bf16.msra.mxu0 %v937
  %985 = vmatpush.bf16.msra.mxu0 %v936
  %986 = vmatpush.bf16.msra.mxu0 %v935
  %987 = vmatpush.bf16.msra.mxu0 %v934
  %988 = vmatpush.bf16.msra.mxu0 %v933
  %989 = vmatmul.bf16.gmra.mxu0 %v645
  %v990 = vpop.f32.mrf.mxu0
  %v991 = vadd.f32 0.0, %v990
  %v992 = vpop.f32.mrf.mxu0
  %v993 = vadd.f32 0.0, %v992
  %994 = vmatmul.bf16.gmra.mxu0 %v648
  %v995 = vpop.f32.mrf.mxu0
  %v996 = vadd.f32 0.0, %v995
  %v997 = vpop.f32.mrf.mxu0
  %v998 = vadd.f32 0.0, %v997
  %999 = vmatmul.bf16.gmra.mxu0 %v651
  %v1000 = vpop.f32.mrf.mxu0
  %v1001 = vadd.f32 0.0, %v1000
  %v1002 = vpop.f32.mrf.mxu0
  %v1003 = vadd.f32 0.0, %v1002
  %1004 = vmatmul.bf16.gmra.mxu0 %v654
  %v1005 = vpop.f32.mrf.mxu0
  %v1006 = vadd.f32 0.0, %v1005
  %v1007 = vpop.f32.mrf.mxu0
  %v1008 = vadd.f32 0.0, %v1007
  %1009 = vmatmul.bf16.gmra.mxu0 %v657
  %v1010 = vpop.f32.mrf.mxu0
  %v1011 = vadd.f32 0.0, %v1010
  %v1012 = vpop.f32.mrf.mxu0
  %v1013 = vadd.f32 0.0, %v1012
  %1014 = vmatmul.bf16.gmra.mxu0 %v660
  %v1015 = vpop.f32.mrf.mxu0
  %v1016 = vadd.f32 0.0, %v1015
  %v1017 = vpop.f32.mrf.mxu0
  %v1018 = vadd.f32 0.0, %v1017
  %1019 = vmatmul.bf16.gmra.mxu0 %v663
  %v1020 = vpop.f32.mrf.mxu0
  %v1021 = vadd.f32 0.0, %v1020
  %v1022 = vpop.f32.mrf.mxu0
  %v1023 = vadd.f32 0.0, %v1022
  %1024 = vmatmul.bf16.gmra.mxu0 %v666
  %v1025 = vpop.f32.mrf.mxu0
  %v1026 = vadd.f32 0.0, %v1025
  %v1027 = vpop.f32.mrf.mxu0
  %v1028 = vadd.f32 0.0, %v1027
  %1029 = vmatmul.bf16.gmra.mxu0 %v669
  %v1030 = vpop.f32.mrf.mxu0
  %v1031 = vadd.f32 0.0, %v1030
  %v1032 = vpop.f32.mrf.mxu0
  %v1033 = vadd.f32 0.0, %v1032
  %1034 = vmatmul.bf16.gmra.mxu0 %v672
  %v1035 = vpop.f32.mrf.mxu0
  %v1036 = vadd.f32 0.0, %v1035
  %v1037 = vpop.f32.mrf.mxu0
  %v1038 = vadd.f32 0.0, %v1037
  %1039 = vmatmul.bf16.gmra.mxu0 %v675
  %v1040 = vpop.f32.mrf.mxu0
  %v1041 = vadd.f32 0.0, %v1040
  %v1042 = vpop.f32.mrf.mxu0
  %v1043 = vadd.f32 0.0, %v1042
  %1044 = vmatmul.bf16.gmra.mxu0 %v678
  %v1045 = vpop.f32.mrf.mxu0
  %v1046 = vadd.f32 0.0, %v1045
  %v1047 = vpop.f32.mrf.mxu0
  %v1048 = vadd.f32 0.0, %v1047
  %1049 = vmatmul.bf16.gmra.mxu0 %v681
  %v1050 = vpop.f32.mrf.mxu0
  %v1051 = vadd.f32 0.0, %v1050
  %v1052 = vpop.f32.mrf.mxu0
  %v1053 = vadd.f32 0.0, %v1052
  %1054 = vmatmul.bf16.gmra.mxu0 %v684
  %v1055 = vpop.f32.mrf.mxu0
  %v1056 = vadd.f32 0.0, %v1055
  %v1057 = vpop.f32.mrf.mxu0
  %v1058 = vadd.f32 0.0, %v1057
  %1059 = vmatmul.bf16.gmra.mxu0 %v687
  %v1060 = vpop.f32.mrf.mxu0
  %v1061 = vadd.f32 0.0, %v1060
  %v1062 = vpop.f32.mrf.mxu0
  %v1063 = vadd.f32 0.0, %v1062
  %1064 = vmatmul.bf16.gmra.mxu0 %v690
  %v1065 = vpop.f32.mrf.mxu0
  %v1066 = vadd.f32 0.0, %v1065
  %v1067 = vpop.f32.mrf.mxu0
  %v1068 = vadd.f32 0.0, %v1067
  %1069 = vmatmul.bf16.gmra.mxu0 %v693
  %v1070 = vpop.f32.mrf.mxu0
  %v1071 = vadd.f32 0.0, %v1070
  %v1072 = vpop.f32.mrf.mxu0
  %v1073 = vadd.f32 0.0, %v1072
  %1074 = vmatmul.bf16.gmra.mxu0 %v696
  %v1075 = vpop.f32.mrf.mxu0
  %v1076 = vadd.f32 0.0, %v1075
  %v1077 = vpop.f32.mrf.mxu0
  %v1078 = vadd.f32 0.0, %v1077
  %1079 = vmatmul.bf16.gmra.mxu0 %v699
  %v1080 = vpop.f32.mrf.mxu0
  %v1081 = vadd.f32 0.0, %v1080
  %v1082 = vpop.f32.mrf.mxu0
  %v1083 = vadd.f32 0.0, %v1082
  %1084 = vmatmul.bf16.gmra.mxu0 %v702
  %v1085 = vpop.f32.mrf.mxu0
  %v1086 = vadd.f32 0.0, %v1085
  %v1087 = vpop.f32.mrf.mxu0
  %v1088 = vadd.f32 0.0, %v1087
  %1089 = vmatmul.bf16.gmra.mxu0 %v705
  %v1090 = vpop.f32.mrf.mxu0
  %v1091 = vadd.f32 0.0, %v1090
  %v1092 = vpop.f32.mrf.mxu0
  %v1093 = vadd.f32 0.0, %v1092
  %1094 = vmatmul.bf16.gmra.mxu0 %v708
  %v1095 = vpop.f32.mrf.mxu0
  %v1096 = vadd.f32 0.0, %v1095
  %v1097 = vpop.f32.mrf.mxu0
  %v1098 = vadd.f32 0.0, %v1097
  %1099 = vmatmul.bf16.gmra.mxu0 %v711
  %v1100 = vpop.f32.mrf.mxu0
  %v1101 = vadd.f32 0.0, %v1100
  %v1102 = vpop.f32.mrf.mxu0
  %v1103 = vadd.f32 0.0, %v1102
  %1104 = vmatmul.bf16.gmra.mxu0 %v714
  %v1105 = vpop.f32.mrf.mxu0
  %v1106 = vadd.f32 0.0, %v1105
  %v1107 = vpop.f32.mrf.mxu0
  %v1108 = vadd.f32 0.0, %v1107
  %1109 = vmatmul.bf16.gmra.mxu0 %v717
  %v1110 = vpop.f32.mrf.mxu0
  %v1111 = vadd.f32 0.0, %v1110
  %v1112 = vpop.f32.mrf.mxu0
  %v1113 = vadd.f32 0.0, %v1112
  %1114 = vmatmul.bf16.gmra.mxu0 %v720
  %v1115 = vpop.f32.mrf.mxu0
  %v1116 = vadd.f32 0.0, %v1115
  %v1117 = vpop.f32.mrf.mxu0
  %v1118 = vadd.f32 0.0, %v1117
  %1119 = vmatmul.bf16.gmra.mxu0 %v723
  %v1120 = vpop.f32.mrf.mxu0
  %v1121 = vadd.f32 0.0, %v1120
  %v1122 = vpop.f32.mrf.mxu0
  %v1123 = vadd.f32 0.0, %v1122
  %1124 = vmatmul.bf16.gmra.mxu0 %v726
  %v1125 = vpop.f32.mrf.mxu0
  %v1126 = vadd.f32 0.0, %v1125
  %v1127 = vpop.f32.mrf.mxu0
  %v1128 = vadd.f32 0.0, %v1127
  %1129 = vmatmul.bf16.gmra.mxu0 %v729
  %v1130 = vpop.f32.mrf.mxu0
  %v1131 = vadd.f32 0.0, %v1130
  %v1132 = vpop.f32.mrf.mxu0
  %v1133 = vadd.f32 0.0, %v1132
  %1134 = vmatmul.bf16.gmra.mxu0 %v732
  %v1135 = vpop.f32.mrf.mxu0
  %v1136 = vadd.f32 0.0, %v1135
  %v1137 = vpop.f32.mrf.mxu0
  %v1138 = vadd.f32 0.0, %v1137
  %1139 = vmatmul.bf16.gmra.mxu0 %v735
  %v1140 = vpop.f32.mrf.mxu0
  %v1141 = vadd.f32 0.0, %v1140
  %v1142 = vpop.f32.mrf.mxu0
  %v1143 = vadd.f32 0.0, %v1142
  %1144 = vmatmul.bf16.gmra.mxu0 %v738
  %v1145 = vpop.f32.mrf.mxu0
  %v1146 = vadd.f32 0.0, %v1145
  %v1147 = vpop.f32.mrf.mxu0
  %v1148 = vadd.f32 0.0, %v1147
  %1149 = vdwg.mxu0
  %1150 = vmatpush.bf16.msra.mxu0 %v948
  %1151 = vmatpush.bf16.msra.mxu0 %v947
  %1152 = vmatpush.bf16.msra.mxu0 %v946
  %1153 = vmatpush.bf16.msra.mxu0 %v945
  %1154 = vmatpush.bf16.msra.mxu0 %v944
  %1155 = vmatpush.bf16.msra.mxu0 %v943
  %1156 = vmatpush.bf16.msra.mxu0 %v942
  %1157 = vmatpush.bf16.msra.mxu0 %v941
  %1158 = vmatmul.bf16.gmra.mxu0 %v646
  %v1159 = vpop.f32.mrf.mxu0
  %v1160 = vadd.f32 %v991, %v1159
  %v1161 = vpop.f32.mrf.mxu0
  %v1162 = vadd.f32 %v993, %v1161
  %1163 = vmatmul.bf16.gmra.mxu0 %v649
  %v1164 = vpop.f32.mrf.mxu0
  %v1165 = vadd.f32 %v996, %v1164
  %v1166 = vpop.f32.mrf.mxu0
  %v1167 = vadd.f32 %v998, %v1166
  %1168 = vmatmul.bf16.gmra.mxu0 %v652
  %v1169 = vpop.f32.mrf.mxu0
  %v1170 = vadd.f32 %v1001, %v1169
  %v1171 = vpop.f32.mrf.mxu0
  %v1172 = vadd.f32 %v1003, %v1171
  %1173 = vmatmul.bf16.gmra.mxu0 %v655
  %v1174 = vpop.f32.mrf.mxu0
  %v1175 = vadd.f32 %v1006, %v1174
  %v1176 = vpop.f32.mrf.mxu0
  %v1177 = vadd.f32 %v1008, %v1176
  %1178 = vmatmul.bf16.gmra.mxu0 %v658
  %v1179 = vpop.f32.mrf.mxu0
  %v1180 = vadd.f32 %v1011, %v1179
  %v1181 = vpop.f32.mrf.mxu0
  %v1182 = vadd.f32 %v1013, %v1181
  %1183 = vmatmul.bf16.gmra.mxu0 %v661
  %v1184 = vpop.f32.mrf.mxu0
  %v1185 = vadd.f32 %v1016, %v1184
  %v1186 = vpop.f32.mrf.mxu0
  %v1187 = vadd.f32 %v1018, %v1186
  %1188 = vmatmul.bf16.gmra.mxu0 %v664
  %v1189 = vpop.f32.mrf.mxu0
  %v1190 = vadd.f32 %v1021, %v1189
  %v1191 = vpop.f32.mrf.mxu0
  %v1192 = vadd.f32 %v1023, %v1191
  %1193 = vmatmul.bf16.gmra.mxu0 %v667
  %v1194 = vpop.f32.mrf.mxu0
  %v1195 = vadd.f32 %v1026, %v1194
  %v1196 = vpop.f32.mrf.mxu0
  %v1197 = vadd.f32 %v1028, %v1196
  %1198 = vmatmul.bf16.gmra.mxu0 %v670
  %v1199 = vpop.f32.mrf.mxu0
  %v1200 = vadd.f32 %v1031, %v1199
  %v1201 = vpop.f32.mrf.mxu0
  %v1202 = vadd.f32 %v1033, %v1201
  %1203 = vmatmul.bf16.gmra.mxu0 %v673
  %v1204 = vpop.f32.mrf.mxu0
  %v1205 = vadd.f32 %v1036, %v1204
  %v1206 = vpop.f32.mrf.mxu0
  %v1207 = vadd.f32 %v1038, %v1206
  %1208 = vmatmul.bf16.gmra.mxu0 %v676
  %v1209 = vpop.f32.mrf.mxu0
  %v1210 = vadd.f32 %v1041, %v1209
  %v1211 = vpop.f32.mrf.mxu0
  %v1212 = vadd.f32 %v1043, %v1211
  %1213 = vmatmul.bf16.gmra.mxu0 %v679
  %v1214 = vpop.f32.mrf.mxu0
  %v1215 = vadd.f32 %v1046, %v1214
  %v1216 = vpop.f32.mrf.mxu0
  %v1217 = vadd.f32 %v1048, %v1216
  %1218 = vmatmul.bf16.gmra.mxu0 %v682
  %v1219 = vpop.f32.mrf.mxu0
  %v1220 = vadd.f32 %v1051, %v1219
  %v1221 = vpop.f32.mrf.mxu0
  %v1222 = vadd.f32 %v1053, %v1221
  %1223 = vmatmul.bf16.gmra.mxu0 %v685
  %v1224 = vpop.f32.mrf.mxu0
  %v1225 = vadd.f32 %v1056, %v1224
  %v1226 = vpop.f32.mrf.mxu0
  %v1227 = vadd.f32 %v1058, %v1226
  %1228 = vmatmul.bf16.gmra.mxu0 %v688
  %v1229 = vpop.f32.mrf.mxu0
  %v1230 = vadd.f32 %v1061, %v1229
  %v1231 = vpop.f32.mrf.mxu0
  %v1232 = vadd.f32 %v1063, %v1231
  %1233 = vmatmul.bf16.gmra.mxu0 %v691
  %v1234 = vpop.f32.mrf.mxu0
  %v1235 = vadd.f32 %v1066, %v1234
  %v1236 = vpop.f32.mrf.mxu0
  %v1237 = vadd.f32 %v1068, %v1236
  %1238 = vmatmul.bf16.gmra.mxu0 %v694
  %v1239 = vpop.f32.mrf.mxu0
  %v1240 = vadd.f32 %v1071, %v1239
  %v1241 = vpop.f32.mrf.mxu0
  %v1242 = vadd.f32 %v1073, %v1241
  %1243 = vmatmul.bf16.gmra.mxu0 %v697
  %v1244 = vpop.f32.mrf.mxu0
  %v1245 = vadd.f32 %v1076, %v1244
  %v1246 = vpop.f32.mrf.mxu0
  %v1247 = vadd.f32 %v1078, %v1246
  %1248 = vmatmul.bf16.gmra.mxu0 %v700
  %v1249 = vpop.f32.mrf.mxu0
  %v1250 = vadd.f32 %v1081, %v1249
  %v1251 = vpop.f32.mrf.mxu0
  %v1252 = vadd.f32 %v1083, %v1251
  %1253 = vmatmul.bf16.gmra.mxu0 %v703
  %v1254 = vpop.f32.mrf.mxu0
  %v1255 = vadd.f32 %v1086, %v1254
  %v1256 = vpop.f32.mrf.mxu0
  %v1257 = vadd.f32 %v1088, %v1256
  %1258 = vmatmul.bf16.gmra.mxu0 %v706
  %v1259 = vpop.f32.mrf.mxu0
  %v1260 = vadd.f32 %v1091, %v1259
  %v1261 = vpop.f32.mrf.mxu0
  %v1262 = vadd.f32 %v1093, %v1261
  %1263 = vmatmul.bf16.gmra.mxu0 %v709
  %v1264 = vpop.f32.mrf.mxu0
  %v1265 = vadd.f32 %v1096, %v1264
  %v1266 = vpop.f32.mrf.mxu0
  %v1267 = vadd.f32 %v1098, %v1266
  %1268 = vmatmul.bf16.gmra.mxu0 %v712
  %v1269 = vpop.f32.mrf.mxu0
  %v1270 = vadd.f32 %v1101, %v1269
  %v1271 = vpop.f32.mrf.mxu0
  %v1272 = vadd.f32 %v1103, %v1271
  %1273 = vmatmul.bf16.gmra.mxu0 %v715
  %v1274 = vpop.f32.mrf.mxu0
  %v1275 = vadd.f32 %v1106, %v1274
  %v1276 = vpop.f32.mrf.mxu0
  %v1277 = vadd.f32 %v1108, %v1276
  %1278 = vmatmul.bf16.gmra.mxu0 %v718
  %v1279 = vpop.f32.mrf.mxu0
  %v1280 = vadd.f32 %v1111, %v1279
  %v1281 = vpop.f32.mrf.mxu0
  %v1282 = vadd.f32 %v1113, %v1281
  %1283 = vmatmul.bf16.gmra.mxu0 %v721
  %v1284 = vpop.f32.mrf.mxu0
  %v1285 = vadd.f32 %v1116, %v1284
  %v1286 = vpop.f32.mrf.mxu0
  %v1287 = vadd.f32 %v1118, %v1286
  %1288 = vmatmul.bf16.gmra.mxu0 %v724
  %v1289 = vpop.f32.mrf.mxu0
  %v1290 = vadd.f32 %v1121, %v1289
  %v1291 = vpop.f32.mrf.mxu0
  %v1292 = vadd.f32 %v1123, %v1291
  %1293 = vmatmul.bf16.gmra.mxu0 %v727
  %v1294 = vpop.f32.mrf.mxu0
  %v1295 = vadd.f32 %v1126, %v1294
  %v1296 = vpop.f32.mrf.mxu0
  %v1297 = vadd.f32 %v1128, %v1296
  %1298 = vmatmul.bf16.gmra.mxu0 %v730
  %v1299 = vpop.f32.mrf.mxu0
  %v1300 = vadd.f32 %v1131, %v1299
  %v1301 = vpop.f32.mrf.mxu0
  %v1302 = vadd.f32 %v1133, %v1301
  %1303 = vmatmul.bf16.gmra.mxu0 %v733
  %v1304 = vpop.f32.mrf.mxu0
  %v1305 = vadd.f32 %v1136, %v1304
  %v1306 = vpop.f32.mrf.mxu0
  %v1307 = vadd.f32 %v1138, %v1306
  %1308 = vmatmul.bf16.gmra.mxu0 %v736
  %v1309 = vpop.f32.mrf.mxu0
  %v1310 = vadd.f32 %v1141, %v1309
  %v1311 = vpop.f32.mrf.mxu0
  %v1312 = vadd.f32 %v1143, %v1311
  %1313 = vmatmul.bf16.gmra.mxu0 %v739
  %v1314 = vpop.f32.mrf.mxu0
  %v1315 = vadd.f32 %v1146, %v1314
  %v1316 = vpop.f32.mrf.mxu0
  %v1317 = vadd.f32 %v1148, %v1316
  %1318 = vdwg.mxu0
  %1319 = vmatpush.bf16.msra.mxu0 %v956
  %1320 = vmatpush.bf16.msra.mxu0 %v955
  %1321 = vmatpush.bf16.msra.mxu0 %v954
  %1322 = vmatpush.bf16.msra.mxu0 %v953
  %1323 = vmatpush.bf16.msra.mxu0 %v952
  %1324 = vmatpush.bf16.msra.mxu0 %v951
  %1325 = vmatpush.bf16.msra.mxu0 %v950
  %1326 = vmatpush.bf16.msra.mxu0 %v949
  %1327 = vmatmul.bf16.gmra.mxu0 %v647
  %v1328 = vpop.f32.mrf.mxu0
  %v1329 = vadd.f32 %v1160, %v1328
  %v1330 = vpop.f32.mrf.mxu0
  %v1331 = vadd.f32 %v1162, %v1330
  %1332 = vmatmul.bf16.gmra.mxu0 %v650
  %v1333 = vpop.f32.mrf.mxu0
  %v1334 = vadd.f32 %v1165, %v1333
  %v1335 = vpop.f32.mrf.mxu0
  %v1336 = vadd.f32 %v1167, %v1335
  %1337 = vmatmul.bf16.gmra.mxu0 %v653
  %v1338 = vpop.f32.mrf.mxu0
  %v1339 = vadd.f32 %v1170, %v1338
  %v1340 = vpop.f32.mrf.mxu0
  %v1341 = vadd.f32 %v1172, %v1340
  %1342 = vmatmul.bf16.gmra.mxu0 %v656
  %v1343 = vpop.f32.mrf.mxu0
  %v1344 = vadd.f32 %v1175, %v1343
  %v1345 = vpop.f32.mrf.mxu0
  %v1346 = vadd.f32 %v1177, %v1345
  %1347 = vmatmul.bf16.gmra.mxu0 %v659
  %v1348 = vpop.f32.mrf.mxu0
  %v1349 = vadd.f32 %v1180, %v1348
  %v1350 = vpop.f32.mrf.mxu0
  %v1351 = vadd.f32 %v1182, %v1350
  %1352 = vmatmul.bf16.gmra.mxu0 %v662
  %v1353 = vpop.f32.mrf.mxu0
  %v1354 = vadd.f32 %v1185, %v1353
  %v1355 = vpop.f32.mrf.mxu0
  %v1356 = vadd.f32 %v1187, %v1355
  %1357 = vmatmul.bf16.gmra.mxu0 %v665
  %v1358 = vpop.f32.mrf.mxu0
  %v1359 = vadd.f32 %v1190, %v1358
  %v1360 = vpop.f32.mrf.mxu0
  %v1361 = vadd.f32 %v1192, %v1360
  %1362 = vmatmul.bf16.gmra.mxu0 %v668
  %v1363 = vpop.f32.mrf.mxu0
  %v1364 = vadd.f32 %v1195, %v1363
  %v1365 = vpop.f32.mrf.mxu0
  %v1366 = vadd.f32 %v1197, %v1365
  %1367 = vmatmul.bf16.gmra.mxu0 %v671
  %v1368 = vpop.f32.mrf.mxu0
  %v1369 = vadd.f32 %v1200, %v1368
  %v1370 = vpop.f32.mrf.mxu0
  %v1371 = vadd.f32 %v1202, %v1370
  %1372 = vmatmul.bf16.gmra.mxu0 %v674
  %v1373 = vpop.f32.mrf.mxu0
  %v1374 = vadd.f32 %v1205, %v1373
  %v1375 = vpop.f32.mrf.mxu0
  %v1376 = vadd.f32 %v1207, %v1375
  %1377 = vmatmul.bf16.gmra.mxu0 %v677
  %v1378 = vpop.f32.mrf.mxu0
  %v1379 = vadd.f32 %v1210, %v1378
  %v1380 = vpop.f32.mrf.mxu0
  %v1381 = vadd.f32 %v1212, %v1380
  %1382 = vmatmul.bf16.gmra.mxu0 %v680
  %v1383 = vpop.f32.mrf.mxu0
  %v1384 = vadd.f32 %v1215, %v1383
  %v1385 = vpop.f32.mrf.mxu0
  %v1386 = vadd.f32 %v1217, %v1385
  %1387 = vmatmul.bf16.gmra.mxu0 %v683
  %v1388 = vpop.f32.mrf.mxu0
  %v1389 = vadd.f32 %v1220, %v1388
  %v1390 = vpop.f32.mrf.mxu0
  %v1391 = vadd.f32 %v1222, %v1390
  %1392 = vmatmul.bf16.gmra.mxu0 %v686
  %v1393 = vpop.f32.mrf.mxu0
  %v1394 = vadd.f32 %v1225, %v1393
  %v1395 = vpop.f32.mrf.mxu0
  %v1396 = vadd.f32 %v1227, %v1395
  %1397 = vmatmul.bf16.gmra.mxu0 %v689
  %v1398 = vpop.f32.mrf.mxu0
  %v1399 = vadd.f32 %v1230, %v1398
  %v1400 = vpop.f32.mrf.mxu0
  %v1401 = vadd.f32 %v1232, %v1400
  %1402 = vmatmul.bf16.gmra.mxu0 %v692
  %v1403 = vpop.f32.mrf.mxu0
  %v1404 = vadd.f32 %v1235, %v1403
  %v1405 = vpop.f32.mrf.mxu0
  %v1406 = vadd.f32 %v1237, %v1405
  %1407 = vmatmul.bf16.gmra.mxu0 %v695
  %v1408 = vpop.f32.mrf.mxu0
  %v1409 = vadd.f32 %v1240, %v1408
  %v1410 = vpop.f32.mrf.mxu0
  %v1411 = vadd.f32 %v1242, %v1410
  %1412 = vmatmul.bf16.gmra.mxu0 %v698
  %v1413 = vpop.f32.mrf.mxu0
  %v1414 = vadd.f32 %v1245, %v1413
  %v1415 = vpop.f32.mrf.mxu0
  %v1416 = vadd.f32 %v1247, %v1415
  %1417 = vmatmul.bf16.gmra.mxu0 %v701
  %v1418 = vpop.f32.mrf.mxu0
  %v1419 = vadd.f32 %v1250, %v1418
  %v1420 = vpop.f32.mrf.mxu0
  %v1421 = vadd.f32 %v1252, %v1420
  %1422 = vmatmul.bf16.gmra.mxu0 %v704
  %v1423 = vpop.f32.mrf.mxu0
  %v1424 = vadd.f32 %v1255, %v1423
  %v1425 = vpop.f32.mrf.mxu0
  %v1426 = vadd.f32 %v1257, %v1425
  %1427 = vmatmul.bf16.gmra.mxu0 %v707
  %v1428 = vpop.f32.mrf.mxu0
  %v1429 = vadd.f32 %v1260, %v1428
  %v1430 = vpop.f32.mrf.mxu0
  %v1431 = vadd.f32 %v1262, %v1430
  %1432 = vmatmul.bf16.gmra.mxu0 %v710
  %v1433 = vpop.f32.mrf.mxu0
  %v1434 = vadd.f32 %v1265, %v1433
  %v1435 = vpop.f32.mrf.mxu0
  %v1436 = vadd.f32 %v1267, %v1435
  %1437 = vmatmul.bf16.gmra.mxu0 %v713
  %v1438 = vpop.f32.mrf.mxu0
  %v1439 = vadd.f32 %v1270, %v1438
  %v1440 = vpop.f32.mrf.mxu0
  %v1441 = vadd.f32 %v1272, %v1440
  %1442 = vmatmul.bf16.gmra.mxu0 %v716
  %v1443 = vpop.f32.mrf.mxu0
  %v1444 = vadd.f32 %v1275, %v1443
  %v1445 = vpop.f32.mrf.mxu0
  %v1446 = vadd.f32 %v1277, %v1445
  %1447 = vmatmul.bf16.gmra.mxu0 %v719
  %v1448 = vpop.f32.mrf.mxu0
  %v1449 = vadd.f32 %v1280, %v1448
  %v1450 = vpop.f32.mrf.mxu0
  %v1451 = vadd.f32 %v1282, %v1450
  %1452 = vmatmul.bf16.gmra.mxu0 %v722
  %v1453 = vpop.f32.mrf.mxu0
  %v1454 = vadd.f32 %v1285, %v1453
  %v1455 = vpop.f32.mrf.mxu0
  %v1456 = vadd.f32 %v1287, %v1455
  %1457 = vmatmul.bf16.gmra.mxu0 %v725
  %v1458 = vpop.f32.mrf.mxu0
  %v1459 = vadd.f32 %v1290, %v1458
  %v1460 = vpop.f32.mrf.mxu0
  %v1461 = vadd.f32 %v1292, %v1460
  %1462 = vmatmul.bf16.gmra.mxu0 %v728
  %v1463 = vpop.f32.mrf.mxu0
  %v1464 = vadd.f32 %v1295, %v1463
  %v1465 = vpop.f32.mrf.mxu0
  %v1466 = vadd.f32 %v1297, %v1465
  %1467 = vmatmul.bf16.gmra.mxu0 %v731
  %v1468 = vpop.f32.mrf.mxu0
  %v1469 = vadd.f32 %v1300, %v1468
  %v1470 = vpop.f32.mrf.mxu0
  %v1471 = vadd.f32 %v1302, %v1470
  %1472 = vmatmul.bf16.gmra.mxu0 %v734
  %v1473 = vpop.f32.mrf.mxu0
  %v1474 = vadd.f32 %v1305, %v1473
  %v1475 = vpop.f32.mrf.mxu0
  %v1476 = vadd.f32 %v1307, %v1475
  %1477 = vmatmul.bf16.gmra.mxu0 %v737
  %v1478 = vpop.f32.mrf.mxu0
  %v1479 = vadd.f32 %v1310, %v1478
  %v1480 = vpop.f32.mrf.mxu0
  %v1481 = vadd.f32 %v1312, %v1480
  %1482 = vmatmul.bf16.gmra.mxu0 %v740
  %v1483 = vpop.f32.mrf.mxu0
  %v1484 = vadd.f32 %v1315, %v1483
  %v1485 = vpop.f32.mrf.mxu0
  %v1486 = vadd.f32 %v1317, %v1485
  %1487 = vdwg.mxu0
  %v1488 = vadd.f32 %v85, %v1329
  %v1489 = vadd.f32 %v86, %v1331
  %v1490 = vadd.f32 %v87, %v1334
  %v1491 = vadd.f32 %v88, %v1336
  %v1492 = vadd.f32 %v89, %v1339
  %v1493 = vadd.f32 %v90, %v1341
  %v1494 = vadd.f32 %v91, %v1344
  %v1495 = vadd.f32 %v92, %v1346
  %v1496 = vadd.f32 %v93, %v1349
  %v1497 = vadd.f32 %v94, %v1351
  %v1498 = vadd.f32 %v95, %v1354
  %v1499 = vadd.f32 %v96, %v1356
  %v1500 = vadd.f32 %v97, %v1359
  %v1501 = vadd.f32 %v98, %v1361
  %v1502 = vadd.f32 %v99, %v1364
  %v1503 = vadd.f32 %v100, %v1366
  %v1504 = vadd.f32 %v101, %v1369
  %v1505 = vadd.f32 %v102, %v1371
  %v1506 = vadd.f32 %v103, %v1374
  %v1507 = vadd.f32 %v104, %v1376
  %v1508 = vadd.f32 %v105, %v1379
  %v1509 = vadd.f32 %v106, %v1381
  %v1510 = vadd.f32 %v107, %v1384
  %v1511 = vadd.f32 %v108, %v1386
  %v1512 = vadd.f32 %v109, %v1389
  %v1513 = vadd.f32 %v110, %v1391
  %v1514 = vadd.f32 %v111, %v1394
  %v1515 = vadd.f32 %v112, %v1396
  %v1516 = vadd.f32 %v113, %v1399
  %v1517 = vadd.f32 %v114, %v1401
  %v1518 = vadd.f32 %v115, %v1404
  %v1519 = vadd.f32 %v116, %v1406
  %v1520 = vadd.f32 %v117, %v1409
  %v1521 = vadd.f32 %v118, %v1411
  %v1522 = vadd.f32 %v119, %v1414
  %v1523 = vadd.f32 %v120, %v1416
  %v1524 = vadd.f32 %v121, %v1419
  %v1525 = vadd.f32 %v122, %v1421
  %v1526 = vadd.f32 %v123, %v1424
  %v1527 = vadd.f32 %v124, %v1426
  %v1528 = vadd.f32 %v125, %v1429
  %v1529 = vadd.f32 %v126, %v1431
  %v1530 = vadd.f32 %v127, %v1434
  %v1531 = vadd.f32 %v128, %v1436
  %v1532 = vadd.f32 %v129, %v1439
  %v1533 = vadd.f32 %v130, %v1441
  %v1534 = vadd.f32 %v131, %v1444
  %v1535 = vadd.f32 %v132, %v1446
  %v1536 = vadd.f32 %v133, %v1449
  %v1537 = vadd.f32 %v134, %v1451
  %v1538 = vadd.f32 %v135, %v1454
  %v1539 = vadd.f32 %v136, %v1456
  %v1540 = vadd.f32 %v137, %v1459
  %v1541 = vadd.f32 %v138, %v1461
  %v1542 = vadd.f32 %v139, %v1464
  %v1543 = vadd.f32 %v140, %v1466
  %v1544 = vadd.f32 %v141, %v1469
  %v1545 = vadd.f32 %v142, %v1471
  %v1546 = vadd.f32 %v143, %v1474
  %v1547 = vadd.f32 %v144, %v1476
  %v1548 = vadd.f32 %v145, %v1479
  %v1549 = vadd.f32 %v146, %v1481
  %v1550 = vadd.f32 %v147, %v1484
  %v1551 = vadd.f32 %v148, %v1486
  %1552 = vst [vmem:[#allocation2] sm:$0xff] %v1488
  %1553 = vst [vmem:[#allocation2 + $0x8] sm:$0xff] %v1489
  %1554 = vst [vmem:[#allocation2 + $0x10] sm:$0xff] %v1490
  %1555 = vst [vmem:[#allocation2 + $0x18] sm:$0xff] %v1491
  %1556 = vst [vmem:[#allocation2 + $0x20] sm:$0xff] %v1492
  %1557 = vst [vmem:[#allocation2 + $0x28] sm:$0xff] %v1493
  %1558 = vst [vmem:[#allocation2 + $0x30] sm:$0xff] %v1494
  %1559 = vst [vmem:[#allocation2 + $0x38] sm:$0xff] %v1495
  %1560 = vst [vmem:[#allocation2 + $0x40] sm:$0xff] %v1496
  %1561 = vst [vmem:[#allocation2 + $0x48] sm:$0xff] %v1497
  %1562 = vst [vmem:[#allocation2 + $0x50] sm:$0xff] %v1498
  %1563 = vst [vmem:[#allocation2 + $0x58] sm:$0xff] %v1499
  %1564 = vst [vmem:[#allocation2 + $0x60] sm:$0xff] %v1500
  %1565 = vst [vmem:[#allocation2 + $0x68] sm:$0xff] %v1501
  %1566 = vst [vmem:[#allocation2 + $0x70] sm:$0xff] %v1502
  %1567 = vst [vmem:[#allocation2 + $0x78] sm:$0xff] %v1503
  %1568 = vst [vmem:[#allocation2 + $0x80] sm:$0xff] %v1504
  %1569 = vst [vmem:[#allocation2 + $0x88] sm:$0xff] %v1505
  %1570 = vst [vmem:[#allocation2 + $0x90] sm:$0xff] %v1506
  %1571 = vst [vmem:[#allocation2 + $0x98] sm:$0xff] %v1507
  %1572 = vst [vmem:[#allocation2 + $0xa0] sm:$0xff] %v1508
  %1573 = vst [vmem:[#allocation2 + $0xa8] sm:$0xff] %v1509
  %1574 = vst [vmem:[#allocation2 + $0xb0] sm:$0xff] %v1510
  %1575 = vst [vmem:[#allocation2 + $0xb8] sm:$0xff] %v1511
  %1576 = vst [vmem:[#allocation2 + $0xc0] sm:$0xff] %v1512
  %1577 = vst [vmem:[#allocation2 + $0xc8] sm:$0xff] %v1513
  %1578 = vst [vmem:[#allocation2 + $0xd0] sm:$0xff] %v1514
  %1579 = vst [vmem:[#allocation2 + $0xd8] sm:$0xff] %v1515
  %1580 = vst [vmem:[#allocation2 + $0xe0] sm:$0xff] %v1516
  %1581 = vst [vmem:[#allocation2 + $0xe8] sm:$0xff] %v1517
  %1582 = vst [vmem:[#allocation2 + $0xf0] sm:$0xff] %v1518
  %1583 = vst [vmem:[#allocation2 + $0xf8] sm:$0xff] %v1519
  %1584 = vst [vmem:[#allocation2 + $0x100] sm:$0xff] %v1520
  %1585 = vst [vmem:[#allocation2 + $0x108] sm:$0xff] %v1521
  %1586 = vst [vmem:[#allocation2 + $0x110] sm:$0xff] %v1522
  %1587 = vst [vmem:[#allocation2 + $0x118] sm:$0xff] %v1523
  %1588 = vst [vmem:[#allocation2 + $0x120] sm:$0xff] %v1524
  %1589 = vst [vmem:[#allocation2 + $0x128] sm:$0xff] %v1525
  %1590 = vst [vmem:[#allocation2 + $0x130] sm:$0xff] %v1526
  %1591 = vst [vmem:[#allocation2 + $0x138] sm:$0xff] %v1527
  %1592 = vst [vmem:[#allocation2 + $0x140] sm:$0xff] %v1528
  %1593 = vst [vmem:[#allocation2 + $0x148] sm:$0xff] %v1529
  %1594 = vst [vmem:[#allocation2 + $0x150] sm:$0xff] %v1530
  %1595 = vst [vmem:[#allocation2 + $0x158] sm:$0xff] %v1531
  %1596 = vst [vmem:[#allocation2 + $0x160] sm:$0xff] %v1532
  %1597 = vst [vmem:[#allocation2 + $0x168] sm:$0xff] %v1533
  %1598 = vst [vmem:[#allocation2 + $0x170] sm:$0xff] %v1534
  %1599 = vst [vmem:[#allocation2 + $0x178] sm:$0xff] %v1535
  %1600 = vst [vmem:[#allocation2 + $0x180] sm:$0xff] %v1536
  %1601 = vst [vmem:[#allocation2 + $0x188] sm:$0xff] %v1537
  %1602 = vst [vmem:[#allocation2 + $0x190] sm:$0xff] %v1538
  %1603 = vst [vmem:[#allocation2 + $0x198] sm:$0xff] %v1539
  %1604 = vst [vmem:[#allocation2 + $0x1a0] sm:$0xff] %v1540
  %1605 = vst [vmem:[#allocation2 + $0x1a8] sm:$0xff] %v1541
  %1606 = vst [vmem:[#allocation2 + $0x1b0] sm:$0xff] %v1542
  %1607 = vst [vmem:[#allocation2 + $0x1b8] sm:$0xff] %v1543
  %1608 = vst [vmem:[#allocation2 + $0x1c0] sm:$0xff] %v1544
  %1609 = vst [vmem:[#allocation2 + $0x1c8] sm:$0xff] %v1545
  %1610 = vst [vmem:[#allocation2 + $0x1d0] sm:$0xff] %v1546
  %1611 = vst [vmem:[#allocation2 + $0x1d8] sm:$0xff] %v1547
  %1612 = vst [vmem:[#allocation2 + $0x1e0] sm:$0xff] %v1548
  %1613 = vst [vmem:[#allocation2 + $0x1e8] sm:$0xff] %v1549
  %1614 = vst [vmem:[#allocation2 + $0x1f0] sm:$0xff] %v1550
  %1615 = vst [vmem:[#allocation2 + $0x1f8] sm:$0xff] %v1551
  // Predicated region
  $region22: #{syn_model_forward.382} parent=0 // pred_check
    %p1616 = pneg %p17
  $region23: #{syn_model_forward.382} parent=0 // pred_check_branch
    %1618 = sbr.rel (%p1616) target = $region25
  $region24: #{syn_model_forward.382} parent=0 // pred_region
    %v1619 = vld [vmem:[#allocation2] sm:$0xff]
    %v1620 = vld [vmem:[#allocation2 + $0x8] sm:$0xff]
    %v1621 = vld [vmem:[#allocation2 + $0x10] sm:$0xff]
    %v1622 = vld [vmem:[#allocation2 + $0x18] sm:$0xff]
    %v1623 = vld [vmem:[#allocation2 + $0x20] sm:$0xff]
    %v1624 = vld [vmem:[#allocation2 + $0x28] sm:$0xff]
    %v1625 = vld [vmem:[#allocation2 + $0x30] sm:$0xff]
    %v1626 = vld [vmem:[#allocation2 + $0x38] sm:$0xff]
    %v1627 = vld [vmem:[#allocation2 + $0x40] sm:$0xff]
    %v1628 = vld [vmem:[#allocation2 + $0x48] sm:$0xff]
    %v1629 = vld [vmem:[#allocation2 + $0x50] sm:$0xff]
    %v1630 = vld [vmem:[#allocation2 + $0x58] sm:$0xff]
    %v1631 = vld [vmem:[#allocation2 + $0x60] sm:$0xff]
    %v1632 = vld [vmem:[#allocation2 + $0x68] sm:$0xff]
    %v1633 = vld [vmem:[#allocation2 + $0x70] sm:$0xff]
    %v1634 = vld [vmem:[#allocation2 + $0x78] sm:$0xff]
    %v1635 = vld [vmem:[#allocation2 + $0x80] sm:$0xff]
    %v1636 = vld [vmem:[#allocation2 + $0x88] sm:$0xff]
    %v1637 = vld [vmem:[#allocation2 + $0x90] sm:$0xff]
    %v1638 = vld [vmem:[#allocation2 + $0x98] sm:$0xff]
    %v1639 = vld [vmem:[#allocation2 + $0xa0] sm:$0xff]
    %v1640 = vld [vmem:[#allocation2 + $0xa8] sm:$0xff]
    %v1641 = vld [vmem:[#allocation2 + $0xb0] sm:$0xff]
    %v1642 = vld [vmem:[#allocation2 + $0xb8] sm:$0xff]
    %v1643 = vld [vmem:[#allocation2 + $0xc0] sm:$0xff]
    %v1644 = vld [vmem:[#allocation2 + $0xc8] sm:$0xff]
    %v1645 = vld [vmem:[#allocation2 + $0xd0] sm:$0xff]
    %v1646 = vld [vmem:[#allocation2 + $0xd8] sm:$0xff]
    %v1647 = vld [vmem:[#allocation2 + $0xe0] sm:$0xff]
    %v1648 = vld [vmem:[#allocation2 + $0xe8] sm:$0xff]
    %v1649 = vld [vmem:[#allocation2 + $0xf0] sm:$0xff]
    %v1650 = vld [vmem:[#allocation2 + $0xf8] sm:$0xff]
    %v1651 = vld [vmem:[#allocation2 + $0x100] sm:$0xff]
    %v1652 = vld [vmem:[#allocation2 + $0x108] sm:$0xff]
    %v1653 = vld [vmem:[#allocation2 + $0x110] sm:$0xff]
    %v1654 = vld [vmem:[#allocation2 + $0x118] sm:$0xff]
    %v1655 = vld [vmem:[#allocation2 + $0x120] sm:$0xff]
    %v1656 = vld [vmem:[#allocation2 + $0x128] sm:$0xff]
    %v1657 = vld [vmem:[#allocation2 + $0x130] sm:$0xff]
    %v1658 = vld [vmem:[#allocation2 + $0x138] sm:$0xff]
    %v1659 = vld [vmem:[#allocation2 + $0x140] sm:$0xff]
    %v1660 = vld [vmem:[#allocation2 + $0x148] sm:$0xff]
    %v1661 = vld [vmem:[#allocation2 + $0x150] sm:$0xff]
    %v1662 = vld [vmem:[#allocation2 + $0x158] sm:$0xff]
    %v1663 = vld [vmem:[#allocation2 + $0x160] sm:$0xff]
    %v1664 = vld [vmem:[#allocation2 + $0x168] sm:$0xff]
    %v1665 = vld [vmem:[#allocation2 + $0x170] sm:$0xff]
    %v1666 = vld [vmem:[#allocation2 + $0x178] sm:$0xff]
    %v1667 = vld [vmem:[#allocation2 + $0x180] sm:$0xff]
    %v1668 = vld [vmem:[#allocation2 + $0x188] sm:$0xff]
    %v1669 = vld [vmem:[#allocation2 + $0x190] sm:$0xff]
    %v1670 = vld [vmem:[#allocation2 + $0x198] sm:$0xff]
    %v1671 = vld [vmem:[#allocation2 + $0x1a0] sm:$0xff]
    %v1672 = vld [vmem:[#allocation2 + $0x1a8] sm:$0xff]
    %v1673 = vld [vmem:[#allocation2 + $0x1b0] sm:$0xff]
    %v1674 = vld [vmem:[#allocation2 + $0x1b8] sm:$0xff]
    %v1675 = vld [vmem:[#allocation2 + $0x1c0] sm:$0xff]
    %v1676 = vld [vmem:[#allocation2 + $0x1c8] sm:$0xff]
    %v1677 = vld [vmem:[#allocation2 + $0x1d0] sm:$0xff]
    %v1678 = vld [vmem:[#allocation2 + $0x1d8] sm:$0xff]
    %v1679 = vld [vmem:[#allocation2 + $0x1e0] sm:$0xff]
    %v1680 = vld [vmem:[#allocation2 + $0x1e8] sm:$0xff]
    %v1681 = vld [vmem:[#allocation2 + $0x1f0] sm:$0xff]
    %v1682 = vld [vmem:[#allocation2 + $0x1f8] sm:$0xff]
    %v1683 = vld [vmem:[%s2] sm:$0x1]
    %v1685 = vperm.slane %v1683, 0
    %v1687 = vadd.f32 %v1619, %v1685
    %v1688 = vadd.f32 %v1620, %v1685
    %v1689 = vadd.f32 %v1621, %v1685
    %v1690 = vadd.f32 %v1622, %v1685
    %v1691 = vadd.f32 %v1623, %v1685
    %v1692 = vadd.f32 %v1624, %v1685
    %v1693 = vadd.f32 %v1625, %v1685
    %v1694 = vadd.f32 %v1626, %v1685
    %v1695 = vadd.f32 %v1627, %v1685
    %v1696 = vadd.f32 %v1628, %v1685
    %v1697 = vadd.f32 %v1629, %v1685
    %v1698 = vadd.f32 %v1630, %v1685
    %v1699 = vadd.f32 %v1631, %v1685
    %v1700 = vadd.f32 %v1632, %v1685
    %v1701 = vadd.f32 %v1633, %v1685
    %v1702 = vadd.f32 %v1634, %v1685
    %v1703 = vadd.f32 %v1635, %v1685
    %v1704 = vadd.f32 %v1636, %v1685
    %v1705 = vadd.f32 %v1637, %v1685
    %v1706 = vadd.f32 %v1638, %v1685
    %v1707 = vadd.f32 %v1639, %v1685
    %v1708 = vadd.f32 %v1640, %v1685
    %v1709 = vadd.f32 %v1641, %v1685
    %v1710 = vadd.f32 %v1642, %v1685
    %v1711 = vadd.f32 %v1643, %v1685
    %v1712 = vadd.f32 %v1644, %v1685
    %v1713 = vadd.f32 %v1645, %v1685
    %v1714 = vadd.f32 %v1646, %v1685
    %v1715 = vadd.f32 %v1647, %v1685
    %v1716 = vadd.f32 %v1648, %v1685
    %v1717 = vadd.f32 %v1649, %v1685
    %v1718 = vadd.f32 %v1650, %v1685
    %v1719 = vadd.f32 %v1651, %v1685
    %v1720 = vadd.f32 %v1652, %v1685
    %v1721 = vadd.f32 %v1653, %v1685
    %v1722 = vadd.f32 %v1654, %v1685
    %v1723 = vadd.f32 %v1655, %v1685
    %v1724 = vadd.f32 %v1656, %v1685
    %v1725 = vadd.f32 %v1657, %v1685
    %v1726 = vadd.f32 %v1658, %v1685
    %v1727 = vadd.f32 %v1659, %v1685
    %v1728 = vadd.f32 %v1660, %v1685
    %v1729 = vadd.f32 %v1661, %v1685
    %v1730 = vadd.f32 %v1662, %v1685
    %v1731 = vadd.f32 %v1663, %v1685
    %v1732 = vadd.f32 %v1664, %v1685
    %v1733 = vadd.f32 %v1665, %v1685
    %v1734 = vadd.f32 %v1666, %v1685
    %v1735 = vadd.f32 %v1667, %v1685
    %v1736 = vadd.f32 %v1668, %v1685
    %v1737 = vadd.f32 %v1669, %v1685
    %v1738 = vadd.f32 %v1670, %v1685
    %v1739 = vadd.f32 %v1671, %v1685
    %v1740 = vadd.f32 %v1672, %v1685
    %v1741 = vadd.f32 %v1673, %v1685
    %v1742 = vadd.f32 %v1674, %v1685
    %v1743 = vadd.f32 %v1675, %v1685
    %v1744 = vadd.f32 %v1676, %v1685
    %v1745 = vadd.f32 %v1677, %v1685
    %v1746 = vadd.f32 %v1678, %v1685
    %v1747 = vadd.f32 %v1679, %v1685
    %v1748 = vadd.f32 %v1680, %v1685
    %v1749 = vadd.f32 %v1681, %v1685
    %v1750 = vadd.f32 %v1682, %v1685
    %v1751 = vld [vmem:[%s3] sm:$0xff]
    %v1752 = vld [vmem:[%s3 + $0x8] sm:$0xff]
    %v1753 = vld [vmem:[%s3 + $0x10] sm:$0xff]
    %v1754 = vld [vmem:[%s3 + $0x18] sm:$0xff]
    %v1755 = vld [vmem:[%s3 + $0x20] sm:$0xff]
    %v1756 = vld [vmem:[%s3 + $0x28] sm:$0xff]
    %v1757 = vld [vmem:[%s3 + $0x30] sm:$0xff]
    %v1758 = vld [vmem:[%s3 + $0x38] sm:$0xff]
    %v1759 = vld [vmem:[%s3 + $0x40] sm:$0xff]
    %v1760 = vld [vmem:[%s3 + $0x48] sm:$0xff]
    %v1761 = vld [vmem:[%s3 + $0x50] sm:$0xff]
    %v1762 = vld [vmem:[%s3 + $0x58] sm:$0xff]
    %v1763 = vld [vmem:[%s3 + $0x60] sm:$0xff]
    %v1764 = vld [vmem:[%s3 + $0x68] sm:$0xff]
    %v1765 = vld [vmem:[%s3 + $0x70] sm:$0xff]
    %v1766 = vld [vmem:[%s3 + $0x78] sm:$0xff]
    %v1767 = vld [vmem:[%s3 + $0x80] sm:$0xff]
    %v1768 = vld [vmem:[%s3 + $0x88] sm:$0xff]
    %v1769 = vld [vmem:[%s3 + $0x90] sm:$0xff]
    %v1770 = vld [vmem:[%s3 + $0x98] sm:$0xff]
    %v1771 = vld [vmem:[%s3 + $0xa0] sm:$0xff]
    %v1772 = vld [vmem:[%s3 + $0xa8] sm:$0xff]
    %v1773 = vld [vmem:[%s3 + $0xb0] sm:$0xff]
    %v1774 = vld [vmem:[%s3 + $0xb8] sm:$0xff]
    %v1775 = vld [vmem:[%s3 + $0xc0] sm:$0xff]
    %v1776 = vld [vmem:[%s3 + $0xc8] sm:$0xff]
    %v1777 = vld [vmem:[%s3 + $0xd0] sm:$0xff]
    %v1778 = vld [vmem:[%s3 + $0xd8] sm:$0xff]
    %v1779 = vld [vmem:[%s3 + $0xe0] sm:$0xff]
    %v1780 = vld [vmem:[%s3 + $0xe8] sm:$0xff]
    %v1781 = vld [vmem:[%s3 + $0xf0] sm:$0xff]
    %v1782 = vld [vmem:[%s3 + $0xf8] sm:$0xff]
    %v1783 = vld [vmem:[%s3 + $0x100] sm:$0xff]
    %v1784 = vld [vmem:[%s3 + $0x108] sm:$0xff]
    %v1785 = vld [vmem:[%s3 + $0x110] sm:$0xff]
    %v1786 = vld [vmem:[%s3 + $0x118] sm:$0xff]
    %v1787 = vld [vmem:[%s3 + $0x120] sm:$0xff]
    %v1788 = vld [vmem:[%s3 + $0x128] sm:$0xff]
    %v1789 = vld [vmem:[%s3 + $0x130] sm:$0xff]
    %v1790 = vld [vmem:[%s3 + $0x138] sm:$0xff]
    %v1791 = vld [vmem:[%s3 + $0x140] sm:$0xff]
    %v1792 = vld [vmem:[%s3 + $0x148] sm:$0xff]
    %v1793 = vld [vmem:[%s3 + $0x150] sm:$0xff]
    %v1794 = vld [vmem:[%s3 + $0x158] sm:$0xff]
    %v1795 = vld [vmem:[%s3 + $0x160] sm:$0xff]
    %v1796 = vld [vmem:[%s3 + $0x168] sm:$0xff]
    %v1797 = vld [vmem:[%s3 + $0x170] sm:$0xff]
    %v1798 = vld [vmem:[%s3 + $0x178] sm:$0xff]
    %v1799 = vld [vmem:[%s3 + $0x180] sm:$0xff]
    %v1800 = vld [vmem:[%s3 + $0x188] sm:$0xff]
    %v1801 = vld [vmem:[%s3 + $0x190] sm:$0xff]
    %v1802 = vld [vmem:[%s3 + $0x198] sm:$0xff]
    %v1803 = vld [vmem:[%s3 + $0x1a0] sm:$0xff]
    %v1804 = vld [vmem:[%s3 + $0x1a8] sm:$0xff]
    %v1805 = vld [vmem:[%s3 + $0x1b0] sm:$0xff]
    %v1806 = vld [vmem:[%s3 + $0x1b8] sm:$0xff]
    %v1807 = vld [vmem:[%s3 + $0x1c0] sm:$0xff]
    %v1808 = vld [vmem:[%s3 + $0x1c8] sm:$0xff]
    %v1809 = vld [vmem:[%s3 + $0x1d0] sm:$0xff]
    %v1810 = vld [vmem:[%s3 + $0x1d8] sm:$0xff]
    %v1811 = vld [vmem:[%s3 + $0x1e0] sm:$0xff]
    %v1812 = vld [vmem:[%s3 + $0x1e8] sm:$0xff]
    %v1813 = vld [vmem:[%s3 + $0x1f0] sm:$0xff]
    %v1814 = vld [vmem:[%s3 + $0x1f8] sm:$0xff]
    %v1815 = vadd.f32 %v1687, %v1751
    %v1816 = vadd.f32 %v1688, %v1752
    %v1817 = vadd.f32 %v1689, %v1753
    %v1818 = vadd.f32 %v1690, %v1754
    %v1819 = vadd.f32 %v1691, %v1755
    %v1820 = vadd.f32 %v1692, %v1756
    %v1821 = vadd.f32 %v1693, %v1757
    %v1822 = vadd.f32 %v1694, %v1758
    %v1823 = vadd.f32 %v1695, %v1759
    %v1824 = vadd.f32 %v1696, %v1760
    %v1825 = vadd.f32 %v1697, %v1761
    %v1826 = vadd.f32 %v1698, %v1762
    %v1827 = vadd.f32 %v1699, %v1763
    %v1828 = vadd.f32 %v1700, %v1764
    %v1829 = vadd.f32 %v1701, %v1765
    %v1830 = vadd.f32 %v1702, %v1766
    %v1831 = vadd.f32 %v1703, %v1767
    %v1832 = vadd.f32 %v1704, %v1768
    %v1833 = vadd.f32 %v1705, %v1769
    %v1834 = vadd.f32 %v1706, %v1770
    %v1835 = vadd.f32 %v1707, %v1771
    %v1836 = vadd.f32 %v1708, %v1772
    %v1837 = vadd.f32 %v1709, %v1773
    %v1838 = vadd.f32 %v1710, %v1774
    %v1839 = vadd.f32 %v1711, %v1775
    %v1840 = vadd.f32 %v1712, %v1776
    %v1841 = vadd.f32 %v1713, %v1777
    %v1842 = vadd.f32 %v1714, %v1778
    %v1843 = vadd.f32 %v1715, %v1779
    %v1844 = vadd.f32 %v1716, %v1780
    %v1845 = vadd.f32 %v1717, %v1781
    %v1846 = vadd.f32 %v1718, %v1782
    %v1847 = vadd.f32 %v1719, %v1783
    %v1848 = vadd.f32 %v1720, %v1784
    %v1849 = vadd.f32 %v1721, %v1785
    %v1850 = vadd.f32 %v1722, %v1786
    %v1851 = vadd.f32 %v1723, %v1787
    %v1852 = vadd.f32 %v1724, %v1788
    %v1853 = vadd.f32 %v1725, %v1789
    %v1854 = vadd.f32 %v1726, %v1790
    %v1855 = vadd.f32 %v1727, %v1791
    %v1856 = vadd.f32 %v1728, %v1792
    %v1857 = vadd.f32 %v1729, %v1793
    %v1858 = vadd.f32 %v1730, %v1794
    %v1859 = vadd.f32 %v1731, %v1795
    %v1860 = vadd.f32 %v1732, %v1796
    %v1861 = vadd.f32 %v1733, %v1797
    %v1862 = vadd.f32 %v1734, %v1798
    %v1863 = vadd.f32 %v1735, %v1799
    %v1864 = vadd.f32 %v1736, %v1800
    %v1865 = vadd.f32 %v1737, %v1801
    %v1866 = vadd.f32 %v1738, %v1802
    %v1867 = vadd.f32 %v1739, %v1803
    %v1868 = vadd.f32 %v1740, %v1804
    %v1869 = vadd.f32 %v1741, %v1805
    %v1870 = vadd.f32 %v1742, %v1806
    %v1871 = vadd.f32 %v1743, %v1807
    %v1872 = vadd.f32 %v1744, %v1808
    %v1873 = vadd.f32 %v1745, %v1809
    %v1874 = vadd.f32 %v1746, %v1810
    %v1875 = vadd.f32 %v1747, %v1811
    %v1876 = vadd.f32 %v1748, %v1812
    %v1877 = vadd.f32 %v1749, %v1813
    %v1878 = vadd.f32 %v1750, %v1814
    %1879 = vst [vmem:[%s4] sm:$0xff] %v1815
    %1880 = vst [vmem:[%s4 + $0x8] sm:$0xff] %v1816
    %1881 = vst [vmem:[%s4 + $0x10] sm:$0xff] %v1817
    %1882 = vst [vmem:[%s4 + $0x18] sm:$0xff] %v1818
    %1883 = vst [vmem:[%s4 + $0x20] sm:$0xff] %v1819
    %1884 = vst [vmem:[%s4 + $0x28] sm:$0xff] %v1820
    %1885 = vst [vmem:[%s4 + $0x30] sm:$0xff] %v1821
    %1886 = vst [vmem:[%s4 + $0x38] sm:$0xff] %v1822
    %1887 = vst [vmem:[%s4 + $0x40] sm:$0xff] %v1823
    %1888 = vst [vmem:[%s4 + $0x48] sm:$0xff] %v1824
    %1889 = vst [vmem:[%s4 + $0x50] sm:$0xff] %v1825
    %1890 = vst [vmem:[%s4 + $0x58] sm:$0xff] %v1826
    %1891 = vst [vmem:[%s4 + $0x60] sm:$0xff] %v1827
    %1892 = vst [vmem:[%s4 + $0x68] sm:$0xff] %v1828
    %1893 = vst [vmem:[%s4 + $0x70] sm:$0xff] %v1829
    %1894 = vst [vmem:[%s4 + $0x78] sm:$0xff] %v1830
    %1895 = vst [vmem:[%s4 + $0x80] sm:$0xff] %v1831
    %1896 = vst [vmem:[%s4 + $0x88] sm:$0xff] %v1832
    %1897 = vst [vmem:[%s4 + $0x90] sm:$0xff] %v1833
    %1898 = vst [vmem:[%s4 + $0x98] sm:$0xff] %v1834
    %1899 = vst [vmem:[%s4 + $0xa0] sm:$0xff] %v1835
    %1900 = vst [vmem:[%s4 + $0xa8] sm:$0xff] %v1836
    %1901 = vst [vmem:[%s4 + $0xb0] sm:$0xff] %v1837
    %1902 = vst [vmem:[%s4 + $0xb8] sm:$0xff] %v1838
    %1903 = vst [vmem:[%s4 + $0xc0] sm:$0xff] %v1839
    %1904 = vst [vmem:[%s4 + $0xc8] sm:$0xff] %v1840
    %1905 = vst [vmem:[%s4 + $0xd0] sm:$0xff] %v1841
    %1906 = vst [vmem:[%s4 + $0xd8] sm:$0xff] %v1842
    %1907 = vst [vmem:[%s4 + $0xe0] sm:$0xff] %v1843
    %1908 = vst [vmem:[%s4 + $0xe8] sm:$0xff] %v1844
    %1909 = vst [vmem:[%s4 + $0xf0] sm:$0xff] %v1845
    %1910 = vst [vmem:[%s4 + $0xf8] sm:$0xff] %v1846
    %1911 = vst [vmem:[%s4 + $0x100] sm:$0xff] %v1847
    %1912 = vst [vmem:[%s4 + $0x108] sm:$0xff] %v1848
    %1913 = vst [vmem:[%s4 + $0x110] sm:$0xff] %v1849
    %1914 = vst [vmem:[%s4 + $0x118] sm:$0xff] %v1850
    %1915 = vst [vmem:[%s4 + $0x120] sm:$0xff] %v1851
    %1916 = vst [vmem:[%s4 + $0x128] sm:$0xff] %v1852
    %1917 = vst [vmem:[%s4 + $0x130] sm:$0xff] %v1853
    %1918 = vst [vmem:[%s4 + $0x138] sm:$0xff] %v1854
    %1919 = vst [vmem:[%s4 + $0x140] sm:$0xff] %v1855
    %1920 = vst [vmem:[%s4 + $0x148] sm:$0xff] %v1856
    %1921 = vst [vmem:[%s4 + $0x150] sm:$0xff] %v1857
    %1922 = vst [vmem:[%s4 + $0x158] sm:$0xff] %v1858
    %1923 = vst [vmem:[%s4 + $0x160] sm:$0xff] %v1859
    %1924 = vst [vmem:[%s4 + $0x168] sm:$0xff] %v1860
    %1925 = vst [vmem:[%s4 + $0x170] sm:$0xff] %v1861
    %1926 = vst [vmem:[%s4 + $0x178] sm:$0xff] %v1862
    %1927 = vst [vmem:[%s4 + $0x180] sm:$0xff] %v1863
    %1928 = vst [vmem:[%s4 + $0x188] sm:$0xff] %v1864
    %1929 = vst [vmem:[%s4 + $0x190] sm:$0xff] %v1865
    %1930 = vst [vmem:[%s4 + $0x198] sm:$0xff] %v1866
    %1931 = vst [vmem:[%s4 + $0x1a0] sm:$0xff] %v1867
    %1932 = vst [vmem:[%s4 + $0x1a8] sm:$0xff] %v1868
    %1933 = vst [vmem:[%s4 + $0x1b0] sm:$0xff] %v1869
    %1934 = vst [vmem:[%s4 + $0x1b8] sm:$0xff] %v1870
    %1935 = vst [vmem:[%s4 + $0x1c0] sm:$0xff] %v1871
    %1936 = vst [vmem:[%s4 + $0x1c8] sm:$0xff] %v1872
    %1937 = vst [vmem:[%s4 + $0x1d0] sm:$0xff] %v1873
    %1938 = vst [vmem:[%s4 + $0x1d8] sm:$0xff] %v1874
    %1939 = vst [vmem:[%s4 + $0x1e0] sm:$0xff] %v1875
    %1940 = vst [vmem:[%s4 + $0x1e8] sm:$0xff] %v1876
    %1941 = vst [vmem:[%s4 + $0x1f0] sm:$0xff] %v1877
    %1942 = vst [vmem:[%s4 + $0x1f8] sm:$0xff] %v1878
  $region25: #{syn_model_forward.382} parent=0 // pred_fallthru
    _
  // Predicated region
  $region26: #{syn_model_forward.382} parent=0 // pred_check
    _
  $region27: #{syn_model_forward.382} parent=0 // pred_check_branch
    %1944 = sbr.rel (0) target = $region29
  $region28: #{syn_model_forward.382} parent=0 // pred_region
    _
  $region29: #{syn_model_forward.382} parent=0 // pred_fallthru
    _
  // Predicated region
  $region30: #{syn_model_forward.382} parent=0 // pred_check
    _
  $region31: #{syn_model_forward.382} parent=0 // pred_check_branch
    %1946 = sbr.rel (0) target = $region33
  $region32: #{syn_model_forward.382} parent=0 // pred_region
    _
  $region33: #{syn_model_forward.382} parent=0 // pred_fallthru
    _

</llo_original>
